<compile_context>
chip_gen: v6e
topology: v6e:2x2x1
jax: 0.10.0
libtpu: 0.0.40
codegen_flags: <defaults>
</compile_context>

<pallas_src>
import math

import jax
import jax.numpy as jnp
from jax.experimental import pallas as pl
from jax.experimental.pallas import tpu as pltpu


# ----------------------------------------------------------------------------
# Synthetic config (stands in for CFG + BigBirdConfig at small, TPU-friendly
# sizes). NOTE: the original forward hard-codes ".reshape(-1, 768)"; HIDDEN
# plays the role of 768 here.
# ----------------------------------------------------------------------------
class CFG:
    batch_size = 2
    max_option_num = 8
    len_vocab = 64          # vocab for self.vocab_embedding (option tokens)
    num_labels = 4
    dropout = 0.1           # identity at inference


HIDDEN = 128
NUM_HEADS = 4
HEAD_DIM = HIDDEN // NUM_HEADS
FFN_DIM = 4 * HIDDEN
NUM_LAYERS = 2
SEQ_LEN = 128
WORD_VOCAB = 256
TYPE_VOCAB = 2
LN_EPS = 1e-12
WDTYPE = jnp.bfloat16       # matmul-weight storage dtype (f32 accumulation)

# TODO(synk): dropout layers are treated as identity (inference / eval mode).
# TODO(synk): if scaled to real BigBird sizes (S=4096), the in-kernel (S,S)
# score materialization must become a flash-style KV-blocked online softmax.


# ----------------------------------------------------------------------------
# Fused encoder Pallas kernel: one program per batch element.
# ----------------------------------------------------------------------------
def _fused_encoder_kernel(x_ref, bias_ref, eg_ref, eb_ref,
                          wqkv_ref, bqkv_ref, wo_ref, bo_ref,
                          ln1g_ref, ln1b_ref,
                          wff1_ref, bff1_ref, wff2_ref, bff2_ref,
                          ln2g_ref, ln2b_ref,
                          o_ref):
    def layer_norm(v, g, b):
        mu = jnp.mean(v, axis=-1, keepdims=True)
        var = jnp.mean(jnp.square(v - mu), axis=-1, keepdims=True)
        return (v - mu) * jax.lax.rsqrt(var + LN_EPS) * g + b

    scale = 1.0 / math.sqrt(HEAD_DIM)

    x = x_ref[0].astype(jnp.float32)                       # (S, H)
    x = layer_norm(x, eg_ref[...], eb_ref[...])            # embedding LN
    bias = bias_ref[0]                                     # (1, S) key mask bias

    for l in range(NUM_LAYERS):                            # static unroll
        # Fused QKV projection: one (S,H) @ (H,3H) matmul.
        qkv = jnp.dot(x.astype(WDTYPE), wqkv_ref[l],
                      preferred_element_type=jnp.float32) + bqkv_ref[l]   # (S, 3H)

        # Per-head attention, heads looped in-kernel (lane-dense I/O).
        ctx_parts = []
        for h in range(NUM_HEADS):
            lo = h * HEAD_DIM
            q = qkv[:, lo:lo + HEAD_DIM]                                  # (S, dh)
            k = qkv[:, HIDDEN + lo:HIDDEN + lo + HEAD_DIM]                # (S, dh)
            v = qkv[:, 2 * HIDDEN + lo:2 * HIDDEN + lo + HEAD_DIM]        # (S, dh)
            s = jax.lax.dot_general(q, k, (((1,), (1,)), ((), ())),
                                    preferred_element_type=jnp.float32)
            s = s * scale + bias                                          # (S, S)
            m = jnp.max(s, axis=-1, keepdims=True)
            e = jnp.exp(s - m)
            p = e * pl.reciprocal(jnp.sum(e, axis=-1, keepdims=True), approx=True)
            ctx_parts.append(jnp.dot(p.astype(WDTYPE), v.astype(WDTYPE),
                                     preferred_element_type=jnp.float32))
        ctx = jnp.concatenate(ctx_parts, axis=-1)                         # (S, H)

        attn = jnp.dot(ctx.astype(WDTYPE), wo_ref[l],
                       preferred_element_type=jnp.float32) + bo_ref[l]
        x = layer_norm(x + attn, ln1g_ref[l], ln1b_ref[l])

        ff = jax.nn.gelu(jnp.dot(x.astype(WDTYPE), wff1_ref[l],
                                 preferred_element_type=jnp.float32) + bff1_ref[l])
        ff = jnp.dot(ff.astype(WDTYPE), wff2_ref[l],
                     preferred_element_type=jnp.float32) + bff2_ref[l]
        x = layer_norm(x + ff, ln2g_ref[l], ln2b_ref[l])

    o_ref[0] = x.astype(o_ref.dtype)


def _shared_spec(arr):
    nd = arr.ndim
    return pl.BlockSpec(arr.shape, lambda b, _nd=nd: (0,) * _nd)


def fused_encoder(x_emb, mask_bias, p):
    """x_emb: (B,S,H) f32 summed embeddings; mask_bias: (B,1,S) additive bias."""
    B, S, H = x_emb.shape
    shared = [p["emb_ln_g"], p["emb_ln_b"],
              p["wqkv"], p["bqkv"], p["wo"], p["bo"],
              p["ln1_g"], p["ln1_b"],
              p["wff1"], p["bff1"], p["wff2"], p["bff2"],
              p["ln2_g"], p["ln2_b"]]
    in_specs = [pl.BlockSpec((1, S, H), lambda b: (b, 0, 0)),
                pl.BlockSpec((1, 1, S), lambda b: (b, 0, 0))]
    in_specs += [_shared_spec(a) for a in shared]
    return pl.pallas_call(
        _fused_encoder_kernel,
        out_shape=jax.ShapeDtypeStruct((B, S, H), jnp.float32),
        grid_spec=pltpu.PrefetchScalarGridSpec(
            num_scalar_prefetch=0,
            grid=(B,),
            in_specs=in_specs,
            out_specs=pl.BlockSpec((1, S, H), lambda b: (b, 0, 0)),
        ),
        compiler_params=pltpu.CompilerParams(
            dimension_semantics=("parallel",)),   # one batch per TC on v7x
    )(x_emb, mask_bias, *shared)


# ----------------------------------------------------------------------------
# Parameters (deterministic, in-script). Per-layer weights stacked on a
# leading NUM_LAYERS axis so a single pallas_call keeps them VMEM-resident.
# ----------------------------------------------------------------------------
def init_params(key):
    def norm(k, shape, scale=0.02):
        return scale * jax.random.normal(k, shape, dtype=jnp.float32)

    keys = iter(jax.random.split(key, 32))
    L = NUM_LAYERS
    p = {
        "word_emb": norm(next(keys), (WORD_VOCAB, HIDDEN)),
        "pos_emb": norm(next(keys), (SEQ_LEN, HIDDEN)),
        "type_emb": norm(next(keys), (TYPE_VOCAB, HIDDEN)),
        "emb_ln_g": jnp.ones((1, HIDDEN), jnp.float32),
        "emb_ln_b": jnp.zeros((1, HIDDEN), jnp.float32),
        # Fused QKV weight: wq|wk|wv concatenated along the output dim.
        "wqkv": norm(next(keys), (L, HIDDEN, 3 * HIDDEN)).astype(WDTYPE),
        "bqkv": jnp.zeros((L, 1, 3 * HIDDEN), jnp.float32),
        "wo": norm(next(keys), (L, HIDDEN, HIDDEN)).astype(WDTYPE),
        "bo": jnp.zeros((L, 1, HIDDEN), jnp.float32),
        "ln1_g": jnp.ones((L, 1, HIDDEN), jnp.float32),
        "ln1_b": jnp.zeros((L, 1, HIDDEN), jnp.float32),
        "wff1": norm(next(keys), (L, HIDDEN, FFN_DIM)).astype(WDTYPE),
        "bff1": jnp.zeros((L, 1, FFN_DIM), jnp.float32),
        "wff2": norm(next(keys), (L, FFN_DIM, HIDDEN)).astype(WDTYPE),
        "bff2": jnp.zeros((L, 1, HIDDEN), jnp.float32),
        "ln2_g": jnp.ones((L, 1, HIDDEN), jnp.float32),
        "ln2_b": jnp.zeros((L, 1, HIDDEN), jnp.float32),
        "vocab_embedding": norm(next(keys), (CFG.len_vocab, HIDDEN)),
        "lin_head_w": norm(next(keys), (HIDDEN,)),     # nn.Linear(hidden, 1)
        "lin_head_b": jnp.zeros((1,), jnp.float32),
    }
    return p


# ----------------------------------------------------------------------------
# Model forward
# ----------------------------------------------------------------------------
def forward(params, input_ids, attention_mask, token_type_ids,
            options_input, position_input, answers_mask, opt_len, labels=None):
    del opt_len  # passed but unused, matching the reference forward
    batch = min(input_ids.shape[0], CFG.batch_size)

    # Embedding lookups (gathers) stay in XLA; the fused Pallas kernel does
    # the embedding LayerNorm + all encoder layers.
    x = (jnp.take(params["word_emb"], input_ids, axis=0)
         + params["pos_emb"][None, :, :]
         + jnp.take(params["type_emb"], token_type_ids, axis=0))          # (B,S,H)
    mask_bias = ((1.0 - attention_mask.astype(jnp.float32)) * -1e9)[:, None, :]

    seq_out = fused_encoder(x, mask_bias, params)                          # (B,S,H)

    # Post-encoder head in XLA (tiny: ~B*O*4*H MACs). Reproduces:
    # gather -> reshape(-1, "768") -> einsum('abc,ac->abc') -> Dropout(id)
    # -> Linear(H,1) -> view(batch, max_opt, 4).
    pos = jnp.broadcast_to(position_input[:, :, None],
                           (batch, CFG.max_option_num, HIDDEN))
    gathered = jnp.take_along_axis(seq_out, pos, axis=1).reshape(-1, HIDDEN)  # (B*O,H)
    opts = options_input.reshape(-1, 4)                                       # (B*O,4)
    opt_emb = jnp.take(params["vocab_embedding"], opts, axis=0)               # (B*O,4,H)
    hw = gathered * params["lin_head_w"][None, :]                             # (B*O,H)
    logits = jnp.einsum("nkh,nh->nk", opt_emb, hw) + params["lin_head_b"]     # (B*O,4)
    logits = logits.reshape(batch, CFG.max_option_num, 4)

    loss = None
    total_acc = None
    if labels is not None:
        labels_flat = labels.reshape(-1)
        lf = logits.reshape(-1, 4)
        logz = jax.nn.logsumexp(lf, axis=-1)
        picked = jnp.take_along_axis(lf, labels_flat[:, None], axis=-1)[:, 0]
        loss = (logz - picked).reshape(batch, CFG.max_option_num)
        loss = (loss * answers_mask).sum() / answers_mask.sum()
        acc = (jnp.argmax(lf, axis=-1) == labels_flat).astype(jnp.float32)
        acc = acc.reshape(batch, CFG.max_option_num) * answers_mask
        total_acc = acc.sum()
    return loss, logits, total_acc


# ----------------------------------------------------------------------------
# Driver
# ----------------------------------------------------------------------------
if __name__ == "__main__":
    key = jax.random.PRNGKey(0)
    pkey, dkey = jax.random.split(key)
    params = init_params(pkey)

    ks = jax.random.split(dkey, 8)
    B, S, O = CFG.batch_size, SEQ_LEN, CFG.max_option_num
    input_ids = jax.random.randint(ks[0], (B, S), 0, WORD_VOCAB, dtype=jnp.int32)
    attention_mask = jnp.concatenate(
        [jnp.ones((B, S - 16), jnp.int32), jnp.zeros((B, 16), jnp.int32)], axis=1)
    token_type_ids = jnp.zeros((B, S), jnp.int32)
    options_input = jax.random.randint(ks[1], (B, O, 4), 0, CFG.len_vocab, dtype=jnp.int32)
    position_input = jax.random.randint(ks[2], (B, O), 0, S - 16, dtype=jnp.int32)
    answers_mask = (jax.random.uniform(ks[3], (B, O)) > 0.2).astype(jnp.float32)
    answers_mask = answers_mask.at[0, 0].set(1.0)     # guarantee nonzero denominator
    opt_len = jnp.full((B, O), 4, dtype=jnp.int32)
    labels = jax.random.randint(ks[4], (B, O), 0, 4, dtype=jnp.int32)

    fwd = jax.jit(forward)
    loss, logits, total_acc = fwd(params, input_ids, attention_mask,
                                  token_type_ids, options_input,
                                  position_input, answers_mask, opt_len,
                                  labels=labels)
    jax.block_until_ready((loss, logits, total_acc))
    assert logits.shape == (B, O, 4)
    assert bool(jnp.isfinite(loss)) and bool(jnp.isfinite(total_acc))
    print("KERNEL_OK")
</pallas_src>

<mosaic_0001>
module attributes {stable_mosaic.version = 11 : i64} {
  func.func @_fused_encoder_kernel(%arg0: i32, %arg1: memref<1x128x128xf32, #tpu.memory_space<vmem>>, %arg2: memref<1x1x128xf32, #tpu.memory_space<vmem>>, %arg3: memref<1x128xf32, #tpu.memory_space<vmem>>, %arg4: memref<1x128xf32, #tpu.memory_space<vmem>>, %arg5: memref<2x128x384xbf16, #tpu.memory_space<vmem>>, %arg6: memref<2x1x384xf32, #tpu.memory_space<vmem>>, %arg7: memref<2x128x128xbf16, #tpu.memory_space<vmem>>, %arg8: memref<2x1x128xf32, #tpu.memory_space<vmem>>, %arg9: memref<2x1x128xf32, #tpu.memory_space<vmem>>, %arg10: memref<2x1x128xf32, #tpu.memory_space<vmem>>, %arg11: memref<2x128x512xbf16, #tpu.memory_space<vmem>>, %arg12: memref<2x1x512xf32, #tpu.memory_space<vmem>>, %arg13: memref<2x512x128xbf16, #tpu.memory_space<vmem>>, %arg14: memref<2x1x128xf32, #tpu.memory_space<vmem>>, %arg15: memref<2x1x128xf32, #tpu.memory_space<vmem>>, %arg16: memref<2x1x128xf32, #tpu.memory_space<vmem>>, %arg17: memref<1x128x128xf32, #tpu.memory_space<vmem>>) attributes {dimension_semantics = [#tpu.dimension_semantics<parallel>], iteration_bounds = array<i64: 2>, scalar_prefetch = 0 : i64, scratch_operands = 0 : i64, tpu.core_type = #tpu.core_type<tc>, window_params = [{transform_indices = @transform_0, window_bounds = array<i64: 1, 128, 128>}, {transform_indices = @transform_1, window_bounds = array<i64: 1, 1, 128>}, {pipeline_mode = #tpu.pipeline_mode<synchronous>, transform_indices = @transform_2, window_bounds = array<i64: 1, 128>}, {pipeline_mode = #tpu.pipeline_mode<synchronous>, transform_indices = @transform_3, window_bounds = array<i64: 1, 128>}, {pipeline_mode = #tpu.pipeline_mode<synchronous>, transform_indices = @transform_4, window_bounds = array<i64: 2, 128, 384>}, {pipeline_mode = #tpu.pipeline_mode<synchronous>, transform_indices = @transform_5, window_bounds = array<i64: 2, 1, 384>}, {pipeline_mode = #tpu.pipeline_mode<synchronous>, transform_indices = @transform_6, window_bounds = array<i64: 2, 128, 128>}, {pipeline_mode = #tpu.pipeline_mode<synchronous>, transform_indices = @transform_7, window_bounds = array<i64: 2, 1, 128>}, {pipeline_mode = #tpu.pipeline_mode<synchronous>, transform_indices = @transform_8, window_bounds = array<i64: 2, 1, 128>}, {pipeline_mode = #tpu.pipeline_mode<synchronous>, transform_indices = @transform_9, window_bounds = array<i64: 2, 1, 128>}, {pipeline_mode = #tpu.pipeline_mode<synchronous>, transform_indices = @transform_10, window_bounds = array<i64: 2, 128, 512>}, {pipeline_mode = #tpu.pipeline_mode<synchronous>, transform_indices = @transform_11, window_bounds = array<i64: 2, 1, 512>}, {pipeline_mode = #tpu.pipeline_mode<synchronous>, transform_indices = @transform_12, window_bounds = array<i64: 2, 512, 128>}, {pipeline_mode = #tpu.pipeline_mode<synchronous>, transform_indices = @transform_13, window_bounds = array<i64: 2, 1, 128>}, {pipeline_mode = #tpu.pipeline_mode<synchronous>, transform_indices = @transform_14, window_bounds = array<i64: 2, 1, 128>}, {pipeline_mode = #tpu.pipeline_mode<synchronous>, transform_indices = @transform_15, window_bounds = array<i64: 2, 1, 128>}, {transform_indices = @transform_16, window_bounds = array<i64: 1, 128, 128>}]} {
    %c0 = arith.constant 0 : index
    %c0_0 = arith.constant 0 : index
    %c0_1 = arith.constant 0 : index
    %0 = vector.load %arg1[%c0, %c0_0, %c0_1] : memref<1x128x128xf32, #tpu.memory_space<vmem>>, vector<1x128x128xf32>
    %1 = vector.shape_cast %0 : vector<1x128x128xf32> to vector<128x128xf32>
    %c0_2 = arith.constant 0 : index
    %c0_3 = arith.constant 0 : index
    %2 = vector.load %arg3[%c0_2, %c0_3] : memref<1x128xf32, #tpu.memory_space<vmem>>, vector<1x128xf32>
    %c0_4 = arith.constant 0 : index
    %c0_5 = arith.constant 0 : index
    %3 = vector.load %arg4[%c0_4, %c0_5] : memref<1x128xf32, #tpu.memory_space<vmem>>, vector<1x128xf32>
    %cst = arith.constant dense<0.000000e+00> : vector<128xf32>
    %4 = vector.multi_reduction <add>, %1, %cst [1] : vector<128x128xf32> to vector<128xf32>
    %5 = vector.shape_cast %4 : vector<128xf32> to vector<128x1xf32>
    %cst_6 = arith.constant 1.280000e+02 : f32
    %6 = vector.broadcast %cst_6 : f32 to vector<128x1xf32>
    %7 = arith.divf %5, %6 : vector<128x1xf32>
    %8 = vector.broadcast %7 : vector<128x1xf32> to vector<128x128xf32>
    %9 = arith.subf %1, %8 : vector<128x128xf32>
    %10 = arith.mulf %9, %9 : vector<128x128xf32>
    %cst_7 = arith.constant dense<0.000000e+00> : vector<128xf32>
    %11 = vector.multi_reduction <add>, %10, %cst_7 [1] : vector<128x128xf32> to vector<128xf32>
    %12 = vector.shape_cast %11 : vector<128xf32> to vector<128x1xf32>
    %cst_8 = arith.constant 1.280000e+02 : f32
    %13 = vector.broadcast %cst_8 : f32 to vector<128x1xf32>
    %14 = arith.divf %12, %13 : vector<128x1xf32>
    %15 = vector.broadcast %7 : vector<128x1xf32> to vector<128x128xf32>
    %16 = arith.subf %1, %15 : vector<128x128xf32>
    %cst_9 = arith.constant 9.99999996E-13 : f32
    %17 = vector.broadcast %cst_9 : f32 to vector<128x1xf32>
    %18 = arith.addf %14, %17 : vector<128x1xf32>
    %19 = math.rsqrt %18 : vector<128x1xf32>
    %20 = vector.broadcast %19 : vector<128x1xf32> to vector<128x128xf32>
    %21 = arith.mulf %16, %20 : vector<128x128xf32>
    %22 = vector.broadcast %2 : vector<1x128xf32> to vector<128x128xf32>
    %23 = arith.mulf %21, %22 : vector<128x128xf32>
    %24 = vector.broadcast %3 : vector<1x128xf32> to vector<128x128xf32>
    %25 = arith.addf %23, %24 : vector<128x128xf32>
    %c0_10 = arith.constant 0 : index
    %c0_11 = arith.constant 0 : index
    %c0_12 = arith.constant 0 : index
    %26 = vector.load %arg2[%c0_10, %c0_11, %c0_12] : memref<1x1x128xf32, #tpu.memory_space<vmem>>, vector<1x1x128xf32>
    %27 = vector.shape_cast %26 : vector<1x1x128xf32> to vector<1x128xf32>
    %28 = arith.truncf %25 : vector<128x128xf32> to vector<128x128xbf16>
    %c0_13 = arith.constant 0 : index
    %c0_14 = arith.constant 0 : index
    %c0_15 = arith.constant 0 : index
    %29 = vector.load %arg5[%c0_13, %c0_14, %c0_15] : memref<2x128x384xbf16, #tpu.memory_space<vmem>>, vector<1x128x384xbf16>
    %30 = vector.shape_cast %29 : vector<1x128x384xbf16> to vector<128x384xbf16>
    %cst_16 = arith.constant dense<0.000000e+00> : vector<128x384xf32>
    %31 = tpu.matmul %28, %30, %cst_16 {dimension_numbers = #tpu.dot_dimension_numbers<[1], [0], [0], [1], [0, 0, 1, 1], [], []>} : vector<128x128xbf16>, vector<128x384xbf16>, vector<128x384xf32> -> vector<128x384xf32>
    %c0_17 = arith.constant 0 : index
    %c0_18 = arith.constant 0 : index
    %c0_19 = arith.constant 0 : index
    %32 = vector.load %arg6[%c0_17, %c0_18, %c0_19] : memref<2x1x384xf32, #tpu.memory_space<vmem>>, vector<1x1x384xf32>
    %33 = vector.shape_cast %32 : vector<1x1x384xf32> to vector<1x384xf32>
    %34 = vector.broadcast %33 : vector<1x384xf32> to vector<128x384xf32>
    %35 = arith.addf %31, %34 : vector<128x384xf32>
    %36 = vector.extract_strided_slice %35 {offsets = [0, 0], sizes = [128, 32], strides = [1, 1]} : vector<128x384xf32> to vector<128x32xf32>
    %37 = vector.extract_strided_slice %35 {offsets = [0, 128], sizes = [128, 32], strides = [1, 1]} : vector<128x384xf32> to vector<128x32xf32>
    %38 = vector.extract_strided_slice %35 {offsets = [0, 256], sizes = [128, 32], strides = [1, 1]} : vector<128x384xf32> to vector<128x32xf32>
    %cst_20 = arith.constant dense<0.000000e+00> : vector<128x128xf32>
    %39 = tpu.matmul %36, %37, %cst_20 {dimension_numbers = #tpu.dot_dimension_numbers<[1], [1], [0], [0], [0, 0, 1, 0], [], []>} : vector<128x32xf32>, vector<128x32xf32>, vector<128x128xf32> -> vector<128x128xf32>
    %cst_21 = arith.constant 0.176776692 : f32
    %40 = vector.broadcast %cst_21 : f32 to vector<128x128xf32>
    %41 = arith.mulf %39, %40 : vector<128x128xf32>
    %42 = vector.broadcast %27 : vector<1x128xf32> to vector<128x128xf32>
    %43 = arith.addf %41, %42 : vector<128x128xf32>
    %cst_22 = arith.constant dense<0xFF800000> : vector<128xf32>
    %44 = vector.multi_reduction <maximumf>, %43, %cst_22 [1] : vector<128x128xf32> to vector<128xf32>
    %45 = vector.shape_cast %44 : vector<128xf32> to vector<128x1xf32>
    %46 = vector.broadcast %45 : vector<128x1xf32> to vector<128x128xf32>
    %47 = arith.subf %43, %46 : vector<128x128xf32>
    %48 = math.exp %47 : vector<128x128xf32>
    %cst_23 = arith.constant dense<0.000000e+00> : vector<128xf32>
    %49 = vector.multi_reduction <add>, %48, %cst_23 [1] : vector<128x128xf32> to vector<128xf32>
    %50 = vector.shape_cast %49 : vector<128xf32> to vector<128x1xf32>
    %51 = tpu.reciprocal %50 {approx = true} : vector<128x1xf32> -> vector<128x1xf32>
    %52 = vector.broadcast %51 : vector<128x1xf32> to vector<128x128xf32>
    %53 = arith.mulf %48, %52 : vector<128x128xf32>
    %54 = arith.truncf %53 : vector<128x128xf32> to vector<128x128xbf16>
    %55 = arith.truncf %38 : vector<128x32xf32> to vector<128x32xbf16>
    %cst_24 = arith.constant dense<0.000000e+00> : vector<128x32xf32>
    %56 = tpu.matmul %54, %55, %cst_24 {dimension_numbers = #tpu.dot_dimension_numbers<[1], [0], [0], [1], [0, 0, 1, 1], [], []>} : vector<128x128xbf16>, vector<128x32xbf16>, vector<128x32xf32> -> vector<128x32xf32>
    %57 = vector.extract_strided_slice %35 {offsets = [0, 32], sizes = [128, 32], strides = [1, 1]} : vector<128x384xf32> to vector<128x32xf32>
    %58 = vector.extract_strided_slice %35 {offsets = [0, 160], sizes = [128, 32], strides = [1, 1]} : vector<128x384xf32> to vector<128x32xf32>
    %59 = vector.extract_strided_slice %35 {offsets = [0, 288], sizes = [128, 32], strides = [1, 1]} : vector<128x384xf32> to vector<128x32xf32>
    %cst_25 = arith.constant dense<0.000000e+00> : vector<128x128xf32>
    %60 = tpu.matmul %57, %58, %cst_25 {dimension_numbers = #tpu.dot_dimension_numbers<[1], [1], [0], [0], [0, 0, 1, 0], [], []>} : vector<128x32xf32>, vector<128x32xf32>, vector<128x128xf32> -> vector<128x128xf32>
    %cst_26 = arith.constant 0.176776692 : f32
    %61 = vector.broadcast %cst_26 : f32 to vector<128x128xf32>
    %62 = arith.mulf %60, %61 : vector<128x128xf32>
    %63 = vector.broadcast %27 : vector<1x128xf32> to vector<128x128xf32>
    %64 = arith.addf %62, %63 : vector<128x128xf32>
    %cst_27 = arith.constant dense<0xFF800000> : vector<128xf32>
    %65 = vector.multi_reduction <maximumf>, %64, %cst_27 [1] : vector<128x128xf32> to vector<128xf32>
    %66 = vector.shape_cast %65 : vector<128xf32> to vector<128x1xf32>
    %67 = vector.broadcast %66 : vector<128x1xf32> to vector<128x128xf32>
    %68 = arith.subf %64, %67 : vector<128x128xf32>
    %69 = math.exp %68 : vector<128x128xf32>
    %cst_28 = arith.constant dense<0.000000e+00> : vector<128xf32>
    %70 = vector.multi_reduction <add>, %69, %cst_28 [1] : vector<128x128xf32> to vector<128xf32>
    %71 = vector.shape_cast %70 : vector<128xf32> to vector<128x1xf32>
    %72 = tpu.reciprocal %71 {approx = true} : vector<128x1xf32> -> vector<128x1xf32>
    %73 = vector.broadcast %72 : vector<128x1xf32> to vector<128x128xf32>
    %74 = arith.mulf %69, %73 : vector<128x128xf32>
    %75 = arith.truncf %74 : vector<128x128xf32> to vector<128x128xbf16>
    %76 = arith.truncf %59 : vector<128x32xf32> to vector<128x32xbf16>
    %cst_29 = arith.constant dense<0.000000e+00> : vector<128x32xf32>
    %77 = tpu.matmul %75, %76, %cst_29 {dimension_numbers = #tpu.dot_dimension_numbers<[1], [0], [0], [1], [0, 0, 1, 1], [], []>} : vector<128x128xbf16>, vector<128x32xbf16>, vector<128x32xf32> -> vector<128x32xf32>
    %78 = vector.extract_strided_slice %35 {offsets = [0, 64], sizes = [128, 32], strides = [1, 1]} : vector<128x384xf32> to vector<128x32xf32>
    %79 = vector.extract_strided_slice %35 {offsets = [0, 192], sizes = [128, 32], strides = [1, 1]} : vector<128x384xf32> to vector<128x32xf32>
    %80 = vector.extract_strided_slice %35 {offsets = [0, 320], sizes = [128, 32], strides = [1, 1]} : vector<128x384xf32> to vector<128x32xf32>
    %cst_30 = arith.constant dense<0.000000e+00> : vector<128x128xf32>
    %81 = tpu.matmul %78, %79, %cst_30 {dimension_numbers = #tpu.dot_dimension_numbers<[1], [1], [0], [0], [0, 0, 1, 0], [], []>} : vector<128x32xf32>, vector<128x32xf32>, vector<128x128xf32> -> vector<128x128xf32>
    %cst_31 = arith.constant 0.176776692 : f32
    %82 = vector.broadcast %cst_31 : f32 to vector<128x128xf32>
    %83 = arith.mulf %81, %82 : vector<128x128xf32>
    %84 = vector.broadcast %27 : vector<1x128xf32> to vector<128x128xf32>
    %85 = arith.addf %83, %84 : vector<128x128xf32>
    %cst_32 = arith.constant dense<0xFF800000> : vector<128xf32>
    %86 = vector.multi_reduction <maximumf>, %85, %cst_32 [1] : vector<128x128xf32> to vector<128xf32>
    %87 = vector.shape_cast %86 : vector<128xf32> to vector<128x1xf32>
    %88 = vector.broadcast %87 : vector<128x1xf32> to vector<128x128xf32>
    %89 = arith.subf %85, %88 : vector<128x128xf32>
    %90 = math.exp %89 : vector<128x128xf32>
    %cst_33 = arith.constant dense<0.000000e+00> : vector<128xf32>
    %91 = vector.multi_reduction <add>, %90, %cst_33 [1] : vector<128x128xf32> to vector<128xf32>
    %92 = vector.shape_cast %91 : vector<128xf32> to vector<128x1xf32>
    %93 = tpu.reciprocal %92 {approx = true} : vector<128x1xf32> -> vector<128x1xf32>
    %94 = vector.broadcast %93 : vector<128x1xf32> to vector<128x128xf32>
    %95 = arith.mulf %90, %94 : vector<128x128xf32>
    %96 = arith.truncf %95 : vector<128x128xf32> to vector<128x128xbf16>
    %97 = arith.truncf %80 : vector<128x32xf32> to vector<128x32xbf16>
    %cst_34 = arith.constant dense<0.000000e+00> : vector<128x32xf32>
    %98 = tpu.matmul %96, %97, %cst_34 {dimension_numbers = #tpu.dot_dimension_numbers<[1], [0], [0], [1], [0, 0, 1, 1], [], []>} : vector<128x128xbf16>, vector<128x32xbf16>, vector<128x32xf32> -> vector<128x32xf32>
    %99 = vector.extract_strided_slice %35 {offsets = [0, 96], sizes = [128, 32], strides = [1, 1]} : vector<128x384xf32> to vector<128x32xf32>
    %100 = vector.extract_strided_slice %35 {offsets = [0, 224], sizes = [128, 32], strides = [1, 1]} : vector<128x384xf32> to vector<128x32xf32>
    %101 = vector.extract_strided_slice %35 {offsets = [0, 352], sizes = [128, 32], strides = [1, 1]} : vector<128x384xf32> to vector<128x32xf32>
    %cst_35 = arith.constant dense<0.000000e+00> : vector<128x128xf32>
    %102 = tpu.matmul %99, %100, %cst_35 {dimension_numbers = #tpu.dot_dimension_numbers<[1], [1], [0], [0], [0, 0, 1, 0], [], []>} : vector<128x32xf32>, vector<128x32xf32>, vector<128x128xf32> -> vector<128x128xf32>
    %cst_36 = arith.constant 0.176776692 : f32
    %103 = vector.broadcast %cst_36 : f32 to vector<128x128xf32>
    %104 = arith.mulf %102, %103 : vector<128x128xf32>
    %105 = vector.broadcast %27 : vector<1x128xf32> to vector<128x128xf32>
    %106 = arith.addf %104, %105 : vector<128x128xf32>
    %cst_37 = arith.constant dense<0xFF800000> : vector<128xf32>
    %107 = vector.multi_reduction <maximumf>, %106, %cst_37 [1] : vector<128x128xf32> to vector<128xf32>
    %108 = vector.shape_cast %107 : vector<128xf32> to vector<128x1xf32>
    %109 = vector.broadcast %108 : vector<128x1xf32> to vector<128x128xf32>
    %110 = arith.subf %106, %109 : vector<128x128xf32>
    %111 = math.exp %110 : vector<128x128xf32>
    %cst_38 = arith.constant dense<0.000000e+00> : vector<128xf32>
    %112 = vector.multi_reduction <add>, %111, %cst_38 [1] : vector<128x128xf32> to vector<128xf32>
    %113 = vector.shape_cast %112 : vector<128xf32> to vector<128x1xf32>
    %114 = tpu.reciprocal %113 {approx = true} : vector<128x1xf32> -> vector<128x1xf32>
    %115 = vector.broadcast %114 : vector<128x1xf32> to vector<128x128xf32>
    %116 = arith.mulf %111, %115 : vector<128x128xf32>
    %117 = arith.truncf %116 : vector<128x128xf32> to vector<128x128xbf16>
    %118 = arith.truncf %101 : vector<128x32xf32> to vector<128x32xbf16>
    %cst_39 = arith.constant dense<0.000000e+00> : vector<128x32xf32>
    %119 = tpu.matmul %117, %118, %cst_39 {dimension_numbers = #tpu.dot_dimension_numbers<[1], [0], [0], [1], [0, 0, 1, 1], [], []>} : vector<128x128xbf16>, vector<128x32xbf16>, vector<128x32xf32> -> vector<128x32xf32>
    %120 = tpu.concatenate %56, %77, %98, %119 in 1 : vector<128x32xf32>, vector<128x32xf32>, vector<128x32xf32>, vector<128x32xf32> -> vector<128x128xf32>
    %121 = arith.truncf %120 : vector<128x128xf32> to vector<128x128xbf16>
    %c0_40 = arith.constant 0 : index
    %c0_41 = arith.constant 0 : index
    %c0_42 = arith.constant 0 : index
    %122 = vector.load %arg7[%c0_40, %c0_41, %c0_42] : memref<2x128x128xbf16, #tpu.memory_space<vmem>>, vector<1x128x128xbf16>
    %123 = vector.shape_cast %122 : vector<1x128x128xbf16> to vector<128x128xbf16>
    %cst_43 = arith.constant dense<0.000000e+00> : vector<128x128xf32>
    %124 = tpu.matmul %121, %123, %cst_43 {dimension_numbers = #tpu.dot_dimension_numbers<[1], [0], [0], [1], [0, 0, 1, 1], [], []>} : vector<128x128xbf16>, vector<128x128xbf16>, vector<128x128xf32> -> vector<128x128xf32>
    %c0_44 = arith.constant 0 : index
    %c0_45 = arith.constant 0 : index
    %c0_46 = arith.constant 0 : index
    %125 = vector.load %arg8[%c0_44, %c0_45, %c0_46] : memref<2x1x128xf32, #tpu.memory_space<vmem>>, vector<1x1x128xf32>
    %126 = vector.shape_cast %125 : vector<1x1x128xf32> to vector<1x128xf32>
    %127 = vector.broadcast %126 : vector<1x128xf32> to vector<128x128xf32>
    %128 = arith.addf %124, %127 : vector<128x128xf32>
    %129 = arith.addf %25, %128 : vector<128x128xf32>
    %c0_47 = arith.constant 0 : index
    %c0_48 = arith.constant 0 : index
    %c0_49 = arith.constant 0 : index
    %130 = vector.load %arg9[%c0_47, %c0_48, %c0_49] : memref<2x1x128xf32, #tpu.memory_space<vmem>>, vector<1x1x128xf32>
    %131 = vector.shape_cast %130 : vector<1x1x128xf32> to vector<1x128xf32>
    %c0_50 = arith.constant 0 : index
    %c0_51 = arith.constant 0 : index
    %c0_52 = arith.constant 0 : index
    %132 = vector.load %arg10[%c0_50, %c0_51, %c0_52] : memref<2x1x128xf32, #tpu.memory_space<vmem>>, vector<1x1x128xf32>
    %133 = vector.shape_cast %132 : vector<1x1x128xf32> to vector<1x128xf32>
    %cst_53 = arith.constant dense<0.000000e+00> : vector<128xf32>
    %134 = vector.multi_reduction <add>, %129, %cst_53 [1] : vector<128x128xf32> to vector<128xf32>
    %135 = vector.shape_cast %134 : vector<128xf32> to vector<128x1xf32>
    %cst_54 = arith.constant 1.280000e+02 : f32
    %136 = vector.broadcast %cst_54 : f32 to vector<128x1xf32>
    %137 = arith.divf %135, %136 : vector<128x1xf32>
    %138 = vector.broadcast %137 : vector<128x1xf32> to vector<128x128xf32>
    %139 = arith.subf %129, %138 : vector<128x128xf32>
    %140 = arith.mulf %139, %139 : vector<128x128xf32>
    %cst_55 = arith.constant dense<0.000000e+00> : vector<128xf32>
    %141 = vector.multi_reduction <add>, %140, %cst_55 [1] : vector<128x128xf32> to vector<128xf32>
    %142 = vector.shape_cast %141 : vector<128xf32> to vector<128x1xf32>
    %cst_56 = arith.constant 1.280000e+02 : f32
    %143 = vector.broadcast %cst_56 : f32 to vector<128x1xf32>
    %144 = arith.divf %142, %143 : vector<128x1xf32>
    %145 = vector.broadcast %137 : vector<128x1xf32> to vector<128x128xf32>
    %146 = arith.subf %129, %145 : vector<128x128xf32>
    %cst_57 = arith.constant 9.99999996E-13 : f32
    %147 = vector.broadcast %cst_57 : f32 to vector<128x1xf32>
    %148 = arith.addf %144, %147 : vector<128x1xf32>
    %149 = math.rsqrt %148 : vector<128x1xf32>
    %150 = vector.broadcast %149 : vector<128x1xf32> to vector<128x128xf32>
    %151 = arith.mulf %146, %150 : vector<128x128xf32>
    %152 = vector.broadcast %131 : vector<1x128xf32> to vector<128x128xf32>
    %153 = arith.mulf %151, %152 : vector<128x128xf32>
    %154 = vector.broadcast %133 : vector<1x128xf32> to vector<128x128xf32>
    %155 = arith.addf %153, %154 : vector<128x128xf32>
    %156 = arith.truncf %155 : vector<128x128xf32> to vector<128x128xbf16>
    %c0_58 = arith.constant 0 : index
    %c0_59 = arith.constant 0 : index
    %c0_60 = arith.constant 0 : index
    %157 = vector.load %arg11[%c0_58, %c0_59, %c0_60] : memref<2x128x512xbf16, #tpu.memory_space<vmem>>, vector<1x128x512xbf16>
    %158 = vector.shape_cast %157 : vector<1x128x512xbf16> to vector<128x512xbf16>
    %cst_61 = arith.constant dense<0.000000e+00> : vector<128x512xf32>
    %159 = tpu.matmul %156, %158, %cst_61 {dimension_numbers = #tpu.dot_dimension_numbers<[1], [0], [0], [1], [0, 0, 1, 1], [], []>} : vector<128x128xbf16>, vector<128x512xbf16>, vector<128x512xf32> -> vector<128x512xf32>
    %c0_62 = arith.constant 0 : index
    %c0_63 = arith.constant 0 : index
    %c0_64 = arith.constant 0 : index
    %160 = vector.load %arg12[%c0_62, %c0_63, %c0_64] : memref<2x1x512xf32, #tpu.memory_space<vmem>>, vector<1x1x512xf32>
    %161 = vector.shape_cast %160 : vector<1x1x512xf32> to vector<1x512xf32>
    %162 = vector.broadcast %161 : vector<1x512xf32> to vector<128x512xf32>
    %163 = arith.addf %159, %162 : vector<128x512xf32>
    %164 = arith.mulf %163, %163 : vector<128x512xf32>
    %165 = arith.mulf %163, %164 : vector<128x512xf32>
    %cst_65 = arith.constant 4.471500e-02 : f32
    %166 = vector.broadcast %cst_65 : f32 to vector<128x512xf32>
    %167 = arith.mulf %166, %165 : vector<128x512xf32>
    %168 = arith.addf %163, %167 : vector<128x512xf32>
    %cst_66 = arith.constant 0.797884583 : f32
    %169 = vector.broadcast %cst_66 : f32 to vector<128x512xf32>
    %170 = arith.mulf %169, %168 : vector<128x512xf32>
    %171 = math.tanh %170 : vector<128x512xf32>
    %cst_67 = arith.constant 1.000000e+00 : f32
    %172 = vector.broadcast %cst_67 : f32 to vector<128x512xf32>
    %173 = arith.addf %172, %171 : vector<128x512xf32>
    %cst_68 = arith.constant 5.000000e-01 : f32
    %174 = vector.broadcast %cst_68 : f32 to vector<128x512xf32>
    %175 = arith.mulf %174, %173 : vector<128x512xf32>
    %176 = arith.mulf %163, %175 : vector<128x512xf32>
    %177 = arith.truncf %176 : vector<128x512xf32> to vector<128x512xbf16>
    %c0_69 = arith.constant 0 : index
    %c0_70 = arith.constant 0 : index
    %c0_71 = arith.constant 0 : index
    %178 = vector.load %arg13[%c0_69, %c0_70, %c0_71] : memref<2x512x128xbf16, #tpu.memory_space<vmem>>, vector<1x512x128xbf16>
    %179 = vector.shape_cast %178 : vector<1x512x128xbf16> to vector<512x128xbf16>
    %cst_72 = arith.constant dense<0.000000e+00> : vector<128x128xf32>
    %180 = tpu.matmul %177, %179, %cst_72 {dimension_numbers = #tpu.dot_dimension_numbers<[1], [0], [0], [1], [0, 0, 1, 1], [], []>} : vector<128x512xbf16>, vector<512x128xbf16>, vector<128x128xf32> -> vector<128x128xf32>
    %c0_73 = arith.constant 0 : index
    %c0_74 = arith.constant 0 : index
    %c0_75 = arith.constant 0 : index
    %181 = vector.load %arg14[%c0_73, %c0_74, %c0_75] : memref<2x1x128xf32, #tpu.memory_space<vmem>>, vector<1x1x128xf32>
    %182 = vector.shape_cast %181 : vector<1x1x128xf32> to vector<1x128xf32>
    %183 = vector.broadcast %182 : vector<1x128xf32> to vector<128x128xf32>
    %184 = arith.addf %180, %183 : vector<128x128xf32>
    %185 = arith.addf %155, %184 : vector<128x128xf32>
    %c0_76 = arith.constant 0 : index
    %c0_77 = arith.constant 0 : index
    %c0_78 = arith.constant 0 : index
    %186 = vector.load %arg15[%c0_76, %c0_77, %c0_78] : memref<2x1x128xf32, #tpu.memory_space<vmem>>, vector<1x1x128xf32>
    %187 = vector.shape_cast %186 : vector<1x1x128xf32> to vector<1x128xf32>
    %c0_79 = arith.constant 0 : index
    %c0_80 = arith.constant 0 : index
    %c0_81 = arith.constant 0 : index
    %188 = vector.load %arg16[%c0_79, %c0_80, %c0_81] : memref<2x1x128xf32, #tpu.memory_space<vmem>>, vector<1x1x128xf32>
    %189 = vector.shape_cast %188 : vector<1x1x128xf32> to vector<1x128xf32>
    %cst_82 = arith.constant dense<0.000000e+00> : vector<128xf32>
    %190 = vector.multi_reduction <add>, %185, %cst_82 [1] : vector<128x128xf32> to vector<128xf32>
    %191 = vector.shape_cast %190 : vector<128xf32> to vector<128x1xf32>
    %cst_83 = arith.constant 1.280000e+02 : f32
    %192 = vector.broadcast %cst_83 : f32 to vector<128x1xf32>
    %193 = arith.divf %191, %192 : vector<128x1xf32>
    %194 = vector.broadcast %193 : vector<128x1xf32> to vector<128x128xf32>
    %195 = arith.subf %185, %194 : vector<128x128xf32>
    %196 = arith.mulf %195, %195 : vector<128x128xf32>
    %cst_84 = arith.constant dense<0.000000e+00> : vector<128xf32>
    %197 = vector.multi_reduction <add>, %196, %cst_84 [1] : vector<128x128xf32> to vector<128xf32>
    %198 = vector.shape_cast %197 : vector<128xf32> to vector<128x1xf32>
    %cst_85 = arith.constant 1.280000e+02 : f32
    %199 = vector.broadcast %cst_85 : f32 to vector<128x1xf32>
    %200 = arith.divf %198, %199 : vector<128x1xf32>
    %201 = vector.broadcast %193 : vector<128x1xf32> to vector<128x128xf32>
    %202 = arith.subf %185, %201 : vector<128x128xf32>
    %cst_86 = arith.constant 9.99999996E-13 : f32
    %203 = vector.broadcast %cst_86 : f32 to vector<128x1xf32>
    %204 = arith.addf %200, %203 : vector<128x1xf32>
    %205 = math.rsqrt %204 : vector<128x1xf32>
    %206 = vector.broadcast %205 : vector<128x1xf32> to vector<128x128xf32>
    %207 = arith.mulf %202, %206 : vector<128x128xf32>
    %208 = vector.broadcast %187 : vector<1x128xf32> to vector<128x128xf32>
    %209 = arith.mulf %207, %208 : vector<128x128xf32>
    %210 = vector.broadcast %189 : vector<1x128xf32> to vector<128x128xf32>
    %211 = arith.addf %209, %210 : vector<128x128xf32>
    %212 = arith.truncf %211 : vector<128x128xf32> to vector<128x128xbf16>
    %c1 = arith.constant 1 : index
    %c0_87 = arith.constant 0 : index
    %c0_88 = arith.constant 0 : index
    %213 = vector.load %arg5[%c1, %c0_87, %c0_88] : memref<2x128x384xbf16, #tpu.memory_space<vmem>>, vector<1x128x384xbf16>
    %214 = vector.shape_cast %213 : vector<1x128x384xbf16> to vector<128x384xbf16>
    %cst_89 = arith.constant dense<0.000000e+00> : vector<128x384xf32>
    %215 = tpu.matmul %212, %214, %cst_89 {dimension_numbers = #tpu.dot_dimension_numbers<[1], [0], [0], [1], [0, 0, 1, 1], [], []>} : vector<128x128xbf16>, vector<128x384xbf16>, vector<128x384xf32> -> vector<128x384xf32>
    %c1_90 = arith.constant 1 : index
    %c0_91 = arith.constant 0 : index
    %c0_92 = arith.constant 0 : index
    %216 = vector.load %arg6[%c1_90, %c0_91, %c0_92] : memref<2x1x384xf32, #tpu.memory_space<vmem>>, vector<1x1x384xf32>
    %217 = vector.shape_cast %216 : vector<1x1x384xf32> to vector<1x384xf32>
    %218 = vector.broadcast %217 : vector<1x384xf32> to vector<128x384xf32>
    %219 = arith.addf %215, %218 : vector<128x384xf32>
    %220 = vector.extract_strided_slice %219 {offsets = [0, 0], sizes = [128, 32], strides = [1, 1]} : vector<128x384xf32> to vector<128x32xf32>
    %221 = vector.extract_strided_slice %219 {offsets = [0, 128], sizes = [128, 32], strides = [1, 1]} : vector<128x384xf32> to vector<128x32xf32>
    %222 = vector.extract_strided_slice %219 {offsets = [0, 256], sizes = [128, 32], strides = [1, 1]} : vector<128x384xf32> to vector<128x32xf32>
    %cst_93 = arith.constant dense<0.000000e+00> : vector<128x128xf32>
    %223 = tpu.matmul %220, %221, %cst_93 {dimension_numbers = #tpu.dot_dimension_numbers<[1], [1], [0], [0], [0, 0, 1, 0], [], []>} : vector<128x32xf32>, vector<128x32xf32>, vector<128x128xf32> -> vector<128x128xf32>
    %cst_94 = arith.constant 0.176776692 : f32
    %224 = vector.broadcast %cst_94 : f32 to vector<128x128xf32>
    %225 = arith.mulf %223, %224 : vector<128x128xf32>
    %226 = vector.broadcast %27 : vector<1x128xf32> to vector<128x128xf32>
    %227 = arith.addf %225, %226 : vector<128x128xf32>
    %cst_95 = arith.constant dense<0xFF800000> : vector<128xf32>
    %228 = vector.multi_reduction <maximumf>, %227, %cst_95 [1] : vector<128x128xf32> to vector<128xf32>
    %229 = vector.shape_cast %228 : vector<128xf32> to vector<128x1xf32>
    %230 = vector.broadcast %229 : vector<128x1xf32> to vector<128x128xf32>
    %231 = arith.subf %227, %230 : vector<128x128xf32>
    %232 = math.exp %231 : vector<128x128xf32>
    %cst_96 = arith.constant dense<0.000000e+00> : vector<128xf32>
    %233 = vector.multi_reduction <add>, %232, %cst_96 [1] : vector<128x128xf32> to vector<128xf32>
    %234 = vector.shape_cast %233 : vector<128xf32> to vector<128x1xf32>
    %235 = tpu.reciprocal %234 {approx = true} : vector<128x1xf32> -> vector<128x1xf32>
    %236 = vector.broadcast %235 : vector<128x1xf32> to vector<128x128xf32>
    %237 = arith.mulf %232, %236 : vector<128x128xf32>
    %238 = arith.truncf %237 : vector<128x128xf32> to vector<128x128xbf16>
    %239 = arith.truncf %222 : vector<128x32xf32> to vector<128x32xbf16>
    %cst_97 = arith.constant dense<0.000000e+00> : vector<128x32xf32>
    %240 = tpu.matmul %238, %239, %cst_97 {dimension_numbers = #tpu.dot_dimension_numbers<[1], [0], [0], [1], [0, 0, 1, 1], [], []>} : vector<128x128xbf16>, vector<128x32xbf16>, vector<128x32xf32> -> vector<128x32xf32>
    %241 = vector.extract_strided_slice %219 {offsets = [0, 32], sizes = [128, 32], strides = [1, 1]} : vector<128x384xf32> to vector<128x32xf32>
    %242 = vector.extract_strided_slice %219 {offsets = [0, 160], sizes = [128, 32], strides = [1, 1]} : vector<128x384xf32> to vector<128x32xf32>
    %243 = vector.extract_strided_slice %219 {offsets = [0, 288], sizes = [128, 32], strides = [1, 1]} : vector<128x384xf32> to vector<128x32xf32>
    %cst_98 = arith.constant dense<0.000000e+00> : vector<128x128xf32>
    %244 = tpu.matmul %241, %242, %cst_98 {dimension_numbers = #tpu.dot_dimension_numbers<[1], [1], [0], [0], [0, 0, 1, 0], [], []>} : vector<128x32xf32>, vector<128x32xf32>, vector<128x128xf32> -> vector<128x128xf32>
    %cst_99 = arith.constant 0.176776692 : f32
    %245 = vector.broadcast %cst_99 : f32 to vector<128x128xf32>
    %246 = arith.mulf %244, %245 : vector<128x128xf32>
    %247 = vector.broadcast %27 : vector<1x128xf32> to vector<128x128xf32>
    %248 = arith.addf %246, %247 : vector<128x128xf32>
    %cst_100 = arith.constant dense<0xFF800000> : vector<128xf32>
    %249 = vector.multi_reduction <maximumf>, %248, %cst_100 [1] : vector<128x128xf32> to vector<128xf32>
    %250 = vector.shape_cast %249 : vector<128xf32> to vector<128x1xf32>
    %251 = vector.broadcast %250 : vector<128x1xf32> to vector<128x128xf32>
    %252 = arith.subf %248, %251 : vector<128x128xf32>
    %253 = math.exp %252 : vector<128x128xf32>
    %cst_101 = arith.constant dense<0.000000e+00> : vector<128xf32>
    %254 = vector.multi_reduction <add>, %253, %cst_101 [1] : vector<128x128xf32> to vector<128xf32>
    %255 = vector.shape_cast %254 : vector<128xf32> to vector<128x1xf32>
    %256 = tpu.reciprocal %255 {approx = true} : vector<128x1xf32> -> vector<128x1xf32>
    %257 = vector.broadcast %256 : vector<128x1xf32> to vector<128x128xf32>
    %258 = arith.mulf %253, %257 : vector<128x128xf32>
    %259 = arith.truncf %258 : vector<128x128xf32> to vector<128x128xbf16>
    %260 = arith.truncf %243 : vector<128x32xf32> to vector<128x32xbf16>
    %cst_102 = arith.constant dense<0.000000e+00> : vector<128x32xf32>
    %261 = tpu.matmul %259, %260, %cst_102 {dimension_numbers = #tpu.dot_dimension_numbers<[1], [0], [0], [1], [0, 0, 1, 1], [], []>} : vector<128x128xbf16>, vector<128x32xbf16>, vector<128x32xf32> -> vector<128x32xf32>
    %262 = vector.extract_strided_slice %219 {offsets = [0, 64], sizes = [128, 32], strides = [1, 1]} : vector<128x384xf32> to vector<128x32xf32>
    %263 = vector.extract_strided_slice %219 {offsets = [0, 192], sizes = [128, 32], strides = [1, 1]} : vector<128x384xf32> to vector<128x32xf32>
    %264 = vector.extract_strided_slice %219 {offsets = [0, 320], sizes = [128, 32], strides = [1, 1]} : vector<128x384xf32> to vector<128x32xf32>
    %cst_103 = arith.constant dense<0.000000e+00> : vector<128x128xf32>
    %265 = tpu.matmul %262, %263, %cst_103 {dimension_numbers = #tpu.dot_dimension_numbers<[1], [1], [0], [0], [0, 0, 1, 0], [], []>} : vector<128x32xf32>, vector<128x32xf32>, vector<128x128xf32> -> vector<128x128xf32>
    %cst_104 = arith.constant 0.176776692 : f32
    %266 = vector.broadcast %cst_104 : f32 to vector<128x128xf32>
    %267 = arith.mulf %265, %266 : vector<128x128xf32>
    %268 = vector.broadcast %27 : vector<1x128xf32> to vector<128x128xf32>
    %269 = arith.addf %267, %268 : vector<128x128xf32>
    %cst_105 = arith.constant dense<0xFF800000> : vector<128xf32>
    %270 = vector.multi_reduction <maximumf>, %269, %cst_105 [1] : vector<128x128xf32> to vector<128xf32>
    %271 = vector.shape_cast %270 : vector<128xf32> to vector<128x1xf32>
    %272 = vector.broadcast %271 : vector<128x1xf32> to vector<128x128xf32>
    %273 = arith.subf %269, %272 : vector<128x128xf32>
    %274 = math.exp %273 : vector<128x128xf32>
    %cst_106 = arith.constant dense<0.000000e+00> : vector<128xf32>
    %275 = vector.multi_reduction <add>, %274, %cst_106 [1] : vector<128x128xf32> to vector<128xf32>
    %276 = vector.shape_cast %275 : vector<128xf32> to vector<128x1xf32>
    %277 = tpu.reciprocal %276 {approx = true} : vector<128x1xf32> -> vector<128x1xf32>
    %278 = vector.broadcast %277 : vector<128x1xf32> to vector<128x128xf32>
    %279 = arith.mulf %274, %278 : vector<128x128xf32>
    %280 = arith.truncf %279 : vector<128x128xf32> to vector<128x128xbf16>
    %281 = arith.truncf %264 : vector<128x32xf32> to vector<128x32xbf16>
    %cst_107 = arith.constant dense<0.000000e+00> : vector<128x32xf32>
    %282 = tpu.matmul %280, %281, %cst_107 {dimension_numbers = #tpu.dot_dimension_numbers<[1], [0], [0], [1], [0, 0, 1, 1], [], []>} : vector<128x128xbf16>, vector<128x32xbf16>, vector<128x32xf32> -> vector<128x32xf32>
    %283 = vector.extract_strided_slice %219 {offsets = [0, 96], sizes = [128, 32], strides = [1, 1]} : vector<128x384xf32> to vector<128x32xf32>
    %284 = vector.extract_strided_slice %219 {offsets = [0, 224], sizes = [128, 32], strides = [1, 1]} : vector<128x384xf32> to vector<128x32xf32>
    %285 = vector.extract_strided_slice %219 {offsets = [0, 352], sizes = [128, 32], strides = [1, 1]} : vector<128x384xf32> to vector<128x32xf32>
    %cst_108 = arith.constant dense<0.000000e+00> : vector<128x128xf32>
    %286 = tpu.matmul %283, %284, %cst_108 {dimension_numbers = #tpu.dot_dimension_numbers<[1], [1], [0], [0], [0, 0, 1, 0], [], []>} : vector<128x32xf32>, vector<128x32xf32>, vector<128x128xf32> -> vector<128x128xf32>
    %cst_109 = arith.constant 0.176776692 : f32
    %287 = vector.broadcast %cst_109 : f32 to vector<128x128xf32>
    %288 = arith.mulf %286, %287 : vector<128x128xf32>
    %289 = vector.broadcast %27 : vector<1x128xf32> to vector<128x128xf32>
    %290 = arith.addf %288, %289 : vector<128x128xf32>
    %cst_110 = arith.constant dense<0xFF800000> : vector<128xf32>
    %291 = vector.multi_reduction <maximumf>, %290, %cst_110 [1] : vector<128x128xf32> to vector<128xf32>
    %292 = vector.shape_cast %291 : vector<128xf32> to vector<128x1xf32>
    %293 = vector.broadcast %292 : vector<128x1xf32> to vector<128x128xf32>
    %294 = arith.subf %290, %293 : vector<128x128xf32>
    %295 = math.exp %294 : vector<128x128xf32>
    %cst_111 = arith.constant dense<0.000000e+00> : vector<128xf32>
    %296 = vector.multi_reduction <add>, %295, %cst_111 [1] : vector<128x128xf32> to vector<128xf32>
    %297 = vector.shape_cast %296 : vector<128xf32> to vector<128x1xf32>
    %298 = tpu.reciprocal %297 {approx = true} : vector<128x1xf32> -> vector<128x1xf32>
    %299 = vector.broadcast %298 : vector<128x1xf32> to vector<128x128xf32>
    %300 = arith.mulf %295, %299 : vector<128x128xf32>
    %301 = arith.truncf %300 : vector<128x128xf32> to vector<128x128xbf16>
    %302 = arith.truncf %285 : vector<128x32xf32> to vector<128x32xbf16>
    %cst_112 = arith.constant dense<0.000000e+00> : vector<128x32xf32>
    %303 = tpu.matmul %301, %302, %cst_112 {dimension_numbers = #tpu.dot_dimension_numbers<[1], [0], [0], [1], [0, 0, 1, 1], [], []>} : vector<128x128xbf16>, vector<128x32xbf16>, vector<128x32xf32> -> vector<128x32xf32>
    %304 = tpu.concatenate %240, %261, %282, %303 in 1 : vector<128x32xf32>, vector<128x32xf32>, vector<128x32xf32>, vector<128x32xf32> -> vector<128x128xf32>
    %305 = arith.truncf %304 : vector<128x128xf32> to vector<128x128xbf16>
    %c1_113 = arith.constant 1 : index
    %c0_114 = arith.constant 0 : index
    %c0_115 = arith.constant 0 : index
    %306 = vector.load %arg7[%c1_113, %c0_114, %c0_115] : memref<2x128x128xbf16, #tpu.memory_space<vmem>>, vector<1x128x128xbf16>
    %307 = vector.shape_cast %306 : vector<1x128x128xbf16> to vector<128x128xbf16>
    %cst_116 = arith.constant dense<0.000000e+00> : vector<128x128xf32>
    %308 = tpu.matmul %305, %307, %cst_116 {dimension_numbers = #tpu.dot_dimension_numbers<[1], [0], [0], [1], [0, 0, 1, 1], [], []>} : vector<128x128xbf16>, vector<128x128xbf16>, vector<128x128xf32> -> vector<128x128xf32>
    %c1_117 = arith.constant 1 : index
    %c0_118 = arith.constant 0 : index
    %c0_119 = arith.constant 0 : index
    %309 = vector.load %arg8[%c1_117, %c0_118, %c0_119] : memref<2x1x128xf32, #tpu.memory_space<vmem>>, vector<1x1x128xf32>
    %310 = vector.shape_cast %309 : vector<1x1x128xf32> to vector<1x128xf32>
    %311 = vector.broadcast %310 : vector<1x128xf32> to vector<128x128xf32>
    %312 = arith.addf %308, %311 : vector<128x128xf32>
    %313 = arith.addf %211, %312 : vector<128x128xf32>
    %c1_120 = arith.constant 1 : index
    %c0_121 = arith.constant 0 : index
    %c0_122 = arith.constant 0 : index
    %314 = vector.load %arg9[%c1_120, %c0_121, %c0_122] : memref<2x1x128xf32, #tpu.memory_space<vmem>>, vector<1x1x128xf32>
    %315 = vector.shape_cast %314 : vector<1x1x128xf32> to vector<1x128xf32>
    %c1_123 = arith.constant 1 : index
    %c0_124 = arith.constant 0 : index
    %c0_125 = arith.constant 0 : index
    %316 = vector.load %arg10[%c1_123, %c0_124, %c0_125] : memref<2x1x128xf32, #tpu.memory_space<vmem>>, vector<1x1x128xf32>
    %317 = vector.shape_cast %316 : vector<1x1x128xf32> to vector<1x128xf32>
    %cst_126 = arith.constant dense<0.000000e+00> : vector<128xf32>
    %318 = vector.multi_reduction <add>, %313, %cst_126 [1] : vector<128x128xf32> to vector<128xf32>
    %319 = vector.shape_cast %318 : vector<128xf32> to vector<128x1xf32>
    %cst_127 = arith.constant 1.280000e+02 : f32
    %320 = vector.broadcast %cst_127 : f32 to vector<128x1xf32>
    %321 = arith.divf %319, %320 : vector<128x1xf32>
    %322 = vector.broadcast %321 : vector<128x1xf32> to vector<128x128xf32>
    %323 = arith.subf %313, %322 : vector<128x128xf32>
    %324 = arith.mulf %323, %323 : vector<128x128xf32>
    %cst_128 = arith.constant dense<0.000000e+00> : vector<128xf32>
    %325 = vector.multi_reduction <add>, %324, %cst_128 [1] : vector<128x128xf32> to vector<128xf32>
    %326 = vector.shape_cast %325 : vector<128xf32> to vector<128x1xf32>
    %cst_129 = arith.constant 1.280000e+02 : f32
    %327 = vector.broadcast %cst_129 : f32 to vector<128x1xf32>
    %328 = arith.divf %326, %327 : vector<128x1xf32>
    %329 = vector.broadcast %321 : vector<128x1xf32> to vector<128x128xf32>
    %330 = arith.subf %313, %329 : vector<128x128xf32>
    %cst_130 = arith.constant 9.99999996E-13 : f32
    %331 = vector.broadcast %cst_130 : f32 to vector<128x1xf32>
    %332 = arith.addf %328, %331 : vector<128x1xf32>
    %333 = math.rsqrt %332 : vector<128x1xf32>
    %334 = vector.broadcast %333 : vector<128x1xf32> to vector<128x128xf32>
    %335 = arith.mulf %330, %334 : vector<128x128xf32>
    %336 = vector.broadcast %315 : vector<1x128xf32> to vector<128x128xf32>
    %337 = arith.mulf %335, %336 : vector<128x128xf32>
    %338 = vector.broadcast %317 : vector<1x128xf32> to vector<128x128xf32>
    %339 = arith.addf %337, %338 : vector<128x128xf32>
    %340 = arith.truncf %339 : vector<128x128xf32> to vector<128x128xbf16>
    %c1_131 = arith.constant 1 : index
    %c0_132 = arith.constant 0 : index
    %c0_133 = arith.constant 0 : index
    %341 = vector.load %arg11[%c1_131, %c0_132, %c0_133] : memref<2x128x512xbf16, #tpu.memory_space<vmem>>, vector<1x128x512xbf16>
    %342 = vector.shape_cast %341 : vector<1x128x512xbf16> to vector<128x512xbf16>
    %cst_134 = arith.constant dense<0.000000e+00> : vector<128x512xf32>
    %343 = tpu.matmul %340, %342, %cst_134 {dimension_numbers = #tpu.dot_dimension_numbers<[1], [0], [0], [1], [0, 0, 1, 1], [], []>} : vector<128x128xbf16>, vector<128x512xbf16>, vector<128x512xf32> -> vector<128x512xf32>
    %c1_135 = arith.constant 1 : index
    %c0_136 = arith.constant 0 : index
    %c0_137 = arith.constant 0 : index
    %344 = vector.load %arg12[%c1_135, %c0_136, %c0_137] : memref<2x1x512xf32, #tpu.memory_space<vmem>>, vector<1x1x512xf32>
    %345 = vector.shape_cast %344 : vector<1x1x512xf32> to vector<1x512xf32>
    %346 = vector.broadcast %345 : vector<1x512xf32> to vector<128x512xf32>
    %347 = arith.addf %343, %346 : vector<128x512xf32>
    %348 = arith.mulf %347, %347 : vector<128x512xf32>
    %349 = arith.mulf %347, %348 : vector<128x512xf32>
    %cst_138 = arith.constant 4.471500e-02 : f32
    %350 = vector.broadcast %cst_138 : f32 to vector<128x512xf32>
    %351 = arith.mulf %350, %349 : vector<128x512xf32>
    %352 = arith.addf %347, %351 : vector<128x512xf32>
    %cst_139 = arith.constant 0.797884583 : f32
    %353 = vector.broadcast %cst_139 : f32 to vector<128x512xf32>
    %354 = arith.mulf %353, %352 : vector<128x512xf32>
    %355 = math.tanh %354 : vector<128x512xf32>
    %cst_140 = arith.constant 1.000000e+00 : f32
    %356 = vector.broadcast %cst_140 : f32 to vector<128x512xf32>
    %357 = arith.addf %356, %355 : vector<128x512xf32>
    %cst_141 = arith.constant 5.000000e-01 : f32
    %358 = vector.broadcast %cst_141 : f32 to vector<128x512xf32>
    %359 = arith.mulf %358, %357 : vector<128x512xf32>
    %360 = arith.mulf %347, %359 : vector<128x512xf32>
    %361 = arith.truncf %360 : vector<128x512xf32> to vector<128x512xbf16>
    %c1_142 = arith.constant 1 : index
    %c0_143 = arith.constant 0 : index
    %c0_144 = arith.constant 0 : index
    %362 = vector.load %arg13[%c1_142, %c0_143, %c0_144] : memref<2x512x128xbf16, #tpu.memory_space<vmem>>, vector<1x512x128xbf16>
    %363 = vector.shape_cast %362 : vector<1x512x128xbf16> to vector<512x128xbf16>
    %cst_145 = arith.constant dense<0.000000e+00> : vector<128x128xf32>
    %364 = tpu.matmul %361, %363, %cst_145 {dimension_numbers = #tpu.dot_dimension_numbers<[1], [0], [0], [1], [0, 0, 1, 1], [], []>} : vector<128x512xbf16>, vector<512x128xbf16>, vector<128x128xf32> -> vector<128x128xf32>
    %c1_146 = arith.constant 1 : index
    %c0_147 = arith.constant 0 : index
    %c0_148 = arith.constant 0 : index
    %365 = vector.load %arg14[%c1_146, %c0_147, %c0_148] : memref<2x1x128xf32, #tpu.memory_space<vmem>>, vector<1x1x128xf32>
    %366 = vector.shape_cast %365 : vector<1x1x128xf32> to vector<1x128xf32>
    %367 = vector.broadcast %366 : vector<1x128xf32> to vector<128x128xf32>
    %368 = arith.addf %364, %367 : vector<128x128xf32>
    %369 = arith.addf %339, %368 : vector<128x128xf32>
    %c1_149 = arith.constant 1 : index
    %c0_150 = arith.constant 0 : index
    %c0_151 = arith.constant 0 : index
    %370 = vector.load %arg15[%c1_149, %c0_150, %c0_151] : memref<2x1x128xf32, #tpu.memory_space<vmem>>, vector<1x1x128xf32>
    %371 = vector.shape_cast %370 : vector<1x1x128xf32> to vector<1x128xf32>
    %c1_152 = arith.constant 1 : index
    %c0_153 = arith.constant 0 : index
    %c0_154 = arith.constant 0 : index
    %372 = vector.load %arg16[%c1_152, %c0_153, %c0_154] : memref<2x1x128xf32, #tpu.memory_space<vmem>>, vector<1x1x128xf32>
    %373 = vector.shape_cast %372 : vector<1x1x128xf32> to vector<1x128xf32>
    %cst_155 = arith.constant dense<0.000000e+00> : vector<128xf32>
    %374 = vector.multi_reduction <add>, %369, %cst_155 [1] : vector<128x128xf32> to vector<128xf32>
    %375 = vector.shape_cast %374 : vector<128xf32> to vector<128x1xf32>
    %cst_156 = arith.constant 1.280000e+02 : f32
    %376 = vector.broadcast %cst_156 : f32 to vector<128x1xf32>
    %377 = arith.divf %375, %376 : vector<128x1xf32>
    %378 = vector.broadcast %377 : vector<128x1xf32> to vector<128x128xf32>
    %379 = arith.subf %369, %378 : vector<128x128xf32>
    %380 = arith.mulf %379, %379 : vector<128x128xf32>
    %cst_157 = arith.constant dense<0.000000e+00> : vector<128xf32>
    %381 = vector.multi_reduction <add>, %380, %cst_157 [1] : vector<128x128xf32> to vector<128xf32>
    %382 = vector.shape_cast %381 : vector<128xf32> to vector<128x1xf32>
    %cst_158 = arith.constant 1.280000e+02 : f32
    %383 = vector.broadcast %cst_158 : f32 to vector<128x1xf32>
    %384 = arith.divf %382, %383 : vector<128x1xf32>
    %385 = vector.broadcast %377 : vector<128x1xf32> to vector<128x128xf32>
    %386 = arith.subf %369, %385 : vector<128x128xf32>
    %cst_159 = arith.constant 9.99999996E-13 : f32
    %387 = vector.broadcast %cst_159 : f32 to vector<128x1xf32>
    %388 = arith.addf %384, %387 : vector<128x1xf32>
    %389 = math.rsqrt %388 : vector<128x1xf32>
    %390 = vector.broadcast %389 : vector<128x1xf32> to vector<128x128xf32>
    %391 = arith.mulf %386, %390 : vector<128x128xf32>
    %392 = vector.broadcast %371 : vector<1x128xf32> to vector<128x128xf32>
    %393 = arith.mulf %391, %392 : vector<128x128xf32>
    %394 = vector.broadcast %373 : vector<1x128xf32> to vector<128x128xf32>
    %395 = arith.addf %393, %394 : vector<128x128xf32>
    %c0_160 = arith.constant 0 : index
    %c0_161 = arith.constant 0 : index
    %c0_162 = arith.constant 0 : index
    %396 = vector.load %arg17[%c0_160, %c0_161, %c0_162] : memref<1x128x128xf32, #tpu.memory_space<vmem>>, vector<1x128x128xf32>
    %397 = vector.shape_cast %396 : vector<1x128x128xf32> to vector<128x128xf32>
    %398 = vector.shape_cast %395 : vector<128x128xf32> to vector<1x128x128xf32>
    tpu.vector_store %arg17[%c0_160, %c0_161, %c0_162], %398 {strides = array<i32>} : memref<1x128x128xf32, #tpu.memory_space<vmem>>, vector<1x128x128xf32>,
    return
  }
  func.func @transform_0(%arg0: i32) -> (i32, i32, i32) {
    %c0_i32 = arith.constant 0 : i32
    %c0_i32_0 = arith.constant 0 : i32
    %c0_i32_1 = arith.constant 0 : i32
    return %arg0, %c0_i32, %c0_i32_0 : i32, i32, i32
  }
  func.func @transform_1(%arg0: i32) -> (i32, i32, i32) {
    %c0_i32 = arith.constant 0 : i32
    %c0_i32_0 = arith.constant 0 : i32
    %c0_i32_1 = arith.constant 0 : i32
    return %arg0, %c0_i32, %c0_i32_0 : i32, i32, i32
  }
  func.func @transform_2(%arg0: i32) -> (i32, i32) {
    %c0_i32 = arith.constant 0 : i32
    %c0_i32_0 = arith.constant 0 : i32
    %c0_i32_1 = arith.constant 0 : i32
    return %c0_i32, %c0_i32_0 : i32, i32
  }
  func.func @transform_3(%arg0: i32) -> (i32, i32) {
    %c0_i32 = arith.constant 0 : i32
    %c0_i32_0 = arith.constant 0 : i32
    %c0_i32_1 = arith.constant 0 : i32
    return %c0_i32, %c0_i32_0 : i32, i32
  }
  func.func @transform_4(%arg0: i32) -> (i32, i32, i32) {
    %c0_i32 = arith.constant 0 : i32
    %c0_i32_0 = arith.constant 0 : i32
    %c0_i32_1 = arith.constant 0 : i32
    %c0_i32_2 = arith.constant 0 : i32
    return %c0_i32, %c0_i32_0, %c0_i32_1 : i32, i32, i32
  }
  func.func @transform_5(%arg0: i32) -> (i32, i32, i32) {
    %c0_i32 = arith.constant 0 : i32
    %c0_i32_0 = arith.constant 0 : i32
    %c0_i32_1 = arith.constant 0 : i32
    %c0_i32_2 = arith.constant 0 : i32
    return %c0_i32, %c0_i32_0, %c0_i32_1 : i32, i32, i32
  }
  func.func @transform_6(%arg0: i32) -> (i32, i32, i32) {
    %c0_i32 = arith.constant 0 : i32
    %c0_i32_0 = arith.constant 0 : i32
    %c0_i32_1 = arith.constant 0 : i32
    %c0_i32_2 = arith.constant 0 : i32
    return %c0_i32, %c0_i32_0, %c0_i32_1 : i32, i32, i32
  }
  func.func @transform_7(%arg0: i32) -> (i32, i32, i32) {
    %c0_i32 = arith.constant 0 : i32
    %c0_i32_0 = arith.constant 0 : i32
    %c0_i32_1 = arith.constant 0 : i32
    %c0_i32_2 = arith.constant 0 : i32
    return %c0_i32, %c0_i32_0, %c0_i32_1 : i32, i32, i32
  }
  func.func @transform_8(%arg0: i32) -> (i32, i32, i32) {
    %c0_i32 = arith.constant 0 : i32
    %c0_i32_0 = arith.constant 0 : i32
    %c0_i32_1 = arith.constant 0 : i32
    %c0_i32_2 = arith.constant 0 : i32
    return %c0_i32, %c0_i32_0, %c0_i32_1 : i32, i32, i32
  }
  func.func @transform_9(%arg0: i32) -> (i32, i32, i32) {
    %c0_i32 = arith.constant 0 : i32
    %c0_i32_0 = arith.constant 0 : i32
    %c0_i32_1 = arith.constant 0 : i32
    %c0_i32_2 = arith.constant 0 : i32
    return %c0_i32, %c0_i32_0, %c0_i32_1 : i32, i32, i32
  }
  func.func @transform_10(%arg0: i32) -> (i32, i32, i32) {
    %c0_i32 = arith.constant 0 : i32
    %c0_i32_0 = arith.constant 0 : i32
    %c0_i32_1 = arith.constant 0 : i32
    %c0_i32_2 = arith.constant 0 : i32
    return %c0_i32, %c0_i32_0, %c0_i32_1 : i32, i32, i32
  }
  func.func @transform_11(%arg0: i32) -> (i32, i32, i32) {
    %c0_i32 = arith.constant 0 : i32
    %c0_i32_0 = arith.constant 0 : i32
    %c0_i32_1 = arith.constant 0 : i32
    %c0_i32_2 = arith.constant 0 : i32
    return %c0_i32, %c0_i32_0, %c0_i32_1 : i32, i32, i32
  }
  func.func @transform_12(%arg0: i32) -> (i32, i32, i32) {
    %c0_i32 = arith.constant 0 : i32
    %c0_i32_0 = arith.constant 0 : i32
    %c0_i32_1 = arith.constant 0 : i32
    %c0_i32_2 = arith.constant 0 : i32
    return %c0_i32, %c0_i32_0, %c0_i32_1 : i32, i32, i32
  }
  func.func @transform_13(%arg0: i32) -> (i32, i32, i32) {
    %c0_i32 = arith.constant 0 : i32
    %c0_i32_0 = arith.constant 0 : i32
    %c0_i32_1 = arith.constant 0 : i32
    %c0_i32_2 = arith.constant 0 : i32
    return %c0_i32, %c0_i32_0, %c0_i32_1 : i32, i32, i32
  }
  func.func @transform_14(%arg0: i32) -> (i32, i32, i32) {
    %c0_i32 = arith.constant 0 : i32
    %c0_i32_0 = arith.constant 0 : i32
    %c0_i32_1 = arith.constant 0 : i32
    %c0_i32_2 = arith.constant 0 : i32
    return %c0_i32, %c0_i32_0, %c0_i32_1 : i32, i32, i32
  }
  func.func @transform_15(%arg0: i32) -> (i32, i32, i32) {
    %c0_i32 = arith.constant 0 : i32
    %c0_i32_0 = arith.constant 0 : i32
    %c0_i32_1 = arith.constant 0 : i32
    %c0_i32_2 = arith.constant 0 : i32
    return %c0_i32, %c0_i32_0, %c0_i32_1 : i32, i32, i32
  }
  func.func @transform_16(%arg0: i32) -> (i32, i32, i32) {
    %c0_i32 = arith.constant 0 : i32
    %c0_i32_0 = arith.constant 0 : i32
    %c0_i32_1 = arith.constant 0 : i32
    return %arg0, %c0_i32, %c0_i32_0 : i32, i32, i32
  }
}

</mosaic_0001>

<llo_original>
// kernel: eq.3
$region0: #{eq.3}
  #allocation0 [shape = 's32[1]{0}', space=sflag, size = 0x4, scoped, tag = 'scoped memory for eq.3']
  %s0 = inlined_call_operand.vmem [shape: s32[16], index: 0, kind: input, shape index: {}]
  %s1 = inlined_call_operand.vmem [shape: s32[16], index: 1, kind: input, shape index: {}]
  %s2 = inlined_call_operand.vmem [shape: pred[16], index: 2, kind: output, shape index: {}]
  %v3 = vld [vmem:[%s0] sm:$0x1]
  %v4 = vld [vmem:[%s1] sm:$0x1]
  %5 = xla_tuple %v3, %v4
  %6 = xla_tuple %5
  %vm7 = vcmp.eq.s32.totalorder %v3, %v4
  %v8 = vsel %vm7, 1, 0
  %9 = xla_tuple %v8
  %v10 = vpack.c.b16 0, %v8
  %v11 = vpack.c.b8 0, %v10
  %s13 = ssub.s32 2, 1
  %14 = vst [vmem:[%s2] sm:%s13] %v11

// kernel: forward.1
$region0: #{forward.1}
  #allocation0 [shape = 'u32[]', space=smem, size = 0x4, offset = 0x4, fixed_abs, tag = 'smem constant byte address 0x4 - core index']
  #allocation1 [shape = 'u32[144,128]{1,0:T(1,128)}', space=vmem, size = 0x12000, scoped, tag = 'internal scratch']
  %s0 = inlined_call_operand.vmem [shape: f32[2,128,128], index: 0, kind: input, shape index: {}]
  %s1 = inlined_call_operand.vmem [shape: f32[2,1,128], index: 1, kind: input, shape index: {}]
  %s2 = inlined_call_operand.vmem [shape: f32[1,128], index: 2, kind: input, shape index: {}]
  %s3 = inlined_call_operand.vmem [shape: f32[1,128], index: 3, kind: input, shape index: {}]
  %s4 = inlined_call_operand.vmem [shape: bf16[2,128,384], index: 4, kind: input, shape index: {}]
  %s5 = inlined_call_operand.vmem [shape: f32[2,1,384], index: 5, kind: input, shape index: {}]
  %s6 = inlined_call_operand.vmem [shape: bf16[2,128,128], index: 6, kind: input, shape index: {}]
  %s7 = inlined_call_operand.vmem [shape: f32[2,1,128], index: 7, kind: input, shape index: {}]
  %s8 = inlined_call_operand.vmem [shape: f32[2,1,128], index: 8, kind: input, shape index: {}]
  %s9 = inlined_call_operand.vmem [shape: f32[2,1,128], index: 9, kind: input, shape index: {}]
  %s10 = inlined_call_operand.vmem [shape: bf16[2,128,512], index: 10, kind: input, shape index: {}]
  %s11 = inlined_call_operand.vmem [shape: f32[2,1,512], index: 11, kind: input, shape index: {}]
  %s12 = inlined_call_operand.vmem [shape: bf16[2,512,128], index: 12, kind: input, shape index: {}]
  %s13 = inlined_call_operand.vmem [shape: f32[2,1,128], index: 13, kind: input, shape index: {}]
  %s14 = inlined_call_operand.vmem [shape: f32[2,1,128], index: 14, kind: input, shape index: {}]
  %s15 = inlined_call_operand.vmem [shape: f32[2,1,128], index: 15, kind: input, shape index: {}]
  %s16 = inlined_call_operand.vmem [shape: f32[2,128,128], index: 16, kind: output, shape index: {}]
  %s17 = sld [smem:[#allocation0]]
  $region97: #{forward.1} parent=0
    _
  %s19 = ssub.s32 1, %s17
  %s20 = scalar_select 0, %s19, %s17
  loop: start=0, step=1, limit=4
  $region2: #{forward.1} parent=0 // loop_pre_header
    _
  $region3: #{forward.1} parent=0 // loop_header
    %s22 = sphi 0, %s26
    %p23 = scmp.ge.s32.totalorder %s22, 4
    %s32 = sphi 0, %s34
    %s35 = sphi 0, %s32
    %s36 = sphi 0, %s35
    %s52 = sphi 0, %s36
    %s58 = sphi 0, %s60
    %s61 = sphi 0, %s58
    %s62 = sphi 0, %s61
    %s78 = sphi 0, %s62
    %s82 = sphi 0, %s82
    %s84 = sphi 0, %s82
    %s85 = sphi 0, %s84
    %s99 = sphi 0, %s85
    %s103 = sphi 0, %s103
    %s105 = sphi 0, %s103
    %s106 = sphi 0, %s105
    %s120 = sphi 0, %s106
    %s124 = sphi 0, %s124
    %s126 = sphi 0, %s124
    %s127 = sphi 0, %s126
    %s141 = sphi 0, %s127
    %s145 = sphi 0, %s145
    %s147 = sphi 0, %s145
    %s148 = sphi 0, %s147
    %s162 = sphi 0, %s148
    %s166 = sphi 0, %s166
    %s168 = sphi 0, %s166
    %s169 = sphi 0, %s168
    %s183 = sphi 0, %s169
    %s187 = sphi 0, %s187
    %s189 = sphi 0, %s187
    %s190 = sphi 0, %s189
    %s204 = sphi 0, %s190
    %s208 = sphi 0, %s208
    %s210 = sphi 0, %s208
    %s211 = sphi 0, %s210
    %s225 = sphi 0, %s211
    %s229 = sphi 0, %s229
    %s231 = sphi 0, %s229
    %s232 = sphi 0, %s231
    %s246 = sphi 0, %s232
    %s250 = sphi 0, %s250
    %s252 = sphi 0, %s250
    %s253 = sphi 0, %s252
    %s267 = sphi 0, %s253
    %s271 = sphi 0, %s271
    %s273 = sphi 0, %s271
    %s274 = sphi 0, %s273
    %s288 = sphi 0, %s274
    %s292 = sphi 0, %s292
    %s294 = sphi 0, %s292
    %s295 = sphi 0, %s294
    %s309 = sphi 0, %s295
    %s313 = sphi 0, %s313
    %s315 = sphi 0, %s313
    %s316 = sphi 0, %s315
    %s330 = sphi 0, %s316
    %s334 = sphi 0, %s334
    %s336 = sphi 0, %s334
    %s337 = sphi 0, %s336
    %s351 = sphi 0, %s337
    %s355 = sphi 0, %s355
    %s357 = sphi 0, %s355
    %s358 = sphi 0, %s357
    %s372 = sphi 0, %s358
    %s378 = sphi 0, %s380
    %s381 = sphi 0, %s378
    %s382 = sphi 0, %s381
    %s398 = sphi 0, %s382
  $region4: #{forward.1} parent=0 // loop_header_branch
    %25 = sbr.rel (%p23) target = $region8
  $region5: #{forward.1} parent=0 // loop_body
    %s27 = ssub.s32 %s22, 1
    %s28 = ssub.s32 %s22, 2
    %s29 = sadd.s32 %s22, 1
    %s30 = ssub.s32 %s22, %s29
    %p31 = scmp.eq.s32.totalorder %s30, 0
    %s33 = sadd.s32 %s32, 1
    %s34 = scalar_select %p31, %s32, %s33
    %p37 = pneg %p31
    %p38 = scmp.eq.s32.totalorder %s22, 1
    %p39 = por %p37, %p38
    %p40 = scmp.ne.s32.totalorder %s32, %s35
    %p41 = scmp.eq.s32.totalorder %s22, 0
    %p42 = por %p40, %p41
    %p43 = scmp.ne.s32.totalorder %s32, %s35
    %p44 = scmp.eq.s32.totalorder %s27, 1
    %p45 = por %p43, %p44
    %p46 = scmp.ne.s32.totalorder %s35, %s36
    %p47 = scmp.eq.s32.totalorder %s27, 0
    %p48 = por %p46, %p47
    %p49 = scmp.ne.s32.totalorder %s35, %s36
    %p50 = scmp.eq.s32.totalorder %s28, 1
    %p51 = por %p49, %p50
    %p53 = scmp.ne.s32.totalorder %s36, %s52
    %p54 = scmp.eq.s32.totalorder %s28, 0
    %p55 = por %p53, %p54
    %s56 = ssub.s32 %s22, %s29
    %p57 = scmp.eq.s32.totalorder %s56, 0
    %s59 = sadd.s32 %s58, 1
    %s60 = scalar_select %p57, %s58, %s59
    %p63 = pneg %p57
    %p64 = scmp.eq.s32.totalorder %s22, 1
    %p65 = por %p63, %p64
    %p66 = scmp.ne.s32.totalorder %s58, %s61
    %p67 = scmp.eq.s32.totalorder %s22, 0
    %p68 = por %p66, %p67
    %p69 = scmp.ne.s32.totalorder %s58, %s61
    %p70 = scmp.eq.s32.totalorder %s27, 1
    %p71 = por %p69, %p70
    %p72 = scmp.ne.s32.totalorder %s61, %s62
    %p73 = scmp.eq.s32.totalorder %s27, 0
    %p74 = por %p72, %p73
    %p75 = scmp.ne.s32.totalorder %s61, %s62
    %p76 = scmp.eq.s32.totalorder %s28, 1
    %p77 = por %p75, %p76
    %p79 = scmp.ne.s32.totalorder %s62, %s78
    %p80 = scmp.eq.s32.totalorder %s28, 0
    %p81 = por %p79, %p80
    %s83 = sadd.s32 %s82, 1
    %p86 = scmp.eq.s32.totalorder %s22, 1
    %p87 = scmp.ne.s32.totalorder %s82, %s84
    %p88 = scmp.eq.s32.totalorder %s22, 0
    %p89 = por %p87, %p88
    %p90 = scmp.ne.s32.totalorder %s82, %s84
    %p91 = scmp.eq.s32.totalorder %s27, 1
    %p92 = por %p90, %p91
    %p93 = scmp.ne.s32.totalorder %s84, %s85
    %p94 = scmp.eq.s32.totalorder %s27, 0
    %p95 = por %p93, %p94
    %p96 = scmp.ne.s32.totalorder %s84, %s85
    %p97 = scmp.eq.s32.totalorder %s28, 1
    %p98 = por %p96, %p97
    %p100 = scmp.ne.s32.totalorder %s85, %s99
    %p101 = scmp.eq.s32.totalorder %s28, 0
    %p102 = por %p100, %p101
    %s104 = sadd.s32 %s103, 1
    %p107 = scmp.eq.s32.totalorder %s22, 1
    %p108 = scmp.ne.s32.totalorder %s103, %s105
    %p109 = scmp.eq.s32.totalorder %s22, 0
    %p110 = por %p108, %p109
    %p111 = scmp.ne.s32.totalorder %s103, %s105
    %p112 = scmp.eq.s32.totalorder %s27, 1
    %p113 = por %p111, %p112
    %p114 = scmp.ne.s32.totalorder %s105, %s106
    %p115 = scmp.eq.s32.totalorder %s27, 0
    %p116 = por %p114, %p115
    %p117 = scmp.ne.s32.totalorder %s105, %s106
    %p118 = scmp.eq.s32.totalorder %s28, 1
    %p119 = por %p117, %p118
    %p121 = scmp.ne.s32.totalorder %s106, %s120
    %p122 = scmp.eq.s32.totalorder %s28, 0
    %p123 = por %p121, %p122
    %s125 = sadd.s32 %s124, 1
    %p128 = scmp.eq.s32.totalorder %s22, 1
    %p129 = scmp.ne.s32.totalorder %s124, %s126
    %p130 = scmp.eq.s32.totalorder %s22, 0
    %p131 = por %p129, %p130
    %p132 = scmp.ne.s32.totalorder %s124, %s126
    %p133 = scmp.eq.s32.totalorder %s27, 1
    %p134 = por %p132, %p133
    %p135 = scmp.ne.s32.totalorder %s126, %s127
    %p136 = scmp.eq.s32.totalorder %s27, 0
    %p137 = por %p135, %p136
    %p138 = scmp.ne.s32.totalorder %s126, %s127
    %p139 = scmp.eq.s32.totalorder %s28, 1
    %p140 = por %p138, %p139
    %p142 = scmp.ne.s32.totalorder %s127, %s141
    %p143 = scmp.eq.s32.totalorder %s28, 0
    %p144 = por %p142, %p143
    %s146 = sadd.s32 %s145, 1
    %p149 = scmp.eq.s32.totalorder %s22, 1
    %p150 = scmp.ne.s32.totalorder %s145, %s147
    %p151 = scmp.eq.s32.totalorder %s22, 0
    %p152 = por %p150, %p151
    %p153 = scmp.ne.s32.totalorder %s145, %s147
    %p154 = scmp.eq.s32.totalorder %s27, 1
    %p155 = por %p153, %p154
    %p156 = scmp.ne.s32.totalorder %s147, %s148
    %p157 = scmp.eq.s32.totalorder %s27, 0
    %p158 = por %p156, %p157
    %p159 = scmp.ne.s32.totalorder %s147, %s148
    %p160 = scmp.eq.s32.totalorder %s28, 1
    %p161 = por %p159, %p160
    %p163 = scmp.ne.s32.totalorder %s148, %s162
    %p164 = scmp.eq.s32.totalorder %s28, 0
    %p165 = por %p163, %p164
    %s167 = sadd.s32 %s166, 1
    %p170 = scmp.eq.s32.totalorder %s22, 1
    %p171 = scmp.ne.s32.totalorder %s166, %s168
    %p172 = scmp.eq.s32.totalorder %s22, 0
    %p173 = por %p171, %p172
    %p174 = scmp.ne.s32.totalorder %s166, %s168
    %p175 = scmp.eq.s32.totalorder %s27, 1
    %p176 = por %p174, %p175
    %p177 = scmp.ne.s32.totalorder %s168, %s169
    %p178 = scmp.eq.s32.totalorder %s27, 0
    %p179 = por %p177, %p178
    %p180 = scmp.ne.s32.totalorder %s168, %s169
    %p181 = scmp.eq.s32.totalorder %s28, 1
    %p182 = por %p180, %p181
    %p184 = scmp.ne.s32.totalorder %s169, %s183
    %p185 = scmp.eq.s32.totalorder %s28, 0
    %p186 = por %p184, %p185
    %s188 = sadd.s32 %s187, 1
    %p191 = scmp.eq.s32.totalorder %s22, 1
    %p192 = scmp.ne.s32.totalorder %s187, %s189
    %p193 = scmp.eq.s32.totalorder %s22, 0
    %p194 = por %p192, %p193
    %p195 = scmp.ne.s32.totalorder %s187, %s189
    %p196 = scmp.eq.s32.totalorder %s27, 1
    %p197 = por %p195, %p196
    %p198 = scmp.ne.s32.totalorder %s189, %s190
    %p199 = scmp.eq.s32.totalorder %s27, 0
    %p200 = por %p198, %p199
    %p201 = scmp.ne.s32.totalorder %s189, %s190
    %p202 = scmp.eq.s32.totalorder %s28, 1
    %p203 = por %p201, %p202
    %p205 = scmp.ne.s32.totalorder %s190, %s204
    %p206 = scmp.eq.s32.totalorder %s28, 0
    %p207 = por %p205, %p206
    %s209 = sadd.s32 %s208, 1
    %p212 = scmp.eq.s32.totalorder %s22, 1
    %p213 = scmp.ne.s32.totalorder %s208, %s210
    %p214 = scmp.eq.s32.totalorder %s22, 0
    %p215 = por %p213, %p214
    %p216 = scmp.ne.s32.totalorder %s208, %s210
    %p217 = scmp.eq.s32.totalorder %s27, 1
    %p218 = por %p216, %p217
    %p219 = scmp.ne.s32.totalorder %s210, %s211
    %p220 = scmp.eq.s32.totalorder %s27, 0
    %p221 = por %p219, %p220
    %p222 = scmp.ne.s32.totalorder %s210, %s211
    %p223 = scmp.eq.s32.totalorder %s28, 1
    %p224 = por %p222, %p223
    %p226 = scmp.ne.s32.totalorder %s211, %s225
    %p227 = scmp.eq.s32.totalorder %s28, 0
    %p228 = por %p226, %p227
    %s230 = sadd.s32 %s229, 1
    %p233 = scmp.eq.s32.totalorder %s22, 1
    %p234 = scmp.ne.s32.totalorder %s229, %s231
    %p235 = scmp.eq.s32.totalorder %s22, 0
    %p236 = por %p234, %p235
    %p237 = scmp.ne.s32.totalorder %s229, %s231
    %p238 = scmp.eq.s32.totalorder %s27, 1
    %p239 = por %p237, %p238
    %p240 = scmp.ne.s32.totalorder %s231, %s232
    %p241 = scmp.eq.s32.totalorder %s27, 0
    %p242 = por %p240, %p241
    %p243 = scmp.ne.s32.totalorder %s231, %s232
    %p244 = scmp.eq.s32.totalorder %s28, 1
    %p245 = por %p243, %p244
    %p247 = scmp.ne.s32.totalorder %s232, %s246
    %p248 = scmp.eq.s32.totalorder %s28, 0
    %p249 = por %p247, %p248
    %s251 = sadd.s32 %s250, 1
    %p254 = scmp.eq.s32.totalorder %s22, 1
    %p255 = scmp.ne.s32.totalorder %s250, %s252
    %p256 = scmp.eq.s32.totalorder %s22, 0
    %p257 = por %p255, %p256
    %p258 = scmp.ne.s32.totalorder %s250, %s252
    %p259 = scmp.eq.s32.totalorder %s27, 1
    %p260 = por %p258, %p259
    %p261 = scmp.ne.s32.totalorder %s252, %s253
    %p262 = scmp.eq.s32.totalorder %s27, 0
    %p263 = por %p261, %p262
    %p264 = scmp.ne.s32.totalorder %s252, %s253
    %p265 = scmp.eq.s32.totalorder %s28, 1
    %p266 = por %p264, %p265
    %p268 = scmp.ne.s32.totalorder %s253, %s267
    %p269 = scmp.eq.s32.totalorder %s28, 0
    %p270 = por %p268, %p269
    %s272 = sadd.s32 %s271, 1
    %p275 = scmp.eq.s32.totalorder %s22, 1
    %p276 = scmp.ne.s32.totalorder %s271, %s273
    %p277 = scmp.eq.s32.totalorder %s22, 0
    %p278 = por %p276, %p277
    %p279 = scmp.ne.s32.totalorder %s271, %s273
    %p280 = scmp.eq.s32.totalorder %s27, 1
    %p281 = por %p279, %p280
    %p282 = scmp.ne.s32.totalorder %s273, %s274
    %p283 = scmp.eq.s32.totalorder %s27, 0
    %p284 = por %p282, %p283
    %p285 = scmp.ne.s32.totalorder %s273, %s274
    %p286 = scmp.eq.s32.totalorder %s28, 1
    %p287 = por %p285, %p286
    %p289 = scmp.ne.s32.totalorder %s274, %s288
    %p290 = scmp.eq.s32.totalorder %s28, 0
    %p291 = por %p289, %p290
    %s293 = sadd.s32 %s292, 1
    %p296 = scmp.eq.s32.totalorder %s22, 1
    %p297 = scmp.ne.s32.totalorder %s292, %s294
    %p298 = scmp.eq.s32.totalorder %s22, 0
    %p299 = por %p297, %p298
    %p300 = scmp.ne.s32.totalorder %s292, %s294
    %p301 = scmp.eq.s32.totalorder %s27, 1
    %p302 = por %p300, %p301
    %p303 = scmp.ne.s32.totalorder %s294, %s295
    %p304 = scmp.eq.s32.totalorder %s27, 0
    %p305 = por %p303, %p304
    %p306 = scmp.ne.s32.totalorder %s294, %s295
    %p307 = scmp.eq.s32.totalorder %s28, 1
    %p308 = por %p306, %p307
    %p310 = scmp.ne.s32.totalorder %s295, %s309
    %p311 = scmp.eq.s32.totalorder %s28, 0
    %p312 = por %p310, %p311
    %s314 = sadd.s32 %s313, 1
    %p317 = scmp.eq.s32.totalorder %s22, 1
    %p318 = scmp.ne.s32.totalorder %s313, %s315
    %p319 = scmp.eq.s32.totalorder %s22, 0
    %p320 = por %p318, %p319
    %p321 = scmp.ne.s32.totalorder %s313, %s315
    %p322 = scmp.eq.s32.totalorder %s27, 1
    %p323 = por %p321, %p322
    %p324 = scmp.ne.s32.totalorder %s315, %s316
    %p325 = scmp.eq.s32.totalorder %s27, 0
    %p326 = por %p324, %p325
    %p327 = scmp.ne.s32.totalorder %s315, %s316
    %p328 = scmp.eq.s32.totalorder %s28, 1
    %p329 = por %p327, %p328
    %p331 = scmp.ne.s32.totalorder %s316, %s330
    %p332 = scmp.eq.s32.totalorder %s28, 0
    %p333 = por %p331, %p332
    %s335 = sadd.s32 %s334, 1
    %p338 = scmp.eq.s32.totalorder %s22, 1
    %p339 = scmp.ne.s32.totalorder %s334, %s336
    %p340 = scmp.eq.s32.totalorder %s22, 0
    %p341 = por %p339, %p340
    %p342 = scmp.ne.s32.totalorder %s334, %s336
    %p343 = scmp.eq.s32.totalorder %s27, 1
    %p344 = por %p342, %p343
    %p345 = scmp.ne.s32.totalorder %s336, %s337
    %p346 = scmp.eq.s32.totalorder %s27, 0
    %p347 = por %p345, %p346
    %p348 = scmp.ne.s32.totalorder %s336, %s337
    %p349 = scmp.eq.s32.totalorder %s28, 1
    %p350 = por %p348, %p349
    %p352 = scmp.ne.s32.totalorder %s337, %s351
    %p353 = scmp.eq.s32.totalorder %s28, 0
    %p354 = por %p352, %p353
    %s356 = sadd.s32 %s355, 1
    %p359 = scmp.eq.s32.totalorder %s22, 1
    %p360 = scmp.ne.s32.totalorder %s355, %s357
    %p361 = scmp.eq.s32.totalorder %s22, 0
    %p362 = por %p360, %p361
    %p363 = scmp.ne.s32.totalorder %s355, %s357
    %p364 = scmp.eq.s32.totalorder %s27, 1
    %p365 = por %p363, %p364
    %p366 = scmp.ne.s32.totalorder %s357, %s358
    %p367 = scmp.eq.s32.totalorder %s27, 0
    %p368 = por %p366, %p367
    %p369 = scmp.ne.s32.totalorder %s357, %s358
    %p370 = scmp.eq.s32.totalorder %s28, 1
    %p371 = por %p369, %p370
    %p373 = scmp.ne.s32.totalorder %s358, %s372
    %p374 = scmp.eq.s32.totalorder %s28, 0
    %p375 = por %p373, %p374
    %s376 = ssub.s32 %s22, %s29
    %p377 = scmp.eq.s32.totalorder %s376, 0
    %s379 = sadd.s32 %s378, 1
    %s380 = scalar_select %p377, %s378, %s379
    %p383 = pneg %p377
    %p384 = scmp.eq.s32.totalorder %s22, 1
    %p385 = por %p383, %p384
    %p386 = scmp.ne.s32.totalorder %s378, %s381
    %p387 = scmp.eq.s32.totalorder %s22, 0
    %p388 = por %p386, %p387
    %p389 = scmp.ne.s32.totalorder %s378, %s381
    %p390 = scmp.eq.s32.totalorder %s27, 1
    %p391 = por %p389, %p390
    %p392 = scmp.ne.s32.totalorder %s381, %s382
    %p393 = scmp.eq.s32.totalorder %s27, 0
    %p394 = por %p392, %p393
    %p395 = scmp.ne.s32.totalorder %s381, %s382
    %p396 = scmp.eq.s32.totalorder %s28, 1
    %p397 = por %p395, %p396
    %p399 = scmp.ne.s32.totalorder %s382, %s398
    %p400 = scmp.eq.s32.totalorder %s28, 0
    %p401 = por %p399, %p400
    %p402 = scmp.le.s32.totalorder 1, %s22
    %p403 = scmp.lt.s32.totalorder %s22, 3
    %p404 = pnand %p402, %p403
    %p405 = pneg %p404
    // Predicated region
    $region9: #{forward.1} parent=5 // pred_check
      _
    $region10: #{forward.1} parent=5 // pred_check_branch
      %407 = sbr.rel (%p404) target = $region12
    $region11: #{forward.1} parent=5 // pred_region
      %s408 = ssub.s32 %s22, 1
      // Predicated region
      $region13: #{forward.1} parent=11 // pred_check
        %p409 = pneg %p95
      $region14: #{forward.1} parent=11 // pred_check_branch
        %411 = sbr.rel (%p409) target = $region16
      $region15: #{forward.1} parent=11 // pred_region
        _
      $region16: #{forward.1} parent=11 // pred_fallthru
        _
      // Predicated region
      $region17: #{forward.1} parent=11 // pred_check
        %p412 = pneg %p116
      $region18: #{forward.1} parent=11 // pred_check_branch
        %414 = sbr.rel (%p412) target = $region20
      $region19: #{forward.1} parent=11 // pred_region
        _
      $region20: #{forward.1} parent=11 // pred_fallthru
        _
      // Predicated region
      $region21: #{forward.1} parent=11 // pred_check
        %p415 = pneg %p137
      $region22: #{forward.1} parent=11 // pred_check_branch
        %417 = sbr.rel (%p415) target = $region24
      $region23: #{forward.1} parent=11 // pred_region
        _
      $region24: #{forward.1} parent=11 // pred_fallthru
        _
      // Predicated region
      $region25: #{forward.1} parent=11 // pred_check
        %p418 = pneg %p158
      $region26: #{forward.1} parent=11 // pred_check_branch
        %420 = sbr.rel (%p418) target = $region28
      $region27: #{forward.1} parent=11 // pred_region
        _
      $region28: #{forward.1} parent=11 // pred_fallthru
        _
      // Predicated region
      $region29: #{forward.1} parent=11 // pred_check
        %p421 = pneg %p179
      $region30: #{forward.1} parent=11 // pred_check_branch
        %423 = sbr.rel (%p421) target = $region32
      $region31: #{forward.1} parent=11 // pred_region
        _
      $region32: #{forward.1} parent=11 // pred_fallthru
        _
      // Predicated region
      $region33: #{forward.1} parent=11 // pred_check
        %p424 = pneg %p200
      $region34: #{forward.1} parent=11 // pred_check_branch
        %426 = sbr.rel (%p424) target = $region36
      $region35: #{forward.1} parent=11 // pred_region
        _
      $region36: #{forward.1} parent=11 // pred_fallthru
        _
      // Predicated region
      $region37: #{forward.1} parent=11 // pred_check
        %p427 = pneg %p221
      $region38: #{forward.1} parent=11 // pred_check_branch
        %429 = sbr.rel (%p427) target = $region40
      $region39: #{forward.1} parent=11 // pred_region
        _
      $region40: #{forward.1} parent=11 // pred_fallthru
        _
      // Predicated region
      $region41: #{forward.1} parent=11 // pred_check
        %p430 = pneg %p242
      $region42: #{forward.1} parent=11 // pred_check_branch
        %432 = sbr.rel (%p430) target = $region44
      $region43: #{forward.1} parent=11 // pred_region
        _
      $region44: #{forward.1} parent=11 // pred_fallthru
        _
      // Predicated region
      $region45: #{forward.1} parent=11 // pred_check
        %p433 = pneg %p263
      $region46: #{forward.1} parent=11 // pred_check_branch
        %435 = sbr.rel (%p433) target = $region48
      $region47: #{forward.1} parent=11 // pred_region
        _
      $region48: #{forward.1} parent=11 // pred_fallthru
        _
      // Predicated region
      $region49: #{forward.1} parent=11 // pred_check
        %p436 = pneg %p284
      $region50: #{forward.1} parent=11 // pred_check_branch
        %438 = sbr.rel (%p436) target = $region52
      $region51: #{forward.1} parent=11 // pred_region
        _
      $region52: #{forward.1} parent=11 // pred_fallthru
        _
      // Predicated region
      $region53: #{forward.1} parent=11 // pred_check
        %p439 = pneg %p305
      $region54: #{forward.1} parent=11 // pred_check_branch
        %441 = sbr.rel (%p439) target = $region56
      $region55: #{forward.1} parent=11 // pred_region
        _
      $region56: #{forward.1} parent=11 // pred_fallthru
        _
      // Predicated region
      $region57: #{forward.1} parent=11 // pred_check
        %p442 = pneg %p326
      $region58: #{forward.1} parent=11 // pred_check_branch
        %444 = sbr.rel (%p442) target = $region60
      $region59: #{forward.1} parent=11 // pred_region
        _
      $region60: #{forward.1} parent=11 // pred_fallthru
        _
      // Predicated region
      $region61: #{forward.1} parent=11 // pred_check
        %p445 = pneg %p347
      $region62: #{forward.1} parent=11 // pred_check_branch
        %447 = sbr.rel (%p445) target = $region64
      $region63: #{forward.1} parent=11 // pred_region
        _
      $region64: #{forward.1} parent=11 // pred_fallthru
        _
      // Predicated region
      $region65: #{forward.1} parent=11 // pred_check
        %p448 = pneg %p368
      $region66: #{forward.1} parent=11 // pred_check_branch
        %450 = sbr.rel (%p448) target = $region68
      $region67: #{forward.1} parent=11 // pred_region
        _
      $region68: #{forward.1} parent=11 // pred_fallthru
        _
    $region12: #{forward.1} parent=5 // pred_fallthru
      _
    %p451 = scmp.lt.s32.totalorder %s22, 2
    // Predicated region
    $region69: #{forward.1} parent=5 // pred_check
      %p452 = pneg %p451
    $region70: #{forward.1} parent=5 // pred_check_branch
      %454 = sbr.rel (%p452) target = $region72
    $region71: #{forward.1} parent=5 // pred_region
      // Predicated region
      $region73: #{forward.1} parent=71 // pred_check
        %p455 = pneg %p42
      $region74: #{forward.1} parent=71 // pred_check_branch
        %457 = sbr.rel (%p455) target = $region76
      $region75: #{forward.1} parent=71 // pred_region
        %p458 = scmp.lt.s32.totalorder %s22, 1
        %s459 = scalar_select %p458, %s22, 1
        %s460 = smul.addr %s459, 16
        %s461 = smul.addr %s460, 8
        %s462 = scalar_lea.vmem %s0, %s461
      $region76: #{forward.1} parent=71 // pred_fallthru
        _
      // Predicated region
      $region77: #{forward.1} parent=71 // pred_check
        %p463 = pneg %p68
      $region78: #{forward.1} parent=71 // pred_check_branch
        %465 = sbr.rel (%p463) target = $region80
      $region79: #{forward.1} parent=71 // pred_region
        %p466 = scmp.lt.s32.totalorder %s22, 1
        %s467 = scalar_select %p466, %s22, 1
        %s468 = scalar_lea.vmem %s1, %s467
      $region80: #{forward.1} parent=71 // pred_fallthru
        _
    $region72: #{forward.1} parent=5 // pred_fallthru
      _
    %p469 = scmp.le.s32.totalorder 1, %s22
    %p470 = scmp.lt.s32.totalorder %s22, 3
    %p471 = pnand %p469, %p470
    %p472 = pneg %p471
    // Predicated region
    $region81: #{forward.1} parent=5 // pred_check
      _
    $region82: #{forward.1} parent=5 // pred_check_branch
      %474 = sbr.rel (%p471) target = $region84
    $region83: #{forward.1} parent=5 // pred_region
      %s475 = ssub.s32 %s22, 1
      %p476 = scmp.lt.s32.totalorder %s27, 1
      %s477 = scalar_select %p476, %s27, 1
      %s478 = smul.addr %s477, 16
      %s479 = smul.addr %s478, 8
      %s480 = scalar_lea.vmem %s0, %s479
      %p481 = pneg %p48
      %p482 = pneg %p45
      %p483 = scmp.lt.s32.totalorder %s27, 1
      %s484 = scalar_select %p483, %s27, 1
      %s485 = scalar_lea.vmem %s1, %s484
      %p486 = pneg %p74
      %p487 = pneg %p71
      %p488 = pneg %p95
      %p489 = pneg %p92
      %p490 = pneg %p116
      %p491 = pneg %p113
      %p492 = pneg %p137
      %p493 = pneg %p134
      %p494 = pneg %p158
      %p495 = pneg %p155
      %p496 = pneg %p179
      %p497 = pneg %p176
      %p498 = pneg %p200
      %p499 = pneg %p197
      %p500 = pneg %p221
      %p501 = pneg %p218
      %p502 = pneg %p242
      %p503 = pneg %p239
      %p504 = pneg %p263
      %p505 = pneg %p260
      %p506 = pneg %p284
      %p507 = pneg %p281
      %p508 = pneg %p305
      %p509 = pneg %p302
      %p510 = pneg %p326
      %p511 = pneg %p323
      %p512 = pneg %p347
      %p513 = pneg %p344
      %p514 = pneg %p368
      %p515 = pneg %p365
      %p516 = pneg %p394
      %p517 = pneg %p391
      %p518 = scmp.lt.s32.totalorder %s27, 1
      %s519 = scalar_select %p518, %s27, 1
      %s520 = smul.addr %s519, 16
      %s521 = smul.addr %s520, 8
      %s522 = scalar_lea.vmem %s16, %s521
      %p523 = scmp.lt.s32.totalorder %s27, 1
      %s524 = scalar_select %p523, %s27, 1
      %s525 = smul.addr %s524, 16
      %s526 = smul.addr %s525, 8
      %s527 = scalar_lea.vmem %s0, %s526
      %p528 = scmp.lt.s32.totalorder %s27, 1
      %s529 = scalar_select %p528, %s27, 1
      %s530 = scalar_lea.vmem %s1, %s529
      %p531 = scmp.lt.s32.totalorder %s27, 1
      %s532 = scalar_select %p531, %s27, 1
      %s533 = smul.addr %s532, 16
      %s534 = smul.addr %s533, 8
      %s535 = scalar_lea.vmem %s16, %s534
      %v537 = vld [vmem:[%s527] sm:$0xff]
      %v538 = vld [vmem:[%s527 + $0x8] sm:$0xff]
      %v539 = vld [vmem:[%s527 + $0x10] sm:$0xff]
      %v540 = vld [vmem:[%s527 + $0x18] sm:$0xff]
      %v541 = vld [vmem:[%s527 + $0x20] sm:$0xff]
      %v542 = vld [vmem:[%s527 + $0x28] sm:$0xff]
      %v543 = vld [vmem:[%s527 + $0x30] sm:$0xff]
      %v544 = vld [vmem:[%s527 + $0x38] sm:$0xff]
      %v545 = vld [vmem:[%s527 + $0x40] sm:$0xff]
      %v546 = vld [vmem:[%s527 + $0x48] sm:$0xff]
      %v547 = vld [vmem:[%s527 + $0x50] sm:$0xff]
      %v548 = vld [vmem:[%s527 + $0x58] sm:$0xff]
      %v549 = vld [vmem:[%s527 + $0x60] sm:$0xff]
      %v550 = vld [vmem:[%s527 + $0x68] sm:$0xff]
      %v551 = vld [vmem:[%s527 + $0x70] sm:$0xff]
      %v552 = vld [vmem:[%s527 + $0x78] sm:$0xff]
      %v553 = vld [vmem:[%s2] sm:$0x1]
      %v554 = vld [vmem:[%s3] sm:$0x1]
      %555 = vadd.xlane.f32.xlu0 %v537
      %v556 = vpop.xlane.xlu0 %555
      %557 = vadd.xlane.f32.xlu0 %v538
      %v558 = vpop.xlane.xlu0 %557
      %559 = vadd.xlane.f32.xlu0 %v539
      %v560 = vpop.xlane.xlu0 %559
      %561 = vadd.xlane.f32.xlu0 %v540
      %v562 = vpop.xlane.xlu0 %561
      %563 = vadd.xlane.f32.xlu0 %v541
      %v564 = vpop.xlane.xlu0 %563
      %565 = vadd.xlane.f32.xlu0 %v542
      %v566 = vpop.xlane.xlu0 %565
      %567 = vadd.xlane.f32.xlu0 %v543
      %v568 = vpop.xlane.xlu0 %567
      %569 = vadd.xlane.f32.xlu0 %v544
      %v570 = vpop.xlane.xlu0 %569
      %571 = vadd.xlane.f32.xlu0 %v545
      %v572 = vpop.xlane.xlu0 %571
      %573 = vadd.xlane.f32.xlu0 %v546
      %v574 = vpop.xlane.xlu0 %573
      %575 = vadd.xlane.f32.xlu0 %v547
      %v576 = vpop.xlane.xlu0 %575
      %577 = vadd.xlane.f32.xlu0 %v548
      %v578 = vpop.xlane.xlu0 %577
      %579 = vadd.xlane.f32.xlu0 %v549
      %v580 = vpop.xlane.xlu0 %579
      %581 = vadd.xlane.f32.xlu0 %v550
      %v582 = vpop.xlane.xlu0 %581
      %583 = vadd.xlane.f32.xlu0 %v551
      %v584 = vpop.xlane.xlu0 %583
      %585 = vadd.xlane.f32.xlu0 %v552
      %v586 = vpop.xlane.xlu0 %585
      %v587 = vrcp.pop 128.0
      %v588 = vmul.f32 %v556, %v587
      %v589 = vmul.f32 %v558, %v587
      %v590 = vmul.f32 %v560, %v587
      %v591 = vmul.f32 %v562, %v587
      %v592 = vmul.f32 %v564, %v587
      %v593 = vmul.f32 %v566, %v587
      %v594 = vmul.f32 %v568, %v587
      %v595 = vmul.f32 %v570, %v587
      %v596 = vmul.f32 %v572, %v587
      %v597 = vmul.f32 %v574, %v587
      %v598 = vmul.f32 %v576, %v587
      %v599 = vmul.f32 %v578, %v587
      %v600 = vmul.f32 %v580, %v587
      %v601 = vmul.f32 %v582, %v587
      %v602 = vmul.f32 %v584, %v587
      %v603 = vmul.f32 %v586, %v587
      %v604 = vsub.f32 %v537, %v588
      %v605 = vsub.f32 %v538, %v589
      %v606 = vsub.f32 %v539, %v590
      %v607 = vsub.f32 %v540, %v591
      %v608 = vsub.f32 %v541, %v592
      %v609 = vsub.f32 %v542, %v593
      %v610 = vsub.f32 %v543, %v594
      %v611 = vsub.f32 %v544, %v595
      %v612 = vsub.f32 %v545, %v596
      %v613 = vsub.f32 %v546, %v597
      %v614 = vsub.f32 %v547, %v598
      %v615 = vsub.f32 %v548, %v599
      %v616 = vsub.f32 %v549, %v600
      %v617 = vsub.f32 %v550, %v601
      %v618 = vsub.f32 %v551, %v602
      %v619 = vsub.f32 %v552, %v603
      %v620 = vmul.f32 %v604, %v604
      %v621 = vmul.f32 %v605, %v605
      %v622 = vmul.f32 %v606, %v606
      %v623 = vmul.f32 %v607, %v607
      %v624 = vmul.f32 %v608, %v608
      %v625 = vmul.f32 %v609, %v609
      %v626 = vmul.f32 %v610, %v610
      %v627 = vmul.f32 %v611, %v611
      %v628 = vmul.f32 %v612, %v612
      %v629 = vmul.f32 %v613, %v613
      %v630 = vmul.f32 %v614, %v614
      %v631 = vmul.f32 %v615, %v615
      %v632 = vmul.f32 %v616, %v616
      %v633 = vmul.f32 %v617, %v617
      %v634 = vmul.f32 %v618, %v618
      %v635 = vmul.f32 %v619, %v619
      %636 = vadd.xlane.f32.xlu0 %v620
      %v637 = vpop.xlane.xlu0 %636
      %638 = vadd.xlane.f32.xlu0 %v621
      %v639 = vpop.xlane.xlu0 %638
      %640 = vadd.xlane.f32.xlu0 %v622
      %v641 = vpop.xlane.xlu0 %640
      %642 = vadd.xlane.f32.xlu0 %v623
      %v643 = vpop.xlane.xlu0 %642
      %644 = vadd.xlane.f32.xlu0 %v624
      %v645 = vpop.xlane.xlu0 %644
      %646 = vadd.xlane.f32.xlu0 %v625
      %v647 = vpop.xlane.xlu0 %646
      %648 = vadd.xlane.f32.xlu0 %v626
      %v649 = vpop.xlane.xlu0 %648
      %650 = vadd.xlane.f32.xlu0 %v627
      %v651 = vpop.xlane.xlu0 %650
      %652 = vadd.xlane.f32.xlu0 %v628
      %v653 = vpop.xlane.xlu0 %652
      %654 = vadd.xlane.f32.xlu0 %v629
      %v655 = vpop.xlane.xlu0 %654
      %656 = vadd.xlane.f32.xlu0 %v630
      %v657 = vpop.xlane.xlu0 %656
      %658 = vadd.xlane.f32.xlu0 %v631
      %v659 = vpop.xlane.xlu0 %658
      %660 = vadd.xlane.f32.xlu0 %v632
      %v661 = vpop.xlane.xlu0 %660
      %662 = vadd.xlane.f32.xlu0 %v633
      %v663 = vpop.xlane.xlu0 %662
      %664 = vadd.xlane.f32.xlu0 %v634
      %v665 = vpop.xlane.xlu0 %664
      %666 = vadd.xlane.f32.xlu0 %v635
      %v667 = vpop.xlane.xlu0 %666
      %v668 = vmul.f32 %v637, %v587
      %v669 = vmul.f32 %v639, %v587
      %v670 = vmul.f32 %v641, %v587
      %v671 = vmul.f32 %v643, %v587
      %v672 = vmul.f32 %v645, %v587
      %v673 = vmul.f32 %v647, %v587
      %v674 = vmul.f32 %v649, %v587
      %v675 = vmul.f32 %v651, %v587
      %v676 = vmul.f32 %v653, %v587
      %v677 = vmul.f32 %v655, %v587
      %v678 = vmul.f32 %v657, %v587
      %v679 = vmul.f32 %v659, %v587
      %v680 = vmul.f32 %v661, %v587
      %v681 = vmul.f32 %v663, %v587
      %v682 = vmul.f32 %v665, %v587
      %v683 = vmul.f32 %v667, %v587
      %v684 = vadd.f32 %v668, 1e-12
      %v685 = vadd.f32 %v669, 1e-12
      %v686 = vadd.f32 %v670, 1e-12
      %v687 = vadd.f32 %v671, 1e-12
      %v688 = vadd.f32 %v672, 1e-12
      %v689 = vadd.f32 %v673, 1e-12
      %v690 = vadd.f32 %v674, 1e-12
      %v691 = vadd.f32 %v675, 1e-12
      %v692 = vadd.f32 %v676, 1e-12
      %v693 = vadd.f32 %v677, 1e-12
      %v694 = vadd.f32 %v678, 1e-12
      %v695 = vadd.f32 %v679, 1e-12
      %v696 = vadd.f32 %v680, 1e-12
      %v697 = vadd.f32 %v681, 1e-12
      %v698 = vadd.f32 %v682, 1e-12
      %v699 = vadd.f32 %v683, 1e-12
      %v700 = vrsqrt.pop %v684
      %v701 = vrsqrt.pop %v685
      %v702 = vrsqrt.pop %v686
      %v703 = vrsqrt.pop %v687
      %v704 = vrsqrt.pop %v688
      %v705 = vrsqrt.pop %v689
      %v706 = vrsqrt.pop %v690
      %v707 = vrsqrt.pop %v691
      %v708 = vrsqrt.pop %v692
      %v709 = vrsqrt.pop %v693
      %v710 = vrsqrt.pop %v694
      %v711 = vrsqrt.pop %v695
      %v712 = vrsqrt.pop %v696
      %v713 = vrsqrt.pop %v697
      %v714 = vrsqrt.pop %v698
      %v715 = vrsqrt.pop %v699
      %v716 = vmul.f32 %v604, %v700
      %v717 = vmul.f32 %v605, %v701
      %v718 = vmul.f32 %v606, %v702
      %v719 = vmul.f32 %v607, %v703
      %v720 = vmul.f32 %v608, %v704
      %v721 = vmul.f32 %v609, %v705
      %v722 = vmul.f32 %v610, %v706
      %v723 = vmul.f32 %v611, %v707
      %v724 = vmul.f32 %v612, %v708
      %v725 = vmul.f32 %v613, %v709
      %v726 = vmul.f32 %v614, %v710
      %v727 = vmul.f32 %v615, %v711
      %v728 = vmul.f32 %v616, %v712
      %v729 = vmul.f32 %v617, %v713
      %v730 = vmul.f32 %v618, %v714
      %v731 = vmul.f32 %v619, %v715
      %v733 = vlaneseq
      %v734 = vshrl.u32 %v733, 7
      %v735 = vsub.s32 0, %v734
      %v736 = vrot.slane %v553, %v735
      %v738 = vmul.f32 %v716, %v736
      %v739 = vmul.f32 %v717, %v736
      %v740 = vmul.f32 %v718, %v736
      %v741 = vmul.f32 %v719, %v736
      %v742 = vmul.f32 %v720, %v736
      %v743 = vmul.f32 %v721, %v736
      %v744 = vmul.f32 %v722, %v736
      %v745 = vmul.f32 %v723, %v736
      %v746 = vmul.f32 %v724, %v736
      %v747 = vmul.f32 %v725, %v736
      %v748 = vmul.f32 %v726, %v736
      %v749 = vmul.f32 %v727, %v736
      %v750 = vmul.f32 %v728, %v736
      %v751 = vmul.f32 %v729, %v736
      %v752 = vmul.f32 %v730, %v736
      %v753 = vmul.f32 %v731, %v736
      %v755 = vlaneseq
      %v756 = vshrl.u32 %v755, 7
      %v757 = vsub.s32 0, %v756
      %v758 = vrot.slane %v554, %v757
      %v760 = vadd.f32 %v738, %v758
      %v761 = vadd.f32 %v739, %v758
      %v762 = vadd.f32 %v740, %v758
      %v763 = vadd.f32 %v741, %v758
      %v764 = vadd.f32 %v742, %v758
      %v765 = vadd.f32 %v743, %v758
      %v766 = vadd.f32 %v744, %v758
      %v767 = vadd.f32 %v745, %v758
      %v768 = vadd.f32 %v746, %v758
      %v769 = vadd.f32 %v747, %v758
      %v770 = vadd.f32 %v748, %v758
      %v771 = vadd.f32 %v749, %v758
      %v772 = vadd.f32 %v750, %v758
      %v773 = vadd.f32 %v751, %v758
      %v774 = vadd.f32 %v752, %v758
      %v775 = vadd.f32 %v753, %v758
      %v776 = vld [vmem:[%s530] sm:$0x1]
      %v777 = vpack.c.bf16 %v761, %v760
      %v778 = vpack.c.bf16 %v763, %v762
      %v779 = vpack.c.bf16 %v765, %v764
      %v780 = vpack.c.bf16 %v767, %v766
      %v781 = vpack.c.bf16 %v769, %v768
      %v782 = vpack.c.bf16 %v771, %v770
      %v783 = vpack.c.bf16 %v773, %v772
      %v784 = vpack.c.bf16 %v775, %v774
      %v785 = vld [vmem:[%s4] sm:$0xff]
      %v786 = vld [vmem:[%s4 + $0x8] sm:$0xf]
      %v787 = vld [vmem:[%s4 + $0xc] sm:$0xff]
      %v788 = vld [vmem:[%s4 + $0x14] sm:$0xf]
      %v789 = vld [vmem:[%s4 + $0x18] sm:$0xff]
      %v790 = vld [vmem:[%s4 + $0x20] sm:$0xf]
      %v791 = vld [vmem:[%s4 + $0x24] sm:$0xff]
      %v792 = vld [vmem:[%s4 + $0x2c] sm:$0xf]
      %v793 = vld [vmem:[%s4 + $0x30] sm:$0xff]
      %v794 = vld [vmem:[%s4 + $0x38] sm:$0xf]
      %v795 = vld [vmem:[%s4 + $0x3c] sm:$0xff]
      %v796 = vld [vmem:[%s4 + $0x44] sm:$0xf]
      %v797 = vld [vmem:[%s4 + $0x48] sm:$0xff]
      %v798 = vld [vmem:[%s4 + $0x50] sm:$0xf]
      %v799 = vld [vmem:[%s4 + $0x54] sm:$0xff]
      %v800 = vld [vmem:[%s4 + $0x5c] sm:$0xf]
      %v801 = vld [vmem:[%s4 + $0x60] sm:$0xff]
      %v802 = vld [vmem:[%s4 + $0x68] sm:$0xf]
      %v803 = vld [vmem:[%s4 + $0x6c] sm:$0xff]
      %v804 = vld [vmem:[%s4 + $0x74] sm:$0xf]
      %v805 = vld [vmem:[%s4 + $0x78] sm:$0xff]
      %v806 = vld [vmem:[%s4 + $0x80] sm:$0xf]
      %v807 = vld [vmem:[%s4 + $0x84] sm:$0xff]
      %v808 = vld [vmem:[%s4 + $0x8c] sm:$0xf]
      %v809 = vld [vmem:[%s4 + $0x90] sm:$0xff]
      %v810 = vld [vmem:[%s4 + $0x98] sm:$0xf]
      %v811 = vld [vmem:[%s4 + $0x9c] sm:$0xff]
      %v812 = vld [vmem:[%s4 + $0xa4] sm:$0xf]
      %v813 = vld [vmem:[%s4 + $0xa8] sm:$0xff]
      %v814 = vld [vmem:[%s4 + $0xb0] sm:$0xf]
      %v815 = vld [vmem:[%s4 + $0xb4] sm:$0xff]
      %v816 = vld [vmem:[%s4 + $0xbc] sm:$0xf]
      %v817 = vld [vmem:[%s5] sm:$0x7]
      %v819 = vlaneseq
      %v820 = vshrl.u32 %v819, 7
      %v821 = vsub.s32 0, %v820
      %v822 = vrot.slane %v817, %v821
      %v823 = vlaneseq
      %v824 = vshrl.u32 %v823, 7
      %v825 = vsub.s32 1, %v824
      %v826 = vrot.slane %v817, %v825
      %v827 = vlaneseq
      %v828 = vshrl.u32 %v827, 7
      %v829 = vsub.s32 2, %v828
      %v830 = vrot.slane %v817, %v829
      %v866 = vunpack.c.l.b16 %v785
      %v867 = vunpack.c.h.b16 %v785
      %v868 = vunpack.c.l.b16 %v786
      %v869 = vunpack.c.l.b16 %v787
      %v870 = vunpack.c.h.b16 %v787
      %v871 = vunpack.c.l.b16 %v788
      %v872 = vunpack.c.l.b16 %v789
      %v873 = vunpack.c.h.b16 %v789
      %v874 = vunpack.c.l.b16 %v790
      %v875 = vunpack.c.l.b16 %v791
      %v876 = vunpack.c.h.b16 %v791
      %v877 = vunpack.c.l.b16 %v792
      %v878 = vunpack.c.l.b16 %v793
      %v879 = vunpack.c.h.b16 %v793
      %v880 = vunpack.c.l.b16 %v794
      %v881 = vunpack.c.l.b16 %v795
      %v882 = vunpack.c.h.b16 %v795
      %v883 = vunpack.c.l.b16 %v796
      %v884 = vunpack.c.l.b16 %v797
      %v885 = vunpack.c.h.b16 %v797
      %v886 = vunpack.c.l.b16 %v798
      %v887 = vunpack.c.l.b16 %v799
      %v888 = vunpack.c.h.b16 %v799
      %v889 = vunpack.c.l.b16 %v800
      %v890 = vunpack.c.l.b16 %v801
      %v891 = vunpack.c.h.b16 %v801
      %v892 = vunpack.c.l.b16 %v802
      %v893 = vunpack.c.l.b16 %v803
      %v894 = vunpack.c.h.b16 %v803
      %v895 = vunpack.c.l.b16 %v804
      %v896 = vunpack.c.l.b16 %v805
      %v897 = vunpack.c.h.b16 %v805
      %v898 = vunpack.c.l.b16 %v806
      %v899 = vunpack.c.l.b16 %v807
      %v900 = vunpack.c.h.b16 %v807
      %v901 = vunpack.c.l.b16 %v808
      %v902 = vunpack.c.l.b16 %v809
      %v903 = vunpack.c.h.b16 %v809
      %v904 = vunpack.c.l.b16 %v810
      %v905 = vunpack.c.l.b16 %v811
      %v906 = vunpack.c.h.b16 %v811
      %v907 = vunpack.c.l.b16 %v812
      %v908 = vunpack.c.l.b16 %v813
      %v909 = vunpack.c.h.b16 %v813
      %v910 = vunpack.c.l.b16 %v814
      %v911 = vunpack.c.l.b16 %v815
      %v912 = vunpack.c.h.b16 %v815
      %v913 = vunpack.c.l.b16 %v816
      %v914 = vpack.c.b16 %v869, %v866
      %v915 = vpack.c.b16 %v870, %v867
      %v916 = vpack.c.b16 %v871, %v868
      %v917 = vpack.c.b16 %v875, %v872
      %v918 = vpack.c.b16 %v876, %v873
      %v919 = vpack.c.b16 %v877, %v874
      %v920 = vpack.c.b16 %v881, %v878
      %v921 = vpack.c.b16 %v882, %v879
      %v922 = vpack.c.b16 %v883, %v880
      %v923 = vpack.c.b16 %v887, %v884
      %v924 = vpack.c.b16 %v888, %v885
      %v925 = vpack.c.b16 %v889, %v886
      %v926 = vpack.c.b16 %v893, %v890
      %v927 = vpack.c.b16 %v894, %v891
      %v928 = vpack.c.b16 %v895, %v892
      %v929 = vpack.c.b16 %v899, %v896
      %v930 = vpack.c.b16 %v900, %v897
      %v931 = vpack.c.b16 %v901, %v898
      %v932 = vpack.c.b16 %v905, %v902
      %v933 = vpack.c.b16 %v906, %v903
      %v934 = vpack.c.b16 %v907, %v904
      %v935 = vpack.c.b16 %v911, %v908
      %v936 = vpack.c.b16 %v912, %v909
      %v937 = vpack.c.b16 %v913, %v910
      %962 = vmatprep.subr.bf16.mxu0 %v936
      %963 = vmatpush1.bf16.msra.mxu0 %v935
      %964 = vmatprep.subr.bf16.mxu0 %v933
      %965 = vmatpush1.bf16.msra.mxu0 %v932
      %966 = vmatprep.subr.bf16.mxu0 %v930
      %967 = vmatpush1.bf16.msra.mxu0 %v929
      %968 = vmatprep.subr.bf16.mxu0 %v927
      %969 = vmatpush1.bf16.msra.mxu0 %v926
      %970 = vmatprep.subr.bf16.mxu0 %v924
      %971 = vmatpush1.bf16.msra.mxu0 %v923
      %972 = vmatprep.subr.bf16.mxu0 %v921
      %973 = vmatpush1.bf16.msra.mxu0 %v920
      %974 = vmatprep.subr.bf16.mxu0 %v918
      %975 = vmatpush1.bf16.msra.mxu0 %v917
      %976 = vmatprep.subr.bf16.mxu0 %v915
      %977 = vmatpush1.bf16.msra.mxu0 %v914
      %978 = vmatprep.subr.bf16.mxu0 0
      %979 = vmatpush2.bf16.msra.mxu0 0
      %980 = vmatprep.subr.bf16.mxu0 0
      %981 = vmatpush2.bf16.msra.mxu0 0
      %982 = vmatprep.subr.bf16.mxu0 0
      %983 = vmatpush2.bf16.msra.mxu0 0
      %984 = vmatprep.subr.bf16.mxu0 0
      %985 = vmatpush2.bf16.msra.mxu0 0
      %986 = vmatprep.subr.bf16.mxu0 0
      %987 = vmatpush2.bf16.msra.mxu0 0
      %988 = vmatprep.subr.bf16.mxu0 0
      %989 = vmatpush2.bf16.msra.mxu0 0
      %990 = vmatprep.subr.bf16.mxu0 0
      %991 = vmatpush2.bf16.msra.mxu0 0
      %992 = vmatprep.subr.bf16.mxu0 0
      %993 = vmatpush2.bf16.msra.mxu0 0
      %994 = vmatprep.mubr.bf16.mxu0 0
      %995 = vmatmul.mubr.bf16.gmra.mxu0 %v777
      %v996 = vpop.f32.mrf.mxu0
      %v997 = vadd.f32 %v822, %v996
      %v998 = vpop.f32.mrf.mxu0
      %v999 = vadd.f32 %v826, %v998
      %v1000 = vpop.f32.mrf.mxu0
      %v1001 = vadd.f32 %v822, %v1000
      %v1002 = vpop.f32.mrf.mxu0
      %v1003 = vadd.f32 %v826, %v1002
      %1004 = vmatprep.mubr.bf16.mxu0 0
      %1005 = vmatmul.mubr.bf16.gmra.mxu0 %v778
      %v1006 = vpop.f32.mrf.mxu0
      %v1007 = vadd.f32 %v822, %v1006
      %v1008 = vpop.f32.mrf.mxu0
      %v1009 = vadd.f32 %v826, %v1008
      %v1010 = vpop.f32.mrf.mxu0
      %v1011 = vadd.f32 %v822, %v1010
      %v1012 = vpop.f32.mrf.mxu0
      %v1013 = vadd.f32 %v826, %v1012
      %1014 = vmatprep.mubr.bf16.mxu0 0
      %1015 = vmatmul.mubr.bf16.gmra.mxu0 %v779
      %v1016 = vpop.f32.mrf.mxu0
      %v1017 = vadd.f32 %v822, %v1016
      %v1018 = vpop.f32.mrf.mxu0
      %v1019 = vadd.f32 %v826, %v1018
      %v1020 = vpop.f32.mrf.mxu0
      %v1021 = vadd.f32 %v822, %v1020
      %v1022 = vpop.f32.mrf.mxu0
      %v1023 = vadd.f32 %v826, %v1022
      %1024 = vmatprep.mubr.bf16.mxu0 0
      %1025 = vmatmul.mubr.bf16.gmra.mxu0 %v780
      %v1026 = vpop.f32.mrf.mxu0
      %v1027 = vadd.f32 %v822, %v1026
      %v1028 = vpop.f32.mrf.mxu0
      %v1029 = vadd.f32 %v826, %v1028
      %v1030 = vpop.f32.mrf.mxu0
      %v1031 = vadd.f32 %v822, %v1030
      %v1032 = vpop.f32.mrf.mxu0
      %v1033 = vadd.f32 %v826, %v1032
      %1034 = vmatprep.mubr.bf16.mxu0 0
      %1035 = vmatmul.mubr.bf16.gmra.mxu0 %v781
      %v1036 = vpop.f32.mrf.mxu0
      %v1037 = vadd.f32 %v822, %v1036
      %v1038 = vpop.f32.mrf.mxu0
      %v1039 = vadd.f32 %v826, %v1038
      %v1040 = vpop.f32.mrf.mxu0
      %v1041 = vadd.f32 %v822, %v1040
      %v1042 = vpop.f32.mrf.mxu0
      %v1043 = vadd.f32 %v826, %v1042
      %1044 = vmatprep.mubr.bf16.mxu0 0
      %1045 = vmatmul.mubr.bf16.gmra.mxu0 %v782
      %v1046 = vpop.f32.mrf.mxu0
      %v1047 = vadd.f32 %v822, %v1046
      %v1048 = vpop.f32.mrf.mxu0
      %v1049 = vadd.f32 %v826, %v1048
      %v1050 = vpop.f32.mrf.mxu0
      %v1051 = vadd.f32 %v822, %v1050
      %v1052 = vpop.f32.mrf.mxu0
      %v1053 = vadd.f32 %v826, %v1052
      %1054 = vmatprep.mubr.bf16.mxu0 0
      %1055 = vmatmul.mubr.bf16.gmra.mxu0 %v783
      %v1056 = vpop.f32.mrf.mxu0
      %v1057 = vadd.f32 %v822, %v1056
      %v1058 = vpop.f32.mrf.mxu0
      %v1059 = vadd.f32 %v826, %v1058
      %v1060 = vpop.f32.mrf.mxu0
      %v1061 = vadd.f32 %v822, %v1060
      %v1062 = vpop.f32.mrf.mxu0
      %v1063 = vadd.f32 %v826, %v1062
      %1064 = vmatprep.mubr.bf16.mxu0 0
      %1065 = vmatmul.mubr.bf16.gmra.mxu0 %v784
      %v1066 = vpop.f32.mrf.mxu0
      %v1067 = vadd.f32 %v822, %v1066
      %v1068 = vpop.f32.mrf.mxu0
      %v1069 = vadd.f32 %v826, %v1068
      %v1070 = vpop.f32.mrf.mxu0
      %v1071 = vadd.f32 %v822, %v1070
      %v1072 = vpop.f32.mrf.mxu0
      %v1073 = vadd.f32 %v826, %v1072
      %1074 = vdwg.mxu0
      %1075 = vmatprep.subr.bf16.mxu0 0
      %1076 = vmatpush1.bf16.msra.mxu0 %v937
      %1077 = vmatprep.subr.bf16.mxu0 0
      %1078 = vmatpush1.bf16.msra.mxu0 %v934
      %1079 = vmatprep.subr.bf16.mxu0 0
      %1080 = vmatpush1.bf16.msra.mxu0 %v931
      %1081 = vmatprep.subr.bf16.mxu0 0
      %1082 = vmatpush1.bf16.msra.mxu0 %v928
      %1083 = vmatprep.subr.bf16.mxu0 0
      %1084 = vmatpush1.bf16.msra.mxu0 %v925
      %1085 = vmatprep.subr.bf16.mxu0 0
      %1086 = vmatpush1.bf16.msra.mxu0 %v922
      %1087 = vmatprep.subr.bf16.mxu0 0
      %1088 = vmatpush1.bf16.msra.mxu0 %v919
      %1089 = vmatprep.subr.bf16.mxu0 0
      %1090 = vmatpush1.bf16.msra.mxu0 %v916
      %1091 = vmatprep.subr.bf16.mxu0 0
      %1092 = vmatpush2.bf16.msra.mxu0 0
      %1093 = vmatprep.subr.bf16.mxu0 0
      %1094 = vmatpush2.bf16.msra.mxu0 0
      %1095 = vmatprep.subr.bf16.mxu0 0
      %1096 = vmatpush2.bf16.msra.mxu0 0
      %1097 = vmatprep.subr.bf16.mxu0 0
      %1098 = vmatpush2.bf16.msra.mxu0 0
      %1099 = vmatprep.subr.bf16.mxu0 0
      %1100 = vmatpush2.bf16.msra.mxu0 0
      %1101 = vmatprep.subr.bf16.mxu0 0
      %1102 = vmatpush2.bf16.msra.mxu0 0
      %1103 = vmatprep.subr.bf16.mxu0 0
      %1104 = vmatpush2.bf16.msra.mxu0 0
      %1105 = vmatprep.subr.bf16.mxu0 0
      %1106 = vmatpush2.bf16.msra.mxu0 0
      %1107 = vmatprep.mubr.bf16.mxu0 0
      %1108 = vmatmul.mubr.bf16.gmra.mxu0 %v777
      %v1109 = vpop.f32.mrf.mxu0
      %v1110 = vadd.f32 %v830, %v1109
      %v1111 = vpop.f32.mrf.mxu0
      %v1112 = vpop.f32.mrf.mxu0
      %v1113 = vadd.f32 %v830, %v1112
      %v1114 = vpop.f32.mrf.mxu0
      %1115 = vmatprep.mubr.bf16.mxu0 0
      %1116 = vmatmul.mubr.bf16.gmra.mxu0 %v778
      %v1117 = vpop.f32.mrf.mxu0
      %v1118 = vadd.f32 %v830, %v1117
      %v1119 = vpop.f32.mrf.mxu0
      %v1120 = vpop.f32.mrf.mxu0
      %v1121 = vadd.f32 %v830, %v1120
      %v1122 = vpop.f32.mrf.mxu0
      %1123 = vmatprep.mubr.bf16.mxu0 0
      %1124 = vmatmul.mubr.bf16.gmra.mxu0 %v779
      %v1125 = vpop.f32.mrf.mxu0
      %v1126 = vadd.f32 %v830, %v1125
      %v1127 = vpop.f32.mrf.mxu0
      %v1128 = vpop.f32.mrf.mxu0
      %v1129 = vadd.f32 %v830, %v1128
      %v1130 = vpop.f32.mrf.mxu0
      %1131 = vmatprep.mubr.bf16.mxu0 0
      %1132 = vmatmul.mubr.bf16.gmra.mxu0 %v780
      %v1133 = vpop.f32.mrf.mxu0
      %v1134 = vadd.f32 %v830, %v1133
      %v1135 = vpop.f32.mrf.mxu0
      %v1136 = vpop.f32.mrf.mxu0
      %v1137 = vadd.f32 %v830, %v1136
      %v1138 = vpop.f32.mrf.mxu0
      %1139 = vmatprep.mubr.bf16.mxu0 0
      %1140 = vmatmul.mubr.bf16.gmra.mxu0 %v781
      %v1141 = vpop.f32.mrf.mxu0
      %v1142 = vadd.f32 %v830, %v1141
      %v1143 = vpop.f32.mrf.mxu0
      %v1144 = vpop.f32.mrf.mxu0
      %v1145 = vadd.f32 %v830, %v1144
      %v1146 = vpop.f32.mrf.mxu0
      %1147 = vmatprep.mubr.bf16.mxu0 0
      %1148 = vmatmul.mubr.bf16.gmra.mxu0 %v782
      %v1149 = vpop.f32.mrf.mxu0
      %v1150 = vadd.f32 %v830, %v1149
      %v1151 = vpop.f32.mrf.mxu0
      %v1152 = vpop.f32.mrf.mxu0
      %v1153 = vadd.f32 %v830, %v1152
      %v1154 = vpop.f32.mrf.mxu0
      %1155 = vmatprep.mubr.bf16.mxu0 0
      %1156 = vmatmul.mubr.bf16.gmra.mxu0 %v783
      %v1157 = vpop.f32.mrf.mxu0
      %v1158 = vadd.f32 %v830, %v1157
      %v1159 = vpop.f32.mrf.mxu0
      %v1160 = vpop.f32.mrf.mxu0
      %v1161 = vadd.f32 %v830, %v1160
      %v1162 = vpop.f32.mrf.mxu0
      %1163 = vmatprep.mubr.bf16.mxu0 0
      %1164 = vmatmul.mubr.bf16.gmra.mxu0 %v784
      %v1165 = vpop.f32.mrf.mxu0
      %v1166 = vadd.f32 %v830, %v1165
      %v1167 = vpop.f32.mrf.mxu0
      %v1168 = vpop.f32.mrf.mxu0
      %v1169 = vadd.f32 %v830, %v1168
      %v1170 = vpop.f32.mrf.mxu0
      %1171 = vdwg.mxu0
      %vm1172 = vcmask 261120
      %v1174 = vsel %vm1172, %v997, 0
      %v1177 = vsel %vm1172, %v1001, 0
      %v1180 = vsel %vm1172, %v1007, 0
      %v1183 = vsel %vm1172, %v1011, 0
      %v1186 = vsel %vm1172, %v1017, 0
      %v1189 = vsel %vm1172, %v1021, 0
      %v1192 = vsel %vm1172, %v1027, 0
      %v1195 = vsel %vm1172, %v1031, 0
      %v1198 = vsel %vm1172, %v1037, 0
      %v1201 = vsel %vm1172, %v1041, 0
      %v1204 = vsel %vm1172, %v1047, 0
      %v1207 = vsel %vm1172, %v1051, 0
      %v1210 = vsel %vm1172, %v1057, 0
      %v1213 = vsel %vm1172, %v1061, 0
      %v1216 = vsel %vm1172, %v1067, 0
      %v1219 = vsel %vm1172, %v1071, 0
      %v1222 = vsel %vm1172, %v999, 0
      %v1225 = vsel %vm1172, %v1003, 0
      %v1228 = vsel %vm1172, %v1009, 0
      %v1231 = vsel %vm1172, %v1013, 0
      %v1234 = vsel %vm1172, %v1019, 0
      %v1237 = vsel %vm1172, %v1023, 0
      %v1240 = vsel %vm1172, %v1029, 0
      %v1243 = vsel %vm1172, %v1033, 0
      %v1246 = vsel %vm1172, %v1039, 0
      %v1249 = vsel %vm1172, %v1043, 0
      %v1252 = vsel %vm1172, %v1049, 0
      %v1255 = vsel %vm1172, %v1053, 0
      %v1258 = vsel %vm1172, %v1059, 0
      %v1261 = vsel %vm1172, %v1063, 0
      %v1264 = vsel %vm1172, %v1069, 0
      %v1267 = vsel %vm1172, %v1073, 0
      %1269 = vmatprep.subr.mxu0 0.0
      %1270 = vmatpush1.xpose.msra.mxu0 %v1267
      %1271 = vmatprep.subr.mxu0 0.0
      %1272 = vmatpush1.xpose.msra.mxu0 %v1264
      %1273 = vmatprep.subr.mxu0 0.0
      %1274 = vmatpush1.xpose.msra.mxu0 %v1261
      %1275 = vmatprep.subr.mxu0 0.0
      %1276 = vmatpush1.xpose.msra.mxu0 %v1258
      %1277 = vmatprep.subr.mxu0 0.0
      %1278 = vmatpush1.xpose.msra.mxu0 %v1255
      %1279 = vmatprep.subr.mxu0 0.0
      %1280 = vmatpush1.xpose.msra.mxu0 %v1252
      %1281 = vmatprep.subr.mxu0 0.0
      %1282 = vmatpush1.xpose.msra.mxu0 %v1249
      %1283 = vmatprep.subr.mxu0 0.0
      %1284 = vmatpush1.xpose.msra.mxu0 %v1246
      %1285 = vmatprep.subr.mxu0 0.0
      %1286 = vmatpush1.xpose.msra.mxu0 %v1243
      %1287 = vmatprep.subr.mxu0 0.0
      %1288 = vmatpush1.xpose.msra.mxu0 %v1240
      %1289 = vmatprep.subr.mxu0 0.0
      %1290 = vmatpush1.xpose.msra.mxu0 %v1237
      %1291 = vmatprep.subr.mxu0 0.0
      %1292 = vmatpush1.xpose.msra.mxu0 %v1234
      %1293 = vmatprep.subr.mxu0 0.0
      %1294 = vmatpush1.xpose.msra.mxu0 %v1231
      %1295 = vmatprep.subr.mxu0 0.0
      %1296 = vmatpush1.xpose.msra.mxu0 %v1228
      %1297 = vmatprep.subr.mxu0 0.0
      %1298 = vmatpush1.xpose.msra.mxu0 %v1225
      %1299 = vmatprep.subr.mxu0 0.0
      %1300 = vmatpush1.xpose.msra.mxu0 %v1222
      %1301 = vmatprep.subr.mxu0 0.0
      %1302 = vmatpush2.xpose.msra.mxu0 0.0
      %1303 = vmatprep.subr.mxu0 0.0
      %1304 = vmatpush2.xpose.msra.mxu0 0.0
      %1305 = vmatprep.subr.mxu0 0.0
      %1306 = vmatpush2.xpose.msra.mxu0 0.0
      %1307 = vmatprep.subr.mxu0 0.0
      %1308 = vmatpush2.xpose.msra.mxu0 0.0
      %1309 = vmatprep.subr.mxu0 0.0
      %1310 = vmatpush2.xpose.msra.mxu0 0.0
      %1311 = vmatprep.subr.mxu0 0.0
      %1312 = vmatpush2.xpose.msra.mxu0 0.0
      %1313 = vmatprep.subr.mxu0 0.0
      %1314 = vmatpush2.xpose.msra.mxu0 0.0
      %1315 = vmatprep.subr.mxu0 0.0
      %1316 = vmatpush2.xpose.msra.mxu0 0.0
      %1317 = vmatprep.subr.mxu0 0.0
      %1318 = vmatpush2.xpose.msra.mxu0 0.0
      %1319 = vmatprep.subr.mxu0 0.0
      %1320 = vmatpush2.xpose.msra.mxu0 0.0
      %1321 = vmatprep.subr.mxu0 0.0
      %1322 = vmatpush2.xpose.msra.mxu0 0.0
      %1323 = vmatprep.subr.mxu0 0.0
      %1324 = vmatpush2.xpose.msra.mxu0 0.0
      %1325 = vmatprep.subr.mxu0 0.0
      %1326 = vmatpush2.xpose.msra.mxu0 0.0
      %1327 = vmatprep.subr.mxu0 0.0
      %1328 = vmatpush2.xpose.msra.mxu0 0.0
      %1329 = vmatprep.subr.mxu0 0.0
      %1330 = vmatpush2.xpose.msra.mxu0 0.0
      %1331 = vmatprep.subr.mxu0 0.0
      %1332 = vmatpush2.xpose.msra.mxu0 0.0
      %1333 = vmatprep.mubr.f32.mxu0 0.0
      %1334 = vmatmul.mubr.f32.gmra.mxu0 %v1174
      %v1335 = vpop.f32.mrf.mxu0
      %v1336 = vadd.f32 0.0, %v1335
      %v1337 = vpop.f32.mrf.mxu0
      %1338 = vmatprep.mubr.f32.mxu0 0.0
      %1339 = vmatmul.mubr.f32.gmra.mxu0 %v1177
      %v1340 = vpop.f32.mrf.mxu0
      %v1341 = vadd.f32 0.0, %v1340
      %v1342 = vpop.f32.mrf.mxu0
      %1343 = vmatprep.mubr.f32.mxu0 0.0
      %1344 = vmatmul.mubr.f32.gmra.mxu0 %v1180
      %v1345 = vpop.f32.mrf.mxu0
      %v1346 = vadd.f32 0.0, %v1345
      %v1347 = vpop.f32.mrf.mxu0
      %1348 = vmatprep.mubr.f32.mxu0 0.0
      %1349 = vmatmul.mubr.f32.gmra.mxu0 %v1183
      %v1350 = vpop.f32.mrf.mxu0
      %v1351 = vadd.f32 0.0, %v1350
      %v1352 = vpop.f32.mrf.mxu0
      %1353 = vmatprep.mubr.f32.mxu0 0.0
      %1354 = vmatmul.mubr.f32.gmra.mxu0 %v1186
      %v1355 = vpop.f32.mrf.mxu0
      %v1356 = vadd.f32 0.0, %v1355
      %v1357 = vpop.f32.mrf.mxu0
      %1358 = vmatprep.mubr.f32.mxu0 0.0
      %1359 = vmatmul.mubr.f32.gmra.mxu0 %v1189
      %v1360 = vpop.f32.mrf.mxu0
      %v1361 = vadd.f32 0.0, %v1360
      %v1362 = vpop.f32.mrf.mxu0
      %1363 = vmatprep.mubr.f32.mxu0 0.0
      %1364 = vmatmul.mubr.f32.gmra.mxu0 %v1192
      %v1365 = vpop.f32.mrf.mxu0
      %v1366 = vadd.f32 0.0, %v1365
      %v1367 = vpop.f32.mrf.mxu0
      %1368 = vmatprep.mubr.f32.mxu0 0.0
      %1369 = vmatmul.mubr.f32.gmra.mxu0 %v1195
      %v1370 = vpop.f32.mrf.mxu0
      %v1371 = vadd.f32 0.0, %v1370
      %v1372 = vpop.f32.mrf.mxu0
      %1373 = vmatprep.mubr.f32.mxu0 0.0
      %1374 = vmatmul.mubr.f32.gmra.mxu0 %v1198
      %v1375 = vpop.f32.mrf.mxu0
      %v1376 = vadd.f32 0.0, %v1375
      %v1377 = vpop.f32.mrf.mxu0
      %1378 = vmatprep.mubr.f32.mxu0 0.0
      %1379 = vmatmul.mubr.f32.gmra.mxu0 %v1201
      %v1380 = vpop.f32.mrf.mxu0
      %v1381 = vadd.f32 0.0, %v1380
      %v1382 = vpop.f32.mrf.mxu0
      %1383 = vmatprep.mubr.f32.mxu0 0.0
      %1384 = vmatmul.mubr.f32.gmra.mxu0 %v1204
      %v1385 = vpop.f32.mrf.mxu0
      %v1386 = vadd.f32 0.0, %v1385
      %v1387 = vpop.f32.mrf.mxu0
      %1388 = vmatprep.mubr.f32.mxu0 0.0
      %1389 = vmatmul.mubr.f32.gmra.mxu0 %v1207
      %v1390 = vpop.f32.mrf.mxu0
      %v1391 = vadd.f32 0.0, %v1390
      %v1392 = vpop.f32.mrf.mxu0
      %1393 = vmatprep.mubr.f32.mxu0 0.0
      %1394 = vmatmul.mubr.f32.gmra.mxu0 %v1210
      %v1395 = vpop.f32.mrf.mxu0
      %v1396 = vadd.f32 0.0, %v1395
      %v1397 = vpop.f32.mrf.mxu0
      %1398 = vmatprep.mubr.f32.mxu0 0.0
      %1399 = vmatmul.mubr.f32.gmra.mxu0 %v1213
      %v1400 = vpop.f32.mrf.mxu0
      %v1401 = vadd.f32 0.0, %v1400
      %v1402 = vpop.f32.mrf.mxu0
      %1403 = vmatprep.mubr.f32.mxu0 0.0
      %1404 = vmatmul.mubr.f32.gmra.mxu0 %v1216
      %v1405 = vpop.f32.mrf.mxu0
      %v1406 = vadd.f32 0.0, %v1405
      %v1407 = vpop.f32.mrf.mxu0
      %1408 = vmatprep.mubr.f32.mxu0 0.0
      %1409 = vmatmul.mubr.f32.gmra.mxu0 %v1219
      %v1410 = vpop.f32.mrf.mxu0
      %v1411 = vadd.f32 0.0, %v1410
      %v1412 = vpop.f32.mrf.mxu0
      %1413 = vdwg.mxu0
      %v1414 = vmul.f32 %v1336, 0.17677669
      %v1415 = vmul.f32 %v1341, 0.17677669
      %v1416 = vmul.f32 %v1346, 0.17677669
      %v1417 = vmul.f32 %v1351, 0.17677669
      %v1418 = vmul.f32 %v1356, 0.17677669
      %v1419 = vmul.f32 %v1361, 0.17677669
      %v1420 = vmul.f32 %v1366, 0.17677669
      %v1421 = vmul.f32 %v1371, 0.17677669
      %v1422 = vmul.f32 %v1376, 0.17677669
      %v1423 = vmul.f32 %v1381, 0.17677669
      %v1424 = vmul.f32 %v1386, 0.17677669
      %v1425 = vmul.f32 %v1391, 0.17677669
      %v1426 = vmul.f32 %v1396, 0.17677669
      %v1427 = vmul.f32 %v1401, 0.17677669
      %v1428 = vmul.f32 %v1406, 0.17677669
      %v1429 = vmul.f32 %v1411, 0.17677669
      %v1431 = vlaneseq
      %v1432 = vshrl.u32 %v1431, 7
      %v1433 = vsub.s32 0, %v1432
      %v1434 = vrot.slane %v776, %v1433
      %v1436 = vadd.f32 %v1414, %v1434
      %v1437 = vadd.f32 %v1415, %v1434
      %v1438 = vadd.f32 %v1416, %v1434
      %v1439 = vadd.f32 %v1417, %v1434
      %v1440 = vadd.f32 %v1418, %v1434
      %v1441 = vadd.f32 %v1419, %v1434
      %v1442 = vadd.f32 %v1420, %v1434
      %v1443 = vadd.f32 %v1421, %v1434
      %v1444 = vadd.f32 %v1422, %v1434
      %v1445 = vadd.f32 %v1423, %v1434
      %v1446 = vadd.f32 %v1424, %v1434
      %v1447 = vadd.f32 %v1425, %v1434
      %v1448 = vadd.f32 %v1426, %v1434
      %v1449 = vadd.f32 %v1427, %v1434
      %v1450 = vadd.f32 %v1428, %v1434
      %v1451 = vadd.f32 %v1429, %v1434
      %1452 = vmax.xlane.f32.xlu0 %v1436
      %v1453 = vpop.xlane.xlu0 %1452
      %1454 = vmax.xlane.f32.xlu0 %v1437
      %v1455 = vpop.xlane.xlu0 %1454
      %1456 = vmax.xlane.f32.xlu0 %v1438
      %v1457 = vpop.xlane.xlu0 %1456
      %1458 = vmax.xlane.f32.xlu0 %v1439
      %v1459 = vpop.xlane.xlu0 %1458
      %1460 = vmax.xlane.f32.xlu0 %v1440
      %v1461 = vpop.xlane.xlu0 %1460
      %1462 = vmax.xlane.f32.xlu0 %v1441
      %v1463 = vpop.xlane.xlu0 %1462
      %1464 = vmax.xlane.f32.xlu0 %v1442
      %v1465 = vpop.xlane.xlu0 %1464
      %1466 = vmax.xlane.f32.xlu0 %v1443
      %v1467 = vpop.xlane.xlu0 %1466
      %1468 = vmax.xlane.f32.xlu0 %v1444
      %v1469 = vpop.xlane.xlu0 %1468
      %1470 = vmax.xlane.f32.xlu0 %v1445
      %v1471 = vpop.xlane.xlu0 %1470
      %1472 = vmax.xlane.f32.xlu0 %v1446
      %v1473 = vpop.xlane.xlu0 %1472
      %1474 = vmax.xlane.f32.xlu0 %v1447
      %v1475 = vpop.xlane.xlu0 %1474
      %1476 = vmax.xlane.f32.xlu0 %v1448
      %v1477 = vpop.xlane.xlu0 %1476
      %1478 = vmax.xlane.f32.xlu0 %v1449
      %v1479 = vpop.xlane.xlu0 %1478
      %1480 = vmax.xlane.f32.xlu0 %v1450
      %v1481 = vpop.xlane.xlu0 %1480
      %1482 = vmax.xlane.f32.xlu0 %v1451
      %v1483 = vpop.xlane.xlu0 %1482
      %v1484 = vsub.f32 %v1436, %v1453
      %v1485 = vsub.f32 %v1437, %v1455
      %v1486 = vsub.f32 %v1438, %v1457
      %v1487 = vsub.f32 %v1439, %v1459
      %v1488 = vsub.f32 %v1440, %v1461
      %v1489 = vsub.f32 %v1441, %v1463
      %v1490 = vsub.f32 %v1442, %v1465
      %v1491 = vsub.f32 %v1443, %v1467
      %v1492 = vsub.f32 %v1444, %v1469
      %v1493 = vsub.f32 %v1445, %v1471
      %v1494 = vsub.f32 %v1446, %v1473
      %v1495 = vsub.f32 %v1447, %v1475
      %v1496 = vsub.f32 %v1448, %v1477
      %v1497 = vsub.f32 %v1449, %v1479
      %v1498 = vsub.f32 %v1450, %v1481
      %v1499 = vsub.f32 %v1451, %v1483
      %v1500 = vmul.f32 %v1484, 1.442695
      %v1501 = vpow.pop %v1500
      %v1502 = vmul.f32 %v1485, 1.442695
      %v1503 = vpow.pop %v1502
      %v1504 = vmul.f32 %v1486, 1.442695
      %v1505 = vpow.pop %v1504
      %v1506 = vmul.f32 %v1487, 1.442695
      %v1507 = vpow.pop %v1506
      %v1508 = vmul.f32 %v1488, 1.442695
      %v1509 = vpow.pop %v1508
      %v1510 = vmul.f32 %v1489, 1.442695
      %v1511 = vpow.pop %v1510
      %v1512 = vmul.f32 %v1490, 1.442695
      %v1513 = vpow.pop %v1512
      %v1514 = vmul.f32 %v1491, 1.442695
      %v1515 = vpow.pop %v1514
      %v1516 = vmul.f32 %v1492, 1.442695
      %v1517 = vpow.pop %v1516
      %v1518 = vmul.f32 %v1493, 1.442695
      %v1519 = vpow.pop %v1518
      %v1520 = vmul.f32 %v1494, 1.442695
      %v1521 = vpow.pop %v1520
      %v1522 = vmul.f32 %v1495, 1.442695
      %v1523 = vpow.pop %v1522
      %v1524 = vmul.f32 %v1496, 1.442695
      %v1525 = vpow.pop %v1524
      %v1526 = vmul.f32 %v1497, 1.442695
      %v1527 = vpow.pop %v1526
      %v1528 = vmul.f32 %v1498, 1.442695
      %v1529 = vpow.pop %v1528
      %v1530 = vmul.f32 %v1499, 1.442695
      %v1531 = vpow.pop %v1530
      %1532 = vadd.xlane.f32.xlu0 %v1501
      %v1533 = vpop.xlane.xlu0 %1532
      %1534 = vadd.xlane.f32.xlu0 %v1503
      %v1535 = vpop.xlane.xlu0 %1534
      %1536 = vadd.xlane.f32.xlu0 %v1505
      %v1537 = vpop.xlane.xlu0 %1536
      %1538 = vadd.xlane.f32.xlu0 %v1507
      %v1539 = vpop.xlane.xlu0 %1538
      %1540 = vadd.xlane.f32.xlu0 %v1509
      %v1541 = vpop.xlane.xlu0 %1540
      %1542 = vadd.xlane.f32.xlu0 %v1511
      %v1543 = vpop.xlane.xlu0 %1542
      %1544 = vadd.xlane.f32.xlu0 %v1513
      %v1545 = vpop.xlane.xlu0 %1544
      %1546 = vadd.xlane.f32.xlu0 %v1515
      %v1547 = vpop.xlane.xlu0 %1546
      %1548 = vadd.xlane.f32.xlu0 %v1517
      %v1549 = vpop.xlane.xlu0 %1548
      %1550 = vadd.xlane.f32.xlu0 %v1519
      %v1551 = vpop.xlane.xlu0 %1550
      %1552 = vadd.xlane.f32.xlu0 %v1521
      %v1553 = vpop.xlane.xlu0 %1552
      %1554 = vadd.xlane.f32.xlu0 %v1523
      %v1555 = vpop.xlane.xlu0 %1554
      %1556 = vadd.xlane.f32.xlu0 %v1525
      %v1557 = vpop.xlane.xlu0 %1556
      %1558 = vadd.xlane.f32.xlu0 %v1527
      %v1559 = vpop.xlane.xlu0 %1558
      %1560 = vadd.xlane.f32.xlu0 %v1529
      %v1561 = vpop.xlane.xlu0 %1560
      %1562 = vadd.xlane.f32.xlu0 %v1531
      %v1563 = vpop.xlane.xlu0 %1562
      %v1564 = vrcp.pop %v1533
      %v1565 = vrcp.pop %v1535
      %v1566 = vrcp.pop %v1537
      %v1567 = vrcp.pop %v1539
      %v1568 = vrcp.pop %v1541
      %v1569 = vrcp.pop %v1543
      %v1570 = vrcp.pop %v1545
      %v1571 = vrcp.pop %v1547
      %v1572 = vrcp.pop %v1549
      %v1573 = vrcp.pop %v1551
      %v1574 = vrcp.pop %v1553
      %v1575 = vrcp.pop %v1555
      %v1576 = vrcp.pop %v1557
      %v1577 = vrcp.pop %v1559
      %v1578 = vrcp.pop %v1561
      %v1579 = vrcp.pop %v1563
      %v1580 = vmul.f32 %v1501, %v1564
      %v1581 = vmul.f32 %v1503, %v1565
      %v1582 = vmul.f32 %v1505, %v1566
      %v1583 = vmul.f32 %v1507, %v1567
      %v1584 = vmul.f32 %v1509, %v1568
      %v1585 = vmul.f32 %v1511, %v1569
      %v1586 = vmul.f32 %v1513, %v1570
      %v1587 = vmul.f32 %v1515, %v1571
      %v1588 = vmul.f32 %v1517, %v1572
      %v1589 = vmul.f32 %v1519, %v1573
      %v1590 = vmul.f32 %v1521, %v1574
      %v1591 = vmul.f32 %v1523, %v1575
      %v1592 = vmul.f32 %v1525, %v1576
      %v1593 = vmul.f32 %v1527, %v1577
      %v1594 = vmul.f32 %v1529, %v1578
      %v1595 = vmul.f32 %v1531, %v1579
      %v1596 = vpack.c.bf16 %v1581, %v1580
      %v1597 = vpack.c.bf16 %v1583, %v1582
      %v1598 = vpack.c.bf16 %v1585, %v1584
      %v1599 = vpack.c.bf16 %v1587, %v1586
      %v1600 = vpack.c.bf16 %v1589, %v1588
      %v1601 = vpack.c.bf16 %v1591, %v1590
      %v1602 = vpack.c.bf16 %v1593, %v1592
      %v1603 = vpack.c.bf16 %v1595, %v1594
      %v1604 = vpack.c.bf16 %v1113, %v1110
      %v1605 = vpack.c.bf16 %v1121, %v1118
      %v1606 = vpack.c.bf16 %v1129, %v1126
      %v1607 = vpack.c.bf16 %v1137, %v1134
      %v1608 = vpack.c.bf16 %v1145, %v1142
      %v1609 = vpack.c.bf16 %v1153, %v1150
      %v1610 = vpack.c.bf16 %v1161, %v1158
      %v1611 = vpack.c.bf16 %v1169, %v1166
      %1612 = vmatprep.subr.bf16.mxu0 0
      %1613 = vmatpush1.bf16.msra.mxu0 %v1611
      %1614 = vmatprep.subr.bf16.mxu0 0
      %1615 = vmatpush1.bf16.msra.mxu0 %v1610
      %1616 = vmatprep.subr.bf16.mxu0 0
      %1617 = vmatpush1.bf16.msra.mxu0 %v1609
      %1618 = vmatprep.subr.bf16.mxu0 0
      %1619 = vmatpush1.bf16.msra.mxu0 %v1608
      %1620 = vmatprep.subr.bf16.mxu0 0
      %1621 = vmatpush1.bf16.msra.mxu0 %v1607
      %1622 = vmatprep.subr.bf16.mxu0 0
      %1623 = vmatpush1.bf16.msra.mxu0 %v1606
      %1624 = vmatprep.subr.bf16.mxu0 0
      %1625 = vmatpush1.bf16.msra.mxu0 %v1605
      %1626 = vmatprep.subr.bf16.mxu0 0
      %1627 = vmatpush1.bf16.msra.mxu0 %v1604
      %1628 = vmatprep.subr.bf16.mxu0 0
      %1629 = vmatpush2.bf16.msra.mxu0 0
      %1630 = vmatprep.subr.bf16.mxu0 0
      %1631 = vmatpush2.bf16.msra.mxu0 0
      %1632 = vmatprep.subr.bf16.mxu0 0
      %1633 = vmatpush2.bf16.msra.mxu0 0
      %1634 = vmatprep.subr.bf16.mxu0 0
      %1635 = vmatpush2.bf16.msra.mxu0 0
      %1636 = vmatprep.subr.bf16.mxu0 0
      %1637 = vmatpush2.bf16.msra.mxu0 0
      %1638 = vmatprep.subr.bf16.mxu0 0
      %1639 = vmatpush2.bf16.msra.mxu0 0
      %1640 = vmatprep.subr.bf16.mxu0 0
      %1641 = vmatpush2.bf16.msra.mxu0 0
      %1642 = vmatprep.subr.bf16.mxu0 0
      %1643 = vmatpush2.bf16.msra.mxu0 0
      %1644 = vmatprep.mubr.bf16.mxu0 0
      %1645 = vmatmul.mubr.bf16.gmra.mxu0 %v1596
      %v1646 = vpop.f32.mrf.mxu0
      %v1647 = vadd.f32 0.0, %v1646
      %v1648 = vpop.f32.mrf.mxu0
      %v1649 = vpop.f32.mrf.mxu0
      %v1650 = vadd.f32 0.0, %v1649
      %v1651 = vpop.f32.mrf.mxu0
      %1652 = vmatprep.mubr.bf16.mxu0 0
      %1653 = vmatmul.mubr.bf16.gmra.mxu0 %v1597
      %v1654 = vpop.f32.mrf.mxu0
      %v1655 = vadd.f32 0.0, %v1654
      %v1656 = vpop.f32.mrf.mxu0
      %v1657 = vpop.f32.mrf.mxu0
      %v1658 = vadd.f32 0.0, %v1657
      %v1659 = vpop.f32.mrf.mxu0
      %1660 = vmatprep.mubr.bf16.mxu0 0
      %1661 = vmatmul.mubr.bf16.gmra.mxu0 %v1598
      %v1662 = vpop.f32.mrf.mxu0
      %v1663 = vadd.f32 0.0, %v1662
      %v1664 = vpop.f32.mrf.mxu0
      %v1665 = vpop.f32.mrf.mxu0
      %v1666 = vadd.f32 0.0, %v1665
      %v1667 = vpop.f32.mrf.mxu0
      %1668 = vmatprep.mubr.bf16.mxu0 0
      %1669 = vmatmul.mubr.bf16.gmra.mxu0 %v1599
      %v1670 = vpop.f32.mrf.mxu0
      %v1671 = vadd.f32 0.0, %v1670
      %v1672 = vpop.f32.mrf.mxu0
      %v1673 = vpop.f32.mrf.mxu0
      %v1674 = vadd.f32 0.0, %v1673
      %v1675 = vpop.f32.mrf.mxu0
      %1676 = vmatprep.mubr.bf16.mxu0 0
      %1677 = vmatmul.mubr.bf16.gmra.mxu0 %v1600
      %v1678 = vpop.f32.mrf.mxu0
      %v1679 = vadd.f32 0.0, %v1678
      %v1680 = vpop.f32.mrf.mxu0
      %v1681 = vpop.f32.mrf.mxu0
      %v1682 = vadd.f32 0.0, %v1681
      %v1683 = vpop.f32.mrf.mxu0
      %1684 = vmatprep.mubr.bf16.mxu0 0
      %1685 = vmatmul.mubr.bf16.gmra.mxu0 %v1601
      %v1686 = vpop.f32.mrf.mxu0
      %v1687 = vadd.f32 0.0, %v1686
      %v1688 = vpop.f32.mrf.mxu0
      %v1689 = vpop.f32.mrf.mxu0
      %v1690 = vadd.f32 0.0, %v1689
      %v1691 = vpop.f32.mrf.mxu0
      %1692 = vmatprep.mubr.bf16.mxu0 0
      %1693 = vmatmul.mubr.bf16.gmra.mxu0 %v1602
      %v1694 = vpop.f32.mrf.mxu0
      %v1695 = vadd.f32 0.0, %v1694
      %v1696 = vpop.f32.mrf.mxu0
      %v1697 = vpop.f32.mrf.mxu0
      %v1698 = vadd.f32 0.0, %v1697
      %v1699 = vpop.f32.mrf.mxu0
      %1700 = vmatprep.mubr.bf16.mxu0 0
      %1701 = vmatmul.mubr.bf16.gmra.mxu0 %v1603
      %v1702 = vpop.f32.mrf.mxu0
      %v1703 = vadd.f32 0.0, %v1702
      %v1704 = vpop.f32.mrf.mxu0
      %v1705 = vpop.f32.mrf.mxu0
      %v1706 = vadd.f32 0.0, %v1705
      %v1707 = vpop.f32.mrf.mxu0
      %1708 = vdwg.mxu0
      %1709 = vrot.lane.b32.xlu0 %v997, 96
      %v1710 = vpop.permute.xlu0 %1709
      %1711 = vrot.lane.b32.xlu0 %v1001, 96
      %v1712 = vpop.permute.xlu0 %1711
      %1713 = vrot.lane.b32.xlu0 %v1007, 96
      %v1714 = vpop.permute.xlu0 %1713
      %1715 = vrot.lane.b32.xlu0 %v1011, 96
      %v1716 = vpop.permute.xlu0 %1715
      %1717 = vrot.lane.b32.xlu0 %v1017, 96
      %v1718 = vpop.permute.xlu0 %1717
      %1719 = vrot.lane.b32.xlu0 %v1021, 96
      %v1720 = vpop.permute.xlu0 %1719
      %1721 = vrot.lane.b32.xlu0 %v1027, 96
      %v1722 = vpop.permute.xlu0 %1721
      %1723 = vrot.lane.b32.xlu0 %v1031, 96
      %v1724 = vpop.permute.xlu0 %1723
      %1725 = vrot.lane.b32.xlu0 %v1037, 96
      %v1726 = vpop.permute.xlu0 %1725
      %1727 = vrot.lane.b32.xlu0 %v1041, 96
      %v1728 = vpop.permute.xlu0 %1727
      %1729 = vrot.lane.b32.xlu0 %v1047, 96
      %v1730 = vpop.permute.xlu0 %1729
      %1731 = vrot.lane.b32.xlu0 %v1051, 96
      %v1732 = vpop.permute.xlu0 %1731
      %1733 = vrot.lane.b32.xlu0 %v1057, 96
      %v1734 = vpop.permute.xlu0 %1733
      %1735 = vrot.lane.b32.xlu0 %v1061, 96
      %v1736 = vpop.permute.xlu0 %1735
      %1737 = vrot.lane.b32.xlu0 %v1067, 96
      %v1738 = vpop.permute.xlu0 %1737
      %1739 = vrot.lane.b32.xlu0 %v1071, 96
      %v1740 = vpop.permute.xlu0 %1739
      %1741 = vrot.lane.b32.xlu0 %v999, 96
      %v1742 = vpop.permute.xlu0 %1741
      %1743 = vrot.lane.b32.xlu0 %v1003, 96
      %v1744 = vpop.permute.xlu0 %1743
      %1745 = vrot.lane.b32.xlu0 %v1009, 96
      %v1746 = vpop.permute.xlu0 %1745
      %1747 = vrot.lane.b32.xlu0 %v1013, 96
      %v1748 = vpop.permute.xlu0 %1747
      %1749 = vrot.lane.b32.xlu0 %v1019, 96
      %v1750 = vpop.permute.xlu0 %1749
      %1751 = vrot.lane.b32.xlu0 %v1023, 96
      %v1752 = vpop.permute.xlu0 %1751
      %1753 = vrot.lane.b32.xlu0 %v1029, 96
      %v1754 = vpop.permute.xlu0 %1753
      %1755 = vrot.lane.b32.xlu0 %v1033, 96
      %v1756 = vpop.permute.xlu0 %1755
      %1757 = vrot.lane.b32.xlu0 %v1039, 96
      %v1758 = vpop.permute.xlu0 %1757
      %1759 = vrot.lane.b32.xlu0 %v1043, 96
      %v1760 = vpop.permute.xlu0 %1759
      %1761 = vrot.lane.b32.xlu0 %v1049, 96
      %v1762 = vpop.permute.xlu0 %1761
      %1763 = vrot.lane.b32.xlu0 %v1053, 96
      %v1764 = vpop.permute.xlu0 %1763
      %1765 = vrot.lane.b32.xlu0 %v1059, 96
      %v1766 = vpop.permute.xlu0 %1765
      %1767 = vrot.lane.b32.xlu0 %v1063, 96
      %v1768 = vpop.permute.xlu0 %1767
      %1769 = vrot.lane.b32.xlu0 %v1069, 96
      %v1770 = vpop.permute.xlu0 %1769
      %1771 = vrot.lane.b32.xlu0 %v1073, 96
      %v1772 = vpop.permute.xlu0 %1771
      %v1773 = vsel %vm1172, %v1710, 0
      %v1775 = vsel %vm1172, %v1712, 0
      %v1777 = vsel %vm1172, %v1714, 0
      %v1779 = vsel %vm1172, %v1716, 0
      %v1781 = vsel %vm1172, %v1718, 0
      %v1783 = vsel %vm1172, %v1720, 0
      %v1785 = vsel %vm1172, %v1722, 0
      %v1787 = vsel %vm1172, %v1724, 0
      %v1789 = vsel %vm1172, %v1726, 0
      %v1791 = vsel %vm1172, %v1728, 0
      %v1793 = vsel %vm1172, %v1730, 0
      %v1795 = vsel %vm1172, %v1732, 0
      %v1797 = vsel %vm1172, %v1734, 0
      %v1799 = vsel %vm1172, %v1736, 0
      %v1801 = vsel %vm1172, %v1738, 0
      %v1803 = vsel %vm1172, %v1740, 0
      %v1805 = vsel %vm1172, %v1742, 0
      %v1807 = vsel %vm1172, %v1744, 0
      %v1809 = vsel %vm1172, %v1746, 0
      %v1811 = vsel %vm1172, %v1748, 0
      %v1813 = vsel %vm1172, %v1750, 0
      %v1815 = vsel %vm1172, %v1752, 0
      %v1817 = vsel %vm1172, %v1754, 0
      %v1819 = vsel %vm1172, %v1756, 0
      %v1821 = vsel %vm1172, %v1758, 0
      %v1823 = vsel %vm1172, %v1760, 0
      %v1825 = vsel %vm1172, %v1762, 0
      %v1827 = vsel %vm1172, %v1764, 0
      %v1829 = vsel %vm1172, %v1766, 0
      %v1831 = vsel %vm1172, %v1768, 0
      %v1833 = vsel %vm1172, %v1770, 0
      %v1835 = vsel %vm1172, %v1772, 0
      %1837 = vmatprep.subr.mxu0 0.0
      %1838 = vmatpush1.xpose.msra.mxu0 %v1835
      %1839 = vmatprep.subr.mxu0 0.0
      %1840 = vmatpush1.xpose.msra.mxu0 %v1833
      %1841 = vmatprep.subr.mxu0 0.0
      %1842 = vmatpush1.xpose.msra.mxu0 %v1831
      %1843 = vmatprep.subr.mxu0 0.0
      %1844 = vmatpush1.xpose.msra.mxu0 %v1829
      %1845 = vmatprep.subr.mxu0 0.0
      %1846 = vmatpush1.xpose.msra.mxu0 %v1827
      %1847 = vmatprep.subr.mxu0 0.0
      %1848 = vmatpush1.xpose.msra.mxu0 %v1825
      %1849 = vmatprep.subr.mxu0 0.0
      %1850 = vmatpush1.xpose.msra.mxu0 %v1823
      %1851 = vmatprep.subr.mxu0 0.0
      %1852 = vmatpush1.xpose.msra.mxu0 %v1821
      %1853 = vmatprep.subr.mxu0 0.0
      %1854 = vmatpush1.xpose.msra.mxu0 %v1819
      %1855 = vmatprep.subr.mxu0 0.0
      %1856 = vmatpush1.xpose.msra.mxu0 %v1817
      %1857 = vmatprep.subr.mxu0 0.0
      %1858 = vmatpush1.xpose.msra.mxu0 %v1815
      %1859 = vmatprep.subr.mxu0 0.0
      %1860 = vmatpush1.xpose.msra.mxu0 %v1813
      %1861 = vmatprep.subr.mxu0 0.0
      %1862 = vmatpush1.xpose.msra.mxu0 %v1811
      %1863 = vmatprep.subr.mxu0 0.0
      %1864 = vmatpush1.xpose.msra.mxu0 %v1809
      %1865 = vmatprep.subr.mxu0 0.0
      %1866 = vmatpush1.xpose.msra.mxu0 %v1807
      %1867 = vmatprep.subr.mxu0 0.0
      %1868 = vmatpush1.xpose.msra.mxu0 %v1805
      %1869 = vmatprep.subr.mxu0 0.0
      %1870 = vmatpush2.xpose.msra.mxu0 0.0
      %1871 = vmatprep.subr.mxu0 0.0
      %1872 = vmatpush2.xpose.msra.mxu0 0.0
      %1873 = vmatprep.subr.mxu0 0.0
      %1874 = vmatpush2.xpose.msra.mxu0 0.0
      %1875 = vmatprep.subr.mxu0 0.0
      %1876 = vmatpush2.xpose.msra.mxu0 0.0
      %1877 = vmatprep.subr.mxu0 0.0
      %1878 = vmatpush2.xpose.msra.mxu0 0.0
      %1879 = vmatprep.subr.mxu0 0.0
      %1880 = vmatpush2.xpose.msra.mxu0 0.0
      %1881 = vmatprep.subr.mxu0 0.0
      %1882 = vmatpush2.xpose.msra.mxu0 0.0
      %1883 = vmatprep.subr.mxu0 0.0
      %1884 = vmatpush2.xpose.msra.mxu0 0.0
      %1885 = vmatprep.subr.mxu0 0.0
      %1886 = vmatpush2.xpose.msra.mxu0 0.0
      %1887 = vmatprep.subr.mxu0 0.0
      %1888 = vmatpush2.xpose.msra.mxu0 0.0
      %1889 = vmatprep.subr.mxu0 0.0
      %1890 = vmatpush2.xpose.msra.mxu0 0.0
      %1891 = vmatprep.subr.mxu0 0.0
      %1892 = vmatpush2.xpose.msra.mxu0 0.0
      %1893 = vmatprep.subr.mxu0 0.0
      %1894 = vmatpush2.xpose.msra.mxu0 0.0
      %1895 = vmatprep.subr.mxu0 0.0
      %1896 = vmatpush2.xpose.msra.mxu0 0.0
      %1897 = vmatprep.subr.mxu0 0.0
      %1898 = vmatpush2.xpose.msra.mxu0 0.0
      %1899 = vmatprep.subr.mxu0 0.0
      %1900 = vmatpush2.xpose.msra.mxu0 0.0
      %1901 = vmatprep.mubr.f32.mxu0 0.0
      %1902 = vmatmul.mubr.f32.gmra.mxu0 %v1773
      %v1903 = vpop.f32.mrf.mxu0
      %v1904 = vadd.f32 0.0, %v1903
      %v1905 = vpop.f32.mrf.mxu0
      %1906 = vmatprep.mubr.f32.mxu0 0.0
      %1907 = vmatmul.mubr.f32.gmra.mxu0 %v1775
      %v1908 = vpop.f32.mrf.mxu0
      %v1909 = vadd.f32 0.0, %v1908
      %v1910 = vpop.f32.mrf.mxu0
      %1911 = vmatprep.mubr.f32.mxu0 0.0
      %1912 = vmatmul.mubr.f32.gmra.mxu0 %v1777
      %v1913 = vpop.f32.mrf.mxu0
      %v1914 = vadd.f32 0.0, %v1913
      %v1915 = vpop.f32.mrf.mxu0
      %1916 = vmatprep.mubr.f32.mxu0 0.0
      %1917 = vmatmul.mubr.f32.gmra.mxu0 %v1779
      %v1918 = vpop.f32.mrf.mxu0
      %v1919 = vadd.f32 0.0, %v1918
      %v1920 = vpop.f32.mrf.mxu0
      %1921 = vmatprep.mubr.f32.mxu0 0.0
      %1922 = vmatmul.mubr.f32.gmra.mxu0 %v1781
      %v1923 = vpop.f32.mrf.mxu0
      %v1924 = vadd.f32 0.0, %v1923
      %v1925 = vpop.f32.mrf.mxu0
      %1926 = vmatprep.mubr.f32.mxu0 0.0
      %1927 = vmatmul.mubr.f32.gmra.mxu0 %v1783
      %v1928 = vpop.f32.mrf.mxu0
      %v1929 = vadd.f32 0.0, %v1928
      %v1930 = vpop.f32.mrf.mxu0
      %1931 = vmatprep.mubr.f32.mxu0 0.0
      %1932 = vmatmul.mubr.f32.gmra.mxu0 %v1785
      %v1933 = vpop.f32.mrf.mxu0
      %v1934 = vadd.f32 0.0, %v1933
      %v1935 = vpop.f32.mrf.mxu0
      %1936 = vmatprep.mubr.f32.mxu0 0.0
      %1937 = vmatmul.mubr.f32.gmra.mxu0 %v1787
      %v1938 = vpop.f32.mrf.mxu0
      %v1939 = vadd.f32 0.0, %v1938
      %v1940 = vpop.f32.mrf.mxu0
      %1941 = vmatprep.mubr.f32.mxu0 0.0
      %1942 = vmatmul.mubr.f32.gmra.mxu0 %v1789
      %v1943 = vpop.f32.mrf.mxu0
      %v1944 = vadd.f32 0.0, %v1943
      %v1945 = vpop.f32.mrf.mxu0
      %1946 = vmatprep.mubr.f32.mxu0 0.0
      %1947 = vmatmul.mubr.f32.gmra.mxu0 %v1791
      %v1948 = vpop.f32.mrf.mxu0
      %v1949 = vadd.f32 0.0, %v1948
      %v1950 = vpop.f32.mrf.mxu0
      %1951 = vmatprep.mubr.f32.mxu0 0.0
      %1952 = vmatmul.mubr.f32.gmra.mxu0 %v1793
      %v1953 = vpop.f32.mrf.mxu0
      %v1954 = vadd.f32 0.0, %v1953
      %v1955 = vpop.f32.mrf.mxu0
      %1956 = vmatprep.mubr.f32.mxu0 0.0
      %1957 = vmatmul.mubr.f32.gmra.mxu0 %v1795
      %v1958 = vpop.f32.mrf.mxu0
      %v1959 = vadd.f32 0.0, %v1958
      %v1960 = vpop.f32.mrf.mxu0
      %1961 = vmatprep.mubr.f32.mxu0 0.0
      %1962 = vmatmul.mubr.f32.gmra.mxu0 %v1797
      %v1963 = vpop.f32.mrf.mxu0
      %v1964 = vadd.f32 0.0, %v1963
      %v1965 = vpop.f32.mrf.mxu0
      %1966 = vmatprep.mubr.f32.mxu0 0.0
      %1967 = vmatmul.mubr.f32.gmra.mxu0 %v1799
      %v1968 = vpop.f32.mrf.mxu0
      %v1969 = vadd.f32 0.0, %v1968
      %v1970 = vpop.f32.mrf.mxu0
      %1971 = vmatprep.mubr.f32.mxu0 0.0
      %1972 = vmatmul.mubr.f32.gmra.mxu0 %v1801
      %v1973 = vpop.f32.mrf.mxu0
      %v1974 = vadd.f32 0.0, %v1973
      %v1975 = vpop.f32.mrf.mxu0
      %1976 = vmatprep.mubr.f32.mxu0 0.0
      %1977 = vmatmul.mubr.f32.gmra.mxu0 %v1803
      %v1978 = vpop.f32.mrf.mxu0
      %v1979 = vadd.f32 0.0, %v1978
      %v1980 = vpop.f32.mrf.mxu0
      %1981 = vdwg.mxu0
      %v1982 = vmul.f32 %v1904, 0.17677669
      %v1983 = vmul.f32 %v1909, 0.17677669
      %v1984 = vmul.f32 %v1914, 0.17677669
      %v1985 = vmul.f32 %v1919, 0.17677669
      %v1986 = vmul.f32 %v1924, 0.17677669
      %v1987 = vmul.f32 %v1929, 0.17677669
      %v1988 = vmul.f32 %v1934, 0.17677669
      %v1989 = vmul.f32 %v1939, 0.17677669
      %v1990 = vmul.f32 %v1944, 0.17677669
      %v1991 = vmul.f32 %v1949, 0.17677669
      %v1992 = vmul.f32 %v1954, 0.17677669
      %v1993 = vmul.f32 %v1959, 0.17677669
      %v1994 = vmul.f32 %v1964, 0.17677669
      %v1995 = vmul.f32 %v1969, 0.17677669
      %v1996 = vmul.f32 %v1974, 0.17677669
      %v1997 = vmul.f32 %v1979, 0.17677669
      %v1998 = vadd.f32 %v1982, %v1434
      %v1999 = vadd.f32 %v1983, %v1434
      %v2000 = vadd.f32 %v1984, %v1434
      %v2001 = vadd.f32 %v1985, %v1434
      %v2002 = vadd.f32 %v1986, %v1434
      %v2003 = vadd.f32 %v1987, %v1434
      %v2004 = vadd.f32 %v1988, %v1434
      %v2005 = vadd.f32 %v1989, %v1434
      %v2006 = vadd.f32 %v1990, %v1434
      %v2007 = vadd.f32 %v1991, %v1434
      %v2008 = vadd.f32 %v1992, %v1434
      %v2009 = vadd.f32 %v1993, %v1434
      %v2010 = vadd.f32 %v1994, %v1434
      %v2011 = vadd.f32 %v1995, %v1434
      %v2012 = vadd.f32 %v1996, %v1434
      %v2013 = vadd.f32 %v1997, %v1434
      %2014 = vmax.xlane.f32.xlu0 %v1998
      %v2015 = vpop.xlane.xlu0 %2014
      %2016 = vmax.xlane.f32.xlu0 %v1999
      %v2017 = vpop.xlane.xlu0 %2016
      %2018 = vmax.xlane.f32.xlu0 %v2000
      %v2019 = vpop.xlane.xlu0 %2018
      %2020 = vmax.xlane.f32.xlu0 %v2001
      %v2021 = vpop.xlane.xlu0 %2020
      %2022 = vmax.xlane.f32.xlu0 %v2002
      %v2023 = vpop.xlane.xlu0 %2022
      %2024 = vmax.xlane.f32.xlu0 %v2003
      %v2025 = vpop.xlane.xlu0 %2024
      %2026 = vmax.xlane.f32.xlu0 %v2004
      %v2027 = vpop.xlane.xlu0 %2026
      %2028 = vmax.xlane.f32.xlu0 %v2005
      %v2029 = vpop.xlane.xlu0 %2028
      %2030 = vmax.xlane.f32.xlu0 %v2006
      %v2031 = vpop.xlane.xlu0 %2030
      %2032 = vmax.xlane.f32.xlu0 %v2007
      %v2033 = vpop.xlane.xlu0 %2032
      %2034 = vmax.xlane.f32.xlu0 %v2008
      %v2035 = vpop.xlane.xlu0 %2034
      %2036 = vmax.xlane.f32.xlu0 %v2009
      %v2037 = vpop.xlane.xlu0 %2036
      %2038 = vmax.xlane.f32.xlu0 %v2010
      %v2039 = vpop.xlane.xlu0 %2038
      %2040 = vmax.xlane.f32.xlu0 %v2011
      %v2041 = vpop.xlane.xlu0 %2040
      %2042 = vmax.xlane.f32.xlu0 %v2012
      %v2043 = vpop.xlane.xlu0 %2042
      %2044 = vmax.xlane.f32.xlu0 %v2013
      %v2045 = vpop.xlane.xlu0 %2044
      %v2046 = vsub.f32 %v1998, %v2015
      %v2047 = vsub.f32 %v1999, %v2017
      %v2048 = vsub.f32 %v2000, %v2019
      %v2049 = vsub.f32 %v2001, %v2021
      %v2050 = vsub.f32 %v2002, %v2023
      %v2051 = vsub.f32 %v2003, %v2025
      %v2052 = vsub.f32 %v2004, %v2027
      %v2053 = vsub.f32 %v2005, %v2029
      %v2054 = vsub.f32 %v2006, %v2031
      %v2055 = vsub.f32 %v2007, %v2033
      %v2056 = vsub.f32 %v2008, %v2035
      %v2057 = vsub.f32 %v2009, %v2037
      %v2058 = vsub.f32 %v2010, %v2039
      %v2059 = vsub.f32 %v2011, %v2041
      %v2060 = vsub.f32 %v2012, %v2043
      %v2061 = vsub.f32 %v2013, %v2045
      %v2062 = vmul.f32 %v2046, 1.442695
      %v2063 = vpow.pop %v2062
      %v2064 = vmul.f32 %v2047, 1.442695
      %v2065 = vpow.pop %v2064
      %v2066 = vmul.f32 %v2048, 1.442695
      %v2067 = vpow.pop %v2066
      %v2068 = vmul.f32 %v2049, 1.442695
      %v2069 = vpow.pop %v2068
      %v2070 = vmul.f32 %v2050, 1.442695
      %v2071 = vpow.pop %v2070
      %v2072 = vmul.f32 %v2051, 1.442695
      %v2073 = vpow.pop %v2072
      %v2074 = vmul.f32 %v2052, 1.442695
      %v2075 = vpow.pop %v2074
      %v2076 = vmul.f32 %v2053, 1.442695
      %v2077 = vpow.pop %v2076
      %v2078 = vmul.f32 %v2054, 1.442695
      %v2079 = vpow.pop %v2078
      %v2080 = vmul.f32 %v2055, 1.442695
      %v2081 = vpow.pop %v2080
      %v2082 = vmul.f32 %v2056, 1.442695
      %v2083 = vpow.pop %v2082
      %v2084 = vmul.f32 %v2057, 1.442695
      %v2085 = vpow.pop %v2084
      %v2086 = vmul.f32 %v2058, 1.442695
      %v2087 = vpow.pop %v2086
      %v2088 = vmul.f32 %v2059, 1.442695
      %v2089 = vpow.pop %v2088
      %v2090 = vmul.f32 %v2060, 1.442695
      %v2091 = vpow.pop %v2090
      %v2092 = vmul.f32 %v2061, 1.442695
      %v2093 = vpow.pop %v2092
      %2094 = vadd.xlane.f32.xlu0 %v2063
      %v2095 = vpop.xlane.xlu0 %2094
      %2096 = vadd.xlane.f32.xlu0 %v2065
      %v2097 = vpop.xlane.xlu0 %2096
      %2098 = vadd.xlane.f32.xlu0 %v2067
      %v2099 = vpop.xlane.xlu0 %2098
      %2100 = vadd.xlane.f32.xlu0 %v2069
      %v2101 = vpop.xlane.xlu0 %2100
      %2102 = vadd.xlane.f32.xlu0 %v2071
      %v2103 = vpop.xlane.xlu0 %2102
      %2104 = vadd.xlane.f32.xlu0 %v2073
      %v2105 = vpop.xlane.xlu0 %2104
      %2106 = vadd.xlane.f32.xlu0 %v2075
      %v2107 = vpop.xlane.xlu0 %2106
      %2108 = vadd.xlane.f32.xlu0 %v2077
      %v2109 = vpop.xlane.xlu0 %2108
      %2110 = vadd.xlane.f32.xlu0 %v2079
      %v2111 = vpop.xlane.xlu0 %2110
      %2112 = vadd.xlane.f32.xlu0 %v2081
      %v2113 = vpop.xlane.xlu0 %2112
      %2114 = vadd.xlane.f32.xlu0 %v2083
      %v2115 = vpop.xlane.xlu0 %2114
      %2116 = vadd.xlane.f32.xlu0 %v2085
      %v2117 = vpop.xlane.xlu0 %2116
      %2118 = vadd.xlane.f32.xlu0 %v2087
      %v2119 = vpop.xlane.xlu0 %2118
      %2120 = vadd.xlane.f32.xlu0 %v2089
      %v2121 = vpop.xlane.xlu0 %2120
      %2122 = vadd.xlane.f32.xlu0 %v2091
      %v2123 = vpop.xlane.xlu0 %2122
      %2124 = vadd.xlane.f32.xlu0 %v2093
      %v2125 = vpop.xlane.xlu0 %2124
      %v2126 = vrcp.pop %v2095
      %v2127 = vrcp.pop %v2097
      %v2128 = vrcp.pop %v2099
      %v2129 = vrcp.pop %v2101
      %v2130 = vrcp.pop %v2103
      %v2131 = vrcp.pop %v2105
      %v2132 = vrcp.pop %v2107
      %v2133 = vrcp.pop %v2109
      %v2134 = vrcp.pop %v2111
      %v2135 = vrcp.pop %v2113
      %v2136 = vrcp.pop %v2115
      %v2137 = vrcp.pop %v2117
      %v2138 = vrcp.pop %v2119
      %v2139 = vrcp.pop %v2121
      %v2140 = vrcp.pop %v2123
      %v2141 = vrcp.pop %v2125
      %v2142 = vmul.f32 %v2063, %v2126
      %v2143 = vmul.f32 %v2065, %v2127
      %v2144 = vmul.f32 %v2067, %v2128
      %v2145 = vmul.f32 %v2069, %v2129
      %v2146 = vmul.f32 %v2071, %v2130
      %v2147 = vmul.f32 %v2073, %v2131
      %v2148 = vmul.f32 %v2075, %v2132
      %v2149 = vmul.f32 %v2077, %v2133
      %v2150 = vmul.f32 %v2079, %v2134
      %v2151 = vmul.f32 %v2081, %v2135
      %v2152 = vmul.f32 %v2083, %v2136
      %v2153 = vmul.f32 %v2085, %v2137
      %v2154 = vmul.f32 %v2087, %v2138
      %v2155 = vmul.f32 %v2089, %v2139
      %v2156 = vmul.f32 %v2091, %v2140
      %v2157 = vmul.f32 %v2093, %v2141
      %v2158 = vpack.c.bf16 %v2143, %v2142
      %v2159 = vpack.c.bf16 %v2145, %v2144
      %v2160 = vpack.c.bf16 %v2147, %v2146
      %v2161 = vpack.c.bf16 %v2149, %v2148
      %v2162 = vpack.c.bf16 %v2151, %v2150
      %v2163 = vpack.c.bf16 %v2153, %v2152
      %v2164 = vpack.c.bf16 %v2155, %v2154
      %v2165 = vpack.c.bf16 %v2157, %v2156
      %2174 = vrot.lane.b32.xlu0 %v1604, 96
      %v2175 = vpop.permute.xlu0 %2174
      %2176 = vrot.lane.b32.xlu0 %v1605, 96
      %v2177 = vpop.permute.xlu0 %2176
      %2178 = vrot.lane.b32.xlu0 %v1606, 96
      %v2179 = vpop.permute.xlu0 %2178
      %2180 = vrot.lane.b32.xlu0 %v1607, 96
      %v2181 = vpop.permute.xlu0 %2180
      %2182 = vrot.lane.b32.xlu0 %v1608, 96
      %v2183 = vpop.permute.xlu0 %2182
      %2184 = vrot.lane.b32.xlu0 %v1609, 96
      %v2185 = vpop.permute.xlu0 %2184
      %2186 = vrot.lane.b32.xlu0 %v1610, 96
      %v2187 = vpop.permute.xlu0 %2186
      %2188 = vrot.lane.b32.xlu0 %v1611, 96
      %v2189 = vpop.permute.xlu0 %2188
      %2198 = vmatprep.subr.bf16.mxu0 0
      %2199 = vmatpush1.bf16.msra.mxu0 %v2189
      %2200 = vmatprep.subr.bf16.mxu0 0
      %2201 = vmatpush1.bf16.msra.mxu0 %v2187
      %2202 = vmatprep.subr.bf16.mxu0 0
      %2203 = vmatpush1.bf16.msra.mxu0 %v2185
      %2204 = vmatprep.subr.bf16.mxu0 0
      %2205 = vmatpush1.bf16.msra.mxu0 %v2183
      %2206 = vmatprep.subr.bf16.mxu0 0
      %2207 = vmatpush1.bf16.msra.mxu0 %v2181
      %2208 = vmatprep.subr.bf16.mxu0 0
      %2209 = vmatpush1.bf16.msra.mxu0 %v2179
      %2210 = vmatprep.subr.bf16.mxu0 0
      %2211 = vmatpush1.bf16.msra.mxu0 %v2177
      %2212 = vmatprep.subr.bf16.mxu0 0
      %2213 = vmatpush1.bf16.msra.mxu0 %v2175
      %2214 = vmatprep.subr.bf16.mxu0 0
      %2215 = vmatpush2.bf16.msra.mxu0 0
      %2216 = vmatprep.subr.bf16.mxu0 0
      %2217 = vmatpush2.bf16.msra.mxu0 0
      %2218 = vmatprep.subr.bf16.mxu0 0
      %2219 = vmatpush2.bf16.msra.mxu0 0
      %2220 = vmatprep.subr.bf16.mxu0 0
      %2221 = vmatpush2.bf16.msra.mxu0 0
      %2222 = vmatprep.subr.bf16.mxu0 0
      %2223 = vmatpush2.bf16.msra.mxu0 0
      %2224 = vmatprep.subr.bf16.mxu0 0
      %2225 = vmatpush2.bf16.msra.mxu0 0
      %2226 = vmatprep.subr.bf16.mxu0 0
      %2227 = vmatpush2.bf16.msra.mxu0 0
      %2228 = vmatprep.subr.bf16.mxu0 0
      %2229 = vmatpush2.bf16.msra.mxu0 0
      %2230 = vmatprep.mubr.bf16.mxu0 0
      %2231 = vmatmul.mubr.bf16.gmra.mxu0 %v2158
      %v2232 = vpop.f32.mrf.mxu0
      %v2233 = vadd.f32 0.0, %v2232
      %v2234 = vpop.f32.mrf.mxu0
      %v2235 = vpop.f32.mrf.mxu0
      %v2236 = vadd.f32 0.0, %v2235
      %v2237 = vpop.f32.mrf.mxu0
      %2238 = vmatprep.mubr.bf16.mxu0 0
      %2239 = vmatmul.mubr.bf16.gmra.mxu0 %v2159
      %v2240 = vpop.f32.mrf.mxu0
      %v2241 = vadd.f32 0.0, %v2240
      %v2242 = vpop.f32.mrf.mxu0
      %v2243 = vpop.f32.mrf.mxu0
      %v2244 = vadd.f32 0.0, %v2243
      %v2245 = vpop.f32.mrf.mxu0
      %2246 = vmatprep.mubr.bf16.mxu0 0
      %2247 = vmatmul.mubr.bf16.gmra.mxu0 %v2160
      %v2248 = vpop.f32.mrf.mxu0
      %v2249 = vadd.f32 0.0, %v2248
      %v2250 = vpop.f32.mrf.mxu0
      %v2251 = vpop.f32.mrf.mxu0
      %v2252 = vadd.f32 0.0, %v2251
      %v2253 = vpop.f32.mrf.mxu0
      %2254 = vmatprep.mubr.bf16.mxu0 0
      %2255 = vmatmul.mubr.bf16.gmra.mxu0 %v2161
      %v2256 = vpop.f32.mrf.mxu0
      %v2257 = vadd.f32 0.0, %v2256
      %v2258 = vpop.f32.mrf.mxu0
      %v2259 = vpop.f32.mrf.mxu0
      %v2260 = vadd.f32 0.0, %v2259
      %v2261 = vpop.f32.mrf.mxu0
      %2262 = vmatprep.mubr.bf16.mxu0 0
      %2263 = vmatmul.mubr.bf16.gmra.mxu0 %v2162
      %v2264 = vpop.f32.mrf.mxu0
      %v2265 = vadd.f32 0.0, %v2264
      %v2266 = vpop.f32.mrf.mxu0
      %v2267 = vpop.f32.mrf.mxu0
      %v2268 = vadd.f32 0.0, %v2267
      %v2269 = vpop.f32.mrf.mxu0
      %2270 = vmatprep.mubr.bf16.mxu0 0
      %2271 = vmatmul.mubr.bf16.gmra.mxu0 %v2163
      %v2272 = vpop.f32.mrf.mxu0
      %v2273 = vadd.f32 0.0, %v2272
      %v2274 = vpop.f32.mrf.mxu0
      %v2275 = vpop.f32.mrf.mxu0
      %v2276 = vadd.f32 0.0, %v2275
      %v2277 = vpop.f32.mrf.mxu0
      %2278 = vmatprep.mubr.bf16.mxu0 0
      %2279 = vmatmul.mubr.bf16.gmra.mxu0 %v2164
      %v2280 = vpop.f32.mrf.mxu0
      %v2281 = vadd.f32 0.0, %v2280
      %v2282 = vpop.f32.mrf.mxu0
      %v2283 = vpop.f32.mrf.mxu0
      %v2284 = vadd.f32 0.0, %v2283
      %v2285 = vpop.f32.mrf.mxu0
      %2286 = vmatprep.mubr.bf16.mxu0 0
      %2287 = vmatmul.mubr.bf16.gmra.mxu0 %v2165
      %v2288 = vpop.f32.mrf.mxu0
      %v2289 = vadd.f32 0.0, %v2288
      %v2290 = vpop.f32.mrf.mxu0
      %v2291 = vpop.f32.mrf.mxu0
      %v2292 = vadd.f32 0.0, %v2291
      %v2293 = vpop.f32.mrf.mxu0
      %2294 = vdwg.mxu0
      %2295 = vrot.lane.b32.xlu0 %v997, 64
      %v2296 = vpop.permute.xlu0 %2295
      %2297 = vrot.lane.b32.xlu0 %v1001, 64
      %v2298 = vpop.permute.xlu0 %2297
      %2299 = vrot.lane.b32.xlu0 %v1007, 64
      %v2300 = vpop.permute.xlu0 %2299
      %2301 = vrot.lane.b32.xlu0 %v1011, 64
      %v2302 = vpop.permute.xlu0 %2301
      %2303 = vrot.lane.b32.xlu0 %v1017, 64
      %v2304 = vpop.permute.xlu0 %2303
      %2305 = vrot.lane.b32.xlu0 %v1021, 64
      %v2306 = vpop.permute.xlu0 %2305
      %2307 = vrot.lane.b32.xlu0 %v1027, 64
      %v2308 = vpop.permute.xlu0 %2307
      %2309 = vrot.lane.b32.xlu0 %v1031, 64
      %v2310 = vpop.permute.xlu0 %2309
      %2311 = vrot.lane.b32.xlu0 %v1037, 64
      %v2312 = vpop.permute.xlu0 %2311
      %2313 = vrot.lane.b32.xlu0 %v1041, 64
      %v2314 = vpop.permute.xlu0 %2313
      %2315 = vrot.lane.b32.xlu0 %v1047, 64
      %v2316 = vpop.permute.xlu0 %2315
      %2317 = vrot.lane.b32.xlu0 %v1051, 64
      %v2318 = vpop.permute.xlu0 %2317
      %2319 = vrot.lane.b32.xlu0 %v1057, 64
      %v2320 = vpop.permute.xlu0 %2319
      %2321 = vrot.lane.b32.xlu0 %v1061, 64
      %v2322 = vpop.permute.xlu0 %2321
      %2323 = vrot.lane.b32.xlu0 %v1067, 64
      %v2324 = vpop.permute.xlu0 %2323
      %2325 = vrot.lane.b32.xlu0 %v1071, 64
      %v2326 = vpop.permute.xlu0 %2325
      %2327 = vrot.lane.b32.xlu0 %v999, 64
      %v2328 = vpop.permute.xlu0 %2327
      %2329 = vrot.lane.b32.xlu0 %v1003, 64
      %v2330 = vpop.permute.xlu0 %2329
      %2331 = vrot.lane.b32.xlu0 %v1009, 64
      %v2332 = vpop.permute.xlu0 %2331
      %2333 = vrot.lane.b32.xlu0 %v1013, 64
      %v2334 = vpop.permute.xlu0 %2333
      %2335 = vrot.lane.b32.xlu0 %v1019, 64
      %v2336 = vpop.permute.xlu0 %2335
      %2337 = vrot.lane.b32.xlu0 %v1023, 64
      %v2338 = vpop.permute.xlu0 %2337
      %2339 = vrot.lane.b32.xlu0 %v1029, 64
      %v2340 = vpop.permute.xlu0 %2339
      %2341 = vrot.lane.b32.xlu0 %v1033, 64
      %v2342 = vpop.permute.xlu0 %2341
      %2343 = vrot.lane.b32.xlu0 %v1039, 64
      %v2344 = vpop.permute.xlu0 %2343
      %2345 = vrot.lane.b32.xlu0 %v1043, 64
      %v2346 = vpop.permute.xlu0 %2345
      %2347 = vrot.lane.b32.xlu0 %v1049, 64
      %v2348 = vpop.permute.xlu0 %2347
      %2349 = vrot.lane.b32.xlu0 %v1053, 64
      %v2350 = vpop.permute.xlu0 %2349
      %2351 = vrot.lane.b32.xlu0 %v1059, 64
      %v2352 = vpop.permute.xlu0 %2351
      %2353 = vrot.lane.b32.xlu0 %v1063, 64
      %v2354 = vpop.permute.xlu0 %2353
      %2355 = vrot.lane.b32.xlu0 %v1069, 64
      %v2356 = vpop.permute.xlu0 %2355
      %2357 = vrot.lane.b32.xlu0 %v1073, 64
      %v2358 = vpop.permute.xlu0 %2357
      %v2359 = vsel %vm1172, %v2296, 0
      %v2361 = vsel %vm1172, %v2298, 0
      %v2363 = vsel %vm1172, %v2300, 0
      %v2365 = vsel %vm1172, %v2302, 0
      %v2367 = vsel %vm1172, %v2304, 0
      %v2369 = vsel %vm1172, %v2306, 0
      %v2371 = vsel %vm1172, %v2308, 0
      %v2373 = vsel %vm1172, %v2310, 0
      %v2375 = vsel %vm1172, %v2312, 0
      %v2377 = vsel %vm1172, %v2314, 0
      %v2379 = vsel %vm1172, %v2316, 0
      %v2381 = vsel %vm1172, %v2318, 0
      %v2383 = vsel %vm1172, %v2320, 0
      %v2385 = vsel %vm1172, %v2322, 0
      %v2387 = vsel %vm1172, %v2324, 0
      %v2389 = vsel %vm1172, %v2326, 0
      %v2391 = vsel %vm1172, %v2328, 0
      %v2393 = vsel %vm1172, %v2330, 0
      %v2395 = vsel %vm1172, %v2332, 0
      %v2397 = vsel %vm1172, %v2334, 0
      %v2399 = vsel %vm1172, %v2336, 0
      %v2401 = vsel %vm1172, %v2338, 0
      %v2403 = vsel %vm1172, %v2340, 0
      %v2405 = vsel %vm1172, %v2342, 0
      %v2407 = vsel %vm1172, %v2344, 0
      %v2409 = vsel %vm1172, %v2346, 0
      %v2411 = vsel %vm1172, %v2348, 0
      %v2413 = vsel %vm1172, %v2350, 0
      %v2415 = vsel %vm1172, %v2352, 0
      %v2417 = vsel %vm1172, %v2354, 0
      %v2419 = vsel %vm1172, %v2356, 0
      %v2421 = vsel %vm1172, %v2358, 0
      %2423 = vmatprep.subr.mxu0 0.0
      %2424 = vmatpush1.xpose.msra.mxu0 %v2421
      %2425 = vmatprep.subr.mxu0 0.0
      %2426 = vmatpush1.xpose.msra.mxu0 %v2419
      %2427 = vmatprep.subr.mxu0 0.0
      %2428 = vmatpush1.xpose.msra.mxu0 %v2417
      %2429 = vmatprep.subr.mxu0 0.0
      %2430 = vmatpush1.xpose.msra.mxu0 %v2415
      %2431 = vmatprep.subr.mxu0 0.0
      %2432 = vmatpush1.xpose.msra.mxu0 %v2413
      %2433 = vmatprep.subr.mxu0 0.0
      %2434 = vmatpush1.xpose.msra.mxu0 %v2411
      %2435 = vmatprep.subr.mxu0 0.0
      %2436 = vmatpush1.xpose.msra.mxu0 %v2409
      %2437 = vmatprep.subr.mxu0 0.0
      %2438 = vmatpush1.xpose.msra.mxu0 %v2407
      %2439 = vmatprep.subr.mxu0 0.0
      %2440 = vmatpush1.xpose.msra.mxu0 %v2405
      %2441 = vmatprep.subr.mxu0 0.0
      %2442 = vmatpush1.xpose.msra.mxu0 %v2403
      %2443 = vmatprep.subr.mxu0 0.0
      %2444 = vmatpush1.xpose.msra.mxu0 %v2401
      %2445 = vmatprep.subr.mxu0 0.0
      %2446 = vmatpush1.xpose.msra.mxu0 %v2399
      %2447 = vmatprep.subr.mxu0 0.0
      %2448 = vmatpush1.xpose.msra.mxu0 %v2397
      %2449 = vmatprep.subr.mxu0 0.0
      %2450 = vmatpush1.xpose.msra.mxu0 %v2395
      %2451 = vmatprep.subr.mxu0 0.0
      %2452 = vmatpush1.xpose.msra.mxu0 %v2393
      %2453 = vmatprep.subr.mxu0 0.0
      %2454 = vmatpush1.xpose.msra.mxu0 %v2391
      %2455 = vmatprep.subr.mxu0 0.0
      %2456 = vmatpush2.xpose.msra.mxu0 0.0
      %2457 = vmatprep.subr.mxu0 0.0
      %2458 = vmatpush2.xpose.msra.mxu0 0.0
      %2459 = vmatprep.subr.mxu0 0.0
      %2460 = vmatpush2.xpose.msra.mxu0 0.0
      %2461 = vmatprep.subr.mxu0 0.0
      %2462 = vmatpush2.xpose.msra.mxu0 0.0
      %2463 = vmatprep.subr.mxu0 0.0
      %2464 = vmatpush2.xpose.msra.mxu0 0.0
      %2465 = vmatprep.subr.mxu0 0.0
      %2466 = vmatpush2.xpose.msra.mxu0 0.0
      %2467 = vmatprep.subr.mxu0 0.0
      %2468 = vmatpush2.xpose.msra.mxu0 0.0
      %2469 = vmatprep.subr.mxu0 0.0
      %2470 = vmatpush2.xpose.msra.mxu0 0.0
      %2471 = vmatprep.subr.mxu0 0.0
      %2472 = vmatpush2.xpose.msra.mxu0 0.0
      %2473 = vmatprep.subr.mxu0 0.0
      %2474 = vmatpush2.xpose.msra.mxu0 0.0
      %2475 = vmatprep.subr.mxu0 0.0
      %2476 = vmatpush2.xpose.msra.mxu0 0.0
      %2477 = vmatprep.subr.mxu0 0.0
      %2478 = vmatpush2.xpose.msra.mxu0 0.0
      %2479 = vmatprep.subr.mxu0 0.0
      %2480 = vmatpush2.xpose.msra.mxu0 0.0
      %2481 = vmatprep.subr.mxu0 0.0
      %2482 = vmatpush2.xpose.msra.mxu0 0.0
      %2483 = vmatprep.subr.mxu0 0.0
      %2484 = vmatpush2.xpose.msra.mxu0 0.0
      %2485 = vmatprep.subr.mxu0 0.0
      %2486 = vmatpush2.xpose.msra.mxu0 0.0
      %2487 = vmatprep.mubr.f32.mxu0 0.0
      %2488 = vmatmul.mubr.f32.gmra.mxu0 %v2359
      %v2489 = vpop.f32.mrf.mxu0
      %v2490 = vadd.f32 0.0, %v2489
      %v2491 = vpop.f32.mrf.mxu0
      %2492 = vmatprep.mubr.f32.mxu0 0.0
      %2493 = vmatmul.mubr.f32.gmra.mxu0 %v2361
      %v2494 = vpop.f32.mrf.mxu0
      %v2495 = vadd.f32 0.0, %v2494
      %v2496 = vpop.f32.mrf.mxu0
      %2497 = vmatprep.mubr.f32.mxu0 0.0
      %2498 = vmatmul.mubr.f32.gmra.mxu0 %v2363
      %v2499 = vpop.f32.mrf.mxu0
      %v2500 = vadd.f32 0.0, %v2499
      %v2501 = vpop.f32.mrf.mxu0
      %2502 = vmatprep.mubr.f32.mxu0 0.0
      %2503 = vmatmul.mubr.f32.gmra.mxu0 %v2365
      %v2504 = vpop.f32.mrf.mxu0
      %v2505 = vadd.f32 0.0, %v2504
      %v2506 = vpop.f32.mrf.mxu0
      %2507 = vmatprep.mubr.f32.mxu0 0.0
      %2508 = vmatmul.mubr.f32.gmra.mxu0 %v2367
      %v2509 = vpop.f32.mrf.mxu0
      %v2510 = vadd.f32 0.0, %v2509
      %v2511 = vpop.f32.mrf.mxu0
      %2512 = vmatprep.mubr.f32.mxu0 0.0
      %2513 = vmatmul.mubr.f32.gmra.mxu0 %v2369
      %v2514 = vpop.f32.mrf.mxu0
      %v2515 = vadd.f32 0.0, %v2514
      %v2516 = vpop.f32.mrf.mxu0
      %2517 = vmatprep.mubr.f32.mxu0 0.0
      %2518 = vmatmul.mubr.f32.gmra.mxu0 %v2371
      %v2519 = vpop.f32.mrf.mxu0
      %v2520 = vadd.f32 0.0, %v2519
      %v2521 = vpop.f32.mrf.mxu0
      %2522 = vmatprep.mubr.f32.mxu0 0.0
      %2523 = vmatmul.mubr.f32.gmra.mxu0 %v2373
      %v2524 = vpop.f32.mrf.mxu0
      %v2525 = vadd.f32 0.0, %v2524
      %v2526 = vpop.f32.mrf.mxu0
      %2527 = vmatprep.mubr.f32.mxu0 0.0
      %2528 = vmatmul.mubr.f32.gmra.mxu0 %v2375
      %v2529 = vpop.f32.mrf.mxu0
      %v2530 = vadd.f32 0.0, %v2529
      %v2531 = vpop.f32.mrf.mxu0
      %2532 = vmatprep.mubr.f32.mxu0 0.0
      %2533 = vmatmul.mubr.f32.gmra.mxu0 %v2377
      %v2534 = vpop.f32.mrf.mxu0
      %v2535 = vadd.f32 0.0, %v2534
      %v2536 = vpop.f32.mrf.mxu0
      %2537 = vmatprep.mubr.f32.mxu0 0.0
      %2538 = vmatmul.mubr.f32.gmra.mxu0 %v2379
      %v2539 = vpop.f32.mrf.mxu0
      %v2540 = vadd.f32 0.0, %v2539
      %v2541 = vpop.f32.mrf.mxu0
      %2542 = vmatprep.mubr.f32.mxu0 0.0
      %2543 = vmatmul.mubr.f32.gmra.mxu0 %v2381
      %v2544 = vpop.f32.mrf.mxu0
      %v2545 = vadd.f32 0.0, %v2544
      %v2546 = vpop.f32.mrf.mxu0
      %2547 = vmatprep.mubr.f32.mxu0 0.0
      %2548 = vmatmul.mubr.f32.gmra.mxu0 %v2383
      %v2549 = vpop.f32.mrf.mxu0
      %v2550 = vadd.f32 0.0, %v2549
      %v2551 = vpop.f32.mrf.mxu0
      %2552 = vmatprep.mubr.f32.mxu0 0.0
      %2553 = vmatmul.mubr.f32.gmra.mxu0 %v2385
      %v2554 = vpop.f32.mrf.mxu0
      %v2555 = vadd.f32 0.0, %v2554
      %v2556 = vpop.f32.mrf.mxu0
      %2557 = vmatprep.mubr.f32.mxu0 0.0
      %2558 = vmatmul.mubr.f32.gmra.mxu0 %v2387
      %v2559 = vpop.f32.mrf.mxu0
      %v2560 = vadd.f32 0.0, %v2559
      %v2561 = vpop.f32.mrf.mxu0
      %2562 = vmatprep.mubr.f32.mxu0 0.0
      %2563 = vmatmul.mubr.f32.gmra.mxu0 %v2389
      %v2564 = vpop.f32.mrf.mxu0
      %v2565 = vadd.f32 0.0, %v2564
      %v2566 = vpop.f32.mrf.mxu0
      %2567 = vdwg.mxu0
      %v2568 = vmul.f32 %v2490, 0.17677669
      %v2569 = vmul.f32 %v2495, 0.17677669
      %v2570 = vmul.f32 %v2500, 0.17677669
      %v2571 = vmul.f32 %v2505, 0.17677669
      %v2572 = vmul.f32 %v2510, 0.17677669
      %v2573 = vmul.f32 %v2515, 0.17677669
      %v2574 = vmul.f32 %v2520, 0.17677669
      %v2575 = vmul.f32 %v2525, 0.17677669
      %v2576 = vmul.f32 %v2530, 0.17677669
      %v2577 = vmul.f32 %v2535, 0.17677669
      %v2578 = vmul.f32 %v2540, 0.17677669
      %v2579 = vmul.f32 %v2545, 0.17677669
      %v2580 = vmul.f32 %v2550, 0.17677669
      %v2581 = vmul.f32 %v2555, 0.17677669
      %v2582 = vmul.f32 %v2560, 0.17677669
      %v2583 = vmul.f32 %v2565, 0.17677669
      %v2584 = vadd.f32 %v2568, %v1434
      %v2585 = vadd.f32 %v2569, %v1434
      %v2586 = vadd.f32 %v2570, %v1434
      %v2587 = vadd.f32 %v2571, %v1434
      %v2588 = vadd.f32 %v2572, %v1434
      %v2589 = vadd.f32 %v2573, %v1434
      %v2590 = vadd.f32 %v2574, %v1434
      %v2591 = vadd.f32 %v2575, %v1434
      %v2592 = vadd.f32 %v2576, %v1434
      %v2593 = vadd.f32 %v2577, %v1434
      %v2594 = vadd.f32 %v2578, %v1434
      %v2595 = vadd.f32 %v2579, %v1434
      %v2596 = vadd.f32 %v2580, %v1434
      %v2597 = vadd.f32 %v2581, %v1434
      %v2598 = vadd.f32 %v2582, %v1434
      %v2599 = vadd.f32 %v2583, %v1434
      %2600 = vmax.xlane.f32.xlu0 %v2584
      %v2601 = vpop.xlane.xlu0 %2600
      %2602 = vmax.xlane.f32.xlu0 %v2585
      %v2603 = vpop.xlane.xlu0 %2602
      %2604 = vmax.xlane.f32.xlu0 %v2586
      %v2605 = vpop.xlane.xlu0 %2604
      %2606 = vmax.xlane.f32.xlu0 %v2587
      %v2607 = vpop.xlane.xlu0 %2606
      %2608 = vmax.xlane.f32.xlu0 %v2588
      %v2609 = vpop.xlane.xlu0 %2608
      %2610 = vmax.xlane.f32.xlu0 %v2589
      %v2611 = vpop.xlane.xlu0 %2610
      %2612 = vmax.xlane.f32.xlu0 %v2590
      %v2613 = vpop.xlane.xlu0 %2612
      %2614 = vmax.xlane.f32.xlu0 %v2591
      %v2615 = vpop.xlane.xlu0 %2614
      %2616 = vmax.xlane.f32.xlu0 %v2592
      %v2617 = vpop.xlane.xlu0 %2616
      %2618 = vmax.xlane.f32.xlu0 %v2593
      %v2619 = vpop.xlane.xlu0 %2618
      %2620 = vmax.xlane.f32.xlu0 %v2594
      %v2621 = vpop.xlane.xlu0 %2620
      %2622 = vmax.xlane.f32.xlu0 %v2595
      %v2623 = vpop.xlane.xlu0 %2622
      %2624 = vmax.xlane.f32.xlu0 %v2596
      %v2625 = vpop.xlane.xlu0 %2624
      %2626 = vmax.xlane.f32.xlu0 %v2597
      %v2627 = vpop.xlane.xlu0 %2626
      %2628 = vmax.xlane.f32.xlu0 %v2598
      %v2629 = vpop.xlane.xlu0 %2628
      %2630 = vmax.xlane.f32.xlu0 %v2599
      %v2631 = vpop.xlane.xlu0 %2630
      %v2632 = vsub.f32 %v2584, %v2601
      %v2633 = vsub.f32 %v2585, %v2603
      %v2634 = vsub.f32 %v2586, %v2605
      %v2635 = vsub.f32 %v2587, %v2607
      %v2636 = vsub.f32 %v2588, %v2609
      %v2637 = vsub.f32 %v2589, %v2611
      %v2638 = vsub.f32 %v2590, %v2613
      %v2639 = vsub.f32 %v2591, %v2615
      %v2640 = vsub.f32 %v2592, %v2617
      %v2641 = vsub.f32 %v2593, %v2619
      %v2642 = vsub.f32 %v2594, %v2621
      %v2643 = vsub.f32 %v2595, %v2623
      %v2644 = vsub.f32 %v2596, %v2625
      %v2645 = vsub.f32 %v2597, %v2627
      %v2646 = vsub.f32 %v2598, %v2629
      %v2647 = vsub.f32 %v2599, %v2631
      %v2648 = vmul.f32 %v2632, 1.442695
      %v2649 = vpow.pop %v2648
      %v2650 = vmul.f32 %v2633, 1.442695
      %v2651 = vpow.pop %v2650
      %v2652 = vmul.f32 %v2634, 1.442695
      %v2653 = vpow.pop %v2652
      %v2654 = vmul.f32 %v2635, 1.442695
      %v2655 = vpow.pop %v2654
      %v2656 = vmul.f32 %v2636, 1.442695
      %v2657 = vpow.pop %v2656
      %v2658 = vmul.f32 %v2637, 1.442695
      %v2659 = vpow.pop %v2658
      %v2660 = vmul.f32 %v2638, 1.442695
      %v2661 = vpow.pop %v2660
      %v2662 = vmul.f32 %v2639, 1.442695
      %v2663 = vpow.pop %v2662
      %v2664 = vmul.f32 %v2640, 1.442695
      %v2665 = vpow.pop %v2664
      %v2666 = vmul.f32 %v2641, 1.442695
      %v2667 = vpow.pop %v2666
      %v2668 = vmul.f32 %v2642, 1.442695
      %v2669 = vpow.pop %v2668
      %v2670 = vmul.f32 %v2643, 1.442695
      %v2671 = vpow.pop %v2670
      %v2672 = vmul.f32 %v2644, 1.442695
      %v2673 = vpow.pop %v2672
      %v2674 = vmul.f32 %v2645, 1.442695
      %v2675 = vpow.pop %v2674
      %v2676 = vmul.f32 %v2646, 1.442695
      %v2677 = vpow.pop %v2676
      %v2678 = vmul.f32 %v2647, 1.442695
      %v2679 = vpow.pop %v2678
      %2680 = vadd.xlane.f32.xlu0 %v2649
      %v2681 = vpop.xlane.xlu0 %2680
      %2682 = vadd.xlane.f32.xlu0 %v2651
      %v2683 = vpop.xlane.xlu0 %2682
      %2684 = vadd.xlane.f32.xlu0 %v2653
      %v2685 = vpop.xlane.xlu0 %2684
      %2686 = vadd.xlane.f32.xlu0 %v2655
      %v2687 = vpop.xlane.xlu0 %2686
      %2688 = vadd.xlane.f32.xlu0 %v2657
      %v2689 = vpop.xlane.xlu0 %2688
      %2690 = vadd.xlane.f32.xlu0 %v2659
      %v2691 = vpop.xlane.xlu0 %2690
      %2692 = vadd.xlane.f32.xlu0 %v2661
      %v2693 = vpop.xlane.xlu0 %2692
      %2694 = vadd.xlane.f32.xlu0 %v2663
      %v2695 = vpop.xlane.xlu0 %2694
      %2696 = vadd.xlane.f32.xlu0 %v2665
      %v2697 = vpop.xlane.xlu0 %2696
      %2698 = vadd.xlane.f32.xlu0 %v2667
      %v2699 = vpop.xlane.xlu0 %2698
      %2700 = vadd.xlane.f32.xlu0 %v2669
      %v2701 = vpop.xlane.xlu0 %2700
      %2702 = vadd.xlane.f32.xlu0 %v2671
      %v2703 = vpop.xlane.xlu0 %2702
      %2704 = vadd.xlane.f32.xlu0 %v2673
      %v2705 = vpop.xlane.xlu0 %2704
      %2706 = vadd.xlane.f32.xlu0 %v2675
      %v2707 = vpop.xlane.xlu0 %2706
      %2708 = vadd.xlane.f32.xlu0 %v2677
      %v2709 = vpop.xlane.xlu0 %2708
      %2710 = vadd.xlane.f32.xlu0 %v2679
      %v2711 = vpop.xlane.xlu0 %2710
      %v2712 = vrcp.pop %v2681
      %v2713 = vrcp.pop %v2683
      %v2714 = vrcp.pop %v2685
      %v2715 = vrcp.pop %v2687
      %v2716 = vrcp.pop %v2689
      %v2717 = vrcp.pop %v2691
      %v2718 = vrcp.pop %v2693
      %v2719 = vrcp.pop %v2695
      %v2720 = vrcp.pop %v2697
      %v2721 = vrcp.pop %v2699
      %v2722 = vrcp.pop %v2701
      %v2723 = vrcp.pop %v2703
      %v2724 = vrcp.pop %v2705
      %v2725 = vrcp.pop %v2707
      %v2726 = vrcp.pop %v2709
      %v2727 = vrcp.pop %v2711
      %v2728 = vmul.f32 %v2649, %v2712
      %v2729 = vmul.f32 %v2651, %v2713
      %v2730 = vmul.f32 %v2653, %v2714
      %v2731 = vmul.f32 %v2655, %v2715
      %v2732 = vmul.f32 %v2657, %v2716
      %v2733 = vmul.f32 %v2659, %v2717
      %v2734 = vmul.f32 %v2661, %v2718
      %v2735 = vmul.f32 %v2663, %v2719
      %v2736 = vmul.f32 %v2665, %v2720
      %v2737 = vmul.f32 %v2667, %v2721
      %v2738 = vmul.f32 %v2669, %v2722
      %v2739 = vmul.f32 %v2671, %v2723
      %v2740 = vmul.f32 %v2673, %v2724
      %v2741 = vmul.f32 %v2675, %v2725
      %v2742 = vmul.f32 %v2677, %v2726
      %v2743 = vmul.f32 %v2679, %v2727
      %v2744 = vpack.c.bf16 %v2729, %v2728
      %v2745 = vpack.c.bf16 %v2731, %v2730
      %v2746 = vpack.c.bf16 %v2733, %v2732
      %v2747 = vpack.c.bf16 %v2735, %v2734
      %v2748 = vpack.c.bf16 %v2737, %v2736
      %v2749 = vpack.c.bf16 %v2739, %v2738
      %v2750 = vpack.c.bf16 %v2741, %v2740
      %v2751 = vpack.c.bf16 %v2743, %v2742
      %2752 = vrot.lane.b32.xlu0 %v1604, 64
      %v2753 = vpop.permute.xlu0 %2752
      %2754 = vrot.lane.b32.xlu0 %v1605, 64
      %v2755 = vpop.permute.xlu0 %2754
      %2756 = vrot.lane.b32.xlu0 %v1606, 64
      %v2757 = vpop.permute.xlu0 %2756
      %2758 = vrot.lane.b32.xlu0 %v1607, 64
      %v2759 = vpop.permute.xlu0 %2758
      %2760 = vrot.lane.b32.xlu0 %v1608, 64
      %v2761 = vpop.permute.xlu0 %2760
      %2762 = vrot.lane.b32.xlu0 %v1609, 64
      %v2763 = vpop.permute.xlu0 %2762
      %2764 = vrot.lane.b32.xlu0 %v1610, 64
      %v2765 = vpop.permute.xlu0 %2764
      %2766 = vrot.lane.b32.xlu0 %v1611, 64
      %v2767 = vpop.permute.xlu0 %2766
      %2776 = vmatprep.subr.bf16.mxu0 0
      %2777 = vmatpush1.bf16.msra.mxu0 %v2767
      %2778 = vmatprep.subr.bf16.mxu0 0
      %2779 = vmatpush1.bf16.msra.mxu0 %v2765
      %2780 = vmatprep.subr.bf16.mxu0 0
      %2781 = vmatpush1.bf16.msra.mxu0 %v2763
      %2782 = vmatprep.subr.bf16.mxu0 0
      %2783 = vmatpush1.bf16.msra.mxu0 %v2761
      %2784 = vmatprep.subr.bf16.mxu0 0
      %2785 = vmatpush1.bf16.msra.mxu0 %v2759
      %2786 = vmatprep.subr.bf16.mxu0 0
      %2787 = vmatpush1.bf16.msra.mxu0 %v2757
      %2788 = vmatprep.subr.bf16.mxu0 0
      %2789 = vmatpush1.bf16.msra.mxu0 %v2755
      %2790 = vmatprep.subr.bf16.mxu0 0
      %2791 = vmatpush1.bf16.msra.mxu0 %v2753
      %2792 = vmatprep.subr.bf16.mxu0 0
      %2793 = vmatpush2.bf16.msra.mxu0 0
      %2794 = vmatprep.subr.bf16.mxu0 0
      %2795 = vmatpush2.bf16.msra.mxu0 0
      %2796 = vmatprep.subr.bf16.mxu0 0
      %2797 = vmatpush2.bf16.msra.mxu0 0
      %2798 = vmatprep.subr.bf16.mxu0 0
      %2799 = vmatpush2.bf16.msra.mxu0 0
      %2800 = vmatprep.subr.bf16.mxu0 0
      %2801 = vmatpush2.bf16.msra.mxu0 0
      %2802 = vmatprep.subr.bf16.mxu0 0
      %2803 = vmatpush2.bf16.msra.mxu0 0
      %2804 = vmatprep.subr.bf16.mxu0 0
      %2805 = vmatpush2.bf16.msra.mxu0 0
      %2806 = vmatprep.subr.bf16.mxu0 0
      %2807 = vmatpush2.bf16.msra.mxu0 0
      %2808 = vmatprep.mubr.bf16.mxu0 0
      %2809 = vmatmul.mubr.bf16.gmra.mxu0 %v2744
      %v2810 = vpop.f32.mrf.mxu0
      %v2811 = vadd.f32 0.0, %v2810
      %v2812 = vpop.f32.mrf.mxu0
      %v2813 = vpop.f32.mrf.mxu0
      %v2814 = vadd.f32 0.0, %v2813
      %v2815 = vpop.f32.mrf.mxu0
      %2816 = vmatprep.mubr.bf16.mxu0 0
      %2817 = vmatmul.mubr.bf16.gmra.mxu0 %v2745
      %v2818 = vpop.f32.mrf.mxu0
      %v2819 = vadd.f32 0.0, %v2818
      %v2820 = vpop.f32.mrf.mxu0
      %v2821 = vpop.f32.mrf.mxu0
      %v2822 = vadd.f32 0.0, %v2821
      %v2823 = vpop.f32.mrf.mxu0
      %2824 = vmatprep.mubr.bf16.mxu0 0
      %2825 = vmatmul.mubr.bf16.gmra.mxu0 %v2746
      %v2826 = vpop.f32.mrf.mxu0
      %v2827 = vadd.f32 0.0, %v2826
      %v2828 = vpop.f32.mrf.mxu0
      %v2829 = vpop.f32.mrf.mxu0
      %v2830 = vadd.f32 0.0, %v2829
      %v2831 = vpop.f32.mrf.mxu0
      %2832 = vmatprep.mubr.bf16.mxu0 0
      %2833 = vmatmul.mubr.bf16.gmra.mxu0 %v2747
      %v2834 = vpop.f32.mrf.mxu0
      %v2835 = vadd.f32 0.0, %v2834
      %v2836 = vpop.f32.mrf.mxu0
      %v2837 = vpop.f32.mrf.mxu0
      %v2838 = vadd.f32 0.0, %v2837
      %v2839 = vpop.f32.mrf.mxu0
      %2840 = vmatprep.mubr.bf16.mxu0 0
      %2841 = vmatmul.mubr.bf16.gmra.mxu0 %v2748
      %v2842 = vpop.f32.mrf.mxu0
      %v2843 = vadd.f32 0.0, %v2842
      %v2844 = vpop.f32.mrf.mxu0
      %v2845 = vpop.f32.mrf.mxu0
      %v2846 = vadd.f32 0.0, %v2845
      %v2847 = vpop.f32.mrf.mxu0
      %2848 = vmatprep.mubr.bf16.mxu0 0
      %2849 = vmatmul.mubr.bf16.gmra.mxu0 %v2749
      %v2850 = vpop.f32.mrf.mxu0
      %v2851 = vadd.f32 0.0, %v2850
      %v2852 = vpop.f32.mrf.mxu0
      %v2853 = vpop.f32.mrf.mxu0
      %v2854 = vadd.f32 0.0, %v2853
      %v2855 = vpop.f32.mrf.mxu0
      %2856 = vmatprep.mubr.bf16.mxu0 0
      %2857 = vmatmul.mubr.bf16.gmra.mxu0 %v2750
      %v2858 = vpop.f32.mrf.mxu0
      %v2859 = vadd.f32 0.0, %v2858
      %v2860 = vpop.f32.mrf.mxu0
      %v2861 = vpop.f32.mrf.mxu0
      %v2862 = vadd.f32 0.0, %v2861
      %v2863 = vpop.f32.mrf.mxu0
      %2864 = vmatprep.mubr.bf16.mxu0 0
      %2865 = vmatmul.mubr.bf16.gmra.mxu0 %v2751
      %v2866 = vpop.f32.mrf.mxu0
      %v2867 = vadd.f32 0.0, %v2866
      %v2868 = vpop.f32.mrf.mxu0
      %v2869 = vpop.f32.mrf.mxu0
      %v2870 = vadd.f32 0.0, %v2869
      %v2871 = vpop.f32.mrf.mxu0
      %2872 = vdwg.mxu0
      %2873 = vrot.lane.b32.xlu0 %v997, 32
      %v2874 = vpop.permute.xlu0 %2873
      %2875 = vrot.lane.b32.xlu0 %v1001, 32
      %v2876 = vpop.permute.xlu0 %2875
      %2877 = vrot.lane.b32.xlu0 %v1007, 32
      %v2878 = vpop.permute.xlu0 %2877
      %2879 = vrot.lane.b32.xlu0 %v1011, 32
      %v2880 = vpop.permute.xlu0 %2879
      %2881 = vrot.lane.b32.xlu0 %v1017, 32
      %v2882 = vpop.permute.xlu0 %2881
      %2883 = vrot.lane.b32.xlu0 %v1021, 32
      %v2884 = vpop.permute.xlu0 %2883
      %2885 = vrot.lane.b32.xlu0 %v1027, 32
      %v2886 = vpop.permute.xlu0 %2885
      %2887 = vrot.lane.b32.xlu0 %v1031, 32
      %v2888 = vpop.permute.xlu0 %2887
      %2889 = vrot.lane.b32.xlu0 %v1037, 32
      %v2890 = vpop.permute.xlu0 %2889
      %2891 = vrot.lane.b32.xlu0 %v1041, 32
      %v2892 = vpop.permute.xlu0 %2891
      %2893 = vrot.lane.b32.xlu0 %v1047, 32
      %v2894 = vpop.permute.xlu0 %2893
      %2895 = vrot.lane.b32.xlu0 %v1051, 32
      %v2896 = vpop.permute.xlu0 %2895
      %2897 = vrot.lane.b32.xlu0 %v1057, 32
      %v2898 = vpop.permute.xlu0 %2897
      %2899 = vrot.lane.b32.xlu0 %v1061, 32
      %v2900 = vpop.permute.xlu0 %2899
      %2901 = vrot.lane.b32.xlu0 %v1067, 32
      %v2902 = vpop.permute.xlu0 %2901
      %2903 = vrot.lane.b32.xlu0 %v1071, 32
      %v2904 = vpop.permute.xlu0 %2903
      %2905 = vrot.lane.b32.xlu0 %v999, 32
      %v2906 = vpop.permute.xlu0 %2905
      %2907 = vrot.lane.b32.xlu0 %v1003, 32
      %v2908 = vpop.permute.xlu0 %2907
      %2909 = vrot.lane.b32.xlu0 %v1009, 32
      %v2910 = vpop.permute.xlu0 %2909
      %2911 = vrot.lane.b32.xlu0 %v1013, 32
      %v2912 = vpop.permute.xlu0 %2911
      %2913 = vrot.lane.b32.xlu0 %v1019, 32
      %v2914 = vpop.permute.xlu0 %2913
      %2915 = vrot.lane.b32.xlu0 %v1023, 32
      %v2916 = vpop.permute.xlu0 %2915
      %2917 = vrot.lane.b32.xlu0 %v1029, 32
      %v2918 = vpop.permute.xlu0 %2917
      %2919 = vrot.lane.b32.xlu0 %v1033, 32
      %v2920 = vpop.permute.xlu0 %2919
      %2921 = vrot.lane.b32.xlu0 %v1039, 32
      %v2922 = vpop.permute.xlu0 %2921
      %2923 = vrot.lane.b32.xlu0 %v1043, 32
      %v2924 = vpop.permute.xlu0 %2923
      %2925 = vrot.lane.b32.xlu0 %v1049, 32
      %v2926 = vpop.permute.xlu0 %2925
      %2927 = vrot.lane.b32.xlu0 %v1053, 32
      %v2928 = vpop.permute.xlu0 %2927
      %2929 = vrot.lane.b32.xlu0 %v1059, 32
      %v2930 = vpop.permute.xlu0 %2929
      %2931 = vrot.lane.b32.xlu0 %v1063, 32
      %v2932 = vpop.permute.xlu0 %2931
      %2933 = vrot.lane.b32.xlu0 %v1069, 32
      %v2934 = vpop.permute.xlu0 %2933
      %2935 = vrot.lane.b32.xlu0 %v1073, 32
      %v2936 = vpop.permute.xlu0 %2935
      %v2937 = vsel %vm1172, %v2874, 0
      %v2939 = vsel %vm1172, %v2876, 0
      %v2941 = vsel %vm1172, %v2878, 0
      %v2943 = vsel %vm1172, %v2880, 0
      %v2945 = vsel %vm1172, %v2882, 0
      %v2947 = vsel %vm1172, %v2884, 0
      %v2949 = vsel %vm1172, %v2886, 0
      %v2951 = vsel %vm1172, %v2888, 0
      %v2953 = vsel %vm1172, %v2890, 0
      %v2955 = vsel %vm1172, %v2892, 0
      %v2957 = vsel %vm1172, %v2894, 0
      %v2959 = vsel %vm1172, %v2896, 0
      %v2961 = vsel %vm1172, %v2898, 0
      %v2963 = vsel %vm1172, %v2900, 0
      %v2965 = vsel %vm1172, %v2902, 0
      %v2967 = vsel %vm1172, %v2904, 0
      %v2969 = vsel %vm1172, %v2906, 0
      %v2971 = vsel %vm1172, %v2908, 0
      %v2973 = vsel %vm1172, %v2910, 0
      %v2975 = vsel %vm1172, %v2912, 0
      %v2977 = vsel %vm1172, %v2914, 0
      %v2979 = vsel %vm1172, %v2916, 0
      %v2981 = vsel %vm1172, %v2918, 0
      %v2983 = vsel %vm1172, %v2920, 0
      %v2985 = vsel %vm1172, %v2922, 0
      %v2987 = vsel %vm1172, %v2924, 0
      %v2989 = vsel %vm1172, %v2926, 0
      %v2991 = vsel %vm1172, %v2928, 0
      %v2993 = vsel %vm1172, %v2930, 0
      %v2995 = vsel %vm1172, %v2932, 0
      %v2997 = vsel %vm1172, %v2934, 0
      %v2999 = vsel %vm1172, %v2936, 0
      %3001 = vmatprep.subr.mxu0 0.0
      %3002 = vmatpush1.xpose.msra.mxu0 %v2999
      %3003 = vmatprep.subr.mxu0 0.0
      %3004 = vmatpush1.xpose.msra.mxu0 %v2997
      %3005 = vmatprep.subr.mxu0 0.0
      %3006 = vmatpush1.xpose.msra.mxu0 %v2995
      %3007 = vmatprep.subr.mxu0 0.0
      %3008 = vmatpush1.xpose.msra.mxu0 %v2993
      %3009 = vmatprep.subr.mxu0 0.0
      %3010 = vmatpush1.xpose.msra.mxu0 %v2991
      %3011 = vmatprep.subr.mxu0 0.0
      %3012 = vmatpush1.xpose.msra.mxu0 %v2989
      %3013 = vmatprep.subr.mxu0 0.0
      %3014 = vmatpush1.xpose.msra.mxu0 %v2987
      %3015 = vmatprep.subr.mxu0 0.0
      %3016 = vmatpush1.xpose.msra.mxu0 %v2985
      %3017 = vmatprep.subr.mxu0 0.0
      %3018 = vmatpush1.xpose.msra.mxu0 %v2983
      %3019 = vmatprep.subr.mxu0 0.0
      %3020 = vmatpush1.xpose.msra.mxu0 %v2981
      %3021 = vmatprep.subr.mxu0 0.0
      %3022 = vmatpush1.xpose.msra.mxu0 %v2979
      %3023 = vmatprep.subr.mxu0 0.0
      %3024 = vmatpush1.xpose.msra.mxu0 %v2977
      %3025 = vmatprep.subr.mxu0 0.0
      %3026 = vmatpush1.xpose.msra.mxu0 %v2975
      %3027 = vmatprep.subr.mxu0 0.0
      %3028 = vmatpush1.xpose.msra.mxu0 %v2973
      %3029 = vmatprep.subr.mxu0 0.0
      %3030 = vmatpush1.xpose.msra.mxu0 %v2971
      %3031 = vmatprep.subr.mxu0 0.0
      %3032 = vmatpush1.xpose.msra.mxu0 %v2969
      %3033 = vmatprep.subr.mxu0 0.0
      %3034 = vmatpush2.xpose.msra.mxu0 0.0
      %3035 = vmatprep.subr.mxu0 0.0
      %3036 = vmatpush2.xpose.msra.mxu0 0.0
      %3037 = vmatprep.subr.mxu0 0.0
      %3038 = vmatpush2.xpose.msra.mxu0 0.0
      %3039 = vmatprep.subr.mxu0 0.0
      %3040 = vmatpush2.xpose.msra.mxu0 0.0
      %3041 = vmatprep.subr.mxu0 0.0
      %3042 = vmatpush2.xpose.msra.mxu0 0.0
      %3043 = vmatprep.subr.mxu0 0.0
      %3044 = vmatpush2.xpose.msra.mxu0 0.0
      %3045 = vmatprep.subr.mxu0 0.0
      %3046 = vmatpush2.xpose.msra.mxu0 0.0
      %3047 = vmatprep.subr.mxu0 0.0
      %3048 = vmatpush2.xpose.msra.mxu0 0.0
      %3049 = vmatprep.subr.mxu0 0.0
      %3050 = vmatpush2.xpose.msra.mxu0 0.0
      %3051 = vmatprep.subr.mxu0 0.0
      %3052 = vmatpush2.xpose.msra.mxu0 0.0
      %3053 = vmatprep.subr.mxu0 0.0
      %3054 = vmatpush2.xpose.msra.mxu0 0.0
      %3055 = vmatprep.subr.mxu0 0.0
      %3056 = vmatpush2.xpose.msra.mxu0 0.0
      %3057 = vmatprep.subr.mxu0 0.0
      %3058 = vmatpush2.xpose.msra.mxu0 0.0
      %3059 = vmatprep.subr.mxu0 0.0
      %3060 = vmatpush2.xpose.msra.mxu0 0.0
      %3061 = vmatprep.subr.mxu0 0.0
      %3062 = vmatpush2.xpose.msra.mxu0 0.0
      %3063 = vmatprep.subr.mxu0 0.0
      %3064 = vmatpush2.xpose.msra.mxu0 0.0
      %3065 = vmatprep.mubr.f32.mxu0 0.0
      %3066 = vmatmul.mubr.f32.gmra.mxu0 %v2937
      %v3067 = vpop.f32.mrf.mxu0
      %v3068 = vadd.f32 0.0, %v3067
      %v3069 = vpop.f32.mrf.mxu0
      %3070 = vmatprep.mubr.f32.mxu0 0.0
      %3071 = vmatmul.mubr.f32.gmra.mxu0 %v2939
      %v3072 = vpop.f32.mrf.mxu0
      %v3073 = vadd.f32 0.0, %v3072
      %v3074 = vpop.f32.mrf.mxu0
      %3075 = vmatprep.mubr.f32.mxu0 0.0
      %3076 = vmatmul.mubr.f32.gmra.mxu0 %v2941
      %v3077 = vpop.f32.mrf.mxu0
      %v3078 = vadd.f32 0.0, %v3077
      %v3079 = vpop.f32.mrf.mxu0
      %3080 = vmatprep.mubr.f32.mxu0 0.0
      %3081 = vmatmul.mubr.f32.gmra.mxu0 %v2943
      %v3082 = vpop.f32.mrf.mxu0
      %v3083 = vadd.f32 0.0, %v3082
      %v3084 = vpop.f32.mrf.mxu0
      %3085 = vmatprep.mubr.f32.mxu0 0.0
      %3086 = vmatmul.mubr.f32.gmra.mxu0 %v2945
      %v3087 = vpop.f32.mrf.mxu0
      %v3088 = vadd.f32 0.0, %v3087
      %v3089 = vpop.f32.mrf.mxu0
      %3090 = vmatprep.mubr.f32.mxu0 0.0
      %3091 = vmatmul.mubr.f32.gmra.mxu0 %v2947
      %v3092 = vpop.f32.mrf.mxu0
      %v3093 = vadd.f32 0.0, %v3092
      %v3094 = vpop.f32.mrf.mxu0
      %3095 = vmatprep.mubr.f32.mxu0 0.0
      %3096 = vmatmul.mubr.f32.gmra.mxu0 %v2949
      %v3097 = vpop.f32.mrf.mxu0
      %v3098 = vadd.f32 0.0, %v3097
      %v3099 = vpop.f32.mrf.mxu0
      %3100 = vmatprep.mubr.f32.mxu0 0.0
      %3101 = vmatmul.mubr.f32.gmra.mxu0 %v2951
      %v3102 = vpop.f32.mrf.mxu0
      %v3103 = vadd.f32 0.0, %v3102
      %v3104 = vpop.f32.mrf.mxu0
      %3105 = vmatprep.mubr.f32.mxu0 0.0
      %3106 = vmatmul.mubr.f32.gmra.mxu0 %v2953
      %v3107 = vpop.f32.mrf.mxu0
      %v3108 = vadd.f32 0.0, %v3107
      %v3109 = vpop.f32.mrf.mxu0
      %3110 = vmatprep.mubr.f32.mxu0 0.0
      %3111 = vmatmul.mubr.f32.gmra.mxu0 %v2955
      %v3112 = vpop.f32.mrf.mxu0
      %v3113 = vadd.f32 0.0, %v3112
      %v3114 = vpop.f32.mrf.mxu0
      %3115 = vmatprep.mubr.f32.mxu0 0.0
      %3116 = vmatmul.mubr.f32.gmra.mxu0 %v2957
      %v3117 = vpop.f32.mrf.mxu0
      %v3118 = vadd.f32 0.0, %v3117
      %v3119 = vpop.f32.mrf.mxu0
      %3120 = vmatprep.mubr.f32.mxu0 0.0
      %3121 = vmatmul.mubr.f32.gmra.mxu0 %v2959
      %v3122 = vpop.f32.mrf.mxu0
      %v3123 = vadd.f32 0.0, %v3122
      %v3124 = vpop.f32.mrf.mxu0
      %3125 = vmatprep.mubr.f32.mxu0 0.0
      %3126 = vmatmul.mubr.f32.gmra.mxu0 %v2961
      %v3127 = vpop.f32.mrf.mxu0
      %v3128 = vadd.f32 0.0, %v3127
      %v3129 = vpop.f32.mrf.mxu0
      %3130 = vmatprep.mubr.f32.mxu0 0.0
      %3131 = vmatmul.mubr.f32.gmra.mxu0 %v2963
      %v3132 = vpop.f32.mrf.mxu0
      %v3133 = vadd.f32 0.0, %v3132
      %v3134 = vpop.f32.mrf.mxu0
      %3135 = vmatprep.mubr.f32.mxu0 0.0
      %3136 = vmatmul.mubr.f32.gmra.mxu0 %v2965
      %v3137 = vpop.f32.mrf.mxu0
      %v3138 = vadd.f32 0.0, %v3137
      %v3139 = vpop.f32.mrf.mxu0
      %3140 = vmatprep.mubr.f32.mxu0 0.0
      %3141 = vmatmul.mubr.f32.gmra.mxu0 %v2967
      %v3142 = vpop.f32.mrf.mxu0
      %v3143 = vadd.f32 0.0, %v3142
      %v3144 = vpop.f32.mrf.mxu0
      %3145 = vdwg.mxu0
      %v3146 = vmul.f32 %v3068, 0.17677669
      %v3147 = vmul.f32 %v3073, 0.17677669
      %v3148 = vmul.f32 %v3078, 0.17677669
      %v3149 = vmul.f32 %v3083, 0.17677669
      %v3150 = vmul.f32 %v3088, 0.17677669
      %v3151 = vmul.f32 %v3093, 0.17677669
      %v3152 = vmul.f32 %v3098, 0.17677669
      %v3153 = vmul.f32 %v3103, 0.17677669
      %v3154 = vmul.f32 %v3108, 0.17677669
      %v3155 = vmul.f32 %v3113, 0.17677669
      %v3156 = vmul.f32 %v3118, 0.17677669
      %v3157 = vmul.f32 %v3123, 0.17677669
      %v3158 = vmul.f32 %v3128, 0.17677669
      %v3159 = vmul.f32 %v3133, 0.17677669
      %v3160 = vmul.f32 %v3138, 0.17677669
      %v3161 = vmul.f32 %v3143, 0.17677669
      %v3162 = vadd.f32 %v3146, %v1434
      %v3163 = vadd.f32 %v3147, %v1434
      %v3164 = vadd.f32 %v3148, %v1434
      %v3165 = vadd.f32 %v3149, %v1434
      %v3166 = vadd.f32 %v3150, %v1434
      %v3167 = vadd.f32 %v3151, %v1434
      %v3168 = vadd.f32 %v3152, %v1434
      %v3169 = vadd.f32 %v3153, %v1434
      %v3170 = vadd.f32 %v3154, %v1434
      %v3171 = vadd.f32 %v3155, %v1434
      %v3172 = vadd.f32 %v3156, %v1434
      %v3173 = vadd.f32 %v3157, %v1434
      %v3174 = vadd.f32 %v3158, %v1434
      %v3175 = vadd.f32 %v3159, %v1434
      %v3176 = vadd.f32 %v3160, %v1434
      %v3177 = vadd.f32 %v3161, %v1434
      %3178 = vmax.xlane.f32.xlu0 %v3162
      %v3179 = vpop.xlane.xlu0 %3178
      %3180 = vmax.xlane.f32.xlu0 %v3163
      %v3181 = vpop.xlane.xlu0 %3180
      %3182 = vmax.xlane.f32.xlu0 %v3164
      %v3183 = vpop.xlane.xlu0 %3182
      %3184 = vmax.xlane.f32.xlu0 %v3165
      %v3185 = vpop.xlane.xlu0 %3184
      %3186 = vmax.xlane.f32.xlu0 %v3166
      %v3187 = vpop.xlane.xlu0 %3186
      %3188 = vmax.xlane.f32.xlu0 %v3167
      %v3189 = vpop.xlane.xlu0 %3188
      %3190 = vmax.xlane.f32.xlu0 %v3168
      %v3191 = vpop.xlane.xlu0 %3190
      %3192 = vmax.xlane.f32.xlu0 %v3169
      %v3193 = vpop.xlane.xlu0 %3192
      %3194 = vmax.xlane.f32.xlu0 %v3170
      %v3195 = vpop.xlane.xlu0 %3194
      %3196 = vmax.xlane.f32.xlu0 %v3171
      %v3197 = vpop.xlane.xlu0 %3196
      %3198 = vmax.xlane.f32.xlu0 %v3172
      %v3199 = vpop.xlane.xlu0 %3198
      %3200 = vmax.xlane.f32.xlu0 %v3173
      %v3201 = vpop.xlane.xlu0 %3200
      %3202 = vmax.xlane.f32.xlu0 %v3174
      %v3203 = vpop.xlane.xlu0 %3202
      %3204 = vmax.xlane.f32.xlu0 %v3175
      %v3205 = vpop.xlane.xlu0 %3204
      %3206 = vmax.xlane.f32.xlu0 %v3176
      %v3207 = vpop.xlane.xlu0 %3206
      %3208 = vmax.xlane.f32.xlu0 %v3177
      %v3209 = vpop.xlane.xlu0 %3208
      %v3210 = vsub.f32 %v3162, %v3179
      %v3211 = vsub.f32 %v3163, %v3181
      %v3212 = vsub.f32 %v3164, %v3183
      %v3213 = vsub.f32 %v3165, %v3185
      %v3214 = vsub.f32 %v3166, %v3187
      %v3215 = vsub.f32 %v3167, %v3189
      %v3216 = vsub.f32 %v3168, %v3191
      %v3217 = vsub.f32 %v3169, %v3193
      %v3218 = vsub.f32 %v3170, %v3195
      %v3219 = vsub.f32 %v3171, %v3197
      %v3220 = vsub.f32 %v3172, %v3199
      %v3221 = vsub.f32 %v3173, %v3201
      %v3222 = vsub.f32 %v3174, %v3203
      %v3223 = vsub.f32 %v3175, %v3205
      %v3224 = vsub.f32 %v3176, %v3207
      %v3225 = vsub.f32 %v3177, %v3209
      %v3226 = vmul.f32 %v3210, 1.442695
      %v3227 = vpow.pop %v3226
      %v3228 = vmul.f32 %v3211, 1.442695
      %v3229 = vpow.pop %v3228
      %v3230 = vmul.f32 %v3212, 1.442695
      %v3231 = vpow.pop %v3230
      %v3232 = vmul.f32 %v3213, 1.442695
      %v3233 = vpow.pop %v3232
      %v3234 = vmul.f32 %v3214, 1.442695
      %v3235 = vpow.pop %v3234
      %v3236 = vmul.f32 %v3215, 1.442695
      %v3237 = vpow.pop %v3236
      %v3238 = vmul.f32 %v3216, 1.442695
      %v3239 = vpow.pop %v3238
      %v3240 = vmul.f32 %v3217, 1.442695
      %v3241 = vpow.pop %v3240
      %v3242 = vmul.f32 %v3218, 1.442695
      %v3243 = vpow.pop %v3242
      %v3244 = vmul.f32 %v3219, 1.442695
      %v3245 = vpow.pop %v3244
      %v3246 = vmul.f32 %v3220, 1.442695
      %v3247 = vpow.pop %v3246
      %v3248 = vmul.f32 %v3221, 1.442695
      %v3249 = vpow.pop %v3248
      %v3250 = vmul.f32 %v3222, 1.442695
      %v3251 = vpow.pop %v3250
      %v3252 = vmul.f32 %v3223, 1.442695
      %v3253 = vpow.pop %v3252
      %v3254 = vmul.f32 %v3224, 1.442695
      %v3255 = vpow.pop %v3254
      %v3256 = vmul.f32 %v3225, 1.442695
      %v3257 = vpow.pop %v3256
      %3258 = vadd.xlane.f32.xlu0 %v3227
      %v3259 = vpop.xlane.xlu0 %3258
      %3260 = vadd.xlane.f32.xlu0 %v3229
      %v3261 = vpop.xlane.xlu0 %3260
      %3262 = vadd.xlane.f32.xlu0 %v3231
      %v3263 = vpop.xlane.xlu0 %3262
      %3264 = vadd.xlane.f32.xlu0 %v3233
      %v3265 = vpop.xlane.xlu0 %3264
      %3266 = vadd.xlane.f32.xlu0 %v3235
      %v3267 = vpop.xlane.xlu0 %3266
      %3268 = vadd.xlane.f32.xlu0 %v3237
      %v3269 = vpop.xlane.xlu0 %3268
      %3270 = vadd.xlane.f32.xlu0 %v3239
      %v3271 = vpop.xlane.xlu0 %3270
      %3272 = vadd.xlane.f32.xlu0 %v3241
      %v3273 = vpop.xlane.xlu0 %3272
      %3274 = vadd.xlane.f32.xlu0 %v3243
      %v3275 = vpop.xlane.xlu0 %3274
      %3276 = vadd.xlane.f32.xlu0 %v3245
      %v3277 = vpop.xlane.xlu0 %3276
      %3278 = vadd.xlane.f32.xlu0 %v3247
      %v3279 = vpop.xlane.xlu0 %3278
      %3280 = vadd.xlane.f32.xlu0 %v3249
      %v3281 = vpop.xlane.xlu0 %3280
      %3282 = vadd.xlane.f32.xlu0 %v3251
      %v3283 = vpop.xlane.xlu0 %3282
      %3284 = vadd.xlane.f32.xlu0 %v3253
      %v3285 = vpop.xlane.xlu0 %3284
      %3286 = vadd.xlane.f32.xlu0 %v3255
      %v3287 = vpop.xlane.xlu0 %3286
      %3288 = vadd.xlane.f32.xlu0 %v3257
      %v3289 = vpop.xlane.xlu0 %3288
      %v3290 = vrcp.pop %v3259
      %v3291 = vrcp.pop %v3261
      %v3292 = vrcp.pop %v3263
      %v3293 = vrcp.pop %v3265
      %v3294 = vrcp.pop %v3267
      %v3295 = vrcp.pop %v3269
      %v3296 = vrcp.pop %v3271
      %v3297 = vrcp.pop %v3273
      %v3298 = vrcp.pop %v3275
      %v3299 = vrcp.pop %v3277
      %v3300 = vrcp.pop %v3279
      %v3301 = vrcp.pop %v3281
      %v3302 = vrcp.pop %v3283
      %v3303 = vrcp.pop %v3285
      %v3304 = vrcp.pop %v3287
      %v3305 = vrcp.pop %v3289
      %v3306 = vmul.f32 %v3227, %v3290
      %v3307 = vmul.f32 %v3229, %v3291
      %v3308 = vmul.f32 %v3231, %v3292
      %v3309 = vmul.f32 %v3233, %v3293
      %v3310 = vmul.f32 %v3235, %v3294
      %v3311 = vmul.f32 %v3237, %v3295
      %v3312 = vmul.f32 %v3239, %v3296
      %v3313 = vmul.f32 %v3241, %v3297
      %v3314 = vmul.f32 %v3243, %v3298
      %v3315 = vmul.f32 %v3245, %v3299
      %v3316 = vmul.f32 %v3247, %v3300
      %v3317 = vmul.f32 %v3249, %v3301
      %v3318 = vmul.f32 %v3251, %v3302
      %v3319 = vmul.f32 %v3253, %v3303
      %v3320 = vmul.f32 %v3255, %v3304
      %v3321 = vmul.f32 %v3257, %v3305
      %v3322 = vpack.c.bf16 %v3307, %v3306
      %v3323 = vpack.c.bf16 %v3309, %v3308
      %v3324 = vpack.c.bf16 %v3311, %v3310
      %v3325 = vpack.c.bf16 %v3313, %v3312
      %v3326 = vpack.c.bf16 %v3315, %v3314
      %v3327 = vpack.c.bf16 %v3317, %v3316
      %v3328 = vpack.c.bf16 %v3319, %v3318
      %v3329 = vpack.c.bf16 %v3321, %v3320
      %3330 = vrot.lane.b32.xlu0 %v1604, 32
      %v3331 = vpop.permute.xlu0 %3330
      %3332 = vrot.lane.b32.xlu0 %v1605, 32
      %v3333 = vpop.permute.xlu0 %3332
      %3334 = vrot.lane.b32.xlu0 %v1606, 32
      %v3335 = vpop.permute.xlu0 %3334
      %3336 = vrot.lane.b32.xlu0 %v1607, 32
      %v3337 = vpop.permute.xlu0 %3336
      %3338 = vrot.lane.b32.xlu0 %v1608, 32
      %v3339 = vpop.permute.xlu0 %3338
      %3340 = vrot.lane.b32.xlu0 %v1609, 32
      %v3341 = vpop.permute.xlu0 %3340
      %3342 = vrot.lane.b32.xlu0 %v1610, 32
      %v3343 = vpop.permute.xlu0 %3342
      %3344 = vrot.lane.b32.xlu0 %v1611, 32
      %v3345 = vpop.permute.xlu0 %3344
      %3354 = vmatprep.subr.bf16.mxu0 0
      %3355 = vmatpush1.bf16.msra.mxu0 %v3345
      %3356 = vmatprep.subr.bf16.mxu0 0
      %3357 = vmatpush1.bf16.msra.mxu0 %v3343
      %3358 = vmatprep.subr.bf16.mxu0 0
      %3359 = vmatpush1.bf16.msra.mxu0 %v3341
      %3360 = vmatprep.subr.bf16.mxu0 0
      %3361 = vmatpush1.bf16.msra.mxu0 %v3339
      %3362 = vmatprep.subr.bf16.mxu0 0
      %3363 = vmatpush1.bf16.msra.mxu0 %v3337
      %3364 = vmatprep.subr.bf16.mxu0 0
      %3365 = vmatpush1.bf16.msra.mxu0 %v3335
      %3366 = vmatprep.subr.bf16.mxu0 0
      %3367 = vmatpush1.bf16.msra.mxu0 %v3333
      %3368 = vmatprep.subr.bf16.mxu0 0
      %3369 = vmatpush1.bf16.msra.mxu0 %v3331
      %3370 = vmatprep.subr.bf16.mxu0 0
      %3371 = vmatpush2.bf16.msra.mxu0 0
      %3372 = vmatprep.subr.bf16.mxu0 0
      %3373 = vmatpush2.bf16.msra.mxu0 0
      %3374 = vmatprep.subr.bf16.mxu0 0
      %3375 = vmatpush2.bf16.msra.mxu0 0
      %3376 = vmatprep.subr.bf16.mxu0 0
      %3377 = vmatpush2.bf16.msra.mxu0 0
      %3378 = vmatprep.subr.bf16.mxu0 0
      %3379 = vmatpush2.bf16.msra.mxu0 0
      %3380 = vmatprep.subr.bf16.mxu0 0
      %3381 = vmatpush2.bf16.msra.mxu0 0
      %3382 = vmatprep.subr.bf16.mxu0 0
      %3383 = vmatpush2.bf16.msra.mxu0 0
      %3384 = vmatprep.subr.bf16.mxu0 0
      %3385 = vmatpush2.bf16.msra.mxu0 0
      %3386 = vmatprep.mubr.bf16.mxu0 0
      %3387 = vmatmul.mubr.bf16.gmra.mxu0 %v3322
      %v3388 = vpop.f32.mrf.mxu0
      %v3389 = vadd.f32 0.0, %v3388
      %v3390 = vpop.f32.mrf.mxu0
      %v3391 = vpop.f32.mrf.mxu0
      %v3392 = vadd.f32 0.0, %v3391
      %v3393 = vpop.f32.mrf.mxu0
      %3394 = vmatprep.mubr.bf16.mxu0 0
      %3395 = vmatmul.mubr.bf16.gmra.mxu0 %v3323
      %v3396 = vpop.f32.mrf.mxu0
      %v3397 = vadd.f32 0.0, %v3396
      %v3398 = vpop.f32.mrf.mxu0
      %v3399 = vpop.f32.mrf.mxu0
      %v3400 = vadd.f32 0.0, %v3399
      %v3401 = vpop.f32.mrf.mxu0
      %3402 = vmatprep.mubr.bf16.mxu0 0
      %3403 = vmatmul.mubr.bf16.gmra.mxu0 %v3324
      %v3404 = vpop.f32.mrf.mxu0
      %v3405 = vadd.f32 0.0, %v3404
      %v3406 = vpop.f32.mrf.mxu0
      %v3407 = vpop.f32.mrf.mxu0
      %v3408 = vadd.f32 0.0, %v3407
      %v3409 = vpop.f32.mrf.mxu0
      %3410 = vmatprep.mubr.bf16.mxu0 0
      %3411 = vmatmul.mubr.bf16.gmra.mxu0 %v3325
      %v3412 = vpop.f32.mrf.mxu0
      %v3413 = vadd.f32 0.0, %v3412
      %v3414 = vpop.f32.mrf.mxu0
      %v3415 = vpop.f32.mrf.mxu0
      %v3416 = vadd.f32 0.0, %v3415
      %v3417 = vpop.f32.mrf.mxu0
      %3418 = vmatprep.mubr.bf16.mxu0 0
      %3419 = vmatmul.mubr.bf16.gmra.mxu0 %v3326
      %v3420 = vpop.f32.mrf.mxu0
      %v3421 = vadd.f32 0.0, %v3420
      %v3422 = vpop.f32.mrf.mxu0
      %v3423 = vpop.f32.mrf.mxu0
      %v3424 = vadd.f32 0.0, %v3423
      %v3425 = vpop.f32.mrf.mxu0
      %3426 = vmatprep.mubr.bf16.mxu0 0
      %3427 = vmatmul.mubr.bf16.gmra.mxu0 %v3327
      %v3428 = vpop.f32.mrf.mxu0
      %v3429 = vadd.f32 0.0, %v3428
      %v3430 = vpop.f32.mrf.mxu0
      %v3431 = vpop.f32.mrf.mxu0
      %v3432 = vadd.f32 0.0, %v3431
      %v3433 = vpop.f32.mrf.mxu0
      %3434 = vmatprep.mubr.bf16.mxu0 0
      %3435 = vmatmul.mubr.bf16.gmra.mxu0 %v3328
      %v3436 = vpop.f32.mrf.mxu0
      %v3437 = vadd.f32 0.0, %v3436
      %v3438 = vpop.f32.mrf.mxu0
      %v3439 = vpop.f32.mrf.mxu0
      %v3440 = vadd.f32 0.0, %v3439
      %v3441 = vpop.f32.mrf.mxu0
      %3442 = vmatprep.mubr.bf16.mxu0 0
      %3443 = vmatmul.mubr.bf16.gmra.mxu0 %v3329
      %v3444 = vpop.f32.mrf.mxu0
      %v3445 = vadd.f32 0.0, %v3444
      %v3446 = vpop.f32.mrf.mxu0
      %v3447 = vpop.f32.mrf.mxu0
      %v3448 = vadd.f32 0.0, %v3447
      %v3449 = vpop.f32.mrf.mxu0
      %3450 = vdwg.mxu0
      %3467 = vrot.lane.b32.xlu0 %v2233, 32
      %v3468 = vpop.permute.xlu0 %3467
      %3469 = vrot.lane.b32.xlu0 %v2236, 32
      %v3470 = vpop.permute.xlu0 %3469
      %3471 = vrot.lane.b32.xlu0 %v2241, 32
      %v3472 = vpop.permute.xlu0 %3471
      %3473 = vrot.lane.b32.xlu0 %v2244, 32
      %v3474 = vpop.permute.xlu0 %3473
      %3475 = vrot.lane.b32.xlu0 %v2249, 32
      %v3476 = vpop.permute.xlu0 %3475
      %3477 = vrot.lane.b32.xlu0 %v2252, 32
      %v3478 = vpop.permute.xlu0 %3477
      %3479 = vrot.lane.b32.xlu0 %v2257, 32
      %v3480 = vpop.permute.xlu0 %3479
      %3481 = vrot.lane.b32.xlu0 %v2260, 32
      %v3482 = vpop.permute.xlu0 %3481
      %3483 = vrot.lane.b32.xlu0 %v2265, 32
      %v3484 = vpop.permute.xlu0 %3483
      %3485 = vrot.lane.b32.xlu0 %v2268, 32
      %v3486 = vpop.permute.xlu0 %3485
      %3487 = vrot.lane.b32.xlu0 %v2273, 32
      %v3488 = vpop.permute.xlu0 %3487
      %3489 = vrot.lane.b32.xlu0 %v2276, 32
      %v3490 = vpop.permute.xlu0 %3489
      %3491 = vrot.lane.b32.xlu0 %v2281, 32
      %v3492 = vpop.permute.xlu0 %3491
      %3493 = vrot.lane.b32.xlu0 %v2284, 32
      %v3494 = vpop.permute.xlu0 %3493
      %3495 = vrot.lane.b32.xlu0 %v2289, 32
      %v3496 = vpop.permute.xlu0 %3495
      %3497 = vrot.lane.b32.xlu0 %v2292, 32
      %v3498 = vpop.permute.xlu0 %3497
      %3531 = vrot.lane.b32.xlu0 %v2811, 64
      %v3532 = vpop.permute.xlu0 %3531
      %3533 = vrot.lane.b32.xlu0 %v2814, 64
      %v3534 = vpop.permute.xlu0 %3533
      %3535 = vrot.lane.b32.xlu0 %v2819, 64
      %v3536 = vpop.permute.xlu0 %3535
      %3537 = vrot.lane.b32.xlu0 %v2822, 64
      %v3538 = vpop.permute.xlu0 %3537
      %3539 = vrot.lane.b32.xlu0 %v2827, 64
      %v3540 = vpop.permute.xlu0 %3539
      %3541 = vrot.lane.b32.xlu0 %v2830, 64
      %v3542 = vpop.permute.xlu0 %3541
      %3543 = vrot.lane.b32.xlu0 %v2835, 64
      %v3544 = vpop.permute.xlu0 %3543
      %3545 = vrot.lane.b32.xlu0 %v2838, 64
      %v3546 = vpop.permute.xlu0 %3545
      %3547 = vrot.lane.b32.xlu0 %v2843, 64
      %v3548 = vpop.permute.xlu0 %3547
      %3549 = vrot.lane.b32.xlu0 %v2846, 64
      %v3550 = vpop.permute.xlu0 %3549
      %3551 = vrot.lane.b32.xlu0 %v2851, 64
      %v3552 = vpop.permute.xlu0 %3551
      %3553 = vrot.lane.b32.xlu0 %v2854, 64
      %v3554 = vpop.permute.xlu0 %3553
      %3555 = vrot.lane.b32.xlu0 %v2859, 64
      %v3556 = vpop.permute.xlu0 %3555
      %3557 = vrot.lane.b32.xlu0 %v2862, 64
      %v3558 = vpop.permute.xlu0 %3557
      %3559 = vrot.lane.b32.xlu0 %v2867, 64
      %v3560 = vpop.permute.xlu0 %3559
      %3561 = vrot.lane.b32.xlu0 %v2870, 64
      %v3562 = vpop.permute.xlu0 %3561
      %3595 = vrot.lane.b32.xlu0 %v3389, 96
      %v3596 = vpop.permute.xlu0 %3595
      %3597 = vrot.lane.b32.xlu0 %v3392, 96
      %v3598 = vpop.permute.xlu0 %3597
      %3599 = vrot.lane.b32.xlu0 %v3397, 96
      %v3600 = vpop.permute.xlu0 %3599
      %3601 = vrot.lane.b32.xlu0 %v3400, 96
      %v3602 = vpop.permute.xlu0 %3601
      %3603 = vrot.lane.b32.xlu0 %v3405, 96
      %v3604 = vpop.permute.xlu0 %3603
      %3605 = vrot.lane.b32.xlu0 %v3408, 96
      %v3606 = vpop.permute.xlu0 %3605
      %3607 = vrot.lane.b32.xlu0 %v3413, 96
      %v3608 = vpop.permute.xlu0 %3607
      %3609 = vrot.lane.b32.xlu0 %v3416, 96
      %v3610 = vpop.permute.xlu0 %3609
      %3611 = vrot.lane.b32.xlu0 %v3421, 96
      %v3612 = vpop.permute.xlu0 %3611
      %3613 = vrot.lane.b32.xlu0 %v3424, 96
      %v3614 = vpop.permute.xlu0 %3613
      %3615 = vrot.lane.b32.xlu0 %v3429, 96
      %v3616 = vpop.permute.xlu0 %3615
      %3617 = vrot.lane.b32.xlu0 %v3432, 96
      %v3618 = vpop.permute.xlu0 %3617
      %3619 = vrot.lane.b32.xlu0 %v3437, 96
      %v3620 = vpop.permute.xlu0 %3619
      %3621 = vrot.lane.b32.xlu0 %v3440, 96
      %v3622 = vpop.permute.xlu0 %3621
      %3623 = vrot.lane.b32.xlu0 %v3445, 96
      %v3624 = vpop.permute.xlu0 %3623
      %3625 = vrot.lane.b32.xlu0 %v3448, 96
      %v3626 = vpop.permute.xlu0 %3625
      %v3643 = vsel %vm1172, %v1647, %v3468
      %v3644 = vsel %vm1172, %v1650, %v3470
      %v3645 = vsel %vm1172, %v1655, %v3472
      %v3646 = vsel %vm1172, %v1658, %v3474
      %v3647 = vsel %vm1172, %v1663, %v3476
      %v3648 = vsel %vm1172, %v1666, %v3478
      %v3649 = vsel %vm1172, %v1671, %v3480
      %v3650 = vsel %vm1172, %v1674, %v3482
      %v3651 = vsel %vm1172, %v1679, %v3484
      %v3652 = vsel %vm1172, %v1682, %v3486
      %v3653 = vsel %vm1172, %v1687, %v3488
      %v3654 = vsel %vm1172, %v1690, %v3490
      %v3655 = vsel %vm1172, %v1695, %v3492
      %v3656 = vsel %vm1172, %v1698, %v3494
      %v3657 = vsel %vm1172, %v1703, %v3496
      %v3658 = vsel %vm1172, %v1706, %v3498
      %vm3659 = vcmask 523264
      %v3660 = vsel %vm3659, %v3643, %v3532
      %v3661 = vsel %vm3659, %v3644, %v3534
      %v3662 = vsel %vm3659, %v3645, %v3536
      %v3663 = vsel %vm3659, %v3646, %v3538
      %v3664 = vsel %vm3659, %v3647, %v3540
      %v3665 = vsel %vm3659, %v3648, %v3542
      %v3666 = vsel %vm3659, %v3649, %v3544
      %v3667 = vsel %vm3659, %v3650, %v3546
      %v3668 = vsel %vm3659, %v3651, %v3548
      %v3669 = vsel %vm3659, %v3652, %v3550
      %v3670 = vsel %vm3659, %v3653, %v3552
      %v3671 = vsel %vm3659, %v3654, %v3554
      %v3672 = vsel %vm3659, %v3655, %v3556
      %v3673 = vsel %vm3659, %v3656, %v3558
      %v3674 = vsel %vm3659, %v3657, %v3560
      %v3675 = vsel %vm3659, %v3658, %v3562
      %vm3676 = vcmask 785408
      %v3677 = vsel %vm3676, %v3660, %v3596
      %v3678 = vsel %vm3676, %v3661, %v3598
      %v3679 = vsel %vm3676, %v3662, %v3600
      %v3680 = vsel %vm3676, %v3663, %v3602
      %v3681 = vsel %vm3676, %v3664, %v3604
      %v3682 = vsel %vm3676, %v3665, %v3606
      %v3683 = vsel %vm3676, %v3666, %v3608
      %v3684 = vsel %vm3676, %v3667, %v3610
      %v3685 = vsel %vm3676, %v3668, %v3612
      %v3686 = vsel %vm3676, %v3669, %v3614
      %v3687 = vsel %vm3676, %v3670, %v3616
      %v3688 = vsel %vm3676, %v3671, %v3618
      %v3689 = vsel %vm3676, %v3672, %v3620
      %v3690 = vsel %vm3676, %v3673, %v3622
      %v3691 = vsel %vm3676, %v3674, %v3624
      %v3692 = vsel %vm3676, %v3675, %v3626
      %v3693 = vpack.c.bf16 %v3678, %v3677
      %v3694 = vpack.c.bf16 %v3680, %v3679
      %v3695 = vpack.c.bf16 %v3682, %v3681
      %v3696 = vpack.c.bf16 %v3684, %v3683
      %v3697 = vpack.c.bf16 %v3686, %v3685
      %v3698 = vpack.c.bf16 %v3688, %v3687
      %v3699 = vpack.c.bf16 %v3690, %v3689
      %v3700 = vpack.c.bf16 %v3692, %v3691
      %v3701 = vld [vmem:[%s6] sm:$0xf]
      %v3702 = vld [vmem:[%s6 + $0x4] sm:$0xf]
      %v3703 = vld [vmem:[%s6 + $0x8] sm:$0xf]
      %v3704 = vld [vmem:[%s6 + $0xc] sm:$0xf]
      %v3705 = vld [vmem:[%s6 + $0x10] sm:$0xf]
      %v3706 = vld [vmem:[%s6 + $0x14] sm:$0xf]
      %v3707 = vld [vmem:[%s6 + $0x18] sm:$0xf]
      %v3708 = vld [vmem:[%s6 + $0x1c] sm:$0xf]
      %v3709 = vld [vmem:[%s6 + $0x20] sm:$0xf]
      %v3710 = vld [vmem:[%s6 + $0x24] sm:$0xf]
      %v3711 = vld [vmem:[%s6 + $0x28] sm:$0xf]
      %v3712 = vld [vmem:[%s6 + $0x2c] sm:$0xf]
      %v3713 = vld [vmem:[%s6 + $0x30] sm:$0xf]
      %v3714 = vld [vmem:[%s6 + $0x34] sm:$0xf]
      %v3715 = vld [vmem:[%s6 + $0x38] sm:$0xf]
      %v3716 = vld [vmem:[%s6 + $0x3c] sm:$0xf]
      %v3717 = vld [vmem:[%s7] sm:$0x1]
      %v3719 = vlaneseq
      %v3720 = vshrl.u32 %v3719, 7
      %v3721 = vsub.s32 0, %v3720
      %v3722 = vrot.slane %v3717, %v3721
      %v3740 = vunpack.c.l.b16 %v3701
      %v3741 = vunpack.c.l.b16 %v3702
      %v3742 = vunpack.c.l.b16 %v3703
      %v3743 = vunpack.c.l.b16 %v3704
      %v3744 = vunpack.c.l.b16 %v3705
      %v3745 = vunpack.c.l.b16 %v3706
      %v3746 = vunpack.c.l.b16 %v3707
      %v3747 = vunpack.c.l.b16 %v3708
      %v3748 = vunpack.c.l.b16 %v3709
      %v3749 = vunpack.c.l.b16 %v3710
      %v3750 = vunpack.c.l.b16 %v3711
      %v3751 = vunpack.c.l.b16 %v3712
      %v3752 = vunpack.c.l.b16 %v3713
      %v3753 = vunpack.c.l.b16 %v3714
      %v3754 = vunpack.c.l.b16 %v3715
      %v3755 = vunpack.c.l.b16 %v3716
      %v3756 = vpack.c.b16 %v3741, %v3740
      %v3757 = vpack.c.b16 %v3743, %v3742
      %v3758 = vpack.c.b16 %v3745, %v3744
      %v3759 = vpack.c.b16 %v3747, %v3746
      %v3760 = vpack.c.b16 %v3749, %v3748
      %v3761 = vpack.c.b16 %v3751, %v3750
      %v3762 = vpack.c.b16 %v3753, %v3752
      %v3763 = vpack.c.b16 %v3755, %v3754
      %3772 = vmatprep.subr.bf16.mxu0 0
      %3773 = vmatpush1.bf16.msra.mxu0 %v3763
      %3774 = vmatprep.subr.bf16.mxu0 0
      %3775 = vmatpush1.bf16.msra.mxu0 %v3762
      %3776 = vmatprep.subr.bf16.mxu0 0
      %3777 = vmatpush1.bf16.msra.mxu0 %v3761
      %3778 = vmatprep.subr.bf16.mxu0 0
      %3779 = vmatpush1.bf16.msra.mxu0 %v3760
      %3780 = vmatprep.subr.bf16.mxu0 0
      %3781 = vmatpush1.bf16.msra.mxu0 %v3759
      %3782 = vmatprep.subr.bf16.mxu0 0
      %3783 = vmatpush1.bf16.msra.mxu0 %v3758
      %3784 = vmatprep.subr.bf16.mxu0 0
      %3785 = vmatpush1.bf16.msra.mxu0 %v3757
      %3786 = vmatprep.subr.bf16.mxu0 0
      %3787 = vmatpush1.bf16.msra.mxu0 %v3756
      %3788 = vmatprep.subr.bf16.mxu0 0
      %3789 = vmatpush2.bf16.msra.mxu0 0
      %3790 = vmatprep.subr.bf16.mxu0 0
      %3791 = vmatpush2.bf16.msra.mxu0 0
      %3792 = vmatprep.subr.bf16.mxu0 0
      %3793 = vmatpush2.bf16.msra.mxu0 0
      %3794 = vmatprep.subr.bf16.mxu0 0
      %3795 = vmatpush2.bf16.msra.mxu0 0
      %3796 = vmatprep.subr.bf16.mxu0 0
      %3797 = vmatpush2.bf16.msra.mxu0 0
      %3798 = vmatprep.subr.bf16.mxu0 0
      %3799 = vmatpush2.bf16.msra.mxu0 0
      %3800 = vmatprep.subr.bf16.mxu0 0
      %3801 = vmatpush2.bf16.msra.mxu0 0
      %3802 = vmatprep.subr.bf16.mxu0 0
      %3803 = vmatpush2.bf16.msra.mxu0 0
      %3804 = vmatprep.mubr.bf16.mxu0 0
      %3805 = vmatmul.mubr.bf16.gmra.mxu0 %v3693
      %v3806 = vpop.f32.mrf.mxu0
      %v3807 = vadd.f32 %v3722, %v3806
      %v3808 = vpop.f32.mrf.mxu0
      %v3809 = vpop.f32.mrf.mxu0
      %v3810 = vadd.f32 %v3722, %v3809
      %v3811 = vpop.f32.mrf.mxu0
      %3812 = vmatprep.mubr.bf16.mxu0 0
      %3813 = vmatmul.mubr.bf16.gmra.mxu0 %v3694
      %v3814 = vpop.f32.mrf.mxu0
      %v3815 = vadd.f32 %v3722, %v3814
      %v3816 = vpop.f32.mrf.mxu0
      %v3817 = vpop.f32.mrf.mxu0
      %v3818 = vadd.f32 %v3722, %v3817
      %v3819 = vpop.f32.mrf.mxu0
      %3820 = vmatprep.mubr.bf16.mxu0 0
      %3821 = vmatmul.mubr.bf16.gmra.mxu0 %v3695
      %v3822 = vpop.f32.mrf.mxu0
      %v3823 = vadd.f32 %v3722, %v3822
      %v3824 = vpop.f32.mrf.mxu0
      %v3825 = vpop.f32.mrf.mxu0
      %v3826 = vadd.f32 %v3722, %v3825
      %v3827 = vpop.f32.mrf.mxu0
      %3828 = vmatprep.mubr.bf16.mxu0 0
      %3829 = vmatmul.mubr.bf16.gmra.mxu0 %v3696
      %v3830 = vpop.f32.mrf.mxu0
      %v3831 = vadd.f32 %v3722, %v3830
      %v3832 = vpop.f32.mrf.mxu0
      %v3833 = vpop.f32.mrf.mxu0
      %v3834 = vadd.f32 %v3722, %v3833
      %v3835 = vpop.f32.mrf.mxu0
      %3836 = vmatprep.mubr.bf16.mxu0 0
      %3837 = vmatmul.mubr.bf16.gmra.mxu0 %v3697
      %v3838 = vpop.f32.mrf.mxu0
      %v3839 = vadd.f32 %v3722, %v3838
      %v3840 = vpop.f32.mrf.mxu0
      %v3841 = vpop.f32.mrf.mxu0
      %v3842 = vadd.f32 %v3722, %v3841
      %v3843 = vpop.f32.mrf.mxu0
      %3844 = vmatprep.mubr.bf16.mxu0 0
      %3845 = vmatmul.mubr.bf16.gmra.mxu0 %v3698
      %v3846 = vpop.f32.mrf.mxu0
      %v3847 = vadd.f32 %v3722, %v3846
      %v3848 = vpop.f32.mrf.mxu0
      %v3849 = vpop.f32.mrf.mxu0
      %v3850 = vadd.f32 %v3722, %v3849
      %v3851 = vpop.f32.mrf.mxu0
      %3852 = vmatprep.mubr.bf16.mxu0 0
      %3853 = vmatmul.mubr.bf16.gmra.mxu0 %v3699
      %v3854 = vpop.f32.mrf.mxu0
      %v3855 = vadd.f32 %v3722, %v3854
      %v3856 = vpop.f32.mrf.mxu0
      %v3857 = vpop.f32.mrf.mxu0
      %v3858 = vadd.f32 %v3722, %v3857
      %v3859 = vpop.f32.mrf.mxu0
      %3860 = vmatprep.mubr.bf16.mxu0 0
      %3861 = vmatmul.mubr.bf16.gmra.mxu0 %v3700
      %v3862 = vpop.f32.mrf.mxu0
      %v3863 = vadd.f32 %v3722, %v3862
      %v3864 = vpop.f32.mrf.mxu0
      %v3865 = vpop.f32.mrf.mxu0
      %v3866 = vadd.f32 %v3722, %v3865
      %v3867 = vpop.f32.mrf.mxu0
      %3868 = vdwg.mxu0
      %v3869 = vadd.f32 %v760, %v3807
      %v3870 = vadd.f32 %v761, %v3810
      %v3871 = vadd.f32 %v762, %v3815
      %v3872 = vadd.f32 %v763, %v3818
      %v3873 = vadd.f32 %v764, %v3823
      %v3874 = vadd.f32 %v765, %v3826
      %v3875 = vadd.f32 %v766, %v3831
      %v3876 = vadd.f32 %v767, %v3834
      %v3877 = vadd.f32 %v768, %v3839
      %v3878 = vadd.f32 %v769, %v3842
      %v3879 = vadd.f32 %v770, %v3847
      %v3880 = vadd.f32 %v771, %v3850
      %v3881 = vadd.f32 %v772, %v3855
      %v3882 = vadd.f32 %v773, %v3858
      %v3883 = vadd.f32 %v774, %v3863
      %v3884 = vadd.f32 %v775, %v3866
      %v3885 = vld [vmem:[%s8] sm:$0x1]
      %v3886 = vld [vmem:[%s9] sm:$0x1]
      %3887 = vadd.xlane.f32.xlu0 %v3869
      %v3888 = vpop.xlane.xlu0 %3887
      %3889 = vadd.xlane.f32.xlu0 %v3870
      %v3890 = vpop.xlane.xlu0 %3889
      %3891 = vadd.xlane.f32.xlu0 %v3871
      %v3892 = vpop.xlane.xlu0 %3891
      %3893 = vadd.xlane.f32.xlu0 %v3872
      %v3894 = vpop.xlane.xlu0 %3893
      %3895 = vadd.xlane.f32.xlu0 %v3873
      %v3896 = vpop.xlane.xlu0 %3895
      %3897 = vadd.xlane.f32.xlu0 %v3874
      %v3898 = vpop.xlane.xlu0 %3897
      %3899 = vadd.xlane.f32.xlu0 %v3875
      %v3900 = vpop.xlane.xlu0 %3899
      %3901 = vadd.xlane.f32.xlu0 %v3876
      %v3902 = vpop.xlane.xlu0 %3901
      %3903 = vadd.xlane.f32.xlu0 %v3877
      %v3904 = vpop.xlane.xlu0 %3903
      %3905 = vadd.xlane.f32.xlu0 %v3878
      %v3906 = vpop.xlane.xlu0 %3905
      %3907 = vadd.xlane.f32.xlu0 %v3879
      %v3908 = vpop.xlane.xlu0 %3907
      %3909 = vadd.xlane.f32.xlu0 %v3880
      %v3910 = vpop.xlane.xlu0 %3909
      %3911 = vadd.xlane.f32.xlu0 %v3881
      %v3912 = vpop.xlane.xlu0 %3911
      %3913 = vadd.xlane.f32.xlu0 %v3882
      %v3914 = vpop.xlane.xlu0 %3913
      %3915 = vadd.xlane.f32.xlu0 %v3883
      %v3916 = vpop.xlane.xlu0 %3915
      %3917 = vadd.xlane.f32.xlu0 %v3884
      %v3918 = vpop.xlane.xlu0 %3917
      %v3919 = vmul.f32 %v3888, %v587
      %v3920 = vmul.f32 %v3890, %v587
      %v3921 = vmul.f32 %v3892, %v587
      %v3922 = vmul.f32 %v3894, %v587
      %v3923 = vmul.f32 %v3896, %v587
      %v3924 = vmul.f32 %v3898, %v587
      %v3925 = vmul.f32 %v3900, %v587
      %v3926 = vmul.f32 %v3902, %v587
      %v3927 = vmul.f32 %v3904, %v587
      %v3928 = vmul.f32 %v3906, %v587
      %v3929 = vmul.f32 %v3908, %v587
      %v3930 = vmul.f32 %v3910, %v587
      %v3931 = vmul.f32 %v3912, %v587
      %v3932 = vmul.f32 %v3914, %v587
      %v3933 = vmul.f32 %v3916, %v587
      %v3934 = vmul.f32 %v3918, %v587
      %v3935 = vsub.f32 %v3869, %v3919
      %v3936 = vsub.f32 %v3870, %v3920
      %v3937 = vsub.f32 %v3871, %v3921
      %v3938 = vsub.f32 %v3872, %v3922
      %v3939 = vsub.f32 %v3873, %v3923
      %v3940 = vsub.f32 %v3874, %v3924
      %v3941 = vsub.f32 %v3875, %v3925
      %v3942 = vsub.f32 %v3876, %v3926
      %v3943 = vsub.f32 %v3877, %v3927
      %v3944 = vsub.f32 %v3878, %v3928
      %v3945 = vsub.f32 %v3879, %v3929
      %v3946 = vsub.f32 %v3880, %v3930
      %v3947 = vsub.f32 %v3881, %v3931
      %v3948 = vsub.f32 %v3882, %v3932
      %v3949 = vsub.f32 %v3883, %v3933
      %v3950 = vsub.f32 %v3884, %v3934
      %v3951 = vmul.f32 %v3935, %v3935
      %v3952 = vmul.f32 %v3936, %v3936
      %v3953 = vmul.f32 %v3937, %v3937
      %v3954 = vmul.f32 %v3938, %v3938
      %v3955 = vmul.f32 %v3939, %v3939
      %v3956 = vmul.f32 %v3940, %v3940
      %v3957 = vmul.f32 %v3941, %v3941
      %v3958 = vmul.f32 %v3942, %v3942
      %v3959 = vmul.f32 %v3943, %v3943
      %v3960 = vmul.f32 %v3944, %v3944
      %v3961 = vmul.f32 %v3945, %v3945
      %v3962 = vmul.f32 %v3946, %v3946
      %v3963 = vmul.f32 %v3947, %v3947
      %v3964 = vmul.f32 %v3948, %v3948
      %v3965 = vmul.f32 %v3949, %v3949
      %v3966 = vmul.f32 %v3950, %v3950
      %3967 = vadd.xlane.f32.xlu0 %v3951
      %v3968 = vpop.xlane.xlu0 %3967
      %3969 = vadd.xlane.f32.xlu0 %v3952
      %v3970 = vpop.xlane.xlu0 %3969
      %3971 = vadd.xlane.f32.xlu0 %v3953
      %v3972 = vpop.xlane.xlu0 %3971
      %3973 = vadd.xlane.f32.xlu0 %v3954
      %v3974 = vpop.xlane.xlu0 %3973
      %3975 = vadd.xlane.f32.xlu0 %v3955
      %v3976 = vpop.xlane.xlu0 %3975
      %3977 = vadd.xlane.f32.xlu0 %v3956
      %v3978 = vpop.xlane.xlu0 %3977
      %3979 = vadd.xlane.f32.xlu0 %v3957
      %v3980 = vpop.xlane.xlu0 %3979
      %3981 = vadd.xlane.f32.xlu0 %v3958
      %v3982 = vpop.xlane.xlu0 %3981
      %3983 = vadd.xlane.f32.xlu0 %v3959
      %v3984 = vpop.xlane.xlu0 %3983
      %3985 = vadd.xlane.f32.xlu0 %v3960
      %v3986 = vpop.xlane.xlu0 %3985
      %3987 = vadd.xlane.f32.xlu0 %v3961
      %v3988 = vpop.xlane.xlu0 %3987
      %3989 = vadd.xlane.f32.xlu0 %v3962
      %v3990 = vpop.xlane.xlu0 %3989
      %3991 = vadd.xlane.f32.xlu0 %v3963
      %v3992 = vpop.xlane.xlu0 %3991
      %3993 = vadd.xlane.f32.xlu0 %v3964
      %v3994 = vpop.xlane.xlu0 %3993
      %3995 = vadd.xlane.f32.xlu0 %v3965
      %v3996 = vpop.xlane.xlu0 %3995
      %3997 = vadd.xlane.f32.xlu0 %v3966
      %v3998 = vpop.xlane.xlu0 %3997
      %v3999 = vmul.f32 %v3968, %v587
      %v4000 = vmul.f32 %v3970, %v587
      %v4001 = vmul.f32 %v3972, %v587
      %v4002 = vmul.f32 %v3974, %v587
      %v4003 = vmul.f32 %v3976, %v587
      %v4004 = vmul.f32 %v3978, %v587
      %v4005 = vmul.f32 %v3980, %v587
      %v4006 = vmul.f32 %v3982, %v587
      %v4007 = vmul.f32 %v3984, %v587
      %v4008 = vmul.f32 %v3986, %v587
      %v4009 = vmul.f32 %v3988, %v587
      %v4010 = vmul.f32 %v3990, %v587
      %v4011 = vmul.f32 %v3992, %v587
      %v4012 = vmul.f32 %v3994, %v587
      %v4013 = vmul.f32 %v3996, %v587
      %v4014 = vmul.f32 %v3998, %v587
      %v4015 = vadd.f32 %v3999, 1e-12
      %v4016 = vadd.f32 %v4000, 1e-12
      %v4017 = vadd.f32 %v4001, 1e-12
      %v4018 = vadd.f32 %v4002, 1e-12
      %v4019 = vadd.f32 %v4003, 1e-12
      %v4020 = vadd.f32 %v4004, 1e-12
      %v4021 = vadd.f32 %v4005, 1e-12
      %v4022 = vadd.f32 %v4006, 1e-12
      %v4023 = vadd.f32 %v4007, 1e-12
      %v4024 = vadd.f32 %v4008, 1e-12
      %v4025 = vadd.f32 %v4009, 1e-12
      %v4026 = vadd.f32 %v4010, 1e-12
      %v4027 = vadd.f32 %v4011, 1e-12
      %v4028 = vadd.f32 %v4012, 1e-12
      %v4029 = vadd.f32 %v4013, 1e-12
      %v4030 = vadd.f32 %v4014, 1e-12
      %v4031 = vrsqrt.pop %v4015
      %v4032 = vrsqrt.pop %v4016
      %v4033 = vrsqrt.pop %v4017
      %v4034 = vrsqrt.pop %v4018
      %v4035 = vrsqrt.pop %v4019
      %v4036 = vrsqrt.pop %v4020
      %v4037 = vrsqrt.pop %v4021
      %v4038 = vrsqrt.pop %v4022
      %v4039 = vrsqrt.pop %v4023
      %v4040 = vrsqrt.pop %v4024
      %v4041 = vrsqrt.pop %v4025
      %v4042 = vrsqrt.pop %v4026
      %v4043 = vrsqrt.pop %v4027
      %v4044 = vrsqrt.pop %v4028
      %v4045 = vrsqrt.pop %v4029
      %v4046 = vrsqrt.pop %v4030
      %v4047 = vmul.f32 %v3935, %v4031
      %v4048 = vmul.f32 %v3936, %v4032
      %v4049 = vmul.f32 %v3937, %v4033
      %v4050 = vmul.f32 %v3938, %v4034
      %v4051 = vmul.f32 %v3939, %v4035
      %v4052 = vmul.f32 %v3940, %v4036
      %v4053 = vmul.f32 %v3941, %v4037
      %v4054 = vmul.f32 %v3942, %v4038
      %v4055 = vmul.f32 %v3943, %v4039
      %v4056 = vmul.f32 %v3944, %v4040
      %v4057 = vmul.f32 %v3945, %v4041
      %v4058 = vmul.f32 %v3946, %v4042
      %v4059 = vmul.f32 %v3947, %v4043
      %v4060 = vmul.f32 %v3948, %v4044
      %v4061 = vmul.f32 %v3949, %v4045
      %v4062 = vmul.f32 %v3950, %v4046
      %v4064 = vlaneseq
      %v4065 = vshrl.u32 %v4064, 7
      %v4066 = vsub.s32 0, %v4065
      %v4067 = vrot.slane %v3885, %v4066
      %v4069 = vmul.f32 %v4047, %v4067
      %v4070 = vmul.f32 %v4048, %v4067
      %v4071 = vmul.f32 %v4049, %v4067
      %v4072 = vmul.f32 %v4050, %v4067
      %v4073 = vmul.f32 %v4051, %v4067
      %v4074 = vmul.f32 %v4052, %v4067
      %v4075 = vmul.f32 %v4053, %v4067
      %v4076 = vmul.f32 %v4054, %v4067
      %v4077 = vmul.f32 %v4055, %v4067
      %v4078 = vmul.f32 %v4056, %v4067
      %v4079 = vmul.f32 %v4057, %v4067
      %v4080 = vmul.f32 %v4058, %v4067
      %v4081 = vmul.f32 %v4059, %v4067
      %v4082 = vmul.f32 %v4060, %v4067
      %v4083 = vmul.f32 %v4061, %v4067
      %v4084 = vmul.f32 %v4062, %v4067
      %v4086 = vlaneseq
      %v4087 = vshrl.u32 %v4086, 7
      %v4088 = vsub.s32 0, %v4087
      %v4089 = vrot.slane %v3886, %v4088
      %v4091 = vadd.f32 %v4069, %v4089
      %v4092 = vadd.f32 %v4070, %v4089
      %v4093 = vadd.f32 %v4071, %v4089
      %v4094 = vadd.f32 %v4072, %v4089
      %v4095 = vadd.f32 %v4073, %v4089
      %v4096 = vadd.f32 %v4074, %v4089
      %v4097 = vadd.f32 %v4075, %v4089
      %v4098 = vadd.f32 %v4076, %v4089
      %v4099 = vadd.f32 %v4077, %v4089
      %v4100 = vadd.f32 %v4078, %v4089
      %v4101 = vadd.f32 %v4079, %v4089
      %v4102 = vadd.f32 %v4080, %v4089
      %v4103 = vadd.f32 %v4081, %v4089
      %v4104 = vadd.f32 %v4082, %v4089
      %v4105 = vadd.f32 %v4083, %v4089
      %v4106 = vadd.f32 %v4084, %v4089
      %v4107 = vpack.c.bf16 %v4092, %v4091
      %v4108 = vpack.c.bf16 %v4094, %v4093
      %v4109 = vpack.c.bf16 %v4096, %v4095
      %v4110 = vpack.c.bf16 %v4098, %v4097
      %v4111 = vpack.c.bf16 %v4100, %v4099
      %v4112 = vpack.c.bf16 %v4102, %v4101
      %v4113 = vpack.c.bf16 %v4104, %v4103
      %v4114 = vpack.c.bf16 %v4106, %v4105
      %v4115 = vld [vmem:[%s10] sm:$0xff]
      %v4116 = vld [vmem:[%s10 + $0x8] sm:$0xff]
      %v4117 = vld [vmem:[%s10 + $0x10] sm:$0xff]
      %v4118 = vld [vmem:[%s10 + $0x18] sm:$0xff]
      %v4119 = vld [vmem:[%s10 + $0x20] sm:$0xff]
      %v4120 = vld [vmem:[%s10 + $0x28] sm:$0xff]
      %v4121 = vld [vmem:[%s10 + $0x30] sm:$0xff]
      %v4122 = vld [vmem:[%s10 + $0x38] sm:$0xff]
      %v4123 = vld [vmem:[%s10 + $0x40] sm:$0xff]
      %v4124 = vld [vmem:[%s10 + $0x48] sm:$0xff]
      %v4125 = vld [vmem:[%s10 + $0x50] sm:$0xff]
      %v4126 = vld [vmem:[%s10 + $0x58] sm:$0xff]
      %v4127 = vld [vmem:[%s10 + $0x60] sm:$0xff]
      %v4128 = vld [vmem:[%s10 + $0x68] sm:$0xff]
      %v4129 = vld [vmem:[%s10 + $0x70] sm:$0xff]
      %v4130 = vld [vmem:[%s10 + $0x78] sm:$0xff]
      %v4131 = vld [vmem:[%s10 + $0x80] sm:$0xff]
      %v4132 = vld [vmem:[%s10 + $0x88] sm:$0xff]
      %v4133 = vld [vmem:[%s10 + $0x90] sm:$0xff]
      %v4134 = vld [vmem:[%s10 + $0x98] sm:$0xff]
      %v4135 = vld [vmem:[%s10 + $0xa0] sm:$0xff]
      %v4136 = vld [vmem:[%s10 + $0xa8] sm:$0xff]
      %v4137 = vld [vmem:[%s10 + $0xb0] sm:$0xff]
      %v4138 = vld [vmem:[%s10 + $0xb8] sm:$0xff]
      %v4139 = vld [vmem:[%s10 + $0xc0] sm:$0xff]
      %v4140 = vld [vmem:[%s10 + $0xc8] sm:$0xff]
      %v4141 = vld [vmem:[%s10 + $0xd0] sm:$0xff]
      %v4142 = vld [vmem:[%s10 + $0xd8] sm:$0xff]
      %v4143 = vld [vmem:[%s10 + $0xe0] sm:$0xff]
      %v4144 = vld [vmem:[%s10 + $0xe8] sm:$0xff]
      %v4145 = vld [vmem:[%s10 + $0xf0] sm:$0xff]
      %v4146 = vld [vmem:[%s10 + $0xf8] sm:$0xff]
      %v4147 = vld [vmem:[%s11] sm:$0xf]
      %v4149 = vlaneseq
      %v4150 = vshrl.u32 %v4149, 7
      %v4151 = vsub.s32 0, %v4150
      %v4152 = vrot.slane %v4147, %v4151
      %v4153 = vlaneseq
      %v4154 = vshrl.u32 %v4153, 7
      %v4155 = vsub.s32 1, %v4154
      %v4156 = vrot.slane %v4147, %v4155
      %v4157 = vlaneseq
      %v4158 = vshrl.u32 %v4157, 7
      %v4159 = vsub.s32 2, %v4158
      %v4160 = vrot.slane %v4147, %v4159
      %v4161 = vlaneseq
      %v4162 = vshrl.u32 %v4161, 7
      %v4163 = vsub.s32 3, %v4162
      %v4164 = vrot.slane %v4147, %v4163
      %v4201 = vunpack.c.l.b16 %v4115
      %v4202 = vunpack.c.h.b16 %v4115
      %v4203 = vunpack.c.l.b16 %v4116
      %v4204 = vunpack.c.h.b16 %v4116
      %v4205 = vunpack.c.l.b16 %v4117
      %v4206 = vunpack.c.h.b16 %v4117
      %v4207 = vunpack.c.l.b16 %v4118
      %v4208 = vunpack.c.h.b16 %v4118
      %v4209 = vunpack.c.l.b16 %v4119
      %v4210 = vunpack.c.h.b16 %v4119
      %v4211 = vunpack.c.l.b16 %v4120
      %v4212 = vunpack.c.h.b16 %v4120
      %v4213 = vunpack.c.l.b16 %v4121
      %v4214 = vunpack.c.h.b16 %v4121
      %v4215 = vunpack.c.l.b16 %v4122
      %v4216 = vunpack.c.h.b16 %v4122
      %v4217 = vunpack.c.l.b16 %v4123
      %v4218 = vunpack.c.h.b16 %v4123
      %v4219 = vunpack.c.l.b16 %v4124
      %v4220 = vunpack.c.h.b16 %v4124
      %v4221 = vunpack.c.l.b16 %v4125
      %v4222 = vunpack.c.h.b16 %v4125
      %v4223 = vunpack.c.l.b16 %v4126
      %v4224 = vunpack.c.h.b16 %v4126
      %v4225 = vunpack.c.l.b16 %v4127
      %v4226 = vunpack.c.h.b16 %v4127
      %v4227 = vunpack.c.l.b16 %v4128
      %v4228 = vunpack.c.h.b16 %v4128
      %v4229 = vunpack.c.l.b16 %v4129
      %v4230 = vunpack.c.h.b16 %v4129
      %v4231 = vunpack.c.l.b16 %v4130
      %v4232 = vunpack.c.h.b16 %v4130
      %v4233 = vunpack.c.l.b16 %v4131
      %v4234 = vunpack.c.h.b16 %v4131
      %v4235 = vunpack.c.l.b16 %v4132
      %v4236 = vunpack.c.h.b16 %v4132
      %v4237 = vunpack.c.l.b16 %v4133
      %v4238 = vunpack.c.h.b16 %v4133
      %v4239 = vunpack.c.l.b16 %v4134
      %v4240 = vunpack.c.h.b16 %v4134
      %v4241 = vunpack.c.l.b16 %v4135
      %v4242 = vunpack.c.h.b16 %v4135
      %v4243 = vunpack.c.l.b16 %v4136
      %v4244 = vunpack.c.h.b16 %v4136
      %v4245 = vunpack.c.l.b16 %v4137
      %v4246 = vunpack.c.h.b16 %v4137
      %v4247 = vunpack.c.l.b16 %v4138
      %v4248 = vunpack.c.h.b16 %v4138
      %v4249 = vunpack.c.l.b16 %v4139
      %v4250 = vunpack.c.h.b16 %v4139
      %v4251 = vunpack.c.l.b16 %v4140
      %v4252 = vunpack.c.h.b16 %v4140
      %v4253 = vunpack.c.l.b16 %v4141
      %v4254 = vunpack.c.h.b16 %v4141
      %v4255 = vunpack.c.l.b16 %v4142
      %v4256 = vunpack.c.h.b16 %v4142
      %v4257 = vunpack.c.l.b16 %v4143
      %v4258 = vunpack.c.h.b16 %v4143
      %v4259 = vunpack.c.l.b16 %v4144
      %v4260 = vunpack.c.h.b16 %v4144
      %v4261 = vunpack.c.l.b16 %v4145
      %v4262 = vunpack.c.h.b16 %v4145
      %v4263 = vunpack.c.l.b16 %v4146
      %v4264 = vunpack.c.h.b16 %v4146
      %v4265 = vpack.c.b16 %v4205, %v4201
      %v4266 = vpack.c.b16 %v4206, %v4202
      %v4267 = vpack.c.b16 %v4207, %v4203
      %v4268 = vpack.c.b16 %v4208, %v4204
      %v4269 = vpack.c.b16 %v4213, %v4209
      %v4270 = vpack.c.b16 %v4214, %v4210
      %v4271 = vpack.c.b16 %v4215, %v4211
      %v4272 = vpack.c.b16 %v4216, %v4212
      %v4273 = vpack.c.b16 %v4221, %v4217
      %v4274 = vpack.c.b16 %v4222, %v4218
      %v4275 = vpack.c.b16 %v4223, %v4219
      %v4276 = vpack.c.b16 %v4224, %v4220
      %v4277 = vpack.c.b16 %v4229, %v4225
      %v4278 = vpack.c.b16 %v4230, %v4226
      %v4279 = vpack.c.b16 %v4231, %v4227
      %v4280 = vpack.c.b16 %v4232, %v4228
      %v4281 = vpack.c.b16 %v4237, %v4233
      %v4282 = vpack.c.b16 %v4238, %v4234
      %v4283 = vpack.c.b16 %v4239, %v4235
      %v4284 = vpack.c.b16 %v4240, %v4236
      %v4285 = vpack.c.b16 %v4245, %v4241
      %v4286 = vpack.c.b16 %v4246, %v4242
      %v4287 = vpack.c.b16 %v4247, %v4243
      %v4288 = vpack.c.b16 %v4248, %v4244
      %v4289 = vpack.c.b16 %v4253, %v4249
      %v4290 = vpack.c.b16 %v4254, %v4250
      %v4291 = vpack.c.b16 %v4255, %v4251
      %v4292 = vpack.c.b16 %v4256, %v4252
      %v4293 = vpack.c.b16 %v4261, %v4257
      %v4294 = vpack.c.b16 %v4262, %v4258
      %v4295 = vpack.c.b16 %v4263, %v4259
      %v4296 = vpack.c.b16 %v4264, %v4260
      %4329 = vmatprep.subr.bf16.mxu0 %v4294
      %4330 = vmatpush1.bf16.msra.mxu0 %v4293
      %4331 = vmatprep.subr.bf16.mxu0 %v4290
      %4332 = vmatpush1.bf16.msra.mxu0 %v4289
      %4333 = vmatprep.subr.bf16.mxu0 %v4286
      %4334 = vmatpush1.bf16.msra.mxu0 %v4285
      %4335 = vmatprep.subr.bf16.mxu0 %v4282
      %4336 = vmatpush1.bf16.msra.mxu0 %v4281
      %4337 = vmatprep.subr.bf16.mxu0 %v4278
      %4338 = vmatpush1.bf16.msra.mxu0 %v4277
      %4339 = vmatprep.subr.bf16.mxu0 %v4274
      %4340 = vmatpush1.bf16.msra.mxu0 %v4273
      %4341 = vmatprep.subr.bf16.mxu0 %v4270
      %4342 = vmatpush1.bf16.msra.mxu0 %v4269
      %4343 = vmatprep.subr.bf16.mxu0 %v4266
      %4344 = vmatpush1.bf16.msra.mxu0 %v4265
      %4345 = vmatprep.subr.bf16.mxu0 0
      %4346 = vmatpush2.bf16.msra.mxu0 0
      %4347 = vmatprep.subr.bf16.mxu0 0
      %4348 = vmatpush2.bf16.msra.mxu0 0
      %4349 = vmatprep.subr.bf16.mxu0 0
      %4350 = vmatpush2.bf16.msra.mxu0 0
      %4351 = vmatprep.subr.bf16.mxu0 0
      %4352 = vmatpush2.bf16.msra.mxu0 0
      %4353 = vmatprep.subr.bf16.mxu0 0
      %4354 = vmatpush2.bf16.msra.mxu0 0
      %4355 = vmatprep.subr.bf16.mxu0 0
      %4356 = vmatpush2.bf16.msra.mxu0 0
      %4357 = vmatprep.subr.bf16.mxu0 0
      %4358 = vmatpush2.bf16.msra.mxu0 0
      %4359 = vmatprep.subr.bf16.mxu0 0
      %4360 = vmatpush2.bf16.msra.mxu0 0
      %4361 = vmatprep.mubr.bf16.mxu0 0
      %4362 = vmatmul.mubr.bf16.gmra.mxu0 %v4107
      %v4363 = vpop.f32.mrf.mxu0
      %v4364 = vadd.f32 %v4152, %v4363
      %v4365 = vpop.f32.mrf.mxu0
      %v4366 = vadd.f32 %v4156, %v4365
      %v4367 = vpop.f32.mrf.mxu0
      %v4368 = vadd.f32 %v4152, %v4367
      %v4369 = vpop.f32.mrf.mxu0
      %v4370 = vadd.f32 %v4156, %v4369
      %4371 = vmatprep.mubr.bf16.mxu0 0
      %4372 = vmatmul.mubr.bf16.gmra.mxu0 %v4108
      %v4373 = vpop.f32.mrf.mxu0
      %v4374 = vadd.f32 %v4152, %v4373
      %v4375 = vpop.f32.mrf.mxu0
      %v4376 = vadd.f32 %v4156, %v4375
      %v4377 = vpop.f32.mrf.mxu0
      %v4378 = vadd.f32 %v4152, %v4377
      %v4379 = vpop.f32.mrf.mxu0
      %v4380 = vadd.f32 %v4156, %v4379
      %4381 = vmatprep.mubr.bf16.mxu0 0
      %4382 = vmatmul.mubr.bf16.gmra.mxu0 %v4109
      %v4383 = vpop.f32.mrf.mxu0
      %v4384 = vadd.f32 %v4152, %v4383
      %v4385 = vpop.f32.mrf.mxu0
      %v4386 = vadd.f32 %v4156, %v4385
      %v4387 = vpop.f32.mrf.mxu0
      %v4388 = vadd.f32 %v4152, %v4387
      %v4389 = vpop.f32.mrf.mxu0
      %v4390 = vadd.f32 %v4156, %v4389
      %4391 = vmatprep.mubr.bf16.mxu0 0
      %4392 = vmatmul.mubr.bf16.gmra.mxu0 %v4110
      %v4393 = vpop.f32.mrf.mxu0
      %v4394 = vadd.f32 %v4152, %v4393
      %v4395 = vpop.f32.mrf.mxu0
      %v4396 = vadd.f32 %v4156, %v4395
      %v4397 = vpop.f32.mrf.mxu0
      %v4398 = vadd.f32 %v4152, %v4397
      %v4399 = vpop.f32.mrf.mxu0
      %v4400 = vadd.f32 %v4156, %v4399
      %4401 = vmatprep.mubr.bf16.mxu0 0
      %4402 = vmatmul.mubr.bf16.gmra.mxu0 %v4111
      %v4403 = vpop.f32.mrf.mxu0
      %v4404 = vadd.f32 %v4152, %v4403
      %v4405 = vpop.f32.mrf.mxu0
      %v4406 = vadd.f32 %v4156, %v4405
      %v4407 = vpop.f32.mrf.mxu0
      %v4408 = vadd.f32 %v4152, %v4407
      %v4409 = vpop.f32.mrf.mxu0
      %v4410 = vadd.f32 %v4156, %v4409
      %4411 = vmatprep.mubr.bf16.mxu0 0
      %4412 = vmatmul.mubr.bf16.gmra.mxu0 %v4112
      %v4413 = vpop.f32.mrf.mxu0
      %v4414 = vadd.f32 %v4152, %v4413
      %v4415 = vpop.f32.mrf.mxu0
      %v4416 = vadd.f32 %v4156, %v4415
      %v4417 = vpop.f32.mrf.mxu0
      %v4418 = vadd.f32 %v4152, %v4417
      %v4419 = vpop.f32.mrf.mxu0
      %v4420 = vadd.f32 %v4156, %v4419
      %4421 = vmatprep.mubr.bf16.mxu0 0
      %4422 = vmatmul.mubr.bf16.gmra.mxu0 %v4113
      %v4423 = vpop.f32.mrf.mxu0
      %v4424 = vadd.f32 %v4152, %v4423
      %v4425 = vpop.f32.mrf.mxu0
      %v4426 = vadd.f32 %v4156, %v4425
      %v4427 = vpop.f32.mrf.mxu0
      %v4428 = vadd.f32 %v4152, %v4427
      %v4429 = vpop.f32.mrf.mxu0
      %v4430 = vadd.f32 %v4156, %v4429
      %4431 = vmatprep.mubr.bf16.mxu0 0
      %4432 = vmatmul.mubr.bf16.gmra.mxu0 %v4114
      %v4433 = vpop.f32.mrf.mxu0
      %v4434 = vadd.f32 %v4152, %v4433
      %v4435 = vpop.f32.mrf.mxu0
      %v4436 = vadd.f32 %v4156, %v4435
      %v4437 = vpop.f32.mrf.mxu0
      %v4438 = vadd.f32 %v4152, %v4437
      %v4439 = vpop.f32.mrf.mxu0
      %v4440 = vadd.f32 %v4156, %v4439
      %4441 = vdwg.mxu0
      %4442 = vmatprep.subr.bf16.mxu0 %v4296
      %4443 = vmatpush1.bf16.msra.mxu0 %v4295
      %4444 = vmatprep.subr.bf16.mxu0 %v4292
      %4445 = vmatpush1.bf16.msra.mxu0 %v4291
      %4446 = vmatprep.subr.bf16.mxu0 %v4288
      %4447 = vmatpush1.bf16.msra.mxu0 %v4287
      %4448 = vmatprep.subr.bf16.mxu0 %v4284
      %4449 = vmatpush1.bf16.msra.mxu0 %v4283
      %4450 = vmatprep.subr.bf16.mxu0 %v4280
      %4451 = vmatpush1.bf16.msra.mxu0 %v4279
      %4452 = vmatprep.subr.bf16.mxu0 %v4276
      %4453 = vmatpush1.bf16.msra.mxu0 %v4275
      %4454 = vmatprep.subr.bf16.mxu0 %v4272
      %4455 = vmatpush1.bf16.msra.mxu0 %v4271
      %4456 = vmatprep.subr.bf16.mxu0 %v4268
      %4457 = vmatpush1.bf16.msra.mxu0 %v4267
      %4458 = vmatprep.subr.bf16.mxu0 0
      %4459 = vmatpush2.bf16.msra.mxu0 0
      %4460 = vmatprep.subr.bf16.mxu0 0
      %4461 = vmatpush2.bf16.msra.mxu0 0
      %4462 = vmatprep.subr.bf16.mxu0 0
      %4463 = vmatpush2.bf16.msra.mxu0 0
      %4464 = vmatprep.subr.bf16.mxu0 0
      %4465 = vmatpush2.bf16.msra.mxu0 0
      %4466 = vmatprep.subr.bf16.mxu0 0
      %4467 = vmatpush2.bf16.msra.mxu0 0
      %4468 = vmatprep.subr.bf16.mxu0 0
      %4469 = vmatpush2.bf16.msra.mxu0 0
      %4470 = vmatprep.subr.bf16.mxu0 0
      %4471 = vmatpush2.bf16.msra.mxu0 0
      %4472 = vmatprep.subr.bf16.mxu0 0
      %4473 = vmatpush2.bf16.msra.mxu0 0
      %4474 = vmatprep.mubr.bf16.mxu0 0
      %4475 = vmatmul.mubr.bf16.gmra.mxu0 %v4107
      %v4476 = vpop.f32.mrf.mxu0
      %v4477 = vadd.f32 %v4160, %v4476
      %v4478 = vpop.f32.mrf.mxu0
      %v4479 = vadd.f32 %v4164, %v4478
      %v4480 = vpop.f32.mrf.mxu0
      %v4481 = vadd.f32 %v4160, %v4480
      %v4482 = vpop.f32.mrf.mxu0
      %v4483 = vadd.f32 %v4164, %v4482
      %4484 = vmatprep.mubr.bf16.mxu0 0
      %4485 = vmatmul.mubr.bf16.gmra.mxu0 %v4108
      %v4486 = vpop.f32.mrf.mxu0
      %v4487 = vadd.f32 %v4160, %v4486
      %v4488 = vpop.f32.mrf.mxu0
      %v4489 = vadd.f32 %v4164, %v4488
      %v4490 = vpop.f32.mrf.mxu0
      %v4491 = vadd.f32 %v4160, %v4490
      %v4492 = vpop.f32.mrf.mxu0
      %v4493 = vadd.f32 %v4164, %v4492
      %4494 = vmatprep.mubr.bf16.mxu0 0
      %4495 = vmatmul.mubr.bf16.gmra.mxu0 %v4109
      %v4496 = vpop.f32.mrf.mxu0
      %v4497 = vadd.f32 %v4160, %v4496
      %v4498 = vpop.f32.mrf.mxu0
      %v4499 = vadd.f32 %v4164, %v4498
      %v4500 = vpop.f32.mrf.mxu0
      %v4501 = vadd.f32 %v4160, %v4500
      %v4502 = vpop.f32.mrf.mxu0
      %v4503 = vadd.f32 %v4164, %v4502
      %4504 = vmatprep.mubr.bf16.mxu0 0
      %4505 = vmatmul.mubr.bf16.gmra.mxu0 %v4110
      %v4506 = vpop.f32.mrf.mxu0
      %v4507 = vadd.f32 %v4160, %v4506
      %v4508 = vpop.f32.mrf.mxu0
      %v4509 = vadd.f32 %v4164, %v4508
      %v4510 = vpop.f32.mrf.mxu0
      %v4511 = vadd.f32 %v4160, %v4510
      %v4512 = vpop.f32.mrf.mxu0
      %v4513 = vadd.f32 %v4164, %v4512
      %4514 = vmatprep.mubr.bf16.mxu0 0
      %4515 = vmatmul.mubr.bf16.gmra.mxu0 %v4111
      %v4516 = vpop.f32.mrf.mxu0
      %v4517 = vadd.f32 %v4160, %v4516
      %v4518 = vpop.f32.mrf.mxu0
      %v4519 = vadd.f32 %v4164, %v4518
      %v4520 = vpop.f32.mrf.mxu0
      %v4521 = vadd.f32 %v4160, %v4520
      %v4522 = vpop.f32.mrf.mxu0
      %v4523 = vadd.f32 %v4164, %v4522
      %4524 = vmatprep.mubr.bf16.mxu0 0
      %4525 = vmatmul.mubr.bf16.gmra.mxu0 %v4112
      %v4526 = vpop.f32.mrf.mxu0
      %v4527 = vadd.f32 %v4160, %v4526
      %v4528 = vpop.f32.mrf.mxu0
      %v4529 = vadd.f32 %v4164, %v4528
      %v4530 = vpop.f32.mrf.mxu0
      %v4531 = vadd.f32 %v4160, %v4530
      %v4532 = vpop.f32.mrf.mxu0
      %v4533 = vadd.f32 %v4164, %v4532
      %4534 = vmatprep.mubr.bf16.mxu0 0
      %4535 = vmatmul.mubr.bf16.gmra.mxu0 %v4113
      %v4536 = vpop.f32.mrf.mxu0
      %v4537 = vadd.f32 %v4160, %v4536
      %v4538 = vpop.f32.mrf.mxu0
      %v4539 = vadd.f32 %v4164, %v4538
      %v4540 = vpop.f32.mrf.mxu0
      %v4541 = vadd.f32 %v4160, %v4540
      %v4542 = vpop.f32.mrf.mxu0
      %v4543 = vadd.f32 %v4164, %v4542
      %4544 = vmatprep.mubr.bf16.mxu0 0
      %4545 = vmatmul.mubr.bf16.gmra.mxu0 %v4114
      %v4546 = vpop.f32.mrf.mxu0
      %v4547 = vadd.f32 %v4160, %v4546
      %v4548 = vpop.f32.mrf.mxu0
      %v4549 = vadd.f32 %v4164, %v4548
      %v4550 = vpop.f32.mrf.mxu0
      %v4551 = vadd.f32 %v4160, %v4550
      %v4552 = vpop.f32.mrf.mxu0
      %v4553 = vadd.f32 %v4164, %v4552
      %4554 = vdwg.mxu0
      %v4555 = vmul.f32 %v4364, %v4364
      %v4556 = vmul.f32 %v4366, %v4366
      %v4557 = vmul.f32 %v4477, %v4477
      %v4558 = vmul.f32 %v4479, %v4479
      %v4559 = vmul.f32 %v4368, %v4368
      %v4560 = vmul.f32 %v4370, %v4370
      %v4561 = vmul.f32 %v4481, %v4481
      %v4562 = vmul.f32 %v4483, %v4483
      %v4563 = vmul.f32 %v4374, %v4374
      %v4564 = vmul.f32 %v4376, %v4376
      %v4565 = vmul.f32 %v4487, %v4487
      %v4566 = vmul.f32 %v4489, %v4489
      %v4567 = vmul.f32 %v4378, %v4378
      %v4568 = vmul.f32 %v4380, %v4380
      %v4569 = vmul.f32 %v4491, %v4491
      %v4570 = vmul.f32 %v4493, %v4493
      %v4571 = vmul.f32 %v4384, %v4384
      %v4572 = vmul.f32 %v4386, %v4386
      %v4573 = vmul.f32 %v4497, %v4497
      %v4574 = vmul.f32 %v4499, %v4499
      %v4575 = vmul.f32 %v4388, %v4388
      %v4576 = vmul.f32 %v4390, %v4390
      %v4577 = vmul.f32 %v4501, %v4501
      %v4578 = vmul.f32 %v4503, %v4503
      %v4579 = vmul.f32 %v4394, %v4394
      %v4580 = vmul.f32 %v4396, %v4396
      %v4581 = vmul.f32 %v4507, %v4507
      %v4582 = vmul.f32 %v4509, %v4509
      %v4583 = vmul.f32 %v4398, %v4398
      %v4584 = vmul.f32 %v4400, %v4400
      %v4585 = vmul.f32 %v4511, %v4511
      %v4586 = vmul.f32 %v4513, %v4513
      %v4587 = vmul.f32 %v4404, %v4404
      %v4588 = vmul.f32 %v4406, %v4406
      %v4589 = vmul.f32 %v4517, %v4517
      %v4590 = vmul.f32 %v4519, %v4519
      %v4591 = vmul.f32 %v4408, %v4408
      %v4592 = vmul.f32 %v4410, %v4410
      %v4593 = vmul.f32 %v4521, %v4521
      %v4594 = vmul.f32 %v4523, %v4523
      %v4595 = vmul.f32 %v4414, %v4414
      %v4596 = vmul.f32 %v4416, %v4416
      %v4597 = vmul.f32 %v4527, %v4527
      %v4598 = vmul.f32 %v4529, %v4529
      %v4599 = vmul.f32 %v4418, %v4418
      %v4600 = vmul.f32 %v4420, %v4420
      %v4601 = vmul.f32 %v4531, %v4531
      %v4602 = vmul.f32 %v4533, %v4533
      %v4603 = vmul.f32 %v4424, %v4424
      %v4604 = vmul.f32 %v4426, %v4426
      %v4605 = vmul.f32 %v4537, %v4537
      %v4606 = vmul.f32 %v4539, %v4539
      %v4607 = vmul.f32 %v4428, %v4428
      %v4608 = vmul.f32 %v4430, %v4430
      %v4609 = vmul.f32 %v4541, %v4541
      %v4610 = vmul.f32 %v4543, %v4543
      %v4611 = vmul.f32 %v4434, %v4434
      %v4612 = vmul.f32 %v4436, %v4436
      %v4613 = vmul.f32 %v4547, %v4547
      %v4614 = vmul.f32 %v4549, %v4549
      %v4615 = vmul.f32 %v4438, %v4438
      %v4616 = vmul.f32 %v4440, %v4440
      %v4617 = vmul.f32 %v4551, %v4551
      %v4618 = vmul.f32 %v4553, %v4553
      %v4619 = vmul.f32 %v4364, %v4555
      %v4620 = vmul.f32 %v4366, %v4556
      %v4621 = vmul.f32 %v4477, %v4557
      %v4622 = vmul.f32 %v4479, %v4558
      %v4623 = vmul.f32 %v4368, %v4559
      %v4624 = vmul.f32 %v4370, %v4560
      %v4625 = vmul.f32 %v4481, %v4561
      %v4626 = vmul.f32 %v4483, %v4562
      %v4627 = vmul.f32 %v4374, %v4563
      %v4628 = vmul.f32 %v4376, %v4564
      %v4629 = vmul.f32 %v4487, %v4565
      %v4630 = vmul.f32 %v4489, %v4566
      %v4631 = vmul.f32 %v4378, %v4567
      %v4632 = vmul.f32 %v4380, %v4568
      %v4633 = vmul.f32 %v4491, %v4569
      %v4634 = vmul.f32 %v4493, %v4570
      %v4635 = vmul.f32 %v4384, %v4571
      %v4636 = vmul.f32 %v4386, %v4572
      %v4637 = vmul.f32 %v4497, %v4573
      %v4638 = vmul.f32 %v4499, %v4574
      %v4639 = vmul.f32 %v4388, %v4575
      %v4640 = vmul.f32 %v4390, %v4576
      %v4641 = vmul.f32 %v4501, %v4577
      %v4642 = vmul.f32 %v4503, %v4578
      %v4643 = vmul.f32 %v4394, %v4579
      %v4644 = vmul.f32 %v4396, %v4580
      %v4645 = vmul.f32 %v4507, %v4581
      %v4646 = vmul.f32 %v4509, %v4582
      %v4647 = vmul.f32 %v4398, %v4583
      %v4648 = vmul.f32 %v4400, %v4584
      %v4649 = vmul.f32 %v4511, %v4585
      %v4650 = vmul.f32 %v4513, %v4586
      %v4651 = vmul.f32 %v4404, %v4587
      %v4652 = vmul.f32 %v4406, %v4588
      %v4653 = vmul.f32 %v4517, %v4589
      %v4654 = vmul.f32 %v4519, %v4590
      %v4655 = vmul.f32 %v4408, %v4591
      %v4656 = vmul.f32 %v4410, %v4592
      %v4657 = vmul.f32 %v4521, %v4593
      %v4658 = vmul.f32 %v4523, %v4594
      %v4659 = vmul.f32 %v4414, %v4595
      %v4660 = vmul.f32 %v4416, %v4596
      %v4661 = vmul.f32 %v4527, %v4597
      %v4662 = vmul.f32 %v4529, %v4598
      %v4663 = vmul.f32 %v4418, %v4599
      %v4664 = vmul.f32 %v4420, %v4600
      %v4665 = vmul.f32 %v4531, %v4601
      %v4666 = vmul.f32 %v4533, %v4602
      %v4667 = vmul.f32 %v4424, %v4603
      %v4668 = vmul.f32 %v4426, %v4604
      %v4669 = vmul.f32 %v4537, %v4605
      %v4670 = vmul.f32 %v4539, %v4606
      %v4671 = vmul.f32 %v4428, %v4607
      %v4672 = vmul.f32 %v4430, %v4608
      %v4673 = vmul.f32 %v4541, %v4609
      %v4674 = vmul.f32 %v4543, %v4610
      %v4675 = vmul.f32 %v4434, %v4611
      %v4676 = vmul.f32 %v4436, %v4612
      %v4677 = vmul.f32 %v4547, %v4613
      %v4678 = vmul.f32 %v4549, %v4614
      %v4679 = vmul.f32 %v4438, %v4615
      %v4680 = vmul.f32 %v4440, %v4616
      %v4681 = vmul.f32 %v4551, %v4617
      %v4682 = vmul.f32 %v4553, %v4618
      %v4683 = vmul.f32 %v4619, 0.044715
      %v4684 = vmul.f32 %v4620, 0.044715
      %v4685 = vmul.f32 %v4621, 0.044715
      %v4686 = vmul.f32 %v4622, 0.044715
      %v4687 = vmul.f32 %v4623, 0.044715
      %v4688 = vmul.f32 %v4624, 0.044715
      %v4689 = vmul.f32 %v4625, 0.044715
      %v4690 = vmul.f32 %v4626, 0.044715
      %v4691 = vmul.f32 %v4627, 0.044715
      %v4692 = vmul.f32 %v4628, 0.044715
      %v4693 = vmul.f32 %v4629, 0.044715
      %v4694 = vmul.f32 %v4630, 0.044715
      %v4695 = vmul.f32 %v4631, 0.044715
      %v4696 = vmul.f32 %v4632, 0.044715
      %v4697 = vmul.f32 %v4633, 0.044715
      %v4698 = vmul.f32 %v4634, 0.044715
      %v4699 = vmul.f32 %v4635, 0.044715
      %v4700 = vmul.f32 %v4636, 0.044715
      %v4701 = vmul.f32 %v4637, 0.044715
      %v4702 = vmul.f32 %v4638, 0.044715
      %v4703 = vmul.f32 %v4639, 0.044715
      %v4704 = vmul.f32 %v4640, 0.044715
      %v4705 = vmul.f32 %v4641, 0.044715
      %v4706 = vmul.f32 %v4642, 0.044715
      %v4707 = vmul.f32 %v4643, 0.044715
      %v4708 = vmul.f32 %v4644, 0.044715
      %v4709 = vmul.f32 %v4645, 0.044715
      %v4710 = vmul.f32 %v4646, 0.044715
      %v4711 = vmul.f32 %v4647, 0.044715
      %v4712 = vmul.f32 %v4648, 0.044715
      %v4713 = vmul.f32 %v4649, 0.044715
      %v4714 = vmul.f32 %v4650, 0.044715
      %v4715 = vmul.f32 %v4651, 0.044715
      %v4716 = vmul.f32 %v4652, 0.044715
      %v4717 = vmul.f32 %v4653, 0.044715
      %v4718 = vmul.f32 %v4654, 0.044715
      %v4719 = vmul.f32 %v4655, 0.044715
      %v4720 = vmul.f32 %v4656, 0.044715
      %v4721 = vmul.f32 %v4657, 0.044715
      %v4722 = vmul.f32 %v4658, 0.044715
      %v4723 = vmul.f32 %v4659, 0.044715
      %v4724 = vmul.f32 %v4660, 0.044715
      %v4725 = vmul.f32 %v4661, 0.044715
      %v4726 = vmul.f32 %v4662, 0.044715
      %v4727 = vmul.f32 %v4663, 0.044715
      %v4728 = vmul.f32 %v4664, 0.044715
      %v4729 = vmul.f32 %v4665, 0.044715
      %v4730 = vmul.f32 %v4666, 0.044715
      %v4731 = vmul.f32 %v4667, 0.044715
      %v4732 = vmul.f32 %v4668, 0.044715
      %v4733 = vmul.f32 %v4669, 0.044715
      %v4734 = vmul.f32 %v4670, 0.044715
      %v4735 = vmul.f32 %v4671, 0.044715
      %v4736 = vmul.f32 %v4672, 0.044715
      %v4737 = vmul.f32 %v4673, 0.044715
      %v4738 = vmul.f32 %v4674, 0.044715
      %v4739 = vmul.f32 %v4675, 0.044715
      %v4740 = vmul.f32 %v4676, 0.044715
      %v4741 = vmul.f32 %v4677, 0.044715
      %v4742 = vmul.f32 %v4678, 0.044715
      %v4743 = vmul.f32 %v4679, 0.044715
      %v4744 = vmul.f32 %v4680, 0.044715
      %v4745 = vmul.f32 %v4681, 0.044715
      %v4746 = vmul.f32 %v4682, 0.044715
      %v4747 = vadd.f32 %v4364, %v4683
      %v4748 = vadd.f32 %v4366, %v4684
      %v4749 = vadd.f32 %v4477, %v4685
      %v4750 = vadd.f32 %v4479, %v4686
      %v4751 = vadd.f32 %v4368, %v4687
      %v4752 = vadd.f32 %v4370, %v4688
      %v4753 = vadd.f32 %v4481, %v4689
      %v4754 = vadd.f32 %v4483, %v4690
      %v4755 = vadd.f32 %v4374, %v4691
      %v4756 = vadd.f32 %v4376, %v4692
      %v4757 = vadd.f32 %v4487, %v4693
      %v4758 = vadd.f32 %v4489, %v4694
      %v4759 = vadd.f32 %v4378, %v4695
      %v4760 = vadd.f32 %v4380, %v4696
      %v4761 = vadd.f32 %v4491, %v4697
      %v4762 = vadd.f32 %v4493, %v4698
      %v4763 = vadd.f32 %v4384, %v4699
      %v4764 = vadd.f32 %v4386, %v4700
      %v4765 = vadd.f32 %v4497, %v4701
      %v4766 = vadd.f32 %v4499, %v4702
      %v4767 = vadd.f32 %v4388, %v4703
      %v4768 = vadd.f32 %v4390, %v4704
      %v4769 = vadd.f32 %v4501, %v4705
      %v4770 = vadd.f32 %v4503, %v4706
      %v4771 = vadd.f32 %v4394, %v4707
      %v4772 = vadd.f32 %v4396, %v4708
      %v4773 = vadd.f32 %v4507, %v4709
      %v4774 = vadd.f32 %v4509, %v4710
      %v4775 = vadd.f32 %v4398, %v4711
      %v4776 = vadd.f32 %v4400, %v4712
      %v4777 = vadd.f32 %v4511, %v4713
      %v4778 = vadd.f32 %v4513, %v4714
      %v4779 = vadd.f32 %v4404, %v4715
      %v4780 = vadd.f32 %v4406, %v4716
      %v4781 = vadd.f32 %v4517, %v4717
      %v4782 = vadd.f32 %v4519, %v4718
      %v4783 = vadd.f32 %v4408, %v4719
      %v4784 = vadd.f32 %v4410, %v4720
      %v4785 = vadd.f32 %v4521, %v4721
      %v4786 = vadd.f32 %v4523, %v4722
      %v4787 = vadd.f32 %v4414, %v4723
      %v4788 = vadd.f32 %v4416, %v4724
      %v4789 = vadd.f32 %v4527, %v4725
      %v4790 = vadd.f32 %v4529, %v4726
      %v4791 = vadd.f32 %v4418, %v4727
      %v4792 = vadd.f32 %v4420, %v4728
      %v4793 = vadd.f32 %v4531, %v4729
      %v4794 = vadd.f32 %v4533, %v4730
      %v4795 = vadd.f32 %v4424, %v4731
      %v4796 = vadd.f32 %v4426, %v4732
      %v4797 = vadd.f32 %v4537, %v4733
      %v4798 = vadd.f32 %v4539, %v4734
      %v4799 = vadd.f32 %v4428, %v4735
      %v4800 = vadd.f32 %v4430, %v4736
      %v4801 = vadd.f32 %v4541, %v4737
      %v4802 = vadd.f32 %v4543, %v4738
      %v4803 = vadd.f32 %v4434, %v4739
      %v4804 = vadd.f32 %v4436, %v4740
      %v4805 = vadd.f32 %v4547, %v4741
      %v4806 = vadd.f32 %v4549, %v4742
      %v4807 = vadd.f32 %v4438, %v4743
      %v4808 = vadd.f32 %v4440, %v4744
      %v4809 = vadd.f32 %v4551, %v4745
      %v4810 = vadd.f32 %v4553, %v4746
      %v4811 = vmul.f32 %v4747, 0.7978846
      %v4812 = vmul.f32 %v4748, 0.7978846
      %v4813 = vmul.f32 %v4749, 0.7978846
      %v4814 = vmul.f32 %v4750, 0.7978846
      %v4815 = vmul.f32 %v4751, 0.7978846
      %v4816 = vmul.f32 %v4752, 0.7978846
      %v4817 = vmul.f32 %v4753, 0.7978846
      %v4818 = vmul.f32 %v4754, 0.7978846
      %v4819 = vmul.f32 %v4755, 0.7978846
      %v4820 = vmul.f32 %v4756, 0.7978846
      %v4821 = vmul.f32 %v4757, 0.7978846
      %v4822 = vmul.f32 %v4758, 0.7978846
      %v4823 = vmul.f32 %v4759, 0.7978846
      %v4824 = vmul.f32 %v4760, 0.7978846
      %v4825 = vmul.f32 %v4761, 0.7978846
      %v4826 = vmul.f32 %v4762, 0.7978846
      %v4827 = vmul.f32 %v4763, 0.7978846
      %v4828 = vmul.f32 %v4764, 0.7978846
      %v4829 = vmul.f32 %v4765, 0.7978846
      %v4830 = vmul.f32 %v4766, 0.7978846
      %v4831 = vmul.f32 %v4767, 0.7978846
      %v4832 = vmul.f32 %v4768, 0.7978846
      %v4833 = vmul.f32 %v4769, 0.7978846
      %v4834 = vmul.f32 %v4770, 0.7978846
      %v4835 = vmul.f32 %v4771, 0.7978846
      %v4836 = vmul.f32 %v4772, 0.7978846
      %v4837 = vmul.f32 %v4773, 0.7978846
      %v4838 = vmul.f32 %v4774, 0.7978846
      %v4839 = vmul.f32 %v4775, 0.7978846
      %v4840 = vmul.f32 %v4776, 0.7978846
      %v4841 = vmul.f32 %v4777, 0.7978846
      %v4842 = vmul.f32 %v4778, 0.7978846
      %v4843 = vmul.f32 %v4779, 0.7978846
      %v4844 = vmul.f32 %v4780, 0.7978846
      %v4845 = vmul.f32 %v4781, 0.7978846
      %v4846 = vmul.f32 %v4782, 0.7978846
      %v4847 = vmul.f32 %v4783, 0.7978846
      %v4848 = vmul.f32 %v4784, 0.7978846
      %v4849 = vmul.f32 %v4785, 0.7978846
      %v4850 = vmul.f32 %v4786, 0.7978846
      %v4851 = vmul.f32 %v4787, 0.7978846
      %v4852 = vmul.f32 %v4788, 0.7978846
      %v4853 = vmul.f32 %v4789, 0.7978846
      %v4854 = vmul.f32 %v4790, 0.7978846
      %v4855 = vmul.f32 %v4791, 0.7978846
      %v4856 = vmul.f32 %v4792, 0.7978846
      %v4857 = vmul.f32 %v4793, 0.7978846
      %v4858 = vmul.f32 %v4794, 0.7978846
      %v4859 = vmul.f32 %v4795, 0.7978846
      %v4860 = vmul.f32 %v4796, 0.7978846
      %v4861 = vmul.f32 %v4797, 0.7978846
      %v4862 = vmul.f32 %v4798, 0.7978846
      %v4863 = vmul.f32 %v4799, 0.7978846
      %v4864 = vmul.f32 %v4800, 0.7978846
      %v4865 = vmul.f32 %v4801, 0.7978846
      %v4866 = vmul.f32 %v4802, 0.7978846
      %v4867 = vmul.f32 %v4803, 0.7978846
      %v4868 = vmul.f32 %v4804, 0.7978846
      %v4869 = vmul.f32 %v4805, 0.7978846
      %v4870 = vmul.f32 %v4806, 0.7978846
      %v4871 = vmul.f32 %v4807, 0.7978846
      %v4872 = vmul.f32 %v4808, 0.7978846
      %v4873 = vmul.f32 %v4809, 0.7978846
      %v4874 = vmul.f32 %v4810, 0.7978846
      %v4875 = vtanh.pop %v4811
      %v4876 = vtanh.pop %v4812
      %v4877 = vtanh.pop %v4813
      %v4878 = vtanh.pop %v4814
      %v4879 = vtanh.pop %v4815
      %v4880 = vtanh.pop %v4816
      %v4881 = vtanh.pop %v4817
      %v4882 = vtanh.pop %v4818
      %v4883 = vtanh.pop %v4819
      %v4884 = vtanh.pop %v4820
      %v4885 = vtanh.pop %v4821
      %v4886 = vtanh.pop %v4822
      %v4887 = vtanh.pop %v4823
      %v4888 = vtanh.pop %v4824
      %v4889 = vtanh.pop %v4825
      %v4890 = vtanh.pop %v4826
      %v4891 = vtanh.pop %v4827
      %v4892 = vtanh.pop %v4828
      %v4893 = vtanh.pop %v4829
      %v4894 = vtanh.pop %v4830
      %v4895 = vtanh.pop %v4831
      %v4896 = vtanh.pop %v4832
      %v4897 = vtanh.pop %v4833
      %v4898 = vtanh.pop %v4834
      %v4899 = vtanh.pop %v4835
      %v4900 = vtanh.pop %v4836
      %v4901 = vtanh.pop %v4837
      %v4902 = vtanh.pop %v4838
      %v4903 = vtanh.pop %v4839
      %v4904 = vtanh.pop %v4840
      %v4905 = vtanh.pop %v4841
      %v4906 = vtanh.pop %v4842
      %v4907 = vtanh.pop %v4843
      %v4908 = vtanh.pop %v4844
      %v4909 = vtanh.pop %v4845
      %v4910 = vtanh.pop %v4846
      %v4911 = vtanh.pop %v4847
      %v4912 = vtanh.pop %v4848
      %v4913 = vtanh.pop %v4849
      %v4914 = vtanh.pop %v4850
      %v4915 = vtanh.pop %v4851
      %v4916 = vtanh.pop %v4852
      %v4917 = vtanh.pop %v4853
      %v4918 = vtanh.pop %v4854
      %v4919 = vtanh.pop %v4855
      %v4920 = vtanh.pop %v4856
      %v4921 = vtanh.pop %v4857
      %v4922 = vtanh.pop %v4858
      %v4923 = vtanh.pop %v4859
      %v4924 = vtanh.pop %v4860
      %v4925 = vtanh.pop %v4861
      %v4926 = vtanh.pop %v4862
      %v4927 = vtanh.pop %v4863
      %v4928 = vtanh.pop %v4864
      %v4929 = vtanh.pop %v4865
      %v4930 = vtanh.pop %v4866
      %v4931 = vtanh.pop %v4867
      %v4932 = vtanh.pop %v4868
      %v4933 = vtanh.pop %v4869
      %v4934 = vtanh.pop %v4870
      %v4935 = vtanh.pop %v4871
      %v4936 = vtanh.pop %v4872
      %v4937 = vtanh.pop %v4873
      %v4938 = vtanh.pop %v4874
      %v4939 = vadd.f32 %v4875, 1.0
      %v4940 = vadd.f32 %v4876, 1.0
      %v4941 = vadd.f32 %v4877, 1.0
      %v4942 = vadd.f32 %v4878, 1.0
      %v4943 = vadd.f32 %v4879, 1.0
      %v4944 = vadd.f32 %v4880, 1.0
      %v4945 = vadd.f32 %v4881, 1.0
      %v4946 = vadd.f32 %v4882, 1.0
      %v4947 = vadd.f32 %v4883, 1.0
      %v4948 = vadd.f32 %v4884, 1.0
      %v4949 = vadd.f32 %v4885, 1.0
      %v4950 = vadd.f32 %v4886, 1.0
      %v4951 = vadd.f32 %v4887, 1.0
      %v4952 = vadd.f32 %v4888, 1.0
      %v4953 = vadd.f32 %v4889, 1.0
      %v4954 = vadd.f32 %v4890, 1.0
      %v4955 = vadd.f32 %v4891, 1.0
      %v4956 = vadd.f32 %v4892, 1.0
      %v4957 = vadd.f32 %v4893, 1.0
      %v4958 = vadd.f32 %v4894, 1.0
      %v4959 = vadd.f32 %v4895, 1.0
      %v4960 = vadd.f32 %v4896, 1.0
      %v4961 = vadd.f32 %v4897, 1.0
      %v4962 = vadd.f32 %v4898, 1.0
      %v4963 = vadd.f32 %v4899, 1.0
      %v4964 = vadd.f32 %v4900, 1.0
      %v4965 = vadd.f32 %v4901, 1.0
      %v4966 = vadd.f32 %v4902, 1.0
      %v4967 = vadd.f32 %v4903, 1.0
      %v4968 = vadd.f32 %v4904, 1.0
      %v4969 = vadd.f32 %v4905, 1.0
      %v4970 = vadd.f32 %v4906, 1.0
      %v4971 = vadd.f32 %v4907, 1.0
      %v4972 = vadd.f32 %v4908, 1.0
      %v4973 = vadd.f32 %v4909, 1.0
      %v4974 = vadd.f32 %v4910, 1.0
      %v4975 = vadd.f32 %v4911, 1.0
      %v4976 = vadd.f32 %v4912, 1.0
      %v4977 = vadd.f32 %v4913, 1.0
      %v4978 = vadd.f32 %v4914, 1.0
      %v4979 = vadd.f32 %v4915, 1.0
      %v4980 = vadd.f32 %v4916, 1.0
      %v4981 = vadd.f32 %v4917, 1.0
      %v4982 = vadd.f32 %v4918, 1.0
      %v4983 = vadd.f32 %v4919, 1.0
      %v4984 = vadd.f32 %v4920, 1.0
      %v4985 = vadd.f32 %v4921, 1.0
      %v4986 = vadd.f32 %v4922, 1.0
      %v4987 = vadd.f32 %v4923, 1.0
      %v4988 = vadd.f32 %v4924, 1.0
      %v4989 = vadd.f32 %v4925, 1.0
      %v4990 = vadd.f32 %v4926, 1.0
      %v4991 = vadd.f32 %v4927, 1.0
      %v4992 = vadd.f32 %v4928, 1.0
      %v4993 = vadd.f32 %v4929, 1.0
      %v4994 = vadd.f32 %v4930, 1.0
      %v4995 = vadd.f32 %v4931, 1.0
      %v4996 = vadd.f32 %v4932, 1.0
      %v4997 = vadd.f32 %v4933, 1.0
      %v4998 = vadd.f32 %v4934, 1.0
      %v4999 = vadd.f32 %v4935, 1.0
      %v5000 = vadd.f32 %v4936, 1.0
      %v5001 = vadd.f32 %v4937, 1.0
      %v5002 = vadd.f32 %v4938, 1.0
      %v5003 = vmul.f32 %v4939, 0.5
      %v5004 = vmul.f32 %v4940, 0.5
      %v5005 = vmul.f32 %v4941, 0.5
      %v5006 = vmul.f32 %v4942, 0.5
      %v5007 = vmul.f32 %v4943, 0.5
      %v5008 = vmul.f32 %v4944, 0.5
      %v5009 = vmul.f32 %v4945, 0.5
      %v5010 = vmul.f32 %v4946, 0.5
      %v5011 = vmul.f32 %v4947, 0.5
      %v5012 = vmul.f32 %v4948, 0.5
      %v5013 = vmul.f32 %v4949, 0.5
      %v5014 = vmul.f32 %v4950, 0.5
      %v5015 = vmul.f32 %v4951, 0.5
      %v5016 = vmul.f32 %v4952, 0.5
      %v5017 = vmul.f32 %v4953, 0.5
      %v5018 = vmul.f32 %v4954, 0.5
      %v5019 = vmul.f32 %v4955, 0.5
      %v5020 = vmul.f32 %v4956, 0.5
      %v5021 = vmul.f32 %v4957, 0.5
      %v5022 = vmul.f32 %v4958, 0.5
      %v5023 = vmul.f32 %v4959, 0.5
      %v5024 = vmul.f32 %v4960, 0.5
      %v5025 = vmul.f32 %v4961, 0.5
      %v5026 = vmul.f32 %v4962, 0.5
      %v5027 = vmul.f32 %v4963, 0.5
      %v5028 = vmul.f32 %v4964, 0.5
      %v5029 = vmul.f32 %v4965, 0.5
      %v5030 = vmul.f32 %v4966, 0.5
      %v5031 = vmul.f32 %v4967, 0.5
      %v5032 = vmul.f32 %v4968, 0.5
      %v5033 = vmul.f32 %v4969, 0.5
      %v5034 = vmul.f32 %v4970, 0.5
      %v5035 = vmul.f32 %v4971, 0.5
      %v5036 = vmul.f32 %v4972, 0.5
      %v5037 = vmul.f32 %v4973, 0.5
      %v5038 = vmul.f32 %v4974, 0.5
      %v5039 = vmul.f32 %v4975, 0.5
      %v5040 = vmul.f32 %v4976, 0.5
      %v5041 = vmul.f32 %v4977, 0.5
      %v5042 = vmul.f32 %v4978, 0.5
      %v5043 = vmul.f32 %v4979, 0.5
      %v5044 = vmul.f32 %v4980, 0.5
      %v5045 = vmul.f32 %v4981, 0.5
      %v5046 = vmul.f32 %v4982, 0.5
      %v5047 = vmul.f32 %v4983, 0.5
      %v5048 = vmul.f32 %v4984, 0.5
      %v5049 = vmul.f32 %v4985, 0.5
      %v5050 = vmul.f32 %v4986, 0.5
      %v5051 = vmul.f32 %v4987, 0.5
      %v5052 = vmul.f32 %v4988, 0.5
      %v5053 = vmul.f32 %v4989, 0.5
      %v5054 = vmul.f32 %v4990, 0.5
      %v5055 = vmul.f32 %v4991, 0.5
      %v5056 = vmul.f32 %v4992, 0.5
      %v5057 = vmul.f32 %v4993, 0.5
      %v5058 = vmul.f32 %v4994, 0.5
      %v5059 = vmul.f32 %v4995, 0.5
      %v5060 = vmul.f32 %v4996, 0.5
      %v5061 = vmul.f32 %v4997, 0.5
      %v5062 = vmul.f32 %v4998, 0.5
      %v5063 = vmul.f32 %v4999, 0.5
      %v5064 = vmul.f32 %v5000, 0.5
      %v5065 = vmul.f32 %v5001, 0.5
      %v5066 = vmul.f32 %v5002, 0.5
      %v5067 = vmul.f32 %v4364, %v5003
      %v5068 = vmul.f32 %v4366, %v5004
      %v5069 = vmul.f32 %v4477, %v5005
      %v5070 = vmul.f32 %v4479, %v5006
      %v5071 = vmul.f32 %v4368, %v5007
      %v5072 = vmul.f32 %v4370, %v5008
      %v5073 = vmul.f32 %v4481, %v5009
      %v5074 = vmul.f32 %v4483, %v5010
      %v5075 = vmul.f32 %v4374, %v5011
      %v5076 = vmul.f32 %v4376, %v5012
      %v5077 = vmul.f32 %v4487, %v5013
      %v5078 = vmul.f32 %v4489, %v5014
      %v5079 = vmul.f32 %v4378, %v5015
      %v5080 = vmul.f32 %v4380, %v5016
      %v5081 = vmul.f32 %v4491, %v5017
      %v5082 = vmul.f32 %v4493, %v5018
      %v5083 = vmul.f32 %v4384, %v5019
      %v5084 = vmul.f32 %v4386, %v5020
      %v5085 = vmul.f32 %v4497, %v5021
      %v5086 = vmul.f32 %v4499, %v5022
      %v5087 = vmul.f32 %v4388, %v5023
      %v5088 = vmul.f32 %v4390, %v5024
      %v5089 = vmul.f32 %v4501, %v5025
      %v5090 = vmul.f32 %v4503, %v5026
      %v5091 = vmul.f32 %v4394, %v5027
      %v5092 = vmul.f32 %v4396, %v5028
      %v5093 = vmul.f32 %v4507, %v5029
      %v5094 = vmul.f32 %v4509, %v5030
      %v5095 = vmul.f32 %v4398, %v5031
      %v5096 = vmul.f32 %v4400, %v5032
      %v5097 = vmul.f32 %v4511, %v5033
      %v5098 = vmul.f32 %v4513, %v5034
      %v5099 = vmul.f32 %v4404, %v5035
      %v5100 = vmul.f32 %v4406, %v5036
      %v5101 = vmul.f32 %v4517, %v5037
      %v5102 = vmul.f32 %v4519, %v5038
      %v5103 = vmul.f32 %v4408, %v5039
      %v5104 = vmul.f32 %v4410, %v5040
      %v5105 = vmul.f32 %v4521, %v5041
      %v5106 = vmul.f32 %v4523, %v5042
      %v5107 = vmul.f32 %v4414, %v5043
      %v5108 = vmul.f32 %v4416, %v5044
      %v5109 = vmul.f32 %v4527, %v5045
      %v5110 = vmul.f32 %v4529, %v5046
      %v5111 = vmul.f32 %v4418, %v5047
      %v5112 = vmul.f32 %v4420, %v5048
      %v5113 = vmul.f32 %v4531, %v5049
      %v5114 = vmul.f32 %v4533, %v5050
      %v5115 = vmul.f32 %v4424, %v5051
      %v5116 = vmul.f32 %v4426, %v5052
      %v5117 = vmul.f32 %v4537, %v5053
      %v5118 = vmul.f32 %v4539, %v5054
      %v5119 = vmul.f32 %v4428, %v5055
      %v5120 = vmul.f32 %v4430, %v5056
      %v5121 = vmul.f32 %v4541, %v5057
      %v5122 = vmul.f32 %v4543, %v5058
      %v5123 = vmul.f32 %v4434, %v5059
      %v5124 = vmul.f32 %v4436, %v5060
      %v5125 = vmul.f32 %v4547, %v5061
      %v5126 = vmul.f32 %v4549, %v5062
      %v5127 = vmul.f32 %v4438, %v5063
      %v5128 = vmul.f32 %v4440, %v5064
      %v5129 = vmul.f32 %v4551, %v5065
      %v5130 = vmul.f32 %v4553, %v5066
      %v5131 = vpack.c.bf16 %v5071, %v5067
      %v5132 = vpack.c.bf16 %v5072, %v5068
      %v5133 = vpack.c.bf16 %v5073, %v5069
      %v5134 = vpack.c.bf16 %v5074, %v5070
      %v5135 = vpack.c.bf16 %v5079, %v5075
      %v5136 = vpack.c.bf16 %v5080, %v5076
      %v5137 = vpack.c.bf16 %v5081, %v5077
      %v5138 = vpack.c.bf16 %v5082, %v5078
      %v5139 = vpack.c.bf16 %v5087, %v5083
      %v5140 = vpack.c.bf16 %v5088, %v5084
      %v5141 = vpack.c.bf16 %v5089, %v5085
      %v5142 = vpack.c.bf16 %v5090, %v5086
      %v5143 = vpack.c.bf16 %v5095, %v5091
      %v5144 = vpack.c.bf16 %v5096, %v5092
      %v5145 = vpack.c.bf16 %v5097, %v5093
      %v5146 = vpack.c.bf16 %v5098, %v5094
      %v5147 = vpack.c.bf16 %v5103, %v5099
      %v5148 = vpack.c.bf16 %v5104, %v5100
      %v5149 = vpack.c.bf16 %v5105, %v5101
      %v5150 = vpack.c.bf16 %v5106, %v5102
      %v5151 = vpack.c.bf16 %v5111, %v5107
      %v5152 = vpack.c.bf16 %v5112, %v5108
      %v5153 = vpack.c.bf16 %v5113, %v5109
      %v5154 = vpack.c.bf16 %v5114, %v5110
      %v5155 = vpack.c.bf16 %v5119, %v5115
      %v5156 = vpack.c.bf16 %v5120, %v5116
      %v5157 = vpack.c.bf16 %v5121, %v5117
      %v5158 = vpack.c.bf16 %v5122, %v5118
      %v5159 = vpack.c.bf16 %v5127, %v5123
      %v5160 = vpack.c.bf16 %v5128, %v5124
      %v5161 = vpack.c.bf16 %v5129, %v5125
      %v5162 = vpack.c.bf16 %v5130, %v5126
      %v5163 = vld [vmem:[%s12] sm:$0xf]
      %v5164 = vld [vmem:[%s12 + $0x4] sm:$0xf]
      %v5165 = vld [vmem:[%s12 + $0x8] sm:$0xf]
      %v5166 = vld [vmem:[%s12 + $0xc] sm:$0xf]
      %v5167 = vld [vmem:[%s12 + $0x10] sm:$0xf]
      %v5168 = vld [vmem:[%s12 + $0x14] sm:$0xf]
      %v5169 = vld [vmem:[%s12 + $0x18] sm:$0xf]
      %v5170 = vld [vmem:[%s12 + $0x1c] sm:$0xf]
      %v5171 = vld [vmem:[%s12 + $0x20] sm:$0xf]
      %v5172 = vld [vmem:[%s12 + $0x24] sm:$0xf]
      %v5173 = vld [vmem:[%s12 + $0x28] sm:$0xf]
      %v5174 = vld [vmem:[%s12 + $0x2c] sm:$0xf]
      %v5175 = vld [vmem:[%s12 + $0x30] sm:$0xf]
      %v5176 = vld [vmem:[%s12 + $0x34] sm:$0xf]
      %v5177 = vld [vmem:[%s12 + $0x38] sm:$0xf]
      %v5178 = vld [vmem:[%s12 + $0x3c] sm:$0xf]
      %v5179 = vld [vmem:[%s12 + $0x40] sm:$0xf]
      %v5180 = vld [vmem:[%s12 + $0x44] sm:$0xf]
      %v5181 = vld [vmem:[%s12 + $0x48] sm:$0xf]
      %v5182 = vld [vmem:[%s12 + $0x4c] sm:$0xf]
      %v5183 = vld [vmem:[%s12 + $0x50] sm:$0xf]
      %v5184 = vld [vmem:[%s12 + $0x54] sm:$0xf]
      %v5185 = vld [vmem:[%s12 + $0x58] sm:$0xf]
      %v5186 = vld [vmem:[%s12 + $0x5c] sm:$0xf]
      %v5187 = vld [vmem:[%s12 + $0x60] sm:$0xf]
      %v5188 = vld [vmem:[%s12 + $0x64] sm:$0xf]
      %v5189 = vld [vmem:[%s12 + $0x68] sm:$0xf]
      %v5190 = vld [vmem:[%s12 + $0x6c] sm:$0xf]
      %v5191 = vld [vmem:[%s12 + $0x70] sm:$0xf]
      %v5192 = vld [vmem:[%s12 + $0x74] sm:$0xf]
      %v5193 = vld [vmem:[%s12 + $0x78] sm:$0xf]
      %v5194 = vld [vmem:[%s12 + $0x7c] sm:$0xf]
      %v5195 = vld [vmem:[%s12 + $0x80] sm:$0xf]
      %v5196 = vld [vmem:[%s12 + $0x84] sm:$0xf]
      %v5197 = vld [vmem:[%s12 + $0x88] sm:$0xf]
      %v5198 = vld [vmem:[%s12 + $0x8c] sm:$0xf]
      %v5199 = vld [vmem:[%s12 + $0x90] sm:$0xf]
      %v5200 = vld [vmem:[%s12 + $0x94] sm:$0xf]
      %v5201 = vld [vmem:[%s12 + $0x98] sm:$0xf]
      %v5202 = vld [vmem:[%s12 + $0x9c] sm:$0xf]
      %v5203 = vld [vmem:[%s12 + $0xa0] sm:$0xf]
      %v5204 = vld [vmem:[%s12 + $0xa4] sm:$0xf]
      %v5205 = vld [vmem:[%s12 + $0xa8] sm:$0xf]
      %v5206 = vld [vmem:[%s12 + $0xac] sm:$0xf]
      %v5207 = vld [vmem:[%s12 + $0xb0] sm:$0xf]
      %v5208 = vld [vmem:[%s12 + $0xb4] sm:$0xf]
      %v5209 = vld [vmem:[%s12 + $0xb8] sm:$0xf]
      %v5210 = vld [vmem:[%s12 + $0xbc] sm:$0xf]
      %v5211 = vld [vmem:[%s12 + $0xc0] sm:$0xf]
      %v5212 = vld [vmem:[%s12 + $0xc4] sm:$0xf]
      %v5213 = vld [vmem:[%s12 + $0xc8] sm:$0xf]
      %v5214 = vld [vmem:[%s12 + $0xcc] sm:$0xf]
      %v5215 = vld [vmem:[%s12 + $0xd0] sm:$0xf]
      %v5216 = vld [vmem:[%s12 + $0xd4] sm:$0xf]
      %v5217 = vld [vmem:[%s12 + $0xd8] sm:$0xf]
      %v5218 = vld [vmem:[%s12 + $0xdc] sm:$0xf]
      %v5219 = vld [vmem:[%s12 + $0xe0] sm:$0xf]
      %v5220 = vld [vmem:[%s12 + $0xe4] sm:$0xf]
      %v5221 = vld [vmem:[%s12 + $0xe8] sm:$0xf]
      %v5222 = vld [vmem:[%s12 + $0xec] sm:$0xf]
      %v5223 = vld [vmem:[%s12 + $0xf0] sm:$0xf]
      %v5224 = vld [vmem:[%s12 + $0xf4] sm:$0xf]
      %v5225 = vld [vmem:[%s12 + $0xf8] sm:$0xf]
      %v5226 = vld [vmem:[%s12 + $0xfc] sm:$0xf]
      %v5227 = vld [vmem:[%s13] sm:$0x1]
      %v5229 = vlaneseq
      %v5230 = vshrl.u32 %v5229, 7
      %v5231 = vsub.s32 0, %v5230
      %v5232 = vrot.slane %v5227, %v5231
      %v5298 = vunpack.c.l.b16 %v5163
      %v5299 = vunpack.c.l.b16 %v5164
      %v5300 = vunpack.c.l.b16 %v5165
      %v5301 = vunpack.c.l.b16 %v5166
      %v5302 = vunpack.c.l.b16 %v5167
      %v5303 = vunpack.c.l.b16 %v5168
      %v5304 = vunpack.c.l.b16 %v5169
      %v5305 = vunpack.c.l.b16 %v5170
      %v5306 = vunpack.c.l.b16 %v5171
      %v5307 = vunpack.c.l.b16 %v5172
      %v5308 = vunpack.c.l.b16 %v5173
      %v5309 = vunpack.c.l.b16 %v5174
      %v5310 = vunpack.c.l.b16 %v5175
      %v5311 = vunpack.c.l.b16 %v5176
      %v5312 = vunpack.c.l.b16 %v5177
      %v5313 = vunpack.c.l.b16 %v5178
      %v5314 = vunpack.c.l.b16 %v5179
      %v5315 = vunpack.c.l.b16 %v5180
      %v5316 = vunpack.c.l.b16 %v5181
      %v5317 = vunpack.c.l.b16 %v5182
      %v5318 = vunpack.c.l.b16 %v5183
      %v5319 = vunpack.c.l.b16 %v5184
      %v5320 = vunpack.c.l.b16 %v5185
      %v5321 = vunpack.c.l.b16 %v5186
      %v5322 = vunpack.c.l.b16 %v5187
      %v5323 = vunpack.c.l.b16 %v5188
      %v5324 = vunpack.c.l.b16 %v5189
      %v5325 = vunpack.c.l.b16 %v5190
      %v5326 = vunpack.c.l.b16 %v5191
      %v5327 = vunpack.c.l.b16 %v5192
      %v5328 = vunpack.c.l.b16 %v5193
      %v5329 = vunpack.c.l.b16 %v5194
      %v5330 = vunpack.c.l.b16 %v5195
      %v5331 = vunpack.c.l.b16 %v5196
      %v5332 = vunpack.c.l.b16 %v5197
      %v5333 = vunpack.c.l.b16 %v5198
      %v5334 = vunpack.c.l.b16 %v5199
      %v5335 = vunpack.c.l.b16 %v5200
      %v5336 = vunpack.c.l.b16 %v5201
      %v5337 = vunpack.c.l.b16 %v5202
      %v5338 = vunpack.c.l.b16 %v5203
      %v5339 = vunpack.c.l.b16 %v5204
      %v5340 = vunpack.c.l.b16 %v5205
      %v5341 = vunpack.c.l.b16 %v5206
      %v5342 = vunpack.c.l.b16 %v5207
      %v5343 = vunpack.c.l.b16 %v5208
      %v5344 = vunpack.c.l.b16 %v5209
      %v5345 = vunpack.c.l.b16 %v5210
      %v5346 = vunpack.c.l.b16 %v5211
      %v5347 = vunpack.c.l.b16 %v5212
      %v5348 = vunpack.c.l.b16 %v5213
      %v5349 = vunpack.c.l.b16 %v5214
      %v5350 = vunpack.c.l.b16 %v5215
      %v5351 = vunpack.c.l.b16 %v5216
      %v5352 = vunpack.c.l.b16 %v5217
      %v5353 = vunpack.c.l.b16 %v5218
      %v5354 = vunpack.c.l.b16 %v5219
      %v5355 = vunpack.c.l.b16 %v5220
      %v5356 = vunpack.c.l.b16 %v5221
      %v5357 = vunpack.c.l.b16 %v5222
      %v5358 = vunpack.c.l.b16 %v5223
      %v5359 = vunpack.c.l.b16 %v5224
      %v5360 = vunpack.c.l.b16 %v5225
      %v5361 = vunpack.c.l.b16 %v5226
      %v5362 = vpack.c.b16 %v5299, %v5298
      %v5363 = vpack.c.b16 %v5301, %v5300
      %v5364 = vpack.c.b16 %v5303, %v5302
      %v5365 = vpack.c.b16 %v5305, %v5304
      %v5366 = vpack.c.b16 %v5307, %v5306
      %v5367 = vpack.c.b16 %v5309, %v5308
      %v5368 = vpack.c.b16 %v5311, %v5310
      %v5369 = vpack.c.b16 %v5313, %v5312
      %v5370 = vpack.c.b16 %v5315, %v5314
      %v5371 = vpack.c.b16 %v5317, %v5316
      %v5372 = vpack.c.b16 %v5319, %v5318
      %v5373 = vpack.c.b16 %v5321, %v5320
      %v5374 = vpack.c.b16 %v5323, %v5322
      %v5375 = vpack.c.b16 %v5325, %v5324
      %v5376 = vpack.c.b16 %v5327, %v5326
      %v5377 = vpack.c.b16 %v5329, %v5328
      %v5378 = vpack.c.b16 %v5331, %v5330
      %v5379 = vpack.c.b16 %v5333, %v5332
      %v5380 = vpack.c.b16 %v5335, %v5334
      %v5381 = vpack.c.b16 %v5337, %v5336
      %v5382 = vpack.c.b16 %v5339, %v5338
      %v5383 = vpack.c.b16 %v5341, %v5340
      %v5384 = vpack.c.b16 %v5343, %v5342
      %v5385 = vpack.c.b16 %v5345, %v5344
      %v5386 = vpack.c.b16 %v5347, %v5346
      %v5387 = vpack.c.b16 %v5349, %v5348
      %v5388 = vpack.c.b16 %v5351, %v5350
      %v5389 = vpack.c.b16 %v5353, %v5352
      %v5390 = vpack.c.b16 %v5355, %v5354
      %v5391 = vpack.c.b16 %v5357, %v5356
      %v5392 = vpack.c.b16 %v5359, %v5358
      %v5393 = vpack.c.b16 %v5361, %v5360
      %5426 = vmatprep.subr.bf16.mxu0 0
      %5427 = vmatpush1.bf16.msra.mxu0 %v5369
      %5428 = vmatprep.subr.bf16.mxu0 0
      %5429 = vmatpush1.bf16.msra.mxu0 %v5368
      %5430 = vmatprep.subr.bf16.mxu0 0
      %5431 = vmatpush1.bf16.msra.mxu0 %v5367
      %5432 = vmatprep.subr.bf16.mxu0 0
      %5433 = vmatpush1.bf16.msra.mxu0 %v5366
      %5434 = vmatprep.subr.bf16.mxu0 0
      %5435 = vmatpush1.bf16.msra.mxu0 %v5365
      %5436 = vmatprep.subr.bf16.mxu0 0
      %5437 = vmatpush1.bf16.msra.mxu0 %v5364
      %5438 = vmatprep.subr.bf16.mxu0 0
      %5439 = vmatpush1.bf16.msra.mxu0 %v5363
      %5440 = vmatprep.subr.bf16.mxu0 0
      %5441 = vmatpush1.bf16.msra.mxu0 %v5362
      %5442 = vmatprep.subr.bf16.mxu0 0
      %5443 = vmatpush2.bf16.msra.mxu0 %v5377
      %5444 = vmatprep.subr.bf16.mxu0 0
      %5445 = vmatpush2.bf16.msra.mxu0 %v5376
      %5446 = vmatprep.subr.bf16.mxu0 0
      %5447 = vmatpush2.bf16.msra.mxu0 %v5375
      %5448 = vmatprep.subr.bf16.mxu0 0
      %5449 = vmatpush2.bf16.msra.mxu0 %v5374
      %5450 = vmatprep.subr.bf16.mxu0 0
      %5451 = vmatpush2.bf16.msra.mxu0 %v5373
      %5452 = vmatprep.subr.bf16.mxu0 0
      %5453 = vmatpush2.bf16.msra.mxu0 %v5372
      %5454 = vmatprep.subr.bf16.mxu0 0
      %5455 = vmatpush2.bf16.msra.mxu0 %v5371
      %5456 = vmatprep.subr.bf16.mxu0 0
      %5457 = vmatpush2.bf16.msra.mxu0 %v5370
      %5458 = vmatprep.mubr.bf16.mxu0 %v5132
      %5459 = vmatmul.mubr.bf16.gmra.mxu0 %v5131
      %v5460 = vpop.f32.mrf.mxu0
      %v5461 = vadd.f32 %v5232, %v5460
      %v5462 = vpop.f32.mrf.mxu0
      %v5463 = vpop.f32.mrf.mxu0
      %v5464 = vadd.f32 %v5232, %v5463
      %v5465 = vpop.f32.mrf.mxu0
      %5466 = vmatprep.mubr.bf16.mxu0 %v5136
      %5467 = vmatmul.mubr.bf16.gmra.mxu0 %v5135
      %v5468 = vpop.f32.mrf.mxu0
      %v5469 = vadd.f32 %v5232, %v5468
      %v5470 = vpop.f32.mrf.mxu0
      %v5471 = vpop.f32.mrf.mxu0
      %v5472 = vadd.f32 %v5232, %v5471
      %v5473 = vpop.f32.mrf.mxu0
      %5474 = vmatprep.mubr.bf16.mxu0 %v5140
      %5475 = vmatmul.mubr.bf16.gmra.mxu0 %v5139
      %v5476 = vpop.f32.mrf.mxu0
      %v5477 = vadd.f32 %v5232, %v5476
      %v5478 = vpop.f32.mrf.mxu0
      %v5479 = vpop.f32.mrf.mxu0
      %v5480 = vadd.f32 %v5232, %v5479
      %v5481 = vpop.f32.mrf.mxu0
      %5482 = vmatprep.mubr.bf16.mxu0 %v5144
      %5483 = vmatmul.mubr.bf16.gmra.mxu0 %v5143
      %v5484 = vpop.f32.mrf.mxu0
      %v5485 = vadd.f32 %v5232, %v5484
      %v5486 = vpop.f32.mrf.mxu0
      %v5487 = vpop.f32.mrf.mxu0
      %v5488 = vadd.f32 %v5232, %v5487
      %v5489 = vpop.f32.mrf.mxu0
      %5490 = vmatprep.mubr.bf16.mxu0 %v5148
      %5491 = vmatmul.mubr.bf16.gmra.mxu0 %v5147
      %v5492 = vpop.f32.mrf.mxu0
      %v5493 = vadd.f32 %v5232, %v5492
      %v5494 = vpop.f32.mrf.mxu0
      %v5495 = vpop.f32.mrf.mxu0
      %v5496 = vadd.f32 %v5232, %v5495
      %v5497 = vpop.f32.mrf.mxu0
      %5498 = vmatprep.mubr.bf16.mxu0 %v5152
      %5499 = vmatmul.mubr.bf16.gmra.mxu0 %v5151
      %v5500 = vpop.f32.mrf.mxu0
      %v5501 = vadd.f32 %v5232, %v5500
      %v5502 = vpop.f32.mrf.mxu0
      %v5503 = vpop.f32.mrf.mxu0
      %v5504 = vadd.f32 %v5232, %v5503
      %v5505 = vpop.f32.mrf.mxu0
      %5506 = vmatprep.mubr.bf16.mxu0 %v5156
      %5507 = vmatmul.mubr.bf16.gmra.mxu0 %v5155
      %v5508 = vpop.f32.mrf.mxu0
      %v5509 = vadd.f32 %v5232, %v5508
      %v5510 = vpop.f32.mrf.mxu0
      %v5511 = vpop.f32.mrf.mxu0
      %v5512 = vadd.f32 %v5232, %v5511
      %v5513 = vpop.f32.mrf.mxu0
      %5514 = vmatprep.mubr.bf16.mxu0 %v5160
      %5515 = vmatmul.mubr.bf16.gmra.mxu0 %v5159
      %v5516 = vpop.f32.mrf.mxu0
      %v5517 = vadd.f32 %v5232, %v5516
      %v5518 = vpop.f32.mrf.mxu0
      %v5519 = vpop.f32.mrf.mxu0
      %v5520 = vadd.f32 %v5232, %v5519
      %v5521 = vpop.f32.mrf.mxu0
      %5522 = vdwg.mxu0
      %5523 = vmatprep.subr.bf16.mxu0 0
      %5524 = vmatpush1.bf16.msra.mxu0 %v5385
      %5525 = vmatprep.subr.bf16.mxu0 0
      %5526 = vmatpush1.bf16.msra.mxu0 %v5384
      %5527 = vmatprep.subr.bf16.mxu0 0
      %5528 = vmatpush1.bf16.msra.mxu0 %v5383
      %5529 = vmatprep.subr.bf16.mxu0 0
      %5530 = vmatpush1.bf16.msra.mxu0 %v5382
      %5531 = vmatprep.subr.bf16.mxu0 0
      %5532 = vmatpush1.bf16.msra.mxu0 %v5381
      %5533 = vmatprep.subr.bf16.mxu0 0
      %5534 = vmatpush1.bf16.msra.mxu0 %v5380
      %5535 = vmatprep.subr.bf16.mxu0 0
      %5536 = vmatpush1.bf16.msra.mxu0 %v5379
      %5537 = vmatprep.subr.bf16.mxu0 0
      %5538 = vmatpush1.bf16.msra.mxu0 %v5378
      %5539 = vmatprep.subr.bf16.mxu0 0
      %5540 = vmatpush2.bf16.msra.mxu0 %v5393
      %5541 = vmatprep.subr.bf16.mxu0 0
      %5542 = vmatpush2.bf16.msra.mxu0 %v5392
      %5543 = vmatprep.subr.bf16.mxu0 0
      %5544 = vmatpush2.bf16.msra.mxu0 %v5391
      %5545 = vmatprep.subr.bf16.mxu0 0
      %5546 = vmatpush2.bf16.msra.mxu0 %v5390
      %5547 = vmatprep.subr.bf16.mxu0 0
      %5548 = vmatpush2.bf16.msra.mxu0 %v5389
      %5549 = vmatprep.subr.bf16.mxu0 0
      %5550 = vmatpush2.bf16.msra.mxu0 %v5388
      %5551 = vmatprep.subr.bf16.mxu0 0
      %5552 = vmatpush2.bf16.msra.mxu0 %v5387
      %5553 = vmatprep.subr.bf16.mxu0 0
      %5554 = vmatpush2.bf16.msra.mxu0 %v5386
      %5555 = vmatprep.mubr.bf16.mxu0 %v5134
      %5556 = vmatmul.mubr.bf16.gmra.mxu0 %v5133
      %v5557 = vpop.f32.mrf.mxu0
      %v5558 = vadd.f32 %v5461, %v5557
      %v5559 = vpop.f32.mrf.mxu0
      %v5560 = vpop.f32.mrf.mxu0
      %v5561 = vadd.f32 %v5464, %v5560
      %v5562 = vpop.f32.mrf.mxu0
      %5563 = vmatprep.mubr.bf16.mxu0 %v5138
      %5564 = vmatmul.mubr.bf16.gmra.mxu0 %v5137
      %v5565 = vpop.f32.mrf.mxu0
      %v5566 = vadd.f32 %v5469, %v5565
      %v5567 = vpop.f32.mrf.mxu0
      %v5568 = vpop.f32.mrf.mxu0
      %v5569 = vadd.f32 %v5472, %v5568
      %v5570 = vpop.f32.mrf.mxu0
      %5571 = vmatprep.mubr.bf16.mxu0 %v5142
      %5572 = vmatmul.mubr.bf16.gmra.mxu0 %v5141
      %v5573 = vpop.f32.mrf.mxu0
      %v5574 = vadd.f32 %v5477, %v5573
      %v5575 = vpop.f32.mrf.mxu0
      %v5576 = vpop.f32.mrf.mxu0
      %v5577 = vadd.f32 %v5480, %v5576
      %v5578 = vpop.f32.mrf.mxu0
      %5579 = vmatprep.mubr.bf16.mxu0 %v5146
      %5580 = vmatmul.mubr.bf16.gmra.mxu0 %v5145
      %v5581 = vpop.f32.mrf.mxu0
      %v5582 = vadd.f32 %v5485, %v5581
      %v5583 = vpop.f32.mrf.mxu0
      %v5584 = vpop.f32.mrf.mxu0
      %v5585 = vadd.f32 %v5488, %v5584
      %v5586 = vpop.f32.mrf.mxu0
      %5587 = vmatprep.mubr.bf16.mxu0 %v5150
      %5588 = vmatmul.mubr.bf16.gmra.mxu0 %v5149
      %v5589 = vpop.f32.mrf.mxu0
      %v5590 = vadd.f32 %v5493, %v5589
      %v5591 = vpop.f32.mrf.mxu0
      %v5592 = vpop.f32.mrf.mxu0
      %v5593 = vadd.f32 %v5496, %v5592
      %v5594 = vpop.f32.mrf.mxu0
      %5595 = vmatprep.mubr.bf16.mxu0 %v5154
      %5596 = vmatmul.mubr.bf16.gmra.mxu0 %v5153
      %v5597 = vpop.f32.mrf.mxu0
      %v5598 = vadd.f32 %v5501, %v5597
      %v5599 = vpop.f32.mrf.mxu0
      %v5600 = vpop.f32.mrf.mxu0
      %v5601 = vadd.f32 %v5504, %v5600
      %v5602 = vpop.f32.mrf.mxu0
      %5603 = vmatprep.mubr.bf16.mxu0 %v5158
      %5604 = vmatmul.mubr.bf16.gmra.mxu0 %v5157
      %v5605 = vpop.f32.mrf.mxu0
      %v5606 = vadd.f32 %v5509, %v5605
      %v5607 = vpop.f32.mrf.mxu0
      %v5608 = vpop.f32.mrf.mxu0
      %v5609 = vadd.f32 %v5512, %v5608
      %v5610 = vpop.f32.mrf.mxu0
      %5611 = vmatprep.mubr.bf16.mxu0 %v5162
      %5612 = vmatmul.mubr.bf16.gmra.mxu0 %v5161
      %v5613 = vpop.f32.mrf.mxu0
      %v5614 = vadd.f32 %v5517, %v5613
      %v5615 = vpop.f32.mrf.mxu0
      %v5616 = vpop.f32.mrf.mxu0
      %v5617 = vadd.f32 %v5520, %v5616
      %v5618 = vpop.f32.mrf.mxu0
      %5619 = vdwg.mxu0
      %v5620 = vadd.f32 %v4091, %v5558
      %v5621 = vadd.f32 %v4092, %v5561
      %v5622 = vadd.f32 %v4093, %v5566
      %v5623 = vadd.f32 %v4094, %v5569
      %v5624 = vadd.f32 %v4095, %v5574
      %v5625 = vadd.f32 %v4096, %v5577
      %v5626 = vadd.f32 %v4097, %v5582
      %v5627 = vadd.f32 %v4098, %v5585
      %v5628 = vadd.f32 %v4099, %v5590
      %v5629 = vadd.f32 %v4100, %v5593
      %v5630 = vadd.f32 %v4101, %v5598
      %v5631 = vadd.f32 %v4102, %v5601
      %v5632 = vadd.f32 %v4103, %v5606
      %v5633 = vadd.f32 %v4104, %v5609
      %v5634 = vadd.f32 %v4105, %v5614
      %v5635 = vadd.f32 %v4106, %v5617
      %v5636 = vld [vmem:[%s14] sm:$0x1]
      %v5637 = vld [vmem:[%s15] sm:$0x1]
      %5638 = vadd.xlane.f32.xlu0 %v5620
      %v5639 = vpop.xlane.xlu0 %5638
      %5640 = vadd.xlane.f32.xlu0 %v5621
      %v5641 = vpop.xlane.xlu0 %5640
      %5642 = vadd.xlane.f32.xlu0 %v5622
      %v5643 = vpop.xlane.xlu0 %5642
      %5644 = vadd.xlane.f32.xlu0 %v5623
      %v5645 = vpop.xlane.xlu0 %5644
      %5646 = vadd.xlane.f32.xlu0 %v5624
      %v5647 = vpop.xlane.xlu0 %5646
      %5648 = vadd.xlane.f32.xlu0 %v5625
      %v5649 = vpop.xlane.xlu0 %5648
      %5650 = vadd.xlane.f32.xlu0 %v5626
      %v5651 = vpop.xlane.xlu0 %5650
      %5652 = vadd.xlane.f32.xlu0 %v5627
      %v5653 = vpop.xlane.xlu0 %5652
      %5654 = vadd.xlane.f32.xlu0 %v5628
      %v5655 = vpop.xlane.xlu0 %5654
      %5656 = vadd.xlane.f32.xlu0 %v5629
      %v5657 = vpop.xlane.xlu0 %5656
      %5658 = vadd.xlane.f32.xlu0 %v5630
      %v5659 = vpop.xlane.xlu0 %5658
      %5660 = vadd.xlane.f32.xlu0 %v5631
      %v5661 = vpop.xlane.xlu0 %5660
      %5662 = vadd.xlane.f32.xlu0 %v5632
      %v5663 = vpop.xlane.xlu0 %5662
      %5664 = vadd.xlane.f32.xlu0 %v5633
      %v5665 = vpop.xlane.xlu0 %5664
      %5666 = vadd.xlane.f32.xlu0 %v5634
      %v5667 = vpop.xlane.xlu0 %5666
      %5668 = vadd.xlane.f32.xlu0 %v5635
      %v5669 = vpop.xlane.xlu0 %5668
      %v5670 = vmul.f32 %v5639, %v587
      %v5671 = vmul.f32 %v5641, %v587
      %v5672 = vmul.f32 %v5643, %v587
      %v5673 = vmul.f32 %v5645, %v587
      %v5674 = vmul.f32 %v5647, %v587
      %v5675 = vmul.f32 %v5649, %v587
      %v5676 = vmul.f32 %v5651, %v587
      %v5677 = vmul.f32 %v5653, %v587
      %v5678 = vmul.f32 %v5655, %v587
      %v5679 = vmul.f32 %v5657, %v587
      %v5680 = vmul.f32 %v5659, %v587
      %v5681 = vmul.f32 %v5661, %v587
      %v5682 = vmul.f32 %v5663, %v587
      %v5683 = vmul.f32 %v5665, %v587
      %v5684 = vmul.f32 %v5667, %v587
      %v5685 = vmul.f32 %v5669, %v587
      %v5686 = vsub.f32 %v5620, %v5670
      %v5687 = vsub.f32 %v5621, %v5671
      %v5688 = vsub.f32 %v5622, %v5672
      %v5689 = vsub.f32 %v5623, %v5673
      %v5690 = vsub.f32 %v5624, %v5674
      %v5691 = vsub.f32 %v5625, %v5675
      %v5692 = vsub.f32 %v5626, %v5676
      %v5693 = vsub.f32 %v5627, %v5677
      %v5694 = vsub.f32 %v5628, %v5678
      %v5695 = vsub.f32 %v5629, %v5679
      %v5696 = vsub.f32 %v5630, %v5680
      %v5697 = vsub.f32 %v5631, %v5681
      %v5698 = vsub.f32 %v5632, %v5682
      %v5699 = vsub.f32 %v5633, %v5683
      %v5700 = vsub.f32 %v5634, %v5684
      %v5701 = vsub.f32 %v5635, %v5685
      %v5702 = vmul.f32 %v5686, %v5686
      %v5703 = vmul.f32 %v5687, %v5687
      %v5704 = vmul.f32 %v5688, %v5688
      %v5705 = vmul.f32 %v5689, %v5689
      %v5706 = vmul.f32 %v5690, %v5690
      %v5707 = vmul.f32 %v5691, %v5691
      %v5708 = vmul.f32 %v5692, %v5692
      %v5709 = vmul.f32 %v5693, %v5693
      %v5710 = vmul.f32 %v5694, %v5694
      %v5711 = vmul.f32 %v5695, %v5695
      %v5712 = vmul.f32 %v5696, %v5696
      %v5713 = vmul.f32 %v5697, %v5697
      %v5714 = vmul.f32 %v5698, %v5698
      %v5715 = vmul.f32 %v5699, %v5699
      %v5716 = vmul.f32 %v5700, %v5700
      %v5717 = vmul.f32 %v5701, %v5701
      %5718 = vadd.xlane.f32.xlu0 %v5702
      %v5719 = vpop.xlane.xlu0 %5718
      %5720 = vadd.xlane.f32.xlu0 %v5703
      %v5721 = vpop.xlane.xlu0 %5720
      %5722 = vadd.xlane.f32.xlu0 %v5704
      %v5723 = vpop.xlane.xlu0 %5722
      %5724 = vadd.xlane.f32.xlu0 %v5705
      %v5725 = vpop.xlane.xlu0 %5724
      %5726 = vadd.xlane.f32.xlu0 %v5706
      %v5727 = vpop.xlane.xlu0 %5726
      %5728 = vadd.xlane.f32.xlu0 %v5707
      %v5729 = vpop.xlane.xlu0 %5728
      %5730 = vadd.xlane.f32.xlu0 %v5708
      %v5731 = vpop.xlane.xlu0 %5730
      %5732 = vadd.xlane.f32.xlu0 %v5709
      %v5733 = vpop.xlane.xlu0 %5732
      %5734 = vadd.xlane.f32.xlu0 %v5710
      %v5735 = vpop.xlane.xlu0 %5734
      %5736 = vadd.xlane.f32.xlu0 %v5711
      %v5737 = vpop.xlane.xlu0 %5736
      %5738 = vadd.xlane.f32.xlu0 %v5712
      %v5739 = vpop.xlane.xlu0 %5738
      %5740 = vadd.xlane.f32.xlu0 %v5713
      %v5741 = vpop.xlane.xlu0 %5740
      %5742 = vadd.xlane.f32.xlu0 %v5714
      %v5743 = vpop.xlane.xlu0 %5742
      %5744 = vadd.xlane.f32.xlu0 %v5715
      %v5745 = vpop.xlane.xlu0 %5744
      %5746 = vadd.xlane.f32.xlu0 %v5716
      %v5747 = vpop.xlane.xlu0 %5746
      %5748 = vadd.xlane.f32.xlu0 %v5717
      %v5749 = vpop.xlane.xlu0 %5748
      %v5750 = vmul.f32 %v5719, %v587
      %v5751 = vmul.f32 %v5721, %v587
      %v5752 = vmul.f32 %v5723, %v587
      %v5753 = vmul.f32 %v5725, %v587
      %v5754 = vmul.f32 %v5727, %v587
      %v5755 = vmul.f32 %v5729, %v587
      %v5756 = vmul.f32 %v5731, %v587
      %v5757 = vmul.f32 %v5733, %v587
      %v5758 = vmul.f32 %v5735, %v587
      %v5759 = vmul.f32 %v5737, %v587
      %v5760 = vmul.f32 %v5739, %v587
      %v5761 = vmul.f32 %v5741, %v587
      %v5762 = vmul.f32 %v5743, %v587
      %v5763 = vmul.f32 %v5745, %v587
      %v5764 = vmul.f32 %v5747, %v587
      %v5765 = vmul.f32 %v5749, %v587
      %v5766 = vadd.f32 %v5750, 1e-12
      %v5767 = vadd.f32 %v5751, 1e-12
      %v5768 = vadd.f32 %v5752, 1e-12
      %v5769 = vadd.f32 %v5753, 1e-12
      %v5770 = vadd.f32 %v5754, 1e-12
      %v5771 = vadd.f32 %v5755, 1e-12
      %v5772 = vadd.f32 %v5756, 1e-12
      %v5773 = vadd.f32 %v5757, 1e-12
      %v5774 = vadd.f32 %v5758, 1e-12
      %v5775 = vadd.f32 %v5759, 1e-12
      %v5776 = vadd.f32 %v5760, 1e-12
      %v5777 = vadd.f32 %v5761, 1e-12
      %v5778 = vadd.f32 %v5762, 1e-12
      %v5779 = vadd.f32 %v5763, 1e-12
      %v5780 = vadd.f32 %v5764, 1e-12
      %v5781 = vadd.f32 %v5765, 1e-12
      %v5782 = vrsqrt.pop %v5766
      %v5783 = vrsqrt.pop %v5767
      %v5784 = vrsqrt.pop %v5768
      %v5785 = vrsqrt.pop %v5769
      %v5786 = vrsqrt.pop %v5770
      %v5787 = vrsqrt.pop %v5771
      %v5788 = vrsqrt.pop %v5772
      %v5789 = vrsqrt.pop %v5773
      %v5790 = vrsqrt.pop %v5774
      %v5791 = vrsqrt.pop %v5775
      %v5792 = vrsqrt.pop %v5776
      %v5793 = vrsqrt.pop %v5777
      %v5794 = vrsqrt.pop %v5778
      %v5795 = vrsqrt.pop %v5779
      %v5796 = vrsqrt.pop %v5780
      %v5797 = vrsqrt.pop %v5781
      %v5798 = vmul.f32 %v5686, %v5782
      %v5799 = vmul.f32 %v5687, %v5783
      %v5800 = vmul.f32 %v5688, %v5784
      %v5801 = vmul.f32 %v5689, %v5785
      %v5802 = vmul.f32 %v5690, %v5786
      %v5803 = vmul.f32 %v5691, %v5787
      %v5804 = vmul.f32 %v5692, %v5788
      %v5805 = vmul.f32 %v5693, %v5789
      %v5806 = vmul.f32 %v5694, %v5790
      %v5807 = vmul.f32 %v5695, %v5791
      %v5808 = vmul.f32 %v5696, %v5792
      %v5809 = vmul.f32 %v5697, %v5793
      %v5810 = vmul.f32 %v5698, %v5794
      %v5811 = vmul.f32 %v5699, %v5795
      %v5812 = vmul.f32 %v5700, %v5796
      %v5813 = vmul.f32 %v5701, %v5797
      %v5815 = vlaneseq
      %v5816 = vshrl.u32 %v5815, 7
      %v5817 = vsub.s32 0, %v5816
      %v5818 = vrot.slane %v5636, %v5817
      %v5820 = vmul.f32 %v5798, %v5818
      %v5821 = vmul.f32 %v5799, %v5818
      %v5822 = vmul.f32 %v5800, %v5818
      %v5823 = vmul.f32 %v5801, %v5818
      %v5824 = vmul.f32 %v5802, %v5818
      %v5825 = vmul.f32 %v5803, %v5818
      %v5826 = vmul.f32 %v5804, %v5818
      %v5827 = vmul.f32 %v5805, %v5818
      %v5828 = vmul.f32 %v5806, %v5818
      %v5829 = vmul.f32 %v5807, %v5818
      %v5830 = vmul.f32 %v5808, %v5818
      %v5831 = vmul.f32 %v5809, %v5818
      %v5832 = vmul.f32 %v5810, %v5818
      %v5833 = vmul.f32 %v5811, %v5818
      %v5834 = vmul.f32 %v5812, %v5818
      %v5835 = vmul.f32 %v5813, %v5818
      %v5837 = vlaneseq
      %v5838 = vshrl.u32 %v5837, 7
      %v5839 = vsub.s32 0, %v5838
      %v5840 = vrot.slane %v5637, %v5839
      %v5842 = vadd.f32 %v5820, %v5840
      %v5843 = vadd.f32 %v5821, %v5840
      %v5844 = vadd.f32 %v5822, %v5840
      %v5845 = vadd.f32 %v5823, %v5840
      %v5846 = vadd.f32 %v5824, %v5840
      %v5847 = vadd.f32 %v5825, %v5840
      %v5848 = vadd.f32 %v5826, %v5840
      %v5849 = vadd.f32 %v5827, %v5840
      %v5850 = vadd.f32 %v5828, %v5840
      %v5851 = vadd.f32 %v5829, %v5840
      %v5852 = vadd.f32 %v5830, %v5840
      %v5853 = vadd.f32 %v5831, %v5840
      %v5854 = vadd.f32 %v5832, %v5840
      %v5855 = vadd.f32 %v5833, %v5840
      %v5856 = vadd.f32 %v5834, %v5840
      %v5857 = vadd.f32 %v5835, %v5840
      %v5858 = vpack.c.bf16 %v5843, %v5842
      %v5859 = vpack.c.bf16 %v5845, %v5844
      %v5860 = vpack.c.bf16 %v5847, %v5846
      %v5861 = vpack.c.bf16 %v5849, %v5848
      %v5862 = vpack.c.bf16 %v5851, %v5850
      %v5863 = vpack.c.bf16 %v5853, %v5852
      %v5864 = vpack.c.bf16 %v5855, %v5854
      %v5865 = vpack.c.bf16 %v5857, %v5856
      %s5866 = scalar_lea.vmem %s4, 192
      %v5867 = vld [vmem:[%s5866] sm:$0xff]
      %v5868 = vld [vmem:[%s5866 + $0x8] sm:$0xf]
      %v5869 = vld [vmem:[%s5866 + $0xc] sm:$0xff]
      %v5870 = vld [vmem:[%s5866 + $0x14] sm:$0xf]
      %v5871 = vld [vmem:[%s5866 + $0x18] sm:$0xff]
      %v5872 = vld [vmem:[%s5866 + $0x20] sm:$0xf]
      %v5873 = vld [vmem:[%s5866 + $0x24] sm:$0xff]
      %v5874 = vld [vmem:[%s5866 + $0x2c] sm:$0xf]
      %v5875 = vld [vmem:[%s5866 + $0x30] sm:$0xff]
      %v5876 = vld [vmem:[%s5866 + $0x38] sm:$0xf]
      %v5877 = vld [vmem:[%s5866 + $0x3c] sm:$0xff]
      %v5878 = vld [vmem:[%s5866 + $0x44] sm:$0xf]
      %v5879 = vld [vmem:[%s5866 + $0x48] sm:$0xff]
      %v5880 = vld [vmem:[%s5866 + $0x50] sm:$0xf]
      %v5881 = vld [vmem:[%s5866 + $0x54] sm:$0xff]
      %v5882 = vld [vmem:[%s5866 + $0x5c] sm:$0xf]
      %v5883 = vld [vmem:[%s5866 + $0x60] sm:$0xff]
      %v5884 = vld [vmem:[%s5866 + $0x68] sm:$0xf]
      %v5885 = vld [vmem:[%s5866 + $0x6c] sm:$0xff]
      %v5886 = vld [vmem:[%s5866 + $0x74] sm:$0xf]
      %v5887 = vld [vmem:[%s5866 + $0x78] sm:$0xff]
      %v5888 = vld [vmem:[%s5866 + $0x80] sm:$0xf]
      %v5889 = vld [vmem:[%s5866 + $0x84] sm:$0xff]
      %v5890 = vld [vmem:[%s5866 + $0x8c] sm:$0xf]
      %v5891 = vld [vmem:[%s5866 + $0x90] sm:$0xff]
      %v5892 = vld [vmem:[%s5866 + $0x98] sm:$0xf]
      %v5893 = vld [vmem:[%s5866 + $0x9c] sm:$0xff]
      %v5894 = vld [vmem:[%s5866 + $0xa4] sm:$0xf]
      %v5895 = vld [vmem:[%s5866 + $0xa8] sm:$0xff]
      %v5896 = vld [vmem:[%s5866 + $0xb0] sm:$0xf]
      %v5897 = vld [vmem:[%s5866 + $0xb4] sm:$0xff]
      %v5898 = vld [vmem:[%s5866 + $0xbc] sm:$0xf]
      %s5899 = scalar_lea.vmem %s5, 3
      %v5900 = vld [vmem:[%s5899] sm:$0x7]
      %v5902 = vlaneseq
      %v5903 = vshrl.u32 %v5902, 7
      %v5904 = vsub.s32 0, %v5903
      %v5905 = vrot.slane %v5900, %v5904
      %v5906 = vlaneseq
      %v5907 = vshrl.u32 %v5906, 7
      %v5908 = vsub.s32 1, %v5907
      %v5909 = vrot.slane %v5900, %v5908
      %v5910 = vlaneseq
      %v5911 = vshrl.u32 %v5910, 7
      %v5912 = vsub.s32 2, %v5911
      %v5913 = vrot.slane %v5900, %v5912
      %v5949 = vunpack.c.l.b16 %v5867
      %v5950 = vunpack.c.h.b16 %v5867
      %v5951 = vunpack.c.l.b16 %v5868
      %v5952 = vunpack.c.l.b16 %v5869
      %v5953 = vunpack.c.h.b16 %v5869
      %v5954 = vunpack.c.l.b16 %v5870
      %v5955 = vunpack.c.l.b16 %v5871
      %v5956 = vunpack.c.h.b16 %v5871
      %v5957 = vunpack.c.l.b16 %v5872
      %v5958 = vunpack.c.l.b16 %v5873
      %v5959 = vunpack.c.h.b16 %v5873
      %v5960 = vunpack.c.l.b16 %v5874
      %v5961 = vunpack.c.l.b16 %v5875
      %v5962 = vunpack.c.h.b16 %v5875
      %v5963 = vunpack.c.l.b16 %v5876
      %v5964 = vunpack.c.l.b16 %v5877
      %v5965 = vunpack.c.h.b16 %v5877
      %v5966 = vunpack.c.l.b16 %v5878
      %v5967 = vunpack.c.l.b16 %v5879
      %v5968 = vunpack.c.h.b16 %v5879
      %v5969 = vunpack.c.l.b16 %v5880
      %v5970 = vunpack.c.l.b16 %v5881
      %v5971 = vunpack.c.h.b16 %v5881
      %v5972 = vunpack.c.l.b16 %v5882
      %v5973 = vunpack.c.l.b16 %v5883
      %v5974 = vunpack.c.h.b16 %v5883
      %v5975 = vunpack.c.l.b16 %v5884
      %v5976 = vunpack.c.l.b16 %v5885
      %v5977 = vunpack.c.h.b16 %v5885
      %v5978 = vunpack.c.l.b16 %v5886
      %v5979 = vunpack.c.l.b16 %v5887
      %v5980 = vunpack.c.h.b16 %v5887
      %v5981 = vunpack.c.l.b16 %v5888
      %v5982 = vunpack.c.l.b16 %v5889
      %v5983 = vunpack.c.h.b16 %v5889
      %v5984 = vunpack.c.l.b16 %v5890
      %v5985 = vunpack.c.l.b16 %v5891
      %v5986 = vunpack.c.h.b16 %v5891
      %v5987 = vunpack.c.l.b16 %v5892
      %v5988 = vunpack.c.l.b16 %v5893
      %v5989 = vunpack.c.h.b16 %v5893
      %v5990 = vunpack.c.l.b16 %v5894
      %v5991 = vunpack.c.l.b16 %v5895
      %v5992 = vunpack.c.h.b16 %v5895
      %v5993 = vunpack.c.l.b16 %v5896
      %v5994 = vunpack.c.l.b16 %v5897
      %v5995 = vunpack.c.h.b16 %v5897
      %v5996 = vunpack.c.l.b16 %v5898
      %v5997 = vpack.c.b16 %v5952, %v5949
      %v5998 = vpack.c.b16 %v5953, %v5950
      %v5999 = vpack.c.b16 %v5954, %v5951
      %v6000 = vpack.c.b16 %v5958, %v5955
      %v6001 = vpack.c.b16 %v5959, %v5956
      %v6002 = vpack.c.b16 %v5960, %v5957
      %v6003 = vpack.c.b16 %v5964, %v5961
      %v6004 = vpack.c.b16 %v5965, %v5962
      %v6005 = vpack.c.b16 %v5966, %v5963
      %v6006 = vpack.c.b16 %v5970, %v5967
      %v6007 = vpack.c.b16 %v5971, %v5968
      %v6008 = vpack.c.b16 %v5972, %v5969
      %v6009 = vpack.c.b16 %v5976, %v5973
      %v6010 = vpack.c.b16 %v5977, %v5974
      %v6011 = vpack.c.b16 %v5978, %v5975
      %v6012 = vpack.c.b16 %v5982, %v5979
      %v6013 = vpack.c.b16 %v5983, %v5980
      %v6014 = vpack.c.b16 %v5984, %v5981
      %v6015 = vpack.c.b16 %v5988, %v5985
      %v6016 = vpack.c.b16 %v5989, %v5986
      %v6017 = vpack.c.b16 %v5990, %v5987
      %v6018 = vpack.c.b16 %v5994, %v5991
      %v6019 = vpack.c.b16 %v5995, %v5992
      %v6020 = vpack.c.b16 %v5996, %v5993
      %6045 = vmatprep.subr.bf16.mxu0 %v6019
      %6046 = vmatpush1.bf16.msra.mxu0 %v6018
      %6047 = vmatprep.subr.bf16.mxu0 %v6016
      %6048 = vmatpush1.bf16.msra.mxu0 %v6015
      %6049 = vmatprep.subr.bf16.mxu0 %v6013
      %6050 = vmatpush1.bf16.msra.mxu0 %v6012
      %6051 = vmatprep.subr.bf16.mxu0 %v6010
      %6052 = vmatpush1.bf16.msra.mxu0 %v6009
      %6053 = vmatprep.subr.bf16.mxu0 %v6007
      %6054 = vmatpush1.bf16.msra.mxu0 %v6006
      %6055 = vmatprep.subr.bf16.mxu0 %v6004
      %6056 = vmatpush1.bf16.msra.mxu0 %v6003
      %6057 = vmatprep.subr.bf16.mxu0 %v6001
      %6058 = vmatpush1.bf16.msra.mxu0 %v6000
      %6059 = vmatprep.subr.bf16.mxu0 %v5998
      %6060 = vmatpush1.bf16.msra.mxu0 %v5997
      %6061 = vmatprep.subr.bf16.mxu0 0
      %6062 = vmatpush2.bf16.msra.mxu0 0
      %6063 = vmatprep.subr.bf16.mxu0 0
      %6064 = vmatpush2.bf16.msra.mxu0 0
      %6065 = vmatprep.subr.bf16.mxu0 0
      %6066 = vmatpush2.bf16.msra.mxu0 0
      %6067 = vmatprep.subr.bf16.mxu0 0
      %6068 = vmatpush2.bf16.msra.mxu0 0
      %6069 = vmatprep.subr.bf16.mxu0 0
      %6070 = vmatpush2.bf16.msra.mxu0 0
      %6071 = vmatprep.subr.bf16.mxu0 0
      %6072 = vmatpush2.bf16.msra.mxu0 0
      %6073 = vmatprep.subr.bf16.mxu0 0
      %6074 = vmatpush2.bf16.msra.mxu0 0
      %6075 = vmatprep.subr.bf16.mxu0 0
      %6076 = vmatpush2.bf16.msra.mxu0 0
      %6077 = vmatprep.mubr.bf16.mxu0 0
      %6078 = vmatmul.mubr.bf16.gmra.mxu0 %v5858
      %v6079 = vpop.f32.mrf.mxu0
      %v6080 = vadd.f32 %v5905, %v6079
      %v6081 = vpop.f32.mrf.mxu0
      %v6082 = vadd.f32 %v5909, %v6081
      %v6083 = vpop.f32.mrf.mxu0
      %v6084 = vadd.f32 %v5905, %v6083
      %v6085 = vpop.f32.mrf.mxu0
      %v6086 = vadd.f32 %v5909, %v6085
      %6087 = vmatprep.mubr.bf16.mxu0 0
      %6088 = vmatmul.mubr.bf16.gmra.mxu0 %v5859
      %v6089 = vpop.f32.mrf.mxu0
      %v6090 = vadd.f32 %v5905, %v6089
      %v6091 = vpop.f32.mrf.mxu0
      %v6092 = vadd.f32 %v5909, %v6091
      %v6093 = vpop.f32.mrf.mxu0
      %v6094 = vadd.f32 %v5905, %v6093
      %v6095 = vpop.f32.mrf.mxu0
      %v6096 = vadd.f32 %v5909, %v6095
      %6097 = vmatprep.mubr.bf16.mxu0 0
      %6098 = vmatmul.mubr.bf16.gmra.mxu0 %v5860
      %v6099 = vpop.f32.mrf.mxu0
      %v6100 = vadd.f32 %v5905, %v6099
      %v6101 = vpop.f32.mrf.mxu0
      %v6102 = vadd.f32 %v5909, %v6101
      %v6103 = vpop.f32.mrf.mxu0
      %v6104 = vadd.f32 %v5905, %v6103
      %v6105 = vpop.f32.mrf.mxu0
      %v6106 = vadd.f32 %v5909, %v6105
      %6107 = vmatprep.mubr.bf16.mxu0 0
      %6108 = vmatmul.mubr.bf16.gmra.mxu0 %v5861
      %v6109 = vpop.f32.mrf.mxu0
      %v6110 = vadd.f32 %v5905, %v6109
      %v6111 = vpop.f32.mrf.mxu0
      %v6112 = vadd.f32 %v5909, %v6111
      %v6113 = vpop.f32.mrf.mxu0
      %v6114 = vadd.f32 %v5905, %v6113
      %v6115 = vpop.f32.mrf.mxu0
      %v6116 = vadd.f32 %v5909, %v6115
      %6117 = vmatprep.mubr.bf16.mxu0 0
      %6118 = vmatmul.mubr.bf16.gmra.mxu0 %v5862
      %v6119 = vpop.f32.mrf.mxu0
      %v6120 = vadd.f32 %v5905, %v6119
      %v6121 = vpop.f32.mrf.mxu0
      %v6122 = vadd.f32 %v5909, %v6121
      %v6123 = vpop.f32.mrf.mxu0
      %v6124 = vadd.f32 %v5905, %v6123
      %v6125 = vpop.f32.mrf.mxu0
      %v6126 = vadd.f32 %v5909, %v6125
      %6127 = vmatprep.mubr.bf16.mxu0 0
      %6128 = vmatmul.mubr.bf16.gmra.mxu0 %v5863
      %v6129 = vpop.f32.mrf.mxu0
      %v6130 = vadd.f32 %v5905, %v6129
      %v6131 = vpop.f32.mrf.mxu0
      %v6132 = vadd.f32 %v5909, %v6131
      %v6133 = vpop.f32.mrf.mxu0
      %v6134 = vadd.f32 %v5905, %v6133
      %v6135 = vpop.f32.mrf.mxu0
      %v6136 = vadd.f32 %v5909, %v6135
      %6137 = vmatprep.mubr.bf16.mxu0 0
      %6138 = vmatmul.mubr.bf16.gmra.mxu0 %v5864
      %v6139 = vpop.f32.mrf.mxu0
      %v6140 = vadd.f32 %v5905, %v6139
      %v6141 = vpop.f32.mrf.mxu0
      %v6142 = vadd.f32 %v5909, %v6141
      %v6143 = vpop.f32.mrf.mxu0
      %v6144 = vadd.f32 %v5905, %v6143
      %v6145 = vpop.f32.mrf.mxu0
      %v6146 = vadd.f32 %v5909, %v6145
      %6147 = vmatprep.mubr.bf16.mxu0 0
      %6148 = vmatmul.mubr.bf16.gmra.mxu0 %v5865
      %v6149 = vpop.f32.mrf.mxu0
      %v6150 = vadd.f32 %v5905, %v6149
      %v6151 = vpop.f32.mrf.mxu0
      %v6152 = vadd.f32 %v5909, %v6151
      %v6153 = vpop.f32.mrf.mxu0
      %v6154 = vadd.f32 %v5905, %v6153
      %v6155 = vpop.f32.mrf.mxu0
      %v6156 = vadd.f32 %v5909, %v6155
      %6157 = vdwg.mxu0
      %6158 = vmatprep.subr.bf16.mxu0 0
      %6159 = vmatpush1.bf16.msra.mxu0 %v6020
      %6160 = vmatprep.subr.bf16.mxu0 0
      %6161 = vmatpush1.bf16.msra.mxu0 %v6017
      %6162 = vmatprep.subr.bf16.mxu0 0
      %6163 = vmatpush1.bf16.msra.mxu0 %v6014
      %6164 = vmatprep.subr.bf16.mxu0 0
      %6165 = vmatpush1.bf16.msra.mxu0 %v6011
      %6166 = vmatprep.subr.bf16.mxu0 0
      %6167 = vmatpush1.bf16.msra.mxu0 %v6008
      %6168 = vmatprep.subr.bf16.mxu0 0
      %6169 = vmatpush1.bf16.msra.mxu0 %v6005
      %6170 = vmatprep.subr.bf16.mxu0 0
      %6171 = vmatpush1.bf16.msra.mxu0 %v6002
      %6172 = vmatprep.subr.bf16.mxu0 0
      %6173 = vmatpush1.bf16.msra.mxu0 %v5999
      %6174 = vmatprep.subr.bf16.mxu0 0
      %6175 = vmatpush2.bf16.msra.mxu0 0
      %6176 = vmatprep.subr.bf16.mxu0 0
      %6177 = vmatpush2.bf16.msra.mxu0 0
      %6178 = vmatprep.subr.bf16.mxu0 0
      %6179 = vmatpush2.bf16.msra.mxu0 0
      %6180 = vmatprep.subr.bf16.mxu0 0
      %6181 = vmatpush2.bf16.msra.mxu0 0
      %6182 = vmatprep.subr.bf16.mxu0 0
      %6183 = vmatpush2.bf16.msra.mxu0 0
      %6184 = vmatprep.subr.bf16.mxu0 0
      %6185 = vmatpush2.bf16.msra.mxu0 0
      %6186 = vmatprep.subr.bf16.mxu0 0
      %6187 = vmatpush2.bf16.msra.mxu0 0
      %6188 = vmatprep.subr.bf16.mxu0 0
      %6189 = vmatpush2.bf16.msra.mxu0 0
      %6190 = vmatprep.mubr.bf16.mxu0 0
      %6191 = vmatmul.mubr.bf16.gmra.mxu0 %v5858
      %v6192 = vpop.f32.mrf.mxu0
      %v6193 = vadd.f32 %v5913, %v6192
      %v6194 = vpop.f32.mrf.mxu0
      %v6195 = vpop.f32.mrf.mxu0
      %v6196 = vadd.f32 %v5913, %v6195
      %v6197 = vpop.f32.mrf.mxu0
      %6198 = vmatprep.mubr.bf16.mxu0 0
      %6199 = vmatmul.mubr.bf16.gmra.mxu0 %v5859
      %v6200 = vpop.f32.mrf.mxu0
      %v6201 = vadd.f32 %v5913, %v6200
      %v6202 = vpop.f32.mrf.mxu0
      %v6203 = vpop.f32.mrf.mxu0
      %v6204 = vadd.f32 %v5913, %v6203
      %v6205 = vpop.f32.mrf.mxu0
      %6206 = vmatprep.mubr.bf16.mxu0 0
      %6207 = vmatmul.mubr.bf16.gmra.mxu0 %v5860
      %v6208 = vpop.f32.mrf.mxu0
      %v6209 = vadd.f32 %v5913, %v6208
      %v6210 = vpop.f32.mrf.mxu0
      %v6211 = vpop.f32.mrf.mxu0
      %v6212 = vadd.f32 %v5913, %v6211
      %v6213 = vpop.f32.mrf.mxu0
      %6214 = vmatprep.mubr.bf16.mxu0 0
      %6215 = vmatmul.mubr.bf16.gmra.mxu0 %v5861
      %v6216 = vpop.f32.mrf.mxu0
      %v6217 = vadd.f32 %v5913, %v6216
      %v6218 = vpop.f32.mrf.mxu0
      %v6219 = vpop.f32.mrf.mxu0
      %v6220 = vadd.f32 %v5913, %v6219
      %v6221 = vpop.f32.mrf.mxu0
      %6222 = vmatprep.mubr.bf16.mxu0 0
      %6223 = vmatmul.mubr.bf16.gmra.mxu0 %v5862
      %v6224 = vpop.f32.mrf.mxu0
      %v6225 = vadd.f32 %v5913, %v6224
      %v6226 = vpop.f32.mrf.mxu0
      %v6227 = vpop.f32.mrf.mxu0
      %v6228 = vadd.f32 %v5913, %v6227
      %v6229 = vpop.f32.mrf.mxu0
      %6230 = vmatprep.mubr.bf16.mxu0 0
      %6231 = vmatmul.mubr.bf16.gmra.mxu0 %v5863
      %v6232 = vpop.f32.mrf.mxu0
      %v6233 = vadd.f32 %v5913, %v6232
      %v6234 = vpop.f32.mrf.mxu0
      %v6235 = vpop.f32.mrf.mxu0
      %v6236 = vadd.f32 %v5913, %v6235
      %v6237 = vpop.f32.mrf.mxu0
      %6238 = vmatprep.mubr.bf16.mxu0 0
      %6239 = vmatmul.mubr.bf16.gmra.mxu0 %v5864
      %v6240 = vpop.f32.mrf.mxu0
      %v6241 = vadd.f32 %v5913, %v6240
      %v6242 = vpop.f32.mrf.mxu0
      %v6243 = vpop.f32.mrf.mxu0
      %v6244 = vadd.f32 %v5913, %v6243
      %v6245 = vpop.f32.mrf.mxu0
      %6246 = vmatprep.mubr.bf16.mxu0 0
      %6247 = vmatmul.mubr.bf16.gmra.mxu0 %v5865
      %v6248 = vpop.f32.mrf.mxu0
      %v6249 = vadd.f32 %v5913, %v6248
      %v6250 = vpop.f32.mrf.mxu0
      %v6251 = vpop.f32.mrf.mxu0
      %v6252 = vadd.f32 %v5913, %v6251
      %v6253 = vpop.f32.mrf.mxu0
      %6254 = vdwg.mxu0
      %v6256 = vsel %vm1172, %v6080, 0
      %v6259 = vsel %vm1172, %v6084, 0
      %v6262 = vsel %vm1172, %v6090, 0
      %v6265 = vsel %vm1172, %v6094, 0
      %v6268 = vsel %vm1172, %v6100, 0
      %v6271 = vsel %vm1172, %v6104, 0
      %v6274 = vsel %vm1172, %v6110, 0
      %v6277 = vsel %vm1172, %v6114, 0
      %v6280 = vsel %vm1172, %v6120, 0
      %v6283 = vsel %vm1172, %v6124, 0
      %v6286 = vsel %vm1172, %v6130, 0
      %v6289 = vsel %vm1172, %v6134, 0
      %v6292 = vsel %vm1172, %v6140, 0
      %v6295 = vsel %vm1172, %v6144, 0
      %v6298 = vsel %vm1172, %v6150, 0
      %v6301 = vsel %vm1172, %v6154, 0
      %v6304 = vsel %vm1172, %v6082, 0
      %v6307 = vsel %vm1172, %v6086, 0
      %v6310 = vsel %vm1172, %v6092, 0
      %v6313 = vsel %vm1172, %v6096, 0
      %v6316 = vsel %vm1172, %v6102, 0
      %v6319 = vsel %vm1172, %v6106, 0
      %v6322 = vsel %vm1172, %v6112, 0
      %v6325 = vsel %vm1172, %v6116, 0
      %v6328 = vsel %vm1172, %v6122, 0
      %v6331 = vsel %vm1172, %v6126, 0
      %v6334 = vsel %vm1172, %v6132, 0
      %v6337 = vsel %vm1172, %v6136, 0
      %v6340 = vsel %vm1172, %v6142, 0
      %v6343 = vsel %vm1172, %v6146, 0
      %v6346 = vsel %vm1172, %v6152, 0
      %v6349 = vsel %vm1172, %v6156, 0
      %6351 = vmatprep.subr.mxu0 0.0
      %6352 = vmatpush1.xpose.msra.mxu0 %v6349
      %6353 = vmatprep.subr.mxu0 0.0
      %6354 = vmatpush1.xpose.msra.mxu0 %v6346
      %6355 = vmatprep.subr.mxu0 0.0
      %6356 = vmatpush1.xpose.msra.mxu0 %v6343
      %6357 = vmatprep.subr.mxu0 0.0
      %6358 = vmatpush1.xpose.msra.mxu0 %v6340
      %6359 = vmatprep.subr.mxu0 0.0
      %6360 = vmatpush1.xpose.msra.mxu0 %v6337
      %6361 = vmatprep.subr.mxu0 0.0
      %6362 = vmatpush1.xpose.msra.mxu0 %v6334
      %6363 = vmatprep.subr.mxu0 0.0
      %6364 = vmatpush1.xpose.msra.mxu0 %v6331
      %6365 = vmatprep.subr.mxu0 0.0
      %6366 = vmatpush1.xpose.msra.mxu0 %v6328
      %6367 = vmatprep.subr.mxu0 0.0
      %6368 = vmatpush1.xpose.msra.mxu0 %v6325
      %6369 = vmatprep.subr.mxu0 0.0
      %6370 = vmatpush1.xpose.msra.mxu0 %v6322
      %6371 = vmatprep.subr.mxu0 0.0
      %6372 = vmatpush1.xpose.msra.mxu0 %v6319
      %6373 = vmatprep.subr.mxu0 0.0
      %6374 = vmatpush1.xpose.msra.mxu0 %v6316
      %6375 = vmatprep.subr.mxu0 0.0
      %6376 = vmatpush1.xpose.msra.mxu0 %v6313
      %6377 = vmatprep.subr.mxu0 0.0
      %6378 = vmatpush1.xpose.msra.mxu0 %v6310
      %6379 = vmatprep.subr.mxu0 0.0
      %6380 = vmatpush1.xpose.msra.mxu0 %v6307
      %6381 = vmatprep.subr.mxu0 0.0
      %6382 = vmatpush1.xpose.msra.mxu0 %v6304
      %6383 = vmatprep.subr.mxu0 0.0
      %6384 = vmatpush2.xpose.msra.mxu0 0.0
      %6385 = vmatprep.subr.mxu0 0.0
      %6386 = vmatpush2.xpose.msra.mxu0 0.0
      %6387 = vmatprep.subr.mxu0 0.0
      %6388 = vmatpush2.xpose.msra.mxu0 0.0
      %6389 = vmatprep.subr.mxu0 0.0
      %6390 = vmatpush2.xpose.msra.mxu0 0.0
      %6391 = vmatprep.subr.mxu0 0.0
      %6392 = vmatpush2.xpose.msra.mxu0 0.0
      %6393 = vmatprep.subr.mxu0 0.0
      %6394 = vmatpush2.xpose.msra.mxu0 0.0
      %6395 = vmatprep.subr.mxu0 0.0
      %6396 = vmatpush2.xpose.msra.mxu0 0.0
      %6397 = vmatprep.subr.mxu0 0.0
      %6398 = vmatpush2.xpose.msra.mxu0 0.0
      %6399 = vmatprep.subr.mxu0 0.0
      %6400 = vmatpush2.xpose.msra.mxu0 0.0
      %6401 = vmatprep.subr.mxu0 0.0
      %6402 = vmatpush2.xpose.msra.mxu0 0.0
      %6403 = vmatprep.subr.mxu0 0.0
      %6404 = vmatpush2.xpose.msra.mxu0 0.0
      %6405 = vmatprep.subr.mxu0 0.0
      %6406 = vmatpush2.xpose.msra.mxu0 0.0
      %6407 = vmatprep.subr.mxu0 0.0
      %6408 = vmatpush2.xpose.msra.mxu0 0.0
      %6409 = vmatprep.subr.mxu0 0.0
      %6410 = vmatpush2.xpose.msra.mxu0 0.0
      %6411 = vmatprep.subr.mxu0 0.0
      %6412 = vmatpush2.xpose.msra.mxu0 0.0
      %6413 = vmatprep.subr.mxu0 0.0
      %6414 = vmatpush2.xpose.msra.mxu0 0.0
      %6415 = vmatprep.mubr.f32.mxu0 0.0
      %6416 = vmatmul.mubr.f32.gmra.mxu0 %v6256
      %v6417 = vpop.f32.mrf.mxu0
      %v6418 = vadd.f32 0.0, %v6417
      %v6419 = vpop.f32.mrf.mxu0
      %6420 = vmatprep.mubr.f32.mxu0 0.0
      %6421 = vmatmul.mubr.f32.gmra.mxu0 %v6259
      %v6422 = vpop.f32.mrf.mxu0
      %v6423 = vadd.f32 0.0, %v6422
      %v6424 = vpop.f32.mrf.mxu0
      %6425 = vmatprep.mubr.f32.mxu0 0.0
      %6426 = vmatmul.mubr.f32.gmra.mxu0 %v6262
      %v6427 = vpop.f32.mrf.mxu0
      %v6428 = vadd.f32 0.0, %v6427
      %v6429 = vpop.f32.mrf.mxu0
      %6430 = vmatprep.mubr.f32.mxu0 0.0
      %6431 = vmatmul.mubr.f32.gmra.mxu0 %v6265
      %v6432 = vpop.f32.mrf.mxu0
      %v6433 = vadd.f32 0.0, %v6432
      %v6434 = vpop.f32.mrf.mxu0
      %6435 = vmatprep.mubr.f32.mxu0 0.0
      %6436 = vmatmul.mubr.f32.gmra.mxu0 %v6268
      %v6437 = vpop.f32.mrf.mxu0
      %v6438 = vadd.f32 0.0, %v6437
      %v6439 = vpop.f32.mrf.mxu0
      %6440 = vmatprep.mubr.f32.mxu0 0.0
      %6441 = vmatmul.mubr.f32.gmra.mxu0 %v6271
      %v6442 = vpop.f32.mrf.mxu0
      %v6443 = vadd.f32 0.0, %v6442
      %v6444 = vpop.f32.mrf.mxu0
      %6445 = vmatprep.mubr.f32.mxu0 0.0
      %6446 = vmatmul.mubr.f32.gmra.mxu0 %v6274
      %v6447 = vpop.f32.mrf.mxu0
      %v6448 = vadd.f32 0.0, %v6447
      %v6449 = vpop.f32.mrf.mxu0
      %6450 = vmatprep.mubr.f32.mxu0 0.0
      %6451 = vmatmul.mubr.f32.gmra.mxu0 %v6277
      %v6452 = vpop.f32.mrf.mxu0
      %v6453 = vadd.f32 0.0, %v6452
      %v6454 = vpop.f32.mrf.mxu0
      %6455 = vmatprep.mubr.f32.mxu0 0.0
      %6456 = vmatmul.mubr.f32.gmra.mxu0 %v6280
      %v6457 = vpop.f32.mrf.mxu0
      %v6458 = vadd.f32 0.0, %v6457
      %v6459 = vpop.f32.mrf.mxu0
      %6460 = vmatprep.mubr.f32.mxu0 0.0
      %6461 = vmatmul.mubr.f32.gmra.mxu0 %v6283
      %v6462 = vpop.f32.mrf.mxu0
      %v6463 = vadd.f32 0.0, %v6462
      %v6464 = vpop.f32.mrf.mxu0
      %6465 = vmatprep.mubr.f32.mxu0 0.0
      %6466 = vmatmul.mubr.f32.gmra.mxu0 %v6286
      %v6467 = vpop.f32.mrf.mxu0
      %v6468 = vadd.f32 0.0, %v6467
      %v6469 = vpop.f32.mrf.mxu0
      %6470 = vmatprep.mubr.f32.mxu0 0.0
      %6471 = vmatmul.mubr.f32.gmra.mxu0 %v6289
      %v6472 = vpop.f32.mrf.mxu0
      %v6473 = vadd.f32 0.0, %v6472
      %v6474 = vpop.f32.mrf.mxu0
      %6475 = vmatprep.mubr.f32.mxu0 0.0
      %6476 = vmatmul.mubr.f32.gmra.mxu0 %v6292
      %v6477 = vpop.f32.mrf.mxu0
      %v6478 = vadd.f32 0.0, %v6477
      %v6479 = vpop.f32.mrf.mxu0
      %6480 = vmatprep.mubr.f32.mxu0 0.0
      %6481 = vmatmul.mubr.f32.gmra.mxu0 %v6295
      %v6482 = vpop.f32.mrf.mxu0
      %v6483 = vadd.f32 0.0, %v6482
      %v6484 = vpop.f32.mrf.mxu0
      %6485 = vmatprep.mubr.f32.mxu0 0.0
      %6486 = vmatmul.mubr.f32.gmra.mxu0 %v6298
      %v6487 = vpop.f32.mrf.mxu0
      %v6488 = vadd.f32 0.0, %v6487
      %v6489 = vpop.f32.mrf.mxu0
      %6490 = vmatprep.mubr.f32.mxu0 0.0
      %6491 = vmatmul.mubr.f32.gmra.mxu0 %v6301
      %v6492 = vpop.f32.mrf.mxu0
      %v6493 = vadd.f32 0.0, %v6492
      %v6494 = vpop.f32.mrf.mxu0
      %6495 = vdwg.mxu0
      %v6496 = vmul.f32 %v6418, 0.17677669
      %v6497 = vmul.f32 %v6423, 0.17677669
      %v6498 = vmul.f32 %v6428, 0.17677669
      %v6499 = vmul.f32 %v6433, 0.17677669
      %v6500 = vmul.f32 %v6438, 0.17677669
      %v6501 = vmul.f32 %v6443, 0.17677669
      %v6502 = vmul.f32 %v6448, 0.17677669
      %v6503 = vmul.f32 %v6453, 0.17677669
      %v6504 = vmul.f32 %v6458, 0.17677669
      %v6505 = vmul.f32 %v6463, 0.17677669
      %v6506 = vmul.f32 %v6468, 0.17677669
      %v6507 = vmul.f32 %v6473, 0.17677669
      %v6508 = vmul.f32 %v6478, 0.17677669
      %v6509 = vmul.f32 %v6483, 0.17677669
      %v6510 = vmul.f32 %v6488, 0.17677669
      %v6511 = vmul.f32 %v6493, 0.17677669
      %v6512 = vadd.f32 %v6496, %v1434
      %v6513 = vadd.f32 %v6497, %v1434
      %v6514 = vadd.f32 %v6498, %v1434
      %v6515 = vadd.f32 %v6499, %v1434
      %v6516 = vadd.f32 %v6500, %v1434
      %v6517 = vadd.f32 %v6501, %v1434
      %v6518 = vadd.f32 %v6502, %v1434
      %v6519 = vadd.f32 %v6503, %v1434
      %v6520 = vadd.f32 %v6504, %v1434
      %v6521 = vadd.f32 %v6505, %v1434
      %v6522 = vadd.f32 %v6506, %v1434
      %v6523 = vadd.f32 %v6507, %v1434
      %v6524 = vadd.f32 %v6508, %v1434
      %v6525 = vadd.f32 %v6509, %v1434
      %v6526 = vadd.f32 %v6510, %v1434
      %v6527 = vadd.f32 %v6511, %v1434
      %6528 = vmax.xlane.f32.xlu0 %v6512
      %v6529 = vpop.xlane.xlu0 %6528
      %6530 = vmax.xlane.f32.xlu0 %v6513
      %v6531 = vpop.xlane.xlu0 %6530
      %6532 = vmax.xlane.f32.xlu0 %v6514
      %v6533 = vpop.xlane.xlu0 %6532
      %6534 = vmax.xlane.f32.xlu0 %v6515
      %v6535 = vpop.xlane.xlu0 %6534
      %6536 = vmax.xlane.f32.xlu0 %v6516
      %v6537 = vpop.xlane.xlu0 %6536
      %6538 = vmax.xlane.f32.xlu0 %v6517
      %v6539 = vpop.xlane.xlu0 %6538
      %6540 = vmax.xlane.f32.xlu0 %v6518
      %v6541 = vpop.xlane.xlu0 %6540
      %6542 = vmax.xlane.f32.xlu0 %v6519
      %v6543 = vpop.xlane.xlu0 %6542
      %6544 = vmax.xlane.f32.xlu0 %v6520
      %v6545 = vpop.xlane.xlu0 %6544
      %6546 = vmax.xlane.f32.xlu0 %v6521
      %v6547 = vpop.xlane.xlu0 %6546
      %6548 = vmax.xlane.f32.xlu0 %v6522
      %v6549 = vpop.xlane.xlu0 %6548
      %6550 = vmax.xlane.f32.xlu0 %v6523
      %v6551 = vpop.xlane.xlu0 %6550
      %6552 = vmax.xlane.f32.xlu0 %v6524
      %v6553 = vpop.xlane.xlu0 %6552
      %6554 = vmax.xlane.f32.xlu0 %v6525
      %v6555 = vpop.xlane.xlu0 %6554
      %6556 = vmax.xlane.f32.xlu0 %v6526
      %v6557 = vpop.xlane.xlu0 %6556
      %6558 = vmax.xlane.f32.xlu0 %v6527
      %v6559 = vpop.xlane.xlu0 %6558
      %v6560 = vsub.f32 %v6512, %v6529
      %v6561 = vsub.f32 %v6513, %v6531
      %v6562 = vsub.f32 %v6514, %v6533
      %v6563 = vsub.f32 %v6515, %v6535
      %v6564 = vsub.f32 %v6516, %v6537
      %v6565 = vsub.f32 %v6517, %v6539
      %v6566 = vsub.f32 %v6518, %v6541
      %v6567 = vsub.f32 %v6519, %v6543
      %v6568 = vsub.f32 %v6520, %v6545
      %v6569 = vsub.f32 %v6521, %v6547
      %v6570 = vsub.f32 %v6522, %v6549
      %v6571 = vsub.f32 %v6523, %v6551
      %v6572 = vsub.f32 %v6524, %v6553
      %v6573 = vsub.f32 %v6525, %v6555
      %v6574 = vsub.f32 %v6526, %v6557
      %v6575 = vsub.f32 %v6527, %v6559
      %v6576 = vmul.f32 %v6560, 1.442695
      %v6577 = vpow.pop %v6576
      %v6578 = vmul.f32 %v6561, 1.442695
      %v6579 = vpow.pop %v6578
      %v6580 = vmul.f32 %v6562, 1.442695
      %v6581 = vpow.pop %v6580
      %v6582 = vmul.f32 %v6563, 1.442695
      %v6583 = vpow.pop %v6582
      %v6584 = vmul.f32 %v6564, 1.442695
      %v6585 = vpow.pop %v6584
      %v6586 = vmul.f32 %v6565, 1.442695
      %v6587 = vpow.pop %v6586
      %v6588 = vmul.f32 %v6566, 1.442695
      %v6589 = vpow.pop %v6588
      %v6590 = vmul.f32 %v6567, 1.442695
      %v6591 = vpow.pop %v6590
      %v6592 = vmul.f32 %v6568, 1.442695
      %v6593 = vpow.pop %v6592
      %v6594 = vmul.f32 %v6569, 1.442695
      %v6595 = vpow.pop %v6594
      %v6596 = vmul.f32 %v6570, 1.442695
      %v6597 = vpow.pop %v6596
      %v6598 = vmul.f32 %v6571, 1.442695
      %v6599 = vpow.pop %v6598
      %v6600 = vmul.f32 %v6572, 1.442695
      %v6601 = vpow.pop %v6600
      %v6602 = vmul.f32 %v6573, 1.442695
      %v6603 = vpow.pop %v6602
      %v6604 = vmul.f32 %v6574, 1.442695
      %v6605 = vpow.pop %v6604
      %v6606 = vmul.f32 %v6575, 1.442695
      %v6607 = vpow.pop %v6606
      %6608 = vadd.xlane.f32.xlu0 %v6577
      %v6609 = vpop.xlane.xlu0 %6608
      %6610 = vadd.xlane.f32.xlu0 %v6579
      %v6611 = vpop.xlane.xlu0 %6610
      %6612 = vadd.xlane.f32.xlu0 %v6581
      %v6613 = vpop.xlane.xlu0 %6612
      %6614 = vadd.xlane.f32.xlu0 %v6583
      %v6615 = vpop.xlane.xlu0 %6614
      %6616 = vadd.xlane.f32.xlu0 %v6585
      %v6617 = vpop.xlane.xlu0 %6616
      %6618 = vadd.xlane.f32.xlu0 %v6587
      %v6619 = vpop.xlane.xlu0 %6618
      %6620 = vadd.xlane.f32.xlu0 %v6589
      %v6621 = vpop.xlane.xlu0 %6620
      %6622 = vadd.xlane.f32.xlu0 %v6591
      %v6623 = vpop.xlane.xlu0 %6622
      %6624 = vadd.xlane.f32.xlu0 %v6593
      %v6625 = vpop.xlane.xlu0 %6624
      %6626 = vadd.xlane.f32.xlu0 %v6595
      %v6627 = vpop.xlane.xlu0 %6626
      %6628 = vadd.xlane.f32.xlu0 %v6597
      %v6629 = vpop.xlane.xlu0 %6628
      %6630 = vadd.xlane.f32.xlu0 %v6599
      %v6631 = vpop.xlane.xlu0 %6630
      %6632 = vadd.xlane.f32.xlu0 %v6601
      %v6633 = vpop.xlane.xlu0 %6632
      %6634 = vadd.xlane.f32.xlu0 %v6603
      %v6635 = vpop.xlane.xlu0 %6634
      %6636 = vadd.xlane.f32.xlu0 %v6605
      %v6637 = vpop.xlane.xlu0 %6636
      %6638 = vadd.xlane.f32.xlu0 %v6607
      %v6639 = vpop.xlane.xlu0 %6638
      %v6640 = vrcp.pop %v6609
      %v6641 = vrcp.pop %v6611
      %v6642 = vrcp.pop %v6613
      %v6643 = vrcp.pop %v6615
      %v6644 = vrcp.pop %v6617
      %v6645 = vrcp.pop %v6619
      %v6646 = vrcp.pop %v6621
      %v6647 = vrcp.pop %v6623
      %v6648 = vrcp.pop %v6625
      %v6649 = vrcp.pop %v6627
      %v6650 = vrcp.pop %v6629
      %v6651 = vrcp.pop %v6631
      %v6652 = vrcp.pop %v6633
      %v6653 = vrcp.pop %v6635
      %v6654 = vrcp.pop %v6637
      %v6655 = vrcp.pop %v6639
      %v6656 = vmul.f32 %v6577, %v6640
      %v6657 = vmul.f32 %v6579, %v6641
      %v6658 = vmul.f32 %v6581, %v6642
      %v6659 = vmul.f32 %v6583, %v6643
      %v6660 = vmul.f32 %v6585, %v6644
      %v6661 = vmul.f32 %v6587, %v6645
      %v6662 = vmul.f32 %v6589, %v6646
      %v6663 = vmul.f32 %v6591, %v6647
      %v6664 = vmul.f32 %v6593, %v6648
      %v6665 = vmul.f32 %v6595, %v6649
      %v6666 = vmul.f32 %v6597, %v6650
      %v6667 = vmul.f32 %v6599, %v6651
      %v6668 = vmul.f32 %v6601, %v6652
      %v6669 = vmul.f32 %v6603, %v6653
      %v6670 = vmul.f32 %v6605, %v6654
      %v6671 = vmul.f32 %v6607, %v6655
      %v6672 = vpack.c.bf16 %v6657, %v6656
      %v6673 = vpack.c.bf16 %v6659, %v6658
      %v6674 = vpack.c.bf16 %v6661, %v6660
      %v6675 = vpack.c.bf16 %v6663, %v6662
      %v6676 = vpack.c.bf16 %v6665, %v6664
      %v6677 = vpack.c.bf16 %v6667, %v6666
      %v6678 = vpack.c.bf16 %v6669, %v6668
      %v6679 = vpack.c.bf16 %v6671, %v6670
      %v6680 = vpack.c.bf16 %v6196, %v6193
      %v6681 = vpack.c.bf16 %v6204, %v6201
      %v6682 = vpack.c.bf16 %v6212, %v6209
      %v6683 = vpack.c.bf16 %v6220, %v6217
      %v6684 = vpack.c.bf16 %v6228, %v6225
      %v6685 = vpack.c.bf16 %v6236, %v6233
      %v6686 = vpack.c.bf16 %v6244, %v6241
      %v6687 = vpack.c.bf16 %v6252, %v6249
      %6688 = vmatprep.subr.bf16.mxu0 0
      %6689 = vmatpush1.bf16.msra.mxu0 %v6687
      %6690 = vmatprep.subr.bf16.mxu0 0
      %6691 = vmatpush1.bf16.msra.mxu0 %v6686
      %6692 = vmatprep.subr.bf16.mxu0 0
      %6693 = vmatpush1.bf16.msra.mxu0 %v6685
      %6694 = vmatprep.subr.bf16.mxu0 0
      %6695 = vmatpush1.bf16.msra.mxu0 %v6684
      %6696 = vmatprep.subr.bf16.mxu0 0
      %6697 = vmatpush1.bf16.msra.mxu0 %v6683
      %6698 = vmatprep.subr.bf16.mxu0 0
      %6699 = vmatpush1.bf16.msra.mxu0 %v6682
      %6700 = vmatprep.subr.bf16.mxu0 0
      %6701 = vmatpush1.bf16.msra.mxu0 %v6681
      %6702 = vmatprep.subr.bf16.mxu0 0
      %6703 = vmatpush1.bf16.msra.mxu0 %v6680
      %6704 = vmatprep.subr.bf16.mxu0 0
      %6705 = vmatpush2.bf16.msra.mxu0 0
      %6706 = vmatprep.subr.bf16.mxu0 0
      %6707 = vmatpush2.bf16.msra.mxu0 0
      %6708 = vmatprep.subr.bf16.mxu0 0
      %6709 = vmatpush2.bf16.msra.mxu0 0
      %6710 = vmatprep.subr.bf16.mxu0 0
      %6711 = vmatpush2.bf16.msra.mxu0 0
      %6712 = vmatprep.subr.bf16.mxu0 0
      %6713 = vmatpush2.bf16.msra.mxu0 0
      %6714 = vmatprep.subr.bf16.mxu0 0
      %6715 = vmatpush2.bf16.msra.mxu0 0
      %6716 = vmatprep.subr.bf16.mxu0 0
      %6717 = vmatpush2.bf16.msra.mxu0 0
      %6718 = vmatprep.subr.bf16.mxu0 0
      %6719 = vmatpush2.bf16.msra.mxu0 0
      %6720 = vmatprep.mubr.bf16.mxu0 0
      %6721 = vmatmul.mubr.bf16.gmra.mxu0 %v6672
      %v6722 = vpop.f32.mrf.mxu0
      %v6723 = vadd.f32 0.0, %v6722
      %v6724 = vpop.f32.mrf.mxu0
      %v6725 = vpop.f32.mrf.mxu0
      %v6726 = vadd.f32 0.0, %v6725
      %v6727 = vpop.f32.mrf.mxu0
      %6728 = vmatprep.mubr.bf16.mxu0 0
      %6729 = vmatmul.mubr.bf16.gmra.mxu0 %v6673
      %v6730 = vpop.f32.mrf.mxu0
      %v6731 = vadd.f32 0.0, %v6730
      %v6732 = vpop.f32.mrf.mxu0
      %v6733 = vpop.f32.mrf.mxu0
      %v6734 = vadd.f32 0.0, %v6733
      %v6735 = vpop.f32.mrf.mxu0
      %6736 = vmatprep.mubr.bf16.mxu0 0
      %6737 = vmatmul.mubr.bf16.gmra.mxu0 %v6674
      %v6738 = vpop.f32.mrf.mxu0
      %v6739 = vadd.f32 0.0, %v6738
      %v6740 = vpop.f32.mrf.mxu0
      %v6741 = vpop.f32.mrf.mxu0
      %v6742 = vadd.f32 0.0, %v6741
      %v6743 = vpop.f32.mrf.mxu0
      %6744 = vmatprep.mubr.bf16.mxu0 0
      %6745 = vmatmul.mubr.bf16.gmra.mxu0 %v6675
      %v6746 = vpop.f32.mrf.mxu0
      %v6747 = vadd.f32 0.0, %v6746
      %v6748 = vpop.f32.mrf.mxu0
      %v6749 = vpop.f32.mrf.mxu0
      %v6750 = vadd.f32 0.0, %v6749
      %v6751 = vpop.f32.mrf.mxu0
      %6752 = vmatprep.mubr.bf16.mxu0 0
      %6753 = vmatmul.mubr.bf16.gmra.mxu0 %v6676
      %v6754 = vpop.f32.mrf.mxu0
      %v6755 = vadd.f32 0.0, %v6754
      %v6756 = vpop.f32.mrf.mxu0
      %v6757 = vpop.f32.mrf.mxu0
      %v6758 = vadd.f32 0.0, %v6757
      %v6759 = vpop.f32.mrf.mxu0
      %6760 = vmatprep.mubr.bf16.mxu0 0
      %6761 = vmatmul.mubr.bf16.gmra.mxu0 %v6677
      %v6762 = vpop.f32.mrf.mxu0
      %v6763 = vadd.f32 0.0, %v6762
      %v6764 = vpop.f32.mrf.mxu0
      %v6765 = vpop.f32.mrf.mxu0
      %v6766 = vadd.f32 0.0, %v6765
      %v6767 = vpop.f32.mrf.mxu0
      %6768 = vmatprep.mubr.bf16.mxu0 0
      %6769 = vmatmul.mubr.bf16.gmra.mxu0 %v6678
      %v6770 = vpop.f32.mrf.mxu0
      %v6771 = vadd.f32 0.0, %v6770
      %v6772 = vpop.f32.mrf.mxu0
      %v6773 = vpop.f32.mrf.mxu0
      %v6774 = vadd.f32 0.0, %v6773
      %v6775 = vpop.f32.mrf.mxu0
      %6776 = vmatprep.mubr.bf16.mxu0 0
      %6777 = vmatmul.mubr.bf16.gmra.mxu0 %v6679
      %v6778 = vpop.f32.mrf.mxu0
      %v6779 = vadd.f32 0.0, %v6778
      %v6780 = vpop.f32.mrf.mxu0
      %v6781 = vpop.f32.mrf.mxu0
      %v6782 = vadd.f32 0.0, %v6781
      %v6783 = vpop.f32.mrf.mxu0
      %6784 = vdwg.mxu0
      %6785 = vrot.lane.b32.xlu0 %v6080, 96
      %v6786 = vpop.permute.xlu0 %6785
      %6787 = vrot.lane.b32.xlu0 %v6084, 96
      %v6788 = vpop.permute.xlu0 %6787
      %6789 = vrot.lane.b32.xlu0 %v6090, 96
      %v6790 = vpop.permute.xlu0 %6789
      %6791 = vrot.lane.b32.xlu0 %v6094, 96
      %v6792 = vpop.permute.xlu0 %6791
      %6793 = vrot.lane.b32.xlu0 %v6100, 96
      %v6794 = vpop.permute.xlu0 %6793
      %6795 = vrot.lane.b32.xlu0 %v6104, 96
      %v6796 = vpop.permute.xlu0 %6795
      %6797 = vrot.lane.b32.xlu0 %v6110, 96
      %v6798 = vpop.permute.xlu0 %6797
      %6799 = vrot.lane.b32.xlu0 %v6114, 96
      %v6800 = vpop.permute.xlu0 %6799
      %6801 = vrot.lane.b32.xlu0 %v6120, 96
      %v6802 = vpop.permute.xlu0 %6801
      %6803 = vrot.lane.b32.xlu0 %v6124, 96
      %v6804 = vpop.permute.xlu0 %6803
      %6805 = vrot.lane.b32.xlu0 %v6130, 96
      %v6806 = vpop.permute.xlu0 %6805
      %6807 = vrot.lane.b32.xlu0 %v6134, 96
      %v6808 = vpop.permute.xlu0 %6807
      %6809 = vrot.lane.b32.xlu0 %v6140, 96
      %v6810 = vpop.permute.xlu0 %6809
      %6811 = vrot.lane.b32.xlu0 %v6144, 96
      %v6812 = vpop.permute.xlu0 %6811
      %6813 = vrot.lane.b32.xlu0 %v6150, 96
      %v6814 = vpop.permute.xlu0 %6813
      %6815 = vrot.lane.b32.xlu0 %v6154, 96
      %v6816 = vpop.permute.xlu0 %6815
      %6817 = vrot.lane.b32.xlu0 %v6082, 96
      %v6818 = vpop.permute.xlu0 %6817
      %6819 = vrot.lane.b32.xlu0 %v6086, 96
      %v6820 = vpop.permute.xlu0 %6819
      %6821 = vrot.lane.b32.xlu0 %v6092, 96
      %v6822 = vpop.permute.xlu0 %6821
      %6823 = vrot.lane.b32.xlu0 %v6096, 96
      %v6824 = vpop.permute.xlu0 %6823
      %6825 = vrot.lane.b32.xlu0 %v6102, 96
      %v6826 = vpop.permute.xlu0 %6825
      %6827 = vrot.lane.b32.xlu0 %v6106, 96
      %v6828 = vpop.permute.xlu0 %6827
      %6829 = vrot.lane.b32.xlu0 %v6112, 96
      %v6830 = vpop.permute.xlu0 %6829
      %6831 = vrot.lane.b32.xlu0 %v6116, 96
      %v6832 = vpop.permute.xlu0 %6831
      %6833 = vrot.lane.b32.xlu0 %v6122, 96
      %v6834 = vpop.permute.xlu0 %6833
      %6835 = vrot.lane.b32.xlu0 %v6126, 96
      %v6836 = vpop.permute.xlu0 %6835
      %6837 = vrot.lane.b32.xlu0 %v6132, 96
      %v6838 = vpop.permute.xlu0 %6837
      %6839 = vrot.lane.b32.xlu0 %v6136, 96
      %v6840 = vpop.permute.xlu0 %6839
      %6841 = vrot.lane.b32.xlu0 %v6142, 96
      %v6842 = vpop.permute.xlu0 %6841
      %6843 = vrot.lane.b32.xlu0 %v6146, 96
      %v6844 = vpop.permute.xlu0 %6843
      %6845 = vrot.lane.b32.xlu0 %v6152, 96
      %v6846 = vpop.permute.xlu0 %6845
      %6847 = vrot.lane.b32.xlu0 %v6156, 96
      %v6848 = vpop.permute.xlu0 %6847
      %v6849 = vsel %vm1172, %v6786, 0
      %v6851 = vsel %vm1172, %v6788, 0
      %v6853 = vsel %vm1172, %v6790, 0
      %v6855 = vsel %vm1172, %v6792, 0
      %v6857 = vsel %vm1172, %v6794, 0
      %v6859 = vsel %vm1172, %v6796, 0
      %v6861 = vsel %vm1172, %v6798, 0
      %v6863 = vsel %vm1172, %v6800, 0
      %v6865 = vsel %vm1172, %v6802, 0
      %v6867 = vsel %vm1172, %v6804, 0
      %v6869 = vsel %vm1172, %v6806, 0
      %v6871 = vsel %vm1172, %v6808, 0
      %v6873 = vsel %vm1172, %v6810, 0
      %v6875 = vsel %vm1172, %v6812, 0
      %v6877 = vsel %vm1172, %v6814, 0
      %v6879 = vsel %vm1172, %v6816, 0
      %v6881 = vsel %vm1172, %v6818, 0
      %v6883 = vsel %vm1172, %v6820, 0
      %v6885 = vsel %vm1172, %v6822, 0
      %v6887 = vsel %vm1172, %v6824, 0
      %v6889 = vsel %vm1172, %v6826, 0
      %v6891 = vsel %vm1172, %v6828, 0
      %v6893 = vsel %vm1172, %v6830, 0
      %v6895 = vsel %vm1172, %v6832, 0
      %v6897 = vsel %vm1172, %v6834, 0
      %v6899 = vsel %vm1172, %v6836, 0
      %v6901 = vsel %vm1172, %v6838, 0
      %v6903 = vsel %vm1172, %v6840, 0
      %v6905 = vsel %vm1172, %v6842, 0
      %v6907 = vsel %vm1172, %v6844, 0
      %v6909 = vsel %vm1172, %v6846, 0
      %v6911 = vsel %vm1172, %v6848, 0
      %6913 = vmatprep.subr.mxu0 0.0
      %6914 = vmatpush1.xpose.msra.mxu0 %v6911
      %6915 = vmatprep.subr.mxu0 0.0
      %6916 = vmatpush1.xpose.msra.mxu0 %v6909
      %6917 = vmatprep.subr.mxu0 0.0
      %6918 = vmatpush1.xpose.msra.mxu0 %v6907
      %6919 = vmatprep.subr.mxu0 0.0
      %6920 = vmatpush1.xpose.msra.mxu0 %v6905
      %6921 = vmatprep.subr.mxu0 0.0
      %6922 = vmatpush1.xpose.msra.mxu0 %v6903
      %6923 = vmatprep.subr.mxu0 0.0
      %6924 = vmatpush1.xpose.msra.mxu0 %v6901
      %6925 = vmatprep.subr.mxu0 0.0
      %6926 = vmatpush1.xpose.msra.mxu0 %v6899
      %6927 = vmatprep.subr.mxu0 0.0
      %6928 = vmatpush1.xpose.msra.mxu0 %v6897
      %6929 = vmatprep.subr.mxu0 0.0
      %6930 = vmatpush1.xpose.msra.mxu0 %v6895
      %6931 = vmatprep.subr.mxu0 0.0
      %6932 = vmatpush1.xpose.msra.mxu0 %v6893
      %6933 = vmatprep.subr.mxu0 0.0
      %6934 = vmatpush1.xpose.msra.mxu0 %v6891
      %6935 = vmatprep.subr.mxu0 0.0
      %6936 = vmatpush1.xpose.msra.mxu0 %v6889
      %6937 = vmatprep.subr.mxu0 0.0
      %6938 = vmatpush1.xpose.msra.mxu0 %v6887
      %6939 = vmatprep.subr.mxu0 0.0
      %6940 = vmatpush1.xpose.msra.mxu0 %v6885
      %6941 = vmatprep.subr.mxu0 0.0
      %6942 = vmatpush1.xpose.msra.mxu0 %v6883
      %6943 = vmatprep.subr.mxu0 0.0
      %6944 = vmatpush1.xpose.msra.mxu0 %v6881
      %6945 = vmatprep.subr.mxu0 0.0
      %6946 = vmatpush2.xpose.msra.mxu0 0.0
      %6947 = vmatprep.subr.mxu0 0.0
      %6948 = vmatpush2.xpose.msra.mxu0 0.0
      %6949 = vmatprep.subr.mxu0 0.0
      %6950 = vmatpush2.xpose.msra.mxu0 0.0
      %6951 = vmatprep.subr.mxu0 0.0
      %6952 = vmatpush2.xpose.msra.mxu0 0.0
      %6953 = vmatprep.subr.mxu0 0.0
      %6954 = vmatpush2.xpose.msra.mxu0 0.0
      %6955 = vmatprep.subr.mxu0 0.0
      %6956 = vmatpush2.xpose.msra.mxu0 0.0
      %6957 = vmatprep.subr.mxu0 0.0
      %6958 = vmatpush2.xpose.msra.mxu0 0.0
      %6959 = vmatprep.subr.mxu0 0.0
      %6960 = vmatpush2.xpose.msra.mxu0 0.0
      %6961 = vmatprep.subr.mxu0 0.0
      %6962 = vmatpush2.xpose.msra.mxu0 0.0
      %6963 = vmatprep.subr.mxu0 0.0
      %6964 = vmatpush2.xpose.msra.mxu0 0.0
      %6965 = vmatprep.subr.mxu0 0.0
      %6966 = vmatpush2.xpose.msra.mxu0 0.0
      %6967 = vmatprep.subr.mxu0 0.0
      %6968 = vmatpush2.xpose.msra.mxu0 0.0
      %6969 = vmatprep.subr.mxu0 0.0
      %6970 = vmatpush2.xpose.msra.mxu0 0.0
      %6971 = vmatprep.subr.mxu0 0.0
      %6972 = vmatpush2.xpose.msra.mxu0 0.0
      %6973 = vmatprep.subr.mxu0 0.0
      %6974 = vmatpush2.xpose.msra.mxu0 0.0
      %6975 = vmatprep.subr.mxu0 0.0
      %6976 = vmatpush2.xpose.msra.mxu0 0.0
      %6977 = vmatprep.mubr.f32.mxu0 0.0
      %6978 = vmatmul.mubr.f32.gmra.mxu0 %v6849
      %v6979 = vpop.f32.mrf.mxu0
      %v6980 = vadd.f32 0.0, %v6979
      %v6981 = vpop.f32.mrf.mxu0
      %6982 = vmatprep.mubr.f32.mxu0 0.0
      %6983 = vmatmul.mubr.f32.gmra.mxu0 %v6851
      %v6984 = vpop.f32.mrf.mxu0
      %v6985 = vadd.f32 0.0, %v6984
      %v6986 = vpop.f32.mrf.mxu0
      %6987 = vmatprep.mubr.f32.mxu0 0.0
      %6988 = vmatmul.mubr.f32.gmra.mxu0 %v6853
      %v6989 = vpop.f32.mrf.mxu0
      %v6990 = vadd.f32 0.0, %v6989
      %v6991 = vpop.f32.mrf.mxu0
      %6992 = vmatprep.mubr.f32.mxu0 0.0
      %6993 = vmatmul.mubr.f32.gmra.mxu0 %v6855
      %v6994 = vpop.f32.mrf.mxu0
      %v6995 = vadd.f32 0.0, %v6994
      %v6996 = vpop.f32.mrf.mxu0
      %6997 = vmatprep.mubr.f32.mxu0 0.0
      %6998 = vmatmul.mubr.f32.gmra.mxu0 %v6857
      %v6999 = vpop.f32.mrf.mxu0
      %v7000 = vadd.f32 0.0, %v6999
      %v7001 = vpop.f32.mrf.mxu0
      %7002 = vmatprep.mubr.f32.mxu0 0.0
      %7003 = vmatmul.mubr.f32.gmra.mxu0 %v6859
      %v7004 = vpop.f32.mrf.mxu0
      %v7005 = vadd.f32 0.0, %v7004
      %v7006 = vpop.f32.mrf.mxu0
      %7007 = vmatprep.mubr.f32.mxu0 0.0
      %7008 = vmatmul.mubr.f32.gmra.mxu0 %v6861
      %v7009 = vpop.f32.mrf.mxu0
      %v7010 = vadd.f32 0.0, %v7009
      %v7011 = vpop.f32.mrf.mxu0
      %7012 = vmatprep.mubr.f32.mxu0 0.0
      %7013 = vmatmul.mubr.f32.gmra.mxu0 %v6863
      %v7014 = vpop.f32.mrf.mxu0
      %v7015 = vadd.f32 0.0, %v7014
      %v7016 = vpop.f32.mrf.mxu0
      %7017 = vmatprep.mubr.f32.mxu0 0.0
      %7018 = vmatmul.mubr.f32.gmra.mxu0 %v6865
      %v7019 = vpop.f32.mrf.mxu0
      %v7020 = vadd.f32 0.0, %v7019
      %v7021 = vpop.f32.mrf.mxu0
      %7022 = vmatprep.mubr.f32.mxu0 0.0
      %7023 = vmatmul.mubr.f32.gmra.mxu0 %v6867
      %v7024 = vpop.f32.mrf.mxu0
      %v7025 = vadd.f32 0.0, %v7024
      %v7026 = vpop.f32.mrf.mxu0
      %7027 = vmatprep.mubr.f32.mxu0 0.0
      %7028 = vmatmul.mubr.f32.gmra.mxu0 %v6869
      %v7029 = vpop.f32.mrf.mxu0
      %v7030 = vadd.f32 0.0, %v7029
      %v7031 = vpop.f32.mrf.mxu0
      %7032 = vmatprep.mubr.f32.mxu0 0.0
      %7033 = vmatmul.mubr.f32.gmra.mxu0 %v6871
      %v7034 = vpop.f32.mrf.mxu0
      %v7035 = vadd.f32 0.0, %v7034
      %v7036 = vpop.f32.mrf.mxu0
      %7037 = vmatprep.mubr.f32.mxu0 0.0
      %7038 = vmatmul.mubr.f32.gmra.mxu0 %v6873
      %v7039 = vpop.f32.mrf.mxu0
      %v7040 = vadd.f32 0.0, %v7039
      %v7041 = vpop.f32.mrf.mxu0
      %7042 = vmatprep.mubr.f32.mxu0 0.0
      %7043 = vmatmul.mubr.f32.gmra.mxu0 %v6875
      %v7044 = vpop.f32.mrf.mxu0
      %v7045 = vadd.f32 0.0, %v7044
      %v7046 = vpop.f32.mrf.mxu0
      %7047 = vmatprep.mubr.f32.mxu0 0.0
      %7048 = vmatmul.mubr.f32.gmra.mxu0 %v6877
      %v7049 = vpop.f32.mrf.mxu0
      %v7050 = vadd.f32 0.0, %v7049
      %v7051 = vpop.f32.mrf.mxu0
      %7052 = vmatprep.mubr.f32.mxu0 0.0
      %7053 = vmatmul.mubr.f32.gmra.mxu0 %v6879
      %v7054 = vpop.f32.mrf.mxu0
      %v7055 = vadd.f32 0.0, %v7054
      %v7056 = vpop.f32.mrf.mxu0
      %7057 = vdwg.mxu0
      %v7058 = vmul.f32 %v6980, 0.17677669
      %v7059 = vmul.f32 %v6985, 0.17677669
      %v7060 = vmul.f32 %v6990, 0.17677669
      %v7061 = vmul.f32 %v6995, 0.17677669
      %v7062 = vmul.f32 %v7000, 0.17677669
      %v7063 = vmul.f32 %v7005, 0.17677669
      %v7064 = vmul.f32 %v7010, 0.17677669
      %v7065 = vmul.f32 %v7015, 0.17677669
      %v7066 = vmul.f32 %v7020, 0.17677669
      %v7067 = vmul.f32 %v7025, 0.17677669
      %v7068 = vmul.f32 %v7030, 0.17677669
      %v7069 = vmul.f32 %v7035, 0.17677669
      %v7070 = vmul.f32 %v7040, 0.17677669
      %v7071 = vmul.f32 %v7045, 0.17677669
      %v7072 = vmul.f32 %v7050, 0.17677669
      %v7073 = vmul.f32 %v7055, 0.17677669
      %v7074 = vadd.f32 %v7058, %v1434
      %v7075 = vadd.f32 %v7059, %v1434
      %v7076 = vadd.f32 %v7060, %v1434
      %v7077 = vadd.f32 %v7061, %v1434
      %v7078 = vadd.f32 %v7062, %v1434
      %v7079 = vadd.f32 %v7063, %v1434
      %v7080 = vadd.f32 %v7064, %v1434
      %v7081 = vadd.f32 %v7065, %v1434
      %v7082 = vadd.f32 %v7066, %v1434
      %v7083 = vadd.f32 %v7067, %v1434
      %v7084 = vadd.f32 %v7068, %v1434
      %v7085 = vadd.f32 %v7069, %v1434
      %v7086 = vadd.f32 %v7070, %v1434
      %v7087 = vadd.f32 %v7071, %v1434
      %v7088 = vadd.f32 %v7072, %v1434
      %v7089 = vadd.f32 %v7073, %v1434
      %7090 = vmax.xlane.f32.xlu0 %v7074
      %v7091 = vpop.xlane.xlu0 %7090
      %7092 = vmax.xlane.f32.xlu0 %v7075
      %v7093 = vpop.xlane.xlu0 %7092
      %7094 = vmax.xlane.f32.xlu0 %v7076
      %v7095 = vpop.xlane.xlu0 %7094
      %7096 = vmax.xlane.f32.xlu0 %v7077
      %v7097 = vpop.xlane.xlu0 %7096
      %7098 = vmax.xlane.f32.xlu0 %v7078
      %v7099 = vpop.xlane.xlu0 %7098
      %7100 = vmax.xlane.f32.xlu0 %v7079
      %v7101 = vpop.xlane.xlu0 %7100
      %7102 = vmax.xlane.f32.xlu0 %v7080
      %v7103 = vpop.xlane.xlu0 %7102
      %7104 = vmax.xlane.f32.xlu0 %v7081
      %v7105 = vpop.xlane.xlu0 %7104
      %7106 = vmax.xlane.f32.xlu0 %v7082
      %v7107 = vpop.xlane.xlu0 %7106
      %7108 = vmax.xlane.f32.xlu0 %v7083
      %v7109 = vpop.xlane.xlu0 %7108
      %7110 = vmax.xlane.f32.xlu0 %v7084
      %v7111 = vpop.xlane.xlu0 %7110
      %7112 = vmax.xlane.f32.xlu0 %v7085
      %v7113 = vpop.xlane.xlu0 %7112
      %7114 = vmax.xlane.f32.xlu0 %v7086
      %v7115 = vpop.xlane.xlu0 %7114
      %7116 = vmax.xlane.f32.xlu0 %v7087
      %v7117 = vpop.xlane.xlu0 %7116
      %7118 = vmax.xlane.f32.xlu0 %v7088
      %v7119 = vpop.xlane.xlu0 %7118
      %7120 = vmax.xlane.f32.xlu0 %v7089
      %v7121 = vpop.xlane.xlu0 %7120
      %v7122 = vsub.f32 %v7074, %v7091
      %v7123 = vsub.f32 %v7075, %v7093
      %v7124 = vsub.f32 %v7076, %v7095
      %v7125 = vsub.f32 %v7077, %v7097
      %v7126 = vsub.f32 %v7078, %v7099
      %v7127 = vsub.f32 %v7079, %v7101
      %v7128 = vsub.f32 %v7080, %v7103
      %v7129 = vsub.f32 %v7081, %v7105
      %v7130 = vsub.f32 %v7082, %v7107
      %v7131 = vsub.f32 %v7083, %v7109
      %v7132 = vsub.f32 %v7084, %v7111
      %v7133 = vsub.f32 %v7085, %v7113
      %v7134 = vsub.f32 %v7086, %v7115
      %v7135 = vsub.f32 %v7087, %v7117
      %v7136 = vsub.f32 %v7088, %v7119
      %v7137 = vsub.f32 %v7089, %v7121
      %v7138 = vmul.f32 %v7122, 1.442695
      %v7139 = vpow.pop %v7138
      %v7140 = vmul.f32 %v7123, 1.442695
      %v7141 = vpow.pop %v7140
      %v7142 = vmul.f32 %v7124, 1.442695
      %v7143 = vpow.pop %v7142
      %v7144 = vmul.f32 %v7125, 1.442695
      %v7145 = vpow.pop %v7144
      %v7146 = vmul.f32 %v7126, 1.442695
      %v7147 = vpow.pop %v7146
      %v7148 = vmul.f32 %v7127, 1.442695
      %v7149 = vpow.pop %v7148
      %v7150 = vmul.f32 %v7128, 1.442695
      %v7151 = vpow.pop %v7150
      %v7152 = vmul.f32 %v7129, 1.442695
      %v7153 = vpow.pop %v7152
      %v7154 = vmul.f32 %v7130, 1.442695
      %v7155 = vpow.pop %v7154
      %v7156 = vmul.f32 %v7131, 1.442695
      %v7157 = vpow.pop %v7156
      %v7158 = vmul.f32 %v7132, 1.442695
      %v7159 = vpow.pop %v7158
      %v7160 = vmul.f32 %v7133, 1.442695
      %v7161 = vpow.pop %v7160
      %v7162 = vmul.f32 %v7134, 1.442695
      %v7163 = vpow.pop %v7162
      %v7164 = vmul.f32 %v7135, 1.442695
      %v7165 = vpow.pop %v7164
      %v7166 = vmul.f32 %v7136, 1.442695
      %v7167 = vpow.pop %v7166
      %v7168 = vmul.f32 %v7137, 1.442695
      %v7169 = vpow.pop %v7168
      %7170 = vadd.xlane.f32.xlu0 %v7139
      %v7171 = vpop.xlane.xlu0 %7170
      %7172 = vadd.xlane.f32.xlu0 %v7141
      %v7173 = vpop.xlane.xlu0 %7172
      %7174 = vadd.xlane.f32.xlu0 %v7143
      %v7175 = vpop.xlane.xlu0 %7174
      %7176 = vadd.xlane.f32.xlu0 %v7145
      %v7177 = vpop.xlane.xlu0 %7176
      %7178 = vadd.xlane.f32.xlu0 %v7147
      %v7179 = vpop.xlane.xlu0 %7178
      %7180 = vadd.xlane.f32.xlu0 %v7149
      %v7181 = vpop.xlane.xlu0 %7180
      %7182 = vadd.xlane.f32.xlu0 %v7151
      %v7183 = vpop.xlane.xlu0 %7182
      %7184 = vadd.xlane.f32.xlu0 %v7153
      %v7185 = vpop.xlane.xlu0 %7184
      %7186 = vadd.xlane.f32.xlu0 %v7155
      %v7187 = vpop.xlane.xlu0 %7186
      %7188 = vadd.xlane.f32.xlu0 %v7157
      %v7189 = vpop.xlane.xlu0 %7188
      %7190 = vadd.xlane.f32.xlu0 %v7159
      %v7191 = vpop.xlane.xlu0 %7190
      %7192 = vadd.xlane.f32.xlu0 %v7161
      %v7193 = vpop.xlane.xlu0 %7192
      %7194 = vadd.xlane.f32.xlu0 %v7163
      %v7195 = vpop.xlane.xlu0 %7194
      %7196 = vadd.xlane.f32.xlu0 %v7165
      %v7197 = vpop.xlane.xlu0 %7196
      %7198 = vadd.xlane.f32.xlu0 %v7167
      %v7199 = vpop.xlane.xlu0 %7198
      %7200 = vadd.xlane.f32.xlu0 %v7169
      %v7201 = vpop.xlane.xlu0 %7200
      %v7202 = vrcp.pop %v7171
      %v7203 = vrcp.pop %v7173
      %v7204 = vrcp.pop %v7175
      %v7205 = vrcp.pop %v7177
      %v7206 = vrcp.pop %v7179
      %v7207 = vrcp.pop %v7181
      %v7208 = vrcp.pop %v7183
      %v7209 = vrcp.pop %v7185
      %v7210 = vrcp.pop %v7187
      %v7211 = vrcp.pop %v7189
      %v7212 = vrcp.pop %v7191
      %v7213 = vrcp.pop %v7193
      %v7214 = vrcp.pop %v7195
      %v7215 = vrcp.pop %v7197
      %v7216 = vrcp.pop %v7199
      %v7217 = vrcp.pop %v7201
      %v7218 = vmul.f32 %v7139, %v7202
      %v7219 = vmul.f32 %v7141, %v7203
      %v7220 = vmul.f32 %v7143, %v7204
      %v7221 = vmul.f32 %v7145, %v7205
      %v7222 = vmul.f32 %v7147, %v7206
      %v7223 = vmul.f32 %v7149, %v7207
      %v7224 = vmul.f32 %v7151, %v7208
      %v7225 = vmul.f32 %v7153, %v7209
      %v7226 = vmul.f32 %v7155, %v7210
      %v7227 = vmul.f32 %v7157, %v7211
      %v7228 = vmul.f32 %v7159, %v7212
      %v7229 = vmul.f32 %v7161, %v7213
      %v7230 = vmul.f32 %v7163, %v7214
      %v7231 = vmul.f32 %v7165, %v7215
      %v7232 = vmul.f32 %v7167, %v7216
      %v7233 = vmul.f32 %v7169, %v7217
      %v7234 = vpack.c.bf16 %v7219, %v7218
      %v7235 = vpack.c.bf16 %v7221, %v7220
      %v7236 = vpack.c.bf16 %v7223, %v7222
      %v7237 = vpack.c.bf16 %v7225, %v7224
      %v7238 = vpack.c.bf16 %v7227, %v7226
      %v7239 = vpack.c.bf16 %v7229, %v7228
      %v7240 = vpack.c.bf16 %v7231, %v7230
      %v7241 = vpack.c.bf16 %v7233, %v7232
      %7250 = vrot.lane.b32.xlu0 %v6680, 96
      %v7251 = vpop.permute.xlu0 %7250
      %7252 = vrot.lane.b32.xlu0 %v6681, 96
      %v7253 = vpop.permute.xlu0 %7252
      %7254 = vrot.lane.b32.xlu0 %v6682, 96
      %v7255 = vpop.permute.xlu0 %7254
      %7256 = vrot.lane.b32.xlu0 %v6683, 96
      %v7257 = vpop.permute.xlu0 %7256
      %7258 = vrot.lane.b32.xlu0 %v6684, 96
      %v7259 = vpop.permute.xlu0 %7258
      %7260 = vrot.lane.b32.xlu0 %v6685, 96
      %v7261 = vpop.permute.xlu0 %7260
      %7262 = vrot.lane.b32.xlu0 %v6686, 96
      %v7263 = vpop.permute.xlu0 %7262
      %7264 = vrot.lane.b32.xlu0 %v6687, 96
      %v7265 = vpop.permute.xlu0 %7264
      %7274 = vmatprep.subr.bf16.mxu0 0
      %7275 = vmatpush1.bf16.msra.mxu0 %v7265
      %7276 = vmatprep.subr.bf16.mxu0 0
      %7277 = vmatpush1.bf16.msra.mxu0 %v7263
      %7278 = vmatprep.subr.bf16.mxu0 0
      %7279 = vmatpush1.bf16.msra.mxu0 %v7261
      %7280 = vmatprep.subr.bf16.mxu0 0
      %7281 = vmatpush1.bf16.msra.mxu0 %v7259
      %7282 = vmatprep.subr.bf16.mxu0 0
      %7283 = vmatpush1.bf16.msra.mxu0 %v7257
      %7284 = vmatprep.subr.bf16.mxu0 0
      %7285 = vmatpush1.bf16.msra.mxu0 %v7255
      %7286 = vmatprep.subr.bf16.mxu0 0
      %7287 = vmatpush1.bf16.msra.mxu0 %v7253
      %7288 = vmatprep.subr.bf16.mxu0 0
      %7289 = vmatpush1.bf16.msra.mxu0 %v7251
      %7290 = vmatprep.subr.bf16.mxu0 0
      %7291 = vmatpush2.bf16.msra.mxu0 0
      %7292 = vmatprep.subr.bf16.mxu0 0
      %7293 = vmatpush2.bf16.msra.mxu0 0
      %7294 = vmatprep.subr.bf16.mxu0 0
      %7295 = vmatpush2.bf16.msra.mxu0 0
      %7296 = vmatprep.subr.bf16.mxu0 0
      %7297 = vmatpush2.bf16.msra.mxu0 0
      %7298 = vmatprep.subr.bf16.mxu0 0
      %7299 = vmatpush2.bf16.msra.mxu0 0
      %7300 = vmatprep.subr.bf16.mxu0 0
      %7301 = vmatpush2.bf16.msra.mxu0 0
      %7302 = vmatprep.subr.bf16.mxu0 0
      %7303 = vmatpush2.bf16.msra.mxu0 0
      %7304 = vmatprep.subr.bf16.mxu0 0
      %7305 = vmatpush2.bf16.msra.mxu0 0
      %7306 = vmatprep.mubr.bf16.mxu0 0
      %7307 = vmatmul.mubr.bf16.gmra.mxu0 %v7234
      %v7308 = vpop.f32.mrf.mxu0
      %v7309 = vadd.f32 0.0, %v7308
      %v7310 = vpop.f32.mrf.mxu0
      %v7311 = vpop.f32.mrf.mxu0
      %v7312 = vadd.f32 0.0, %v7311
      %v7313 = vpop.f32.mrf.mxu0
      %7314 = vmatprep.mubr.bf16.mxu0 0
      %7315 = vmatmul.mubr.bf16.gmra.mxu0 %v7235
      %v7316 = vpop.f32.mrf.mxu0
      %v7317 = vadd.f32 0.0, %v7316
      %v7318 = vpop.f32.mrf.mxu0
      %v7319 = vpop.f32.mrf.mxu0
      %v7320 = vadd.f32 0.0, %v7319
      %v7321 = vpop.f32.mrf.mxu0
      %7322 = vmatprep.mubr.bf16.mxu0 0
      %7323 = vmatmul.mubr.bf16.gmra.mxu0 %v7236
      %v7324 = vpop.f32.mrf.mxu0
      %v7325 = vadd.f32 0.0, %v7324
      %v7326 = vpop.f32.mrf.mxu0
      %v7327 = vpop.f32.mrf.mxu0
      %v7328 = vadd.f32 0.0, %v7327
      %v7329 = vpop.f32.mrf.mxu0
      %7330 = vmatprep.mubr.bf16.mxu0 0
      %7331 = vmatmul.mubr.bf16.gmra.mxu0 %v7237
      %v7332 = vpop.f32.mrf.mxu0
      %v7333 = vadd.f32 0.0, %v7332
      %v7334 = vpop.f32.mrf.mxu0
      %v7335 = vpop.f32.mrf.mxu0
      %v7336 = vadd.f32 0.0, %v7335
      %v7337 = vpop.f32.mrf.mxu0
      %7338 = vmatprep.mubr.bf16.mxu0 0
      %7339 = vmatmul.mubr.bf16.gmra.mxu0 %v7238
      %v7340 = vpop.f32.mrf.mxu0
      %v7341 = vadd.f32 0.0, %v7340
      %v7342 = vpop.f32.mrf.mxu0
      %v7343 = vpop.f32.mrf.mxu0
      %v7344 = vadd.f32 0.0, %v7343
      %v7345 = vpop.f32.mrf.mxu0
      %7346 = vmatprep.mubr.bf16.mxu0 0
      %7347 = vmatmul.mubr.bf16.gmra.mxu0 %v7239
      %v7348 = vpop.f32.mrf.mxu0
      %v7349 = vadd.f32 0.0, %v7348
      %v7350 = vpop.f32.mrf.mxu0
      %v7351 = vpop.f32.mrf.mxu0
      %v7352 = vadd.f32 0.0, %v7351
      %v7353 = vpop.f32.mrf.mxu0
      %7354 = vmatprep.mubr.bf16.mxu0 0
      %7355 = vmatmul.mubr.bf16.gmra.mxu0 %v7240
      %v7356 = vpop.f32.mrf.mxu0
      %v7357 = vadd.f32 0.0, %v7356
      %v7358 = vpop.f32.mrf.mxu0
      %v7359 = vpop.f32.mrf.mxu0
      %v7360 = vadd.f32 0.0, %v7359
      %v7361 = vpop.f32.mrf.mxu0
      %7362 = vmatprep.mubr.bf16.mxu0 0
      %7363 = vmatmul.mubr.bf16.gmra.mxu0 %v7241
      %v7364 = vpop.f32.mrf.mxu0
      %v7365 = vadd.f32 0.0, %v7364
      %v7366 = vpop.f32.mrf.mxu0
      %v7367 = vpop.f32.mrf.mxu0
      %v7368 = vadd.f32 0.0, %v7367
      %v7369 = vpop.f32.mrf.mxu0
      %7370 = vdwg.mxu0
      %7371 = vrot.lane.b32.xlu0 %v6080, 64
      %v7372 = vpop.permute.xlu0 %7371
      %7373 = vrot.lane.b32.xlu0 %v6084, 64
      %v7374 = vpop.permute.xlu0 %7373
      %7375 = vrot.lane.b32.xlu0 %v6090, 64
      %v7376 = vpop.permute.xlu0 %7375
      %7377 = vrot.lane.b32.xlu0 %v6094, 64
      %v7378 = vpop.permute.xlu0 %7377
      %7379 = vrot.lane.b32.xlu0 %v6100, 64
      %v7380 = vpop.permute.xlu0 %7379
      %7381 = vrot.lane.b32.xlu0 %v6104, 64
      %v7382 = vpop.permute.xlu0 %7381
      %7383 = vrot.lane.b32.xlu0 %v6110, 64
      %v7384 = vpop.permute.xlu0 %7383
      %7385 = vrot.lane.b32.xlu0 %v6114, 64
      %v7386 = vpop.permute.xlu0 %7385
      %7387 = vrot.lane.b32.xlu0 %v6120, 64
      %v7388 = vpop.permute.xlu0 %7387
      %7389 = vrot.lane.b32.xlu0 %v6124, 64
      %v7390 = vpop.permute.xlu0 %7389
      %7391 = vrot.lane.b32.xlu0 %v6130, 64
      %v7392 = vpop.permute.xlu0 %7391
      %7393 = vrot.lane.b32.xlu0 %v6134, 64
      %v7394 = vpop.permute.xlu0 %7393
      %7395 = vrot.lane.b32.xlu0 %v6140, 64
      %v7396 = vpop.permute.xlu0 %7395
      %7397 = vrot.lane.b32.xlu0 %v6144, 64
      %v7398 = vpop.permute.xlu0 %7397
      %7399 = vrot.lane.b32.xlu0 %v6150, 64
      %v7400 = vpop.permute.xlu0 %7399
      %7401 = vrot.lane.b32.xlu0 %v6154, 64
      %v7402 = vpop.permute.xlu0 %7401
      %7403 = vrot.lane.b32.xlu0 %v6082, 64
      %v7404 = vpop.permute.xlu0 %7403
      %7405 = vrot.lane.b32.xlu0 %v6086, 64
      %v7406 = vpop.permute.xlu0 %7405
      %7407 = vrot.lane.b32.xlu0 %v6092, 64
      %v7408 = vpop.permute.xlu0 %7407
      %7409 = vrot.lane.b32.xlu0 %v6096, 64
      %v7410 = vpop.permute.xlu0 %7409
      %7411 = vrot.lane.b32.xlu0 %v6102, 64
      %v7412 = vpop.permute.xlu0 %7411
      %7413 = vrot.lane.b32.xlu0 %v6106, 64
      %v7414 = vpop.permute.xlu0 %7413
      %7415 = vrot.lane.b32.xlu0 %v6112, 64
      %v7416 = vpop.permute.xlu0 %7415
      %7417 = vrot.lane.b32.xlu0 %v6116, 64
      %v7418 = vpop.permute.xlu0 %7417
      %7419 = vrot.lane.b32.xlu0 %v6122, 64
      %v7420 = vpop.permute.xlu0 %7419
      %7421 = vrot.lane.b32.xlu0 %v6126, 64
      %v7422 = vpop.permute.xlu0 %7421
      %7423 = vrot.lane.b32.xlu0 %v6132, 64
      %v7424 = vpop.permute.xlu0 %7423
      %7425 = vrot.lane.b32.xlu0 %v6136, 64
      %v7426 = vpop.permute.xlu0 %7425
      %7427 = vrot.lane.b32.xlu0 %v6142, 64
      %v7428 = vpop.permute.xlu0 %7427
      %7429 = vrot.lane.b32.xlu0 %v6146, 64
      %v7430 = vpop.permute.xlu0 %7429
      %7431 = vrot.lane.b32.xlu0 %v6152, 64
      %v7432 = vpop.permute.xlu0 %7431
      %7433 = vrot.lane.b32.xlu0 %v6156, 64
      %v7434 = vpop.permute.xlu0 %7433
      %v7435 = vsel %vm1172, %v7372, 0
      %v7437 = vsel %vm1172, %v7374, 0
      %v7439 = vsel %vm1172, %v7376, 0
      %v7441 = vsel %vm1172, %v7378, 0
      %v7443 = vsel %vm1172, %v7380, 0
      %v7445 = vsel %vm1172, %v7382, 0
      %v7447 = vsel %vm1172, %v7384, 0
      %v7449 = vsel %vm1172, %v7386, 0
      %v7451 = vsel %vm1172, %v7388, 0
      %v7453 = vsel %vm1172, %v7390, 0
      %v7455 = vsel %vm1172, %v7392, 0
      %v7457 = vsel %vm1172, %v7394, 0
      %v7459 = vsel %vm1172, %v7396, 0
      %v7461 = vsel %vm1172, %v7398, 0
      %v7463 = vsel %vm1172, %v7400, 0
      %v7465 = vsel %vm1172, %v7402, 0
      %v7467 = vsel %vm1172, %v7404, 0
      %v7469 = vsel %vm1172, %v7406, 0
      %v7471 = vsel %vm1172, %v7408, 0
      %v7473 = vsel %vm1172, %v7410, 0
      %v7475 = vsel %vm1172, %v7412, 0
      %v7477 = vsel %vm1172, %v7414, 0
      %v7479 = vsel %vm1172, %v7416, 0
      %v7481 = vsel %vm1172, %v7418, 0
      %v7483 = vsel %vm1172, %v7420, 0
      %v7485 = vsel %vm1172, %v7422, 0
      %v7487 = vsel %vm1172, %v7424, 0
      %v7489 = vsel %vm1172, %v7426, 0
      %v7491 = vsel %vm1172, %v7428, 0
      %v7493 = vsel %vm1172, %v7430, 0
      %v7495 = vsel %vm1172, %v7432, 0
      %v7497 = vsel %vm1172, %v7434, 0
      %7499 = vmatprep.subr.mxu0 0.0
      %7500 = vmatpush1.xpose.msra.mxu0 %v7497
      %7501 = vmatprep.subr.mxu0 0.0
      %7502 = vmatpush1.xpose.msra.mxu0 %v7495
      %7503 = vmatprep.subr.mxu0 0.0
      %7504 = vmatpush1.xpose.msra.mxu0 %v7493
      %7505 = vmatprep.subr.mxu0 0.0
      %7506 = vmatpush1.xpose.msra.mxu0 %v7491
      %7507 = vmatprep.subr.mxu0 0.0
      %7508 = vmatpush1.xpose.msra.mxu0 %v7489
      %7509 = vmatprep.subr.mxu0 0.0
      %7510 = vmatpush1.xpose.msra.mxu0 %v7487
      %7511 = vmatprep.subr.mxu0 0.0
      %7512 = vmatpush1.xpose.msra.mxu0 %v7485
      %7513 = vmatprep.subr.mxu0 0.0
      %7514 = vmatpush1.xpose.msra.mxu0 %v7483
      %7515 = vmatprep.subr.mxu0 0.0
      %7516 = vmatpush1.xpose.msra.mxu0 %v7481
      %7517 = vmatprep.subr.mxu0 0.0
      %7518 = vmatpush1.xpose.msra.mxu0 %v7479
      %7519 = vmatprep.subr.mxu0 0.0
      %7520 = vmatpush1.xpose.msra.mxu0 %v7477
      %7521 = vmatprep.subr.mxu0 0.0
      %7522 = vmatpush1.xpose.msra.mxu0 %v7475
      %7523 = vmatprep.subr.mxu0 0.0
      %7524 = vmatpush1.xpose.msra.mxu0 %v7473
      %7525 = vmatprep.subr.mxu0 0.0
      %7526 = vmatpush1.xpose.msra.mxu0 %v7471
      %7527 = vmatprep.subr.mxu0 0.0
      %7528 = vmatpush1.xpose.msra.mxu0 %v7469
      %7529 = vmatprep.subr.mxu0 0.0
      %7530 = vmatpush1.xpose.msra.mxu0 %v7467
      %7531 = vmatprep.subr.mxu0 0.0
      %7532 = vmatpush2.xpose.msra.mxu0 0.0
      %7533 = vmatprep.subr.mxu0 0.0
      %7534 = vmatpush2.xpose.msra.mxu0 0.0
      %7535 = vmatprep.subr.mxu0 0.0
      %7536 = vmatpush2.xpose.msra.mxu0 0.0
      %7537 = vmatprep.subr.mxu0 0.0
      %7538 = vmatpush2.xpose.msra.mxu0 0.0
      %7539 = vmatprep.subr.mxu0 0.0
      %7540 = vmatpush2.xpose.msra.mxu0 0.0
      %7541 = vmatprep.subr.mxu0 0.0
      %7542 = vmatpush2.xpose.msra.mxu0 0.0
      %7543 = vmatprep.subr.mxu0 0.0
      %7544 = vmatpush2.xpose.msra.mxu0 0.0
      %7545 = vmatprep.subr.mxu0 0.0
      %7546 = vmatpush2.xpose.msra.mxu0 0.0
      %7547 = vmatprep.subr.mxu0 0.0
      %7548 = vmatpush2.xpose.msra.mxu0 0.0
      %7549 = vmatprep.subr.mxu0 0.0
      %7550 = vmatpush2.xpose.msra.mxu0 0.0
      %7551 = vmatprep.subr.mxu0 0.0
      %7552 = vmatpush2.xpose.msra.mxu0 0.0
      %7553 = vmatprep.subr.mxu0 0.0
      %7554 = vmatpush2.xpose.msra.mxu0 0.0
      %7555 = vmatprep.subr.mxu0 0.0
      %7556 = vmatpush2.xpose.msra.mxu0 0.0
      %7557 = vmatprep.subr.mxu0 0.0
      %7558 = vmatpush2.xpose.msra.mxu0 0.0
      %7559 = vmatprep.subr.mxu0 0.0
      %7560 = vmatpush2.xpose.msra.mxu0 0.0
      %7561 = vmatprep.subr.mxu0 0.0
      %7562 = vmatpush2.xpose.msra.mxu0 0.0
      %7563 = vmatprep.mubr.f32.mxu0 0.0
      %7564 = vmatmul.mubr.f32.gmra.mxu0 %v7435
      %v7565 = vpop.f32.mrf.mxu0
      %v7566 = vadd.f32 0.0, %v7565
      %v7567 = vpop.f32.mrf.mxu0
      %7568 = vmatprep.mubr.f32.mxu0 0.0
      %7569 = vmatmul.mubr.f32.gmra.mxu0 %v7437
      %v7570 = vpop.f32.mrf.mxu0
      %v7571 = vadd.f32 0.0, %v7570
      %v7572 = vpop.f32.mrf.mxu0
      %7573 = vmatprep.mubr.f32.mxu0 0.0
      %7574 = vmatmul.mubr.f32.gmra.mxu0 %v7439
      %v7575 = vpop.f32.mrf.mxu0
      %v7576 = vadd.f32 0.0, %v7575
      %v7577 = vpop.f32.mrf.mxu0
      %7578 = vmatprep.mubr.f32.mxu0 0.0
      %7579 = vmatmul.mubr.f32.gmra.mxu0 %v7441
      %v7580 = vpop.f32.mrf.mxu0
      %v7581 = vadd.f32 0.0, %v7580
      %v7582 = vpop.f32.mrf.mxu0
      %7583 = vmatprep.mubr.f32.mxu0 0.0
      %7584 = vmatmul.mubr.f32.gmra.mxu0 %v7443
      %v7585 = vpop.f32.mrf.mxu0
      %v7586 = vadd.f32 0.0, %v7585
      %v7587 = vpop.f32.mrf.mxu0
      %7588 = vmatprep.mubr.f32.mxu0 0.0
      %7589 = vmatmul.mubr.f32.gmra.mxu0 %v7445
      %v7590 = vpop.f32.mrf.mxu0
      %v7591 = vadd.f32 0.0, %v7590
      %v7592 = vpop.f32.mrf.mxu0
      %7593 = vmatprep.mubr.f32.mxu0 0.0
      %7594 = vmatmul.mubr.f32.gmra.mxu0 %v7447
      %v7595 = vpop.f32.mrf.mxu0
      %v7596 = vadd.f32 0.0, %v7595
      %v7597 = vpop.f32.mrf.mxu0
      %7598 = vmatprep.mubr.f32.mxu0 0.0
      %7599 = vmatmul.mubr.f32.gmra.mxu0 %v7449
      %v7600 = vpop.f32.mrf.mxu0
      %v7601 = vadd.f32 0.0, %v7600
      %v7602 = vpop.f32.mrf.mxu0
      %7603 = vmatprep.mubr.f32.mxu0 0.0
      %7604 = vmatmul.mubr.f32.gmra.mxu0 %v7451
      %v7605 = vpop.f32.mrf.mxu0
      %v7606 = vadd.f32 0.0, %v7605
      %v7607 = vpop.f32.mrf.mxu0
      %7608 = vmatprep.mubr.f32.mxu0 0.0
      %7609 = vmatmul.mubr.f32.gmra.mxu0 %v7453
      %v7610 = vpop.f32.mrf.mxu0
      %v7611 = vadd.f32 0.0, %v7610
      %v7612 = vpop.f32.mrf.mxu0
      %7613 = vmatprep.mubr.f32.mxu0 0.0
      %7614 = vmatmul.mubr.f32.gmra.mxu0 %v7455
      %v7615 = vpop.f32.mrf.mxu0
      %v7616 = vadd.f32 0.0, %v7615
      %v7617 = vpop.f32.mrf.mxu0
      %7618 = vmatprep.mubr.f32.mxu0 0.0
      %7619 = vmatmul.mubr.f32.gmra.mxu0 %v7457
      %v7620 = vpop.f32.mrf.mxu0
      %v7621 = vadd.f32 0.0, %v7620
      %v7622 = vpop.f32.mrf.mxu0
      %7623 = vmatprep.mubr.f32.mxu0 0.0
      %7624 = vmatmul.mubr.f32.gmra.mxu0 %v7459
      %v7625 = vpop.f32.mrf.mxu0
      %v7626 = vadd.f32 0.0, %v7625
      %v7627 = vpop.f32.mrf.mxu0
      %7628 = vmatprep.mubr.f32.mxu0 0.0
      %7629 = vmatmul.mubr.f32.gmra.mxu0 %v7461
      %v7630 = vpop.f32.mrf.mxu0
      %v7631 = vadd.f32 0.0, %v7630
      %v7632 = vpop.f32.mrf.mxu0
      %7633 = vmatprep.mubr.f32.mxu0 0.0
      %7634 = vmatmul.mubr.f32.gmra.mxu0 %v7463
      %v7635 = vpop.f32.mrf.mxu0
      %v7636 = vadd.f32 0.0, %v7635
      %v7637 = vpop.f32.mrf.mxu0
      %7638 = vmatprep.mubr.f32.mxu0 0.0
      %7639 = vmatmul.mubr.f32.gmra.mxu0 %v7465
      %v7640 = vpop.f32.mrf.mxu0
      %v7641 = vadd.f32 0.0, %v7640
      %v7642 = vpop.f32.mrf.mxu0
      %7643 = vdwg.mxu0
      %v7644 = vmul.f32 %v7566, 0.17677669
      %v7645 = vmul.f32 %v7571, 0.17677669
      %v7646 = vmul.f32 %v7576, 0.17677669
      %v7647 = vmul.f32 %v7581, 0.17677669
      %v7648 = vmul.f32 %v7586, 0.17677669
      %v7649 = vmul.f32 %v7591, 0.17677669
      %v7650 = vmul.f32 %v7596, 0.17677669
      %v7651 = vmul.f32 %v7601, 0.17677669
      %v7652 = vmul.f32 %v7606, 0.17677669
      %v7653 = vmul.f32 %v7611, 0.17677669
      %v7654 = vmul.f32 %v7616, 0.17677669
      %v7655 = vmul.f32 %v7621, 0.17677669
      %v7656 = vmul.f32 %v7626, 0.17677669
      %v7657 = vmul.f32 %v7631, 0.17677669
      %v7658 = vmul.f32 %v7636, 0.17677669
      %v7659 = vmul.f32 %v7641, 0.17677669
      %v7660 = vadd.f32 %v7644, %v1434
      %v7661 = vadd.f32 %v7645, %v1434
      %v7662 = vadd.f32 %v7646, %v1434
      %v7663 = vadd.f32 %v7647, %v1434
      %v7664 = vadd.f32 %v7648, %v1434
      %v7665 = vadd.f32 %v7649, %v1434
      %v7666 = vadd.f32 %v7650, %v1434
      %v7667 = vadd.f32 %v7651, %v1434
      %v7668 = vadd.f32 %v7652, %v1434
      %v7669 = vadd.f32 %v7653, %v1434
      %v7670 = vadd.f32 %v7654, %v1434
      %v7671 = vadd.f32 %v7655, %v1434
      %v7672 = vadd.f32 %v7656, %v1434
      %v7673 = vadd.f32 %v7657, %v1434
      %v7674 = vadd.f32 %v7658, %v1434
      %v7675 = vadd.f32 %v7659, %v1434
      %7676 = vmax.xlane.f32.xlu0 %v7660
      %v7677 = vpop.xlane.xlu0 %7676
      %7678 = vmax.xlane.f32.xlu0 %v7661
      %v7679 = vpop.xlane.xlu0 %7678
      %7680 = vmax.xlane.f32.xlu0 %v7662
      %v7681 = vpop.xlane.xlu0 %7680
      %7682 = vmax.xlane.f32.xlu0 %v7663
      %v7683 = vpop.xlane.xlu0 %7682
      %7684 = vmax.xlane.f32.xlu0 %v7664
      %v7685 = vpop.xlane.xlu0 %7684
      %7686 = vmax.xlane.f32.xlu0 %v7665
      %v7687 = vpop.xlane.xlu0 %7686
      %7688 = vmax.xlane.f32.xlu0 %v7666
      %v7689 = vpop.xlane.xlu0 %7688
      %7690 = vmax.xlane.f32.xlu0 %v7667
      %v7691 = vpop.xlane.xlu0 %7690
      %7692 = vmax.xlane.f32.xlu0 %v7668
      %v7693 = vpop.xlane.xlu0 %7692
      %7694 = vmax.xlane.f32.xlu0 %v7669
      %v7695 = vpop.xlane.xlu0 %7694
      %7696 = vmax.xlane.f32.xlu0 %v7670
      %v7697 = vpop.xlane.xlu0 %7696
      %7698 = vmax.xlane.f32.xlu0 %v7671
      %v7699 = vpop.xlane.xlu0 %7698
      %7700 = vmax.xlane.f32.xlu0 %v7672
      %v7701 = vpop.xlane.xlu0 %7700
      %7702 = vmax.xlane.f32.xlu0 %v7673
      %v7703 = vpop.xlane.xlu0 %7702
      %7704 = vmax.xlane.f32.xlu0 %v7674
      %v7705 = vpop.xlane.xlu0 %7704
      %7706 = vmax.xlane.f32.xlu0 %v7675
      %v7707 = vpop.xlane.xlu0 %7706
      %v7708 = vsub.f32 %v7660, %v7677
      %v7709 = vsub.f32 %v7661, %v7679
      %v7710 = vsub.f32 %v7662, %v7681
      %v7711 = vsub.f32 %v7663, %v7683
      %v7712 = vsub.f32 %v7664, %v7685
      %v7713 = vsub.f32 %v7665, %v7687
      %v7714 = vsub.f32 %v7666, %v7689
      %v7715 = vsub.f32 %v7667, %v7691
      %v7716 = vsub.f32 %v7668, %v7693
      %v7717 = vsub.f32 %v7669, %v7695
      %v7718 = vsub.f32 %v7670, %v7697
      %v7719 = vsub.f32 %v7671, %v7699
      %v7720 = vsub.f32 %v7672, %v7701
      %v7721 = vsub.f32 %v7673, %v7703
      %v7722 = vsub.f32 %v7674, %v7705
      %v7723 = vsub.f32 %v7675, %v7707
      %v7724 = vmul.f32 %v7708, 1.442695
      %v7725 = vpow.pop %v7724
      %v7726 = vmul.f32 %v7709, 1.442695
      %v7727 = vpow.pop %v7726
      %v7728 = vmul.f32 %v7710, 1.442695
      %v7729 = vpow.pop %v7728
      %v7730 = vmul.f32 %v7711, 1.442695
      %v7731 = vpow.pop %v7730
      %v7732 = vmul.f32 %v7712, 1.442695
      %v7733 = vpow.pop %v7732
      %v7734 = vmul.f32 %v7713, 1.442695
      %v7735 = vpow.pop %v7734
      %v7736 = vmul.f32 %v7714, 1.442695
      %v7737 = vpow.pop %v7736
      %v7738 = vmul.f32 %v7715, 1.442695
      %v7739 = vpow.pop %v7738
      %v7740 = vmul.f32 %v7716, 1.442695
      %v7741 = vpow.pop %v7740
      %v7742 = vmul.f32 %v7717, 1.442695
      %v7743 = vpow.pop %v7742
      %v7744 = vmul.f32 %v7718, 1.442695
      %v7745 = vpow.pop %v7744
      %v7746 = vmul.f32 %v7719, 1.442695
      %v7747 = vpow.pop %v7746
      %v7748 = vmul.f32 %v7720, 1.442695
      %v7749 = vpow.pop %v7748
      %v7750 = vmul.f32 %v7721, 1.442695
      %v7751 = vpow.pop %v7750
      %v7752 = vmul.f32 %v7722, 1.442695
      %v7753 = vpow.pop %v7752
      %v7754 = vmul.f32 %v7723, 1.442695
      %v7755 = vpow.pop %v7754
      %7756 = vadd.xlane.f32.xlu0 %v7725
      %v7757 = vpop.xlane.xlu0 %7756
      %7758 = vadd.xlane.f32.xlu0 %v7727
      %v7759 = vpop.xlane.xlu0 %7758
      %7760 = vadd.xlane.f32.xlu0 %v7729
      %v7761 = vpop.xlane.xlu0 %7760
      %7762 = vadd.xlane.f32.xlu0 %v7731
      %v7763 = vpop.xlane.xlu0 %7762
      %7764 = vadd.xlane.f32.xlu0 %v7733
      %v7765 = vpop.xlane.xlu0 %7764
      %7766 = vadd.xlane.f32.xlu0 %v7735
      %v7767 = vpop.xlane.xlu0 %7766
      %7768 = vadd.xlane.f32.xlu0 %v7737
      %v7769 = vpop.xlane.xlu0 %7768
      %7770 = vadd.xlane.f32.xlu0 %v7739
      %v7771 = vpop.xlane.xlu0 %7770
      %7772 = vadd.xlane.f32.xlu0 %v7741
      %v7773 = vpop.xlane.xlu0 %7772
      %7774 = vadd.xlane.f32.xlu0 %v7743
      %v7775 = vpop.xlane.xlu0 %7774
      %7776 = vadd.xlane.f32.xlu0 %v7745
      %v7777 = vpop.xlane.xlu0 %7776
      %7778 = vadd.xlane.f32.xlu0 %v7747
      %v7779 = vpop.xlane.xlu0 %7778
      %7780 = vadd.xlane.f32.xlu0 %v7749
      %v7781 = vpop.xlane.xlu0 %7780
      %7782 = vadd.xlane.f32.xlu0 %v7751
      %v7783 = vpop.xlane.xlu0 %7782
      %7784 = vadd.xlane.f32.xlu0 %v7753
      %v7785 = vpop.xlane.xlu0 %7784
      %7786 = vadd.xlane.f32.xlu0 %v7755
      %v7787 = vpop.xlane.xlu0 %7786
      %v7788 = vrcp.pop %v7757
      %v7789 = vrcp.pop %v7759
      %v7790 = vrcp.pop %v7761
      %v7791 = vrcp.pop %v7763
      %v7792 = vrcp.pop %v7765
      %v7793 = vrcp.pop %v7767
      %v7794 = vrcp.pop %v7769
      %v7795 = vrcp.pop %v7771
      %v7796 = vrcp.pop %v7773
      %v7797 = vrcp.pop %v7775
      %v7798 = vrcp.pop %v7777
      %v7799 = vrcp.pop %v7779
      %v7800 = vrcp.pop %v7781
      %v7801 = vrcp.pop %v7783
      %v7802 = vrcp.pop %v7785
      %v7803 = vrcp.pop %v7787
      %v7804 = vmul.f32 %v7725, %v7788
      %v7805 = vmul.f32 %v7727, %v7789
      %v7806 = vmul.f32 %v7729, %v7790
      %v7807 = vmul.f32 %v7731, %v7791
      %v7808 = vmul.f32 %v7733, %v7792
      %v7809 = vmul.f32 %v7735, %v7793
      %v7810 = vmul.f32 %v7737, %v7794
      %v7811 = vmul.f32 %v7739, %v7795
      %v7812 = vmul.f32 %v7741, %v7796
      %v7813 = vmul.f32 %v7743, %v7797
      %v7814 = vmul.f32 %v7745, %v7798
      %v7815 = vmul.f32 %v7747, %v7799
      %v7816 = vmul.f32 %v7749, %v7800
      %v7817 = vmul.f32 %v7751, %v7801
      %v7818 = vmul.f32 %v7753, %v7802
      %v7819 = vmul.f32 %v7755, %v7803
      %v7820 = vpack.c.bf16 %v7805, %v7804
      %v7821 = vpack.c.bf16 %v7807, %v7806
      %v7822 = vpack.c.bf16 %v7809, %v7808
      %v7823 = vpack.c.bf16 %v7811, %v7810
      %v7824 = vpack.c.bf16 %v7813, %v7812
      %v7825 = vpack.c.bf16 %v7815, %v7814
      %v7826 = vpack.c.bf16 %v7817, %v7816
      %v7827 = vpack.c.bf16 %v7819, %v7818
      %7828 = vrot.lane.b32.xlu0 %v6680, 64
      %v7829 = vpop.permute.xlu0 %7828
      %7830 = vrot.lane.b32.xlu0 %v6681, 64
      %v7831 = vpop.permute.xlu0 %7830
      %7832 = vrot.lane.b32.xlu0 %v6682, 64
      %v7833 = vpop.permute.xlu0 %7832
      %7834 = vrot.lane.b32.xlu0 %v6683, 64
      %v7835 = vpop.permute.xlu0 %7834
      %7836 = vrot.lane.b32.xlu0 %v6684, 64
      %v7837 = vpop.permute.xlu0 %7836
      %7838 = vrot.lane.b32.xlu0 %v6685, 64
      %v7839 = vpop.permute.xlu0 %7838
      %7840 = vrot.lane.b32.xlu0 %v6686, 64
      %v7841 = vpop.permute.xlu0 %7840
      %7842 = vrot.lane.b32.xlu0 %v6687, 64
      %v7843 = vpop.permute.xlu0 %7842
      %7852 = vmatprep.subr.bf16.mxu0 0
      %7853 = vmatpush1.bf16.msra.mxu0 %v7843
      %7854 = vmatprep.subr.bf16.mxu0 0
      %7855 = vmatpush1.bf16.msra.mxu0 %v7841
      %7856 = vmatprep.subr.bf16.mxu0 0
      %7857 = vmatpush1.bf16.msra.mxu0 %v7839
      %7858 = vmatprep.subr.bf16.mxu0 0
      %7859 = vmatpush1.bf16.msra.mxu0 %v7837
      %7860 = vmatprep.subr.bf16.mxu0 0
      %7861 = vmatpush1.bf16.msra.mxu0 %v7835
      %7862 = vmatprep.subr.bf16.mxu0 0
      %7863 = vmatpush1.bf16.msra.mxu0 %v7833
      %7864 = vmatprep.subr.bf16.mxu0 0
      %7865 = vmatpush1.bf16.msra.mxu0 %v7831
      %7866 = vmatprep.subr.bf16.mxu0 0
      %7867 = vmatpush1.bf16.msra.mxu0 %v7829
      %7868 = vmatprep.subr.bf16.mxu0 0
      %7869 = vmatpush2.bf16.msra.mxu0 0
      %7870 = vmatprep.subr.bf16.mxu0 0
      %7871 = vmatpush2.bf16.msra.mxu0 0
      %7872 = vmatprep.subr.bf16.mxu0 0
      %7873 = vmatpush2.bf16.msra.mxu0 0
      %7874 = vmatprep.subr.bf16.mxu0 0
      %7875 = vmatpush2.bf16.msra.mxu0 0
      %7876 = vmatprep.subr.bf16.mxu0 0
      %7877 = vmatpush2.bf16.msra.mxu0 0
      %7878 = vmatprep.subr.bf16.mxu0 0
      %7879 = vmatpush2.bf16.msra.mxu0 0
      %7880 = vmatprep.subr.bf16.mxu0 0
      %7881 = vmatpush2.bf16.msra.mxu0 0
      %7882 = vmatprep.subr.bf16.mxu0 0
      %7883 = vmatpush2.bf16.msra.mxu0 0
      %7884 = vmatprep.mubr.bf16.mxu0 0
      %7885 = vmatmul.mubr.bf16.gmra.mxu0 %v7820
      %v7886 = vpop.f32.mrf.mxu0
      %v7887 = vadd.f32 0.0, %v7886
      %v7888 = vpop.f32.mrf.mxu0
      %v7889 = vpop.f32.mrf.mxu0
      %v7890 = vadd.f32 0.0, %v7889
      %v7891 = vpop.f32.mrf.mxu0
      %7892 = vmatprep.mubr.bf16.mxu0 0
      %7893 = vmatmul.mubr.bf16.gmra.mxu0 %v7821
      %v7894 = vpop.f32.mrf.mxu0
      %v7895 = vadd.f32 0.0, %v7894
      %v7896 = vpop.f32.mrf.mxu0
      %v7897 = vpop.f32.mrf.mxu0
      %v7898 = vadd.f32 0.0, %v7897
      %v7899 = vpop.f32.mrf.mxu0
      %7900 = vmatprep.mubr.bf16.mxu0 0
      %7901 = vmatmul.mubr.bf16.gmra.mxu0 %v7822
      %v7902 = vpop.f32.mrf.mxu0
      %v7903 = vadd.f32 0.0, %v7902
      %v7904 = vpop.f32.mrf.mxu0
      %v7905 = vpop.f32.mrf.mxu0
      %v7906 = vadd.f32 0.0, %v7905
      %v7907 = vpop.f32.mrf.mxu0
      %7908 = vmatprep.mubr.bf16.mxu0 0
      %7909 = vmatmul.mubr.bf16.gmra.mxu0 %v7823
      %v7910 = vpop.f32.mrf.mxu0
      %v7911 = vadd.f32 0.0, %v7910
      %v7912 = vpop.f32.mrf.mxu0
      %v7913 = vpop.f32.mrf.mxu0
      %v7914 = vadd.f32 0.0, %v7913
      %v7915 = vpop.f32.mrf.mxu0
      %7916 = vmatprep.mubr.bf16.mxu0 0
      %7917 = vmatmul.mubr.bf16.gmra.mxu0 %v7824
      %v7918 = vpop.f32.mrf.mxu0
      %v7919 = vadd.f32 0.0, %v7918
      %v7920 = vpop.f32.mrf.mxu0
      %v7921 = vpop.f32.mrf.mxu0
      %v7922 = vadd.f32 0.0, %v7921
      %v7923 = vpop.f32.mrf.mxu0
      %7924 = vmatprep.mubr.bf16.mxu0 0
      %7925 = vmatmul.mubr.bf16.gmra.mxu0 %v7825
      %v7926 = vpop.f32.mrf.mxu0
      %v7927 = vadd.f32 0.0, %v7926
      %v7928 = vpop.f32.mrf.mxu0
      %v7929 = vpop.f32.mrf.mxu0
      %v7930 = vadd.f32 0.0, %v7929
      %v7931 = vpop.f32.mrf.mxu0
      %7932 = vmatprep.mubr.bf16.mxu0 0
      %7933 = vmatmul.mubr.bf16.gmra.mxu0 %v7826
      %v7934 = vpop.f32.mrf.mxu0
      %v7935 = vadd.f32 0.0, %v7934
      %v7936 = vpop.f32.mrf.mxu0
      %v7937 = vpop.f32.mrf.mxu0
      %v7938 = vadd.f32 0.0, %v7937
      %v7939 = vpop.f32.mrf.mxu0
      %7940 = vmatprep.mubr.bf16.mxu0 0
      %7941 = vmatmul.mubr.bf16.gmra.mxu0 %v7827
      %v7942 = vpop.f32.mrf.mxu0
      %v7943 = vadd.f32 0.0, %v7942
      %v7944 = vpop.f32.mrf.mxu0
      %v7945 = vpop.f32.mrf.mxu0
      %v7946 = vadd.f32 0.0, %v7945
      %v7947 = vpop.f32.mrf.mxu0
      %7948 = vdwg.mxu0
      %7949 = vrot.lane.b32.xlu0 %v6080, 32
      %v7950 = vpop.permute.xlu0 %7949
      %7951 = vrot.lane.b32.xlu0 %v6084, 32
      %v7952 = vpop.permute.xlu0 %7951
      %7953 = vrot.lane.b32.xlu0 %v6090, 32
      %v7954 = vpop.permute.xlu0 %7953
      %7955 = vrot.lane.b32.xlu0 %v6094, 32
      %v7956 = vpop.permute.xlu0 %7955
      %7957 = vrot.lane.b32.xlu0 %v6100, 32
      %v7958 = vpop.permute.xlu0 %7957
      %7959 = vrot.lane.b32.xlu0 %v6104, 32
      %v7960 = vpop.permute.xlu0 %7959
      %7961 = vrot.lane.b32.xlu0 %v6110, 32
      %v7962 = vpop.permute.xlu0 %7961
      %7963 = vrot.lane.b32.xlu0 %v6114, 32
      %v7964 = vpop.permute.xlu0 %7963
      %7965 = vrot.lane.b32.xlu0 %v6120, 32
      %v7966 = vpop.permute.xlu0 %7965
      %7967 = vrot.lane.b32.xlu0 %v6124, 32
      %v7968 = vpop.permute.xlu0 %7967
      %7969 = vrot.lane.b32.xlu0 %v6130, 32
      %v7970 = vpop.permute.xlu0 %7969
      %7971 = vrot.lane.b32.xlu0 %v6134, 32
      %v7972 = vpop.permute.xlu0 %7971
      %7973 = vrot.lane.b32.xlu0 %v6140, 32
      %v7974 = vpop.permute.xlu0 %7973
      %7975 = vrot.lane.b32.xlu0 %v6144, 32
      %v7976 = vpop.permute.xlu0 %7975
      %7977 = vrot.lane.b32.xlu0 %v6150, 32
      %v7978 = vpop.permute.xlu0 %7977
      %7979 = vrot.lane.b32.xlu0 %v6154, 32
      %v7980 = vpop.permute.xlu0 %7979
      %7981 = vrot.lane.b32.xlu0 %v6082, 32
      %v7982 = vpop.permute.xlu0 %7981
      %7983 = vrot.lane.b32.xlu0 %v6086, 32
      %v7984 = vpop.permute.xlu0 %7983
      %7985 = vrot.lane.b32.xlu0 %v6092, 32
      %v7986 = vpop.permute.xlu0 %7985
      %7987 = vrot.lane.b32.xlu0 %v6096, 32
      %v7988 = vpop.permute.xlu0 %7987
      %7989 = vrot.lane.b32.xlu0 %v6102, 32
      %v7990 = vpop.permute.xlu0 %7989
      %7991 = vrot.lane.b32.xlu0 %v6106, 32
      %v7992 = vpop.permute.xlu0 %7991
      %7993 = vrot.lane.b32.xlu0 %v6112, 32
      %v7994 = vpop.permute.xlu0 %7993
      %7995 = vrot.lane.b32.xlu0 %v6116, 32
      %v7996 = vpop.permute.xlu0 %7995
      %7997 = vrot.lane.b32.xlu0 %v6122, 32
      %v7998 = vpop.permute.xlu0 %7997
      %7999 = vrot.lane.b32.xlu0 %v6126, 32
      %v8000 = vpop.permute.xlu0 %7999
      %8001 = vrot.lane.b32.xlu0 %v6132, 32
      %v8002 = vpop.permute.xlu0 %8001
      %8003 = vrot.lane.b32.xlu0 %v6136, 32
      %v8004 = vpop.permute.xlu0 %8003
      %8005 = vrot.lane.b32.xlu0 %v6142, 32
      %v8006 = vpop.permute.xlu0 %8005
      %8007 = vrot.lane.b32.xlu0 %v6146, 32
      %v8008 = vpop.permute.xlu0 %8007
      %8009 = vrot.lane.b32.xlu0 %v6152, 32
      %v8010 = vpop.permute.xlu0 %8009
      %8011 = vrot.lane.b32.xlu0 %v6156, 32
      %v8012 = vpop.permute.xlu0 %8011
      %v8013 = vsel %vm1172, %v7950, 0
      %v8015 = vsel %vm1172, %v7952, 0
      %v8017 = vsel %vm1172, %v7954, 0
      %v8019 = vsel %vm1172, %v7956, 0
      %v8021 = vsel %vm1172, %v7958, 0
      %v8023 = vsel %vm1172, %v7960, 0
      %v8025 = vsel %vm1172, %v7962, 0
      %v8027 = vsel %vm1172, %v7964, 0
      %v8029 = vsel %vm1172, %v7966, 0
      %v8031 = vsel %vm1172, %v7968, 0
      %v8033 = vsel %vm1172, %v7970, 0
      %v8035 = vsel %vm1172, %v7972, 0
      %v8037 = vsel %vm1172, %v7974, 0
      %v8039 = vsel %vm1172, %v7976, 0
      %v8041 = vsel %vm1172, %v7978, 0
      %v8043 = vsel %vm1172, %v7980, 0
      %v8045 = vsel %vm1172, %v7982, 0
      %v8047 = vsel %vm1172, %v7984, 0
      %v8049 = vsel %vm1172, %v7986, 0
      %v8051 = vsel %vm1172, %v7988, 0
      %v8053 = vsel %vm1172, %v7990, 0
      %v8055 = vsel %vm1172, %v7992, 0
      %v8057 = vsel %vm1172, %v7994, 0
      %v8059 = vsel %vm1172, %v7996, 0
      %v8061 = vsel %vm1172, %v7998, 0
      %v8063 = vsel %vm1172, %v8000, 0
      %v8065 = vsel %vm1172, %v8002, 0
      %v8067 = vsel %vm1172, %v8004, 0
      %v8069 = vsel %vm1172, %v8006, 0
      %v8071 = vsel %vm1172, %v8008, 0
      %v8073 = vsel %vm1172, %v8010, 0
      %v8075 = vsel %vm1172, %v8012, 0
      %8077 = vmatprep.subr.mxu0 0.0
      %8078 = vmatpush1.xpose.msra.mxu0 %v8075
      %8079 = vmatprep.subr.mxu0 0.0
      %8080 = vmatpush1.xpose.msra.mxu0 %v8073
      %8081 = vmatprep.subr.mxu0 0.0
      %8082 = vmatpush1.xpose.msra.mxu0 %v8071
      %8083 = vmatprep.subr.mxu0 0.0
      %8084 = vmatpush1.xpose.msra.mxu0 %v8069
      %8085 = vmatprep.subr.mxu0 0.0
      %8086 = vmatpush1.xpose.msra.mxu0 %v8067
      %8087 = vmatprep.subr.mxu0 0.0
      %8088 = vmatpush1.xpose.msra.mxu0 %v8065
      %8089 = vmatprep.subr.mxu0 0.0
      %8090 = vmatpush1.xpose.msra.mxu0 %v8063
      %8091 = vmatprep.subr.mxu0 0.0
      %8092 = vmatpush1.xpose.msra.mxu0 %v8061
      %8093 = vmatprep.subr.mxu0 0.0
      %8094 = vmatpush1.xpose.msra.mxu0 %v8059
      %8095 = vmatprep.subr.mxu0 0.0
      %8096 = vmatpush1.xpose.msra.mxu0 %v8057
      %8097 = vmatprep.subr.mxu0 0.0
      %8098 = vmatpush1.xpose.msra.mxu0 %v8055
      %8099 = vmatprep.subr.mxu0 0.0
      %8100 = vmatpush1.xpose.msra.mxu0 %v8053
      %8101 = vmatprep.subr.mxu0 0.0
      %8102 = vmatpush1.xpose.msra.mxu0 %v8051
      %8103 = vmatprep.subr.mxu0 0.0
      %8104 = vmatpush1.xpose.msra.mxu0 %v8049
      %8105 = vmatprep.subr.mxu0 0.0
      %8106 = vmatpush1.xpose.msra.mxu0 %v8047
      %8107 = vmatprep.subr.mxu0 0.0
      %8108 = vmatpush1.xpose.msra.mxu0 %v8045
      %8109 = vmatprep.subr.mxu0 0.0
      %8110 = vmatpush2.xpose.msra.mxu0 0.0
      %8111 = vmatprep.subr.mxu0 0.0
      %8112 = vmatpush2.xpose.msra.mxu0 0.0
      %8113 = vmatprep.subr.mxu0 0.0
      %8114 = vmatpush2.xpose.msra.mxu0 0.0
      %8115 = vmatprep.subr.mxu0 0.0
      %8116 = vmatpush2.xpose.msra.mxu0 0.0
      %8117 = vmatprep.subr.mxu0 0.0
      %8118 = vmatpush2.xpose.msra.mxu0 0.0
      %8119 = vmatprep.subr.mxu0 0.0
      %8120 = vmatpush2.xpose.msra.mxu0 0.0
      %8121 = vmatprep.subr.mxu0 0.0
      %8122 = vmatpush2.xpose.msra.mxu0 0.0
      %8123 = vmatprep.subr.mxu0 0.0
      %8124 = vmatpush2.xpose.msra.mxu0 0.0
      %8125 = vmatprep.subr.mxu0 0.0
      %8126 = vmatpush2.xpose.msra.mxu0 0.0
      %8127 = vmatprep.subr.mxu0 0.0
      %8128 = vmatpush2.xpose.msra.mxu0 0.0
      %8129 = vmatprep.subr.mxu0 0.0
      %8130 = vmatpush2.xpose.msra.mxu0 0.0
      %8131 = vmatprep.subr.mxu0 0.0
      %8132 = vmatpush2.xpose.msra.mxu0 0.0
      %8133 = vmatprep.subr.mxu0 0.0
      %8134 = vmatpush2.xpose.msra.mxu0 0.0
      %8135 = vmatprep.subr.mxu0 0.0
      %8136 = vmatpush2.xpose.msra.mxu0 0.0
      %8137 = vmatprep.subr.mxu0 0.0
      %8138 = vmatpush2.xpose.msra.mxu0 0.0
      %8139 = vmatprep.subr.mxu0 0.0
      %8140 = vmatpush2.xpose.msra.mxu0 0.0
      %8141 = vmatprep.mubr.f32.mxu0 0.0
      %8142 = vmatmul.mubr.f32.gmra.mxu0 %v8013
      %v8143 = vpop.f32.mrf.mxu0
      %v8144 = vadd.f32 0.0, %v8143
      %v8145 = vpop.f32.mrf.mxu0
      %8146 = vmatprep.mubr.f32.mxu0 0.0
      %8147 = vmatmul.mubr.f32.gmra.mxu0 %v8015
      %v8148 = vpop.f32.mrf.mxu0
      %v8149 = vadd.f32 0.0, %v8148
      %v8150 = vpop.f32.mrf.mxu0
      %8151 = vmatprep.mubr.f32.mxu0 0.0
      %8152 = vmatmul.mubr.f32.gmra.mxu0 %v8017
      %v8153 = vpop.f32.mrf.mxu0
      %v8154 = vadd.f32 0.0, %v8153
      %v8155 = vpop.f32.mrf.mxu0
      %8156 = vmatprep.mubr.f32.mxu0 0.0
      %8157 = vmatmul.mubr.f32.gmra.mxu0 %v8019
      %v8158 = vpop.f32.mrf.mxu0
      %v8159 = vadd.f32 0.0, %v8158
      %v8160 = vpop.f32.mrf.mxu0
      %8161 = vmatprep.mubr.f32.mxu0 0.0
      %8162 = vmatmul.mubr.f32.gmra.mxu0 %v8021
      %v8163 = vpop.f32.mrf.mxu0
      %v8164 = vadd.f32 0.0, %v8163
      %v8165 = vpop.f32.mrf.mxu0
      %8166 = vmatprep.mubr.f32.mxu0 0.0
      %8167 = vmatmul.mubr.f32.gmra.mxu0 %v8023
      %v8168 = vpop.f32.mrf.mxu0
      %v8169 = vadd.f32 0.0, %v8168
      %v8170 = vpop.f32.mrf.mxu0
      %8171 = vmatprep.mubr.f32.mxu0 0.0
      %8172 = vmatmul.mubr.f32.gmra.mxu0 %v8025
      %v8173 = vpop.f32.mrf.mxu0
      %v8174 = vadd.f32 0.0, %v8173
      %v8175 = vpop.f32.mrf.mxu0
      %8176 = vmatprep.mubr.f32.mxu0 0.0
      %8177 = vmatmul.mubr.f32.gmra.mxu0 %v8027
      %v8178 = vpop.f32.mrf.mxu0
      %v8179 = vadd.f32 0.0, %v8178
      %v8180 = vpop.f32.mrf.mxu0
      %8181 = vmatprep.mubr.f32.mxu0 0.0
      %8182 = vmatmul.mubr.f32.gmra.mxu0 %v8029
      %v8183 = vpop.f32.mrf.mxu0
      %v8184 = vadd.f32 0.0, %v8183
      %v8185 = vpop.f32.mrf.mxu0
      %8186 = vmatprep.mubr.f32.mxu0 0.0
      %8187 = vmatmul.mubr.f32.gmra.mxu0 %v8031
      %v8188 = vpop.f32.mrf.mxu0
      %v8189 = vadd.f32 0.0, %v8188
      %v8190 = vpop.f32.mrf.mxu0
      %8191 = vmatprep.mubr.f32.mxu0 0.0
      %8192 = vmatmul.mubr.f32.gmra.mxu0 %v8033
      %v8193 = vpop.f32.mrf.mxu0
      %v8194 = vadd.f32 0.0, %v8193
      %v8195 = vpop.f32.mrf.mxu0
      %8196 = vmatprep.mubr.f32.mxu0 0.0
      %8197 = vmatmul.mubr.f32.gmra.mxu0 %v8035
      %v8198 = vpop.f32.mrf.mxu0
      %v8199 = vadd.f32 0.0, %v8198
      %v8200 = vpop.f32.mrf.mxu0
      %8201 = vmatprep.mubr.f32.mxu0 0.0
      %8202 = vmatmul.mubr.f32.gmra.mxu0 %v8037
      %v8203 = vpop.f32.mrf.mxu0
      %v8204 = vadd.f32 0.0, %v8203
      %v8205 = vpop.f32.mrf.mxu0
      %8206 = vmatprep.mubr.f32.mxu0 0.0
      %8207 = vmatmul.mubr.f32.gmra.mxu0 %v8039
      %v8208 = vpop.f32.mrf.mxu0
      %v8209 = vadd.f32 0.0, %v8208
      %v8210 = vpop.f32.mrf.mxu0
      %8211 = vmatprep.mubr.f32.mxu0 0.0
      %8212 = vmatmul.mubr.f32.gmra.mxu0 %v8041
      %v8213 = vpop.f32.mrf.mxu0
      %v8214 = vadd.f32 0.0, %v8213
      %v8215 = vpop.f32.mrf.mxu0
      %8216 = vmatprep.mubr.f32.mxu0 0.0
      %8217 = vmatmul.mubr.f32.gmra.mxu0 %v8043
      %v8218 = vpop.f32.mrf.mxu0
      %v8219 = vadd.f32 0.0, %v8218
      %v8220 = vpop.f32.mrf.mxu0
      %8221 = vdwg.mxu0
      %v8222 = vmul.f32 %v8144, 0.17677669
      %v8223 = vmul.f32 %v8149, 0.17677669
      %v8224 = vmul.f32 %v8154, 0.17677669
      %v8225 = vmul.f32 %v8159, 0.17677669
      %v8226 = vmul.f32 %v8164, 0.17677669
      %v8227 = vmul.f32 %v8169, 0.17677669
      %v8228 = vmul.f32 %v8174, 0.17677669
      %v8229 = vmul.f32 %v8179, 0.17677669
      %v8230 = vmul.f32 %v8184, 0.17677669
      %v8231 = vmul.f32 %v8189, 0.17677669
      %v8232 = vmul.f32 %v8194, 0.17677669
      %v8233 = vmul.f32 %v8199, 0.17677669
      %v8234 = vmul.f32 %v8204, 0.17677669
      %v8235 = vmul.f32 %v8209, 0.17677669
      %v8236 = vmul.f32 %v8214, 0.17677669
      %v8237 = vmul.f32 %v8219, 0.17677669
      %v8238 = vadd.f32 %v8222, %v1434
      %v8239 = vadd.f32 %v8223, %v1434
      %v8240 = vadd.f32 %v8224, %v1434
      %v8241 = vadd.f32 %v8225, %v1434
      %v8242 = vadd.f32 %v8226, %v1434
      %v8243 = vadd.f32 %v8227, %v1434
      %v8244 = vadd.f32 %v8228, %v1434
      %v8245 = vadd.f32 %v8229, %v1434
      %v8246 = vadd.f32 %v8230, %v1434
      %v8247 = vadd.f32 %v8231, %v1434
      %v8248 = vadd.f32 %v8232, %v1434
      %v8249 = vadd.f32 %v8233, %v1434
      %v8250 = vadd.f32 %v8234, %v1434
      %v8251 = vadd.f32 %v8235, %v1434
      %v8252 = vadd.f32 %v8236, %v1434
      %v8253 = vadd.f32 %v8237, %v1434
      %8254 = vmax.xlane.f32.xlu0 %v8238
      %v8255 = vpop.xlane.xlu0 %8254
      %8256 = vmax.xlane.f32.xlu0 %v8239
      %v8257 = vpop.xlane.xlu0 %8256
      %8258 = vmax.xlane.f32.xlu0 %v8240
      %v8259 = vpop.xlane.xlu0 %8258
      %8260 = vmax.xlane.f32.xlu0 %v8241
      %v8261 = vpop.xlane.xlu0 %8260
      %8262 = vmax.xlane.f32.xlu0 %v8242
      %v8263 = vpop.xlane.xlu0 %8262
      %8264 = vmax.xlane.f32.xlu0 %v8243
      %v8265 = vpop.xlane.xlu0 %8264
      %8266 = vmax.xlane.f32.xlu0 %v8244
      %v8267 = vpop.xlane.xlu0 %8266
      %8268 = vmax.xlane.f32.xlu0 %v8245
      %v8269 = vpop.xlane.xlu0 %8268
      %8270 = vmax.xlane.f32.xlu0 %v8246
      %v8271 = vpop.xlane.xlu0 %8270
      %8272 = vmax.xlane.f32.xlu0 %v8247
      %v8273 = vpop.xlane.xlu0 %8272
      %8274 = vmax.xlane.f32.xlu0 %v8248
      %v8275 = vpop.xlane.xlu0 %8274
      %8276 = vmax.xlane.f32.xlu0 %v8249
      %v8277 = vpop.xlane.xlu0 %8276
      %8278 = vmax.xlane.f32.xlu0 %v8250
      %v8279 = vpop.xlane.xlu0 %8278
      %8280 = vmax.xlane.f32.xlu0 %v8251
      %v8281 = vpop.xlane.xlu0 %8280
      %8282 = vmax.xlane.f32.xlu0 %v8252
      %v8283 = vpop.xlane.xlu0 %8282
      %8284 = vmax.xlane.f32.xlu0 %v8253
      %v8285 = vpop.xlane.xlu0 %8284
      %v8286 = vsub.f32 %v8238, %v8255
      %v8287 = vsub.f32 %v8239, %v8257
      %v8288 = vsub.f32 %v8240, %v8259
      %v8289 = vsub.f32 %v8241, %v8261
      %v8290 = vsub.f32 %v8242, %v8263
      %v8291 = vsub.f32 %v8243, %v8265
      %v8292 = vsub.f32 %v8244, %v8267
      %v8293 = vsub.f32 %v8245, %v8269
      %v8294 = vsub.f32 %v8246, %v8271
      %v8295 = vsub.f32 %v8247, %v8273
      %v8296 = vsub.f32 %v8248, %v8275
      %v8297 = vsub.f32 %v8249, %v8277
      %v8298 = vsub.f32 %v8250, %v8279
      %v8299 = vsub.f32 %v8251, %v8281
      %v8300 = vsub.f32 %v8252, %v8283
      %v8301 = vsub.f32 %v8253, %v8285
      %v8302 = vmul.f32 %v8286, 1.442695
      %v8303 = vpow.pop %v8302
      %v8304 = vmul.f32 %v8287, 1.442695
      %v8305 = vpow.pop %v8304
      %v8306 = vmul.f32 %v8288, 1.442695
      %v8307 = vpow.pop %v8306
      %v8308 = vmul.f32 %v8289, 1.442695
      %v8309 = vpow.pop %v8308
      %v8310 = vmul.f32 %v8290, 1.442695
      %v8311 = vpow.pop %v8310
      %v8312 = vmul.f32 %v8291, 1.442695
      %v8313 = vpow.pop %v8312
      %v8314 = vmul.f32 %v8292, 1.442695
      %v8315 = vpow.pop %v8314
      %v8316 = vmul.f32 %v8293, 1.442695
      %v8317 = vpow.pop %v8316
      %v8318 = vmul.f32 %v8294, 1.442695
      %v8319 = vpow.pop %v8318
      %v8320 = vmul.f32 %v8295, 1.442695
      %v8321 = vpow.pop %v8320
      %v8322 = vmul.f32 %v8296, 1.442695
      %v8323 = vpow.pop %v8322
      %v8324 = vmul.f32 %v8297, 1.442695
      %v8325 = vpow.pop %v8324
      %v8326 = vmul.f32 %v8298, 1.442695
      %v8327 = vpow.pop %v8326
      %v8328 = vmul.f32 %v8299, 1.442695
      %v8329 = vpow.pop %v8328
      %v8330 = vmul.f32 %v8300, 1.442695
      %v8331 = vpow.pop %v8330
      %v8332 = vmul.f32 %v8301, 1.442695
      %v8333 = vpow.pop %v8332
      %8334 = vadd.xlane.f32.xlu0 %v8303
      %v8335 = vpop.xlane.xlu0 %8334
      %8336 = vadd.xlane.f32.xlu0 %v8305
      %v8337 = vpop.xlane.xlu0 %8336
      %8338 = vadd.xlane.f32.xlu0 %v8307
      %v8339 = vpop.xlane.xlu0 %8338
      %8340 = vadd.xlane.f32.xlu0 %v8309
      %v8341 = vpop.xlane.xlu0 %8340
      %8342 = vadd.xlane.f32.xlu0 %v8311
      %v8343 = vpop.xlane.xlu0 %8342
      %8344 = vadd.xlane.f32.xlu0 %v8313
      %v8345 = vpop.xlane.xlu0 %8344
      %8346 = vadd.xlane.f32.xlu0 %v8315
      %v8347 = vpop.xlane.xlu0 %8346
      %8348 = vadd.xlane.f32.xlu0 %v8317
      %v8349 = vpop.xlane.xlu0 %8348
      %8350 = vadd.xlane.f32.xlu0 %v8319
      %v8351 = vpop.xlane.xlu0 %8350
      %8352 = vadd.xlane.f32.xlu0 %v8321
      %v8353 = vpop.xlane.xlu0 %8352
      %8354 = vadd.xlane.f32.xlu0 %v8323
      %v8355 = vpop.xlane.xlu0 %8354
      %8356 = vadd.xlane.f32.xlu0 %v8325
      %v8357 = vpop.xlane.xlu0 %8356
      %8358 = vadd.xlane.f32.xlu0 %v8327
      %v8359 = vpop.xlane.xlu0 %8358
      %8360 = vadd.xlane.f32.xlu0 %v8329
      %v8361 = vpop.xlane.xlu0 %8360
      %8362 = vadd.xlane.f32.xlu0 %v8331
      %v8363 = vpop.xlane.xlu0 %8362
      %8364 = vadd.xlane.f32.xlu0 %v8333
      %v8365 = vpop.xlane.xlu0 %8364
      %v8366 = vrcp.pop %v8335
      %v8367 = vrcp.pop %v8337
      %v8368 = vrcp.pop %v8339
      %v8369 = vrcp.pop %v8341
      %v8370 = vrcp.pop %v8343
      %v8371 = vrcp.pop %v8345
      %v8372 = vrcp.pop %v8347
      %v8373 = vrcp.pop %v8349
      %v8374 = vrcp.pop %v8351
      %v8375 = vrcp.pop %v8353
      %v8376 = vrcp.pop %v8355
      %v8377 = vrcp.pop %v8357
      %v8378 = vrcp.pop %v8359
      %v8379 = vrcp.pop %v8361
      %v8380 = vrcp.pop %v8363
      %v8381 = vrcp.pop %v8365
      %v8382 = vmul.f32 %v8303, %v8366
      %v8383 = vmul.f32 %v8305, %v8367
      %v8384 = vmul.f32 %v8307, %v8368
      %v8385 = vmul.f32 %v8309, %v8369
      %v8386 = vmul.f32 %v8311, %v8370
      %v8387 = vmul.f32 %v8313, %v8371
      %v8388 = vmul.f32 %v8315, %v8372
      %v8389 = vmul.f32 %v8317, %v8373
      %v8390 = vmul.f32 %v8319, %v8374
      %v8391 = vmul.f32 %v8321, %v8375
      %v8392 = vmul.f32 %v8323, %v8376
      %v8393 = vmul.f32 %v8325, %v8377
      %v8394 = vmul.f32 %v8327, %v8378
      %v8395 = vmul.f32 %v8329, %v8379
      %v8396 = vmul.f32 %v8331, %v8380
      %v8397 = vmul.f32 %v8333, %v8381
      %v8398 = vpack.c.bf16 %v8383, %v8382
      %v8399 = vpack.c.bf16 %v8385, %v8384
      %v8400 = vpack.c.bf16 %v8387, %v8386
      %v8401 = vpack.c.bf16 %v8389, %v8388
      %v8402 = vpack.c.bf16 %v8391, %v8390
      %v8403 = vpack.c.bf16 %v8393, %v8392
      %v8404 = vpack.c.bf16 %v8395, %v8394
      %v8405 = vpack.c.bf16 %v8397, %v8396
      %8406 = vrot.lane.b32.xlu0 %v6680, 32
      %v8407 = vpop.permute.xlu0 %8406
      %8408 = vrot.lane.b32.xlu0 %v6681, 32
      %v8409 = vpop.permute.xlu0 %8408
      %8410 = vrot.lane.b32.xlu0 %v6682, 32
      %v8411 = vpop.permute.xlu0 %8410
      %8412 = vrot.lane.b32.xlu0 %v6683, 32
      %v8413 = vpop.permute.xlu0 %8412
      %8414 = vrot.lane.b32.xlu0 %v6684, 32
      %v8415 = vpop.permute.xlu0 %8414
      %8416 = vrot.lane.b32.xlu0 %v6685, 32
      %v8417 = vpop.permute.xlu0 %8416
      %8418 = vrot.lane.b32.xlu0 %v6686, 32
      %v8419 = vpop.permute.xlu0 %8418
      %8420 = vrot.lane.b32.xlu0 %v6687, 32
      %v8421 = vpop.permute.xlu0 %8420
      %8430 = vmatprep.subr.bf16.mxu0 0
      %8431 = vmatpush1.bf16.msra.mxu0 %v8421
      %8432 = vmatprep.subr.bf16.mxu0 0
      %8433 = vmatpush1.bf16.msra.mxu0 %v8419
      %8434 = vmatprep.subr.bf16.mxu0 0
      %8435 = vmatpush1.bf16.msra.mxu0 %v8417
      %8436 = vmatprep.subr.bf16.mxu0 0
      %8437 = vmatpush1.bf16.msra.mxu0 %v8415
      %8438 = vmatprep.subr.bf16.mxu0 0
      %8439 = vmatpush1.bf16.msra.mxu0 %v8413
      %8440 = vmatprep.subr.bf16.mxu0 0
      %8441 = vmatpush1.bf16.msra.mxu0 %v8411
      %8442 = vmatprep.subr.bf16.mxu0 0
      %8443 = vmatpush1.bf16.msra.mxu0 %v8409
      %8444 = vmatprep.subr.bf16.mxu0 0
      %8445 = vmatpush1.bf16.msra.mxu0 %v8407
      %8446 = vmatprep.subr.bf16.mxu0 0
      %8447 = vmatpush2.bf16.msra.mxu0 0
      %8448 = vmatprep.subr.bf16.mxu0 0
      %8449 = vmatpush2.bf16.msra.mxu0 0
      %8450 = vmatprep.subr.bf16.mxu0 0
      %8451 = vmatpush2.bf16.msra.mxu0 0
      %8452 = vmatprep.subr.bf16.mxu0 0
      %8453 = vmatpush2.bf16.msra.mxu0 0
      %8454 = vmatprep.subr.bf16.mxu0 0
      %8455 = vmatpush2.bf16.msra.mxu0 0
      %8456 = vmatprep.subr.bf16.mxu0 0
      %8457 = vmatpush2.bf16.msra.mxu0 0
      %8458 = vmatprep.subr.bf16.mxu0 0
      %8459 = vmatpush2.bf16.msra.mxu0 0
      %8460 = vmatprep.subr.bf16.mxu0 0
      %8461 = vmatpush2.bf16.msra.mxu0 0
      %8462 = vmatprep.mubr.bf16.mxu0 0
      %8463 = vmatmul.mubr.bf16.gmra.mxu0 %v8398
      %v8464 = vpop.f32.mrf.mxu0
      %v8465 = vadd.f32 0.0, %v8464
      %v8466 = vpop.f32.mrf.mxu0
      %v8467 = vpop.f32.mrf.mxu0
      %v8468 = vadd.f32 0.0, %v8467
      %v8469 = vpop.f32.mrf.mxu0
      %8470 = vmatprep.mubr.bf16.mxu0 0
      %8471 = vmatmul.mubr.bf16.gmra.mxu0 %v8399
      %v8472 = vpop.f32.mrf.mxu0
      %v8473 = vadd.f32 0.0, %v8472
      %v8474 = vpop.f32.mrf.mxu0
      %v8475 = vpop.f32.mrf.mxu0
      %v8476 = vadd.f32 0.0, %v8475
      %v8477 = vpop.f32.mrf.mxu0
      %8478 = vmatprep.mubr.bf16.mxu0 0
      %8479 = vmatmul.mubr.bf16.gmra.mxu0 %v8400
      %v8480 = vpop.f32.mrf.mxu0
      %v8481 = vadd.f32 0.0, %v8480
      %v8482 = vpop.f32.mrf.mxu0
      %v8483 = vpop.f32.mrf.mxu0
      %v8484 = vadd.f32 0.0, %v8483
      %v8485 = vpop.f32.mrf.mxu0
      %8486 = vmatprep.mubr.bf16.mxu0 0
      %8487 = vmatmul.mubr.bf16.gmra.mxu0 %v8401
      %v8488 = vpop.f32.mrf.mxu0
      %v8489 = vadd.f32 0.0, %v8488
      %v8490 = vpop.f32.mrf.mxu0
      %v8491 = vpop.f32.mrf.mxu0
      %v8492 = vadd.f32 0.0, %v8491
      %v8493 = vpop.f32.mrf.mxu0
      %8494 = vmatprep.mubr.bf16.mxu0 0
      %8495 = vmatmul.mubr.bf16.gmra.mxu0 %v8402
      %v8496 = vpop.f32.mrf.mxu0
      %v8497 = vadd.f32 0.0, %v8496
      %v8498 = vpop.f32.mrf.mxu0
      %v8499 = vpop.f32.mrf.mxu0
      %v8500 = vadd.f32 0.0, %v8499
      %v8501 = vpop.f32.mrf.mxu0
      %8502 = vmatprep.mubr.bf16.mxu0 0
      %8503 = vmatmul.mubr.bf16.gmra.mxu0 %v8403
      %v8504 = vpop.f32.mrf.mxu0
      %v8505 = vadd.f32 0.0, %v8504
      %v8506 = vpop.f32.mrf.mxu0
      %v8507 = vpop.f32.mrf.mxu0
      %v8508 = vadd.f32 0.0, %v8507
      %v8509 = vpop.f32.mrf.mxu0
      %8510 = vmatprep.mubr.bf16.mxu0 0
      %8511 = vmatmul.mubr.bf16.gmra.mxu0 %v8404
      %v8512 = vpop.f32.mrf.mxu0
      %v8513 = vadd.f32 0.0, %v8512
      %v8514 = vpop.f32.mrf.mxu0
      %v8515 = vpop.f32.mrf.mxu0
      %v8516 = vadd.f32 0.0, %v8515
      %v8517 = vpop.f32.mrf.mxu0
      %8518 = vmatprep.mubr.bf16.mxu0 0
      %8519 = vmatmul.mubr.bf16.gmra.mxu0 %v8405
      %v8520 = vpop.f32.mrf.mxu0
      %v8521 = vadd.f32 0.0, %v8520
      %v8522 = vpop.f32.mrf.mxu0
      %v8523 = vpop.f32.mrf.mxu0
      %v8524 = vadd.f32 0.0, %v8523
      %v8525 = vpop.f32.mrf.mxu0
      %8526 = vdwg.mxu0
      %8543 = vrot.lane.b32.xlu0 %v7309, 32
      %v8544 = vpop.permute.xlu0 %8543
      %8545 = vrot.lane.b32.xlu0 %v7312, 32
      %v8546 = vpop.permute.xlu0 %8545
      %8547 = vrot.lane.b32.xlu0 %v7317, 32
      %v8548 = vpop.permute.xlu0 %8547
      %8549 = vrot.lane.b32.xlu0 %v7320, 32
      %v8550 = vpop.permute.xlu0 %8549
      %8551 = vrot.lane.b32.xlu0 %v7325, 32
      %v8552 = vpop.permute.xlu0 %8551
      %8553 = vrot.lane.b32.xlu0 %v7328, 32
      %v8554 = vpop.permute.xlu0 %8553
      %8555 = vrot.lane.b32.xlu0 %v7333, 32
      %v8556 = vpop.permute.xlu0 %8555
      %8557 = vrot.lane.b32.xlu0 %v7336, 32
      %v8558 = vpop.permute.xlu0 %8557
      %8559 = vrot.lane.b32.xlu0 %v7341, 32
      %v8560 = vpop.permute.xlu0 %8559
      %8561 = vrot.lane.b32.xlu0 %v7344, 32
      %v8562 = vpop.permute.xlu0 %8561
      %8563 = vrot.lane.b32.xlu0 %v7349, 32
      %v8564 = vpop.permute.xlu0 %8563
      %8565 = vrot.lane.b32.xlu0 %v7352, 32
      %v8566 = vpop.permute.xlu0 %8565
      %8567 = vrot.lane.b32.xlu0 %v7357, 32
      %v8568 = vpop.permute.xlu0 %8567
      %8569 = vrot.lane.b32.xlu0 %v7360, 32
      %v8570 = vpop.permute.xlu0 %8569
      %8571 = vrot.lane.b32.xlu0 %v7365, 32
      %v8572 = vpop.permute.xlu0 %8571
      %8573 = vrot.lane.b32.xlu0 %v7368, 32
      %v8574 = vpop.permute.xlu0 %8573
      %8607 = vrot.lane.b32.xlu0 %v7887, 64
      %v8608 = vpop.permute.xlu0 %8607
      %8609 = vrot.lane.b32.xlu0 %v7890, 64
      %v8610 = vpop.permute.xlu0 %8609
      %8611 = vrot.lane.b32.xlu0 %v7895, 64
      %v8612 = vpop.permute.xlu0 %8611
      %8613 = vrot.lane.b32.xlu0 %v7898, 64
      %v8614 = vpop.permute.xlu0 %8613
      %8615 = vrot.lane.b32.xlu0 %v7903, 64
      %v8616 = vpop.permute.xlu0 %8615
      %8617 = vrot.lane.b32.xlu0 %v7906, 64
      %v8618 = vpop.permute.xlu0 %8617
      %8619 = vrot.lane.b32.xlu0 %v7911, 64
      %v8620 = vpop.permute.xlu0 %8619
      %8621 = vrot.lane.b32.xlu0 %v7914, 64
      %v8622 = vpop.permute.xlu0 %8621
      %8623 = vrot.lane.b32.xlu0 %v7919, 64
      %v8624 = vpop.permute.xlu0 %8623
      %8625 = vrot.lane.b32.xlu0 %v7922, 64
      %v8626 = vpop.permute.xlu0 %8625
      %8627 = vrot.lane.b32.xlu0 %v7927, 64
      %v8628 = vpop.permute.xlu0 %8627
      %8629 = vrot.lane.b32.xlu0 %v7930, 64
      %v8630 = vpop.permute.xlu0 %8629
      %8631 = vrot.lane.b32.xlu0 %v7935, 64
      %v8632 = vpop.permute.xlu0 %8631
      %8633 = vrot.lane.b32.xlu0 %v7938, 64
      %v8634 = vpop.permute.xlu0 %8633
      %8635 = vrot.lane.b32.xlu0 %v7943, 64
      %v8636 = vpop.permute.xlu0 %8635
      %8637 = vrot.lane.b32.xlu0 %v7946, 64
      %v8638 = vpop.permute.xlu0 %8637
      %8671 = vrot.lane.b32.xlu0 %v8465, 96
      %v8672 = vpop.permute.xlu0 %8671
      %8673 = vrot.lane.b32.xlu0 %v8468, 96
      %v8674 = vpop.permute.xlu0 %8673
      %8675 = vrot.lane.b32.xlu0 %v8473, 96
      %v8676 = vpop.permute.xlu0 %8675
      %8677 = vrot.lane.b32.xlu0 %v8476, 96
      %v8678 = vpop.permute.xlu0 %8677
      %8679 = vrot.lane.b32.xlu0 %v8481, 96
      %v8680 = vpop.permute.xlu0 %8679
      %8681 = vrot.lane.b32.xlu0 %v8484, 96
      %v8682 = vpop.permute.xlu0 %8681
      %8683 = vrot.lane.b32.xlu0 %v8489, 96
      %v8684 = vpop.permute.xlu0 %8683
      %8685 = vrot.lane.b32.xlu0 %v8492, 96
      %v8686 = vpop.permute.xlu0 %8685
      %8687 = vrot.lane.b32.xlu0 %v8497, 96
      %v8688 = vpop.permute.xlu0 %8687
      %8689 = vrot.lane.b32.xlu0 %v8500, 96
      %v8690 = vpop.permute.xlu0 %8689
      %8691 = vrot.lane.b32.xlu0 %v8505, 96
      %v8692 = vpop.permute.xlu0 %8691
      %8693 = vrot.lane.b32.xlu0 %v8508, 96
      %v8694 = vpop.permute.xlu0 %8693
      %8695 = vrot.lane.b32.xlu0 %v8513, 96
      %v8696 = vpop.permute.xlu0 %8695
      %8697 = vrot.lane.b32.xlu0 %v8516, 96
      %v8698 = vpop.permute.xlu0 %8697
      %8699 = vrot.lane.b32.xlu0 %v8521, 96
      %v8700 = vpop.permute.xlu0 %8699
      %8701 = vrot.lane.b32.xlu0 %v8524, 96
      %v8702 = vpop.permute.xlu0 %8701
      %v8719 = vsel %vm1172, %v6723, %v8544
      %v8720 = vsel %vm1172, %v6726, %v8546
      %v8721 = vsel %vm1172, %v6731, %v8548
      %v8722 = vsel %vm1172, %v6734, %v8550
      %v8723 = vsel %vm1172, %v6739, %v8552
      %v8724 = vsel %vm1172, %v6742, %v8554
      %v8725 = vsel %vm1172, %v6747, %v8556
      %v8726 = vsel %vm1172, %v6750, %v8558
      %v8727 = vsel %vm1172, %v6755, %v8560
      %v8728 = vsel %vm1172, %v6758, %v8562
      %v8729 = vsel %vm1172, %v6763, %v8564
      %v8730 = vsel %vm1172, %v6766, %v8566
      %v8731 = vsel %vm1172, %v6771, %v8568
      %v8732 = vsel %vm1172, %v6774, %v8570
      %v8733 = vsel %vm1172, %v6779, %v8572
      %v8734 = vsel %vm1172, %v6782, %v8574
      %v8735 = vsel %vm3659, %v8719, %v8608
      %v8736 = vsel %vm3659, %v8720, %v8610
      %v8737 = vsel %vm3659, %v8721, %v8612
      %v8738 = vsel %vm3659, %v8722, %v8614
      %v8739 = vsel %vm3659, %v8723, %v8616
      %v8740 = vsel %vm3659, %v8724, %v8618
      %v8741 = vsel %vm3659, %v8725, %v8620
      %v8742 = vsel %vm3659, %v8726, %v8622
      %v8743 = vsel %vm3659, %v8727, %v8624
      %v8744 = vsel %vm3659, %v8728, %v8626
      %v8745 = vsel %vm3659, %v8729, %v8628
      %v8746 = vsel %vm3659, %v8730, %v8630
      %v8747 = vsel %vm3659, %v8731, %v8632
      %v8748 = vsel %vm3659, %v8732, %v8634
      %v8749 = vsel %vm3659, %v8733, %v8636
      %v8750 = vsel %vm3659, %v8734, %v8638
      %v8751 = vsel %vm3676, %v8735, %v8672
      %v8752 = vsel %vm3676, %v8736, %v8674
      %v8753 = vsel %vm3676, %v8737, %v8676
      %v8754 = vsel %vm3676, %v8738, %v8678
      %v8755 = vsel %vm3676, %v8739, %v8680
      %v8756 = vsel %vm3676, %v8740, %v8682
      %v8757 = vsel %vm3676, %v8741, %v8684
      %v8758 = vsel %vm3676, %v8742, %v8686
      %v8759 = vsel %vm3676, %v8743, %v8688
      %v8760 = vsel %vm3676, %v8744, %v8690
      %v8761 = vsel %vm3676, %v8745, %v8692
      %v8762 = vsel %vm3676, %v8746, %v8694
      %v8763 = vsel %vm3676, %v8747, %v8696
      %v8764 = vsel %vm3676, %v8748, %v8698
      %v8765 = vsel %vm3676, %v8749, %v8700
      %v8766 = vsel %vm3676, %v8750, %v8702
      %v8767 = vpack.c.bf16 %v8752, %v8751
      %v8768 = vpack.c.bf16 %v8754, %v8753
      %v8769 = vpack.c.bf16 %v8756, %v8755
      %v8770 = vpack.c.bf16 %v8758, %v8757
      %v8771 = vpack.c.bf16 %v8760, %v8759
      %v8772 = vpack.c.bf16 %v8762, %v8761
      %v8773 = vpack.c.bf16 %v8764, %v8763
      %v8774 = vpack.c.bf16 %v8766, %v8765
      %s8775 = scalar_lea.vmem %s6, 64
      %v8776 = vld [vmem:[%s8775] sm:$0xf]
      %v8777 = vld [vmem:[%s8775 + $0x4] sm:$0xf]
      %v8778 = vld [vmem:[%s8775 + $0x8] sm:$0xf]
      %v8779 = vld [vmem:[%s8775 + $0xc] sm:$0xf]
      %v8780 = vld [vmem:[%s8775 + $0x10] sm:$0xf]
      %v8781 = vld [vmem:[%s8775 + $0x14] sm:$0xf]
      %v8782 = vld [vmem:[%s8775 + $0x18] sm:$0xf]
      %v8783 = vld [vmem:[%s8775 + $0x1c] sm:$0xf]
      %v8784 = vld [vmem:[%s8775 + $0x20] sm:$0xf]
      %v8785 = vld [vmem:[%s8775 + $0x24] sm:$0xf]
      %v8786 = vld [vmem:[%s8775 + $0x28] sm:$0xf]
      %v8787 = vld [vmem:[%s8775 + $0x2c] sm:$0xf]
      %v8788 = vld [vmem:[%s8775 + $0x30] sm:$0xf]
      %v8789 = vld [vmem:[%s8775 + $0x34] sm:$0xf]
      %v8790 = vld [vmem:[%s8775 + $0x38] sm:$0xf]
      %v8791 = vld [vmem:[%s8775 + $0x3c] sm:$0xf]
      %s8792 = scalar_lea.vmem %s7, 1
      %v8793 = vld [vmem:[%s8792] sm:$0x1]
      %v8795 = vlaneseq
      %v8796 = vshrl.u32 %v8795, 7
      %v8797 = vsub.s32 0, %v8796
      %v8798 = vrot.slane %v8793, %v8797
      %v8816 = vunpack.c.l.b16 %v8776
      %v8817 = vunpack.c.l.b16 %v8777
      %v8818 = vunpack.c.l.b16 %v8778
      %v8819 = vunpack.c.l.b16 %v8779
      %v8820 = vunpack.c.l.b16 %v8780
      %v8821 = vunpack.c.l.b16 %v8781
      %v8822 = vunpack.c.l.b16 %v8782
      %v8823 = vunpack.c.l.b16 %v8783
      %v8824 = vunpack.c.l.b16 %v8784
      %v8825 = vunpack.c.l.b16 %v8785
      %v8826 = vunpack.c.l.b16 %v8786
      %v8827 = vunpack.c.l.b16 %v8787
      %v8828 = vunpack.c.l.b16 %v8788
      %v8829 = vunpack.c.l.b16 %v8789
      %v8830 = vunpack.c.l.b16 %v8790
      %v8831 = vunpack.c.l.b16 %v8791
      %v8832 = vpack.c.b16 %v8817, %v8816
      %v8833 = vpack.c.b16 %v8819, %v8818
      %v8834 = vpack.c.b16 %v8821, %v8820
      %v8835 = vpack.c.b16 %v8823, %v8822
      %v8836 = vpack.c.b16 %v8825, %v8824
      %v8837 = vpack.c.b16 %v8827, %v8826
      %v8838 = vpack.c.b16 %v8829, %v8828
      %v8839 = vpack.c.b16 %v8831, %v8830
      %8848 = vmatprep.subr.bf16.mxu0 0
      %8849 = vmatpush1.bf16.msra.mxu0 %v8839
      %8850 = vmatprep.subr.bf16.mxu0 0
      %8851 = vmatpush1.bf16.msra.mxu0 %v8838
      %8852 = vmatprep.subr.bf16.mxu0 0
      %8853 = vmatpush1.bf16.msra.mxu0 %v8837
      %8854 = vmatprep.subr.bf16.mxu0 0
      %8855 = vmatpush1.bf16.msra.mxu0 %v8836
      %8856 = vmatprep.subr.bf16.mxu0 0
      %8857 = vmatpush1.bf16.msra.mxu0 %v8835
      %8858 = vmatprep.subr.bf16.mxu0 0
      %8859 = vmatpush1.bf16.msra.mxu0 %v8834
      %8860 = vmatprep.subr.bf16.mxu0 0
      %8861 = vmatpush1.bf16.msra.mxu0 %v8833
      %8862 = vmatprep.subr.bf16.mxu0 0
      %8863 = vmatpush1.bf16.msra.mxu0 %v8832
      %8864 = vmatprep.subr.bf16.mxu0 0
      %8865 = vmatpush2.bf16.msra.mxu0 0
      %8866 = vmatprep.subr.bf16.mxu0 0
      %8867 = vmatpush2.bf16.msra.mxu0 0
      %8868 = vmatprep.subr.bf16.mxu0 0
      %8869 = vmatpush2.bf16.msra.mxu0 0
      %8870 = vmatprep.subr.bf16.mxu0 0
      %8871 = vmatpush2.bf16.msra.mxu0 0
      %8872 = vmatprep.subr.bf16.mxu0 0
      %8873 = vmatpush2.bf16.msra.mxu0 0
      %8874 = vmatprep.subr.bf16.mxu0 0
      %8875 = vmatpush2.bf16.msra.mxu0 0
      %8876 = vmatprep.subr.bf16.mxu0 0
      %8877 = vmatpush2.bf16.msra.mxu0 0
      %8878 = vmatprep.subr.bf16.mxu0 0
      %8879 = vmatpush2.bf16.msra.mxu0 0
      %8880 = vmatprep.mubr.bf16.mxu0 0
      %8881 = vmatmul.mubr.bf16.gmra.mxu0 %v8767
      %v8882 = vpop.f32.mrf.mxu0
      %v8883 = vadd.f32 %v8798, %v8882
      %v8884 = vpop.f32.mrf.mxu0
      %v8885 = vpop.f32.mrf.mxu0
      %v8886 = vadd.f32 %v8798, %v8885
      %v8887 = vpop.f32.mrf.mxu0
      %8888 = vmatprep.mubr.bf16.mxu0 0
      %8889 = vmatmul.mubr.bf16.gmra.mxu0 %v8768
      %v8890 = vpop.f32.mrf.mxu0
      %v8891 = vadd.f32 %v8798, %v8890
      %v8892 = vpop.f32.mrf.mxu0
      %v8893 = vpop.f32.mrf.mxu0
      %v8894 = vadd.f32 %v8798, %v8893
      %v8895 = vpop.f32.mrf.mxu0
      %8896 = vmatprep.mubr.bf16.mxu0 0
      %8897 = vmatmul.mubr.bf16.gmra.mxu0 %v8769
      %v8898 = vpop.f32.mrf.mxu0
      %v8899 = vadd.f32 %v8798, %v8898
      %v8900 = vpop.f32.mrf.mxu0
      %v8901 = vpop.f32.mrf.mxu0
      %v8902 = vadd.f32 %v8798, %v8901
      %v8903 = vpop.f32.mrf.mxu0
      %8904 = vmatprep.mubr.bf16.mxu0 0
      %8905 = vmatmul.mubr.bf16.gmra.mxu0 %v8770
      %v8906 = vpop.f32.mrf.mxu0
      %v8907 = vadd.f32 %v8798, %v8906
      %v8908 = vpop.f32.mrf.mxu0
      %v8909 = vpop.f32.mrf.mxu0
      %v8910 = vadd.f32 %v8798, %v8909
      %v8911 = vpop.f32.mrf.mxu0
      %8912 = vmatprep.mubr.bf16.mxu0 0
      %8913 = vmatmul.mubr.bf16.gmra.mxu0 %v8771
      %v8914 = vpop.f32.mrf.mxu0
      %v8915 = vadd.f32 %v8798, %v8914
      %v8916 = vpop.f32.mrf.mxu0
      %v8917 = vpop.f32.mrf.mxu0
      %v8918 = vadd.f32 %v8798, %v8917
      %v8919 = vpop.f32.mrf.mxu0
      %8920 = vmatprep.mubr.bf16.mxu0 0
      %8921 = vmatmul.mubr.bf16.gmra.mxu0 %v8772
      %v8922 = vpop.f32.mrf.mxu0
      %v8923 = vadd.f32 %v8798, %v8922
      %v8924 = vpop.f32.mrf.mxu0
      %v8925 = vpop.f32.mrf.mxu0
      %v8926 = vadd.f32 %v8798, %v8925
      %v8927 = vpop.f32.mrf.mxu0
      %8928 = vmatprep.mubr.bf16.mxu0 0
      %8929 = vmatmul.mubr.bf16.gmra.mxu0 %v8773
      %v8930 = vpop.f32.mrf.mxu0
      %v8931 = vadd.f32 %v8798, %v8930
      %v8932 = vpop.f32.mrf.mxu0
      %v8933 = vpop.f32.mrf.mxu0
      %v8934 = vadd.f32 %v8798, %v8933
      %v8935 = vpop.f32.mrf.mxu0
      %8936 = vmatprep.mubr.bf16.mxu0 0
      %8937 = vmatmul.mubr.bf16.gmra.mxu0 %v8774
      %v8938 = vpop.f32.mrf.mxu0
      %v8939 = vadd.f32 %v8798, %v8938
      %v8940 = vpop.f32.mrf.mxu0
      %v8941 = vpop.f32.mrf.mxu0
      %v8942 = vadd.f32 %v8798, %v8941
      %v8943 = vpop.f32.mrf.mxu0
      %8944 = vdwg.mxu0
      %v8945 = vadd.f32 %v5842, %v8883
      %v8946 = vadd.f32 %v5843, %v8886
      %v8947 = vadd.f32 %v5844, %v8891
      %v8948 = vadd.f32 %v5845, %v8894
      %v8949 = vadd.f32 %v5846, %v8899
      %v8950 = vadd.f32 %v5847, %v8902
      %v8951 = vadd.f32 %v5848, %v8907
      %v8952 = vadd.f32 %v5849, %v8910
      %v8953 = vadd.f32 %v5850, %v8915
      %v8954 = vadd.f32 %v5851, %v8918
      %v8955 = vadd.f32 %v5852, %v8923
      %v8956 = vadd.f32 %v5853, %v8926
      %v8957 = vadd.f32 %v5854, %v8931
      %v8958 = vadd.f32 %v5855, %v8934
      %v8959 = vadd.f32 %v5856, %v8939
      %v8960 = vadd.f32 %v5857, %v8942
      %s8961 = scalar_lea.vmem %s8, 1
      %v8962 = vld [vmem:[%s8961] sm:$0x1]
      %s8963 = scalar_lea.vmem %s9, 1
      %v8964 = vld [vmem:[%s8963] sm:$0x1]
      %8965 = vadd.xlane.f32.xlu0 %v8945
      %v8966 = vpop.xlane.xlu0 %8965
      %8967 = vadd.xlane.f32.xlu0 %v8946
      %v8968 = vpop.xlane.xlu0 %8967
      %8969 = vadd.xlane.f32.xlu0 %v8947
      %v8970 = vpop.xlane.xlu0 %8969
      %8971 = vadd.xlane.f32.xlu0 %v8948
      %v8972 = vpop.xlane.xlu0 %8971
      %8973 = vadd.xlane.f32.xlu0 %v8949
      %v8974 = vpop.xlane.xlu0 %8973
      %8975 = vadd.xlane.f32.xlu0 %v8950
      %v8976 = vpop.xlane.xlu0 %8975
      %8977 = vadd.xlane.f32.xlu0 %v8951
      %v8978 = vpop.xlane.xlu0 %8977
      %8979 = vadd.xlane.f32.xlu0 %v8952
      %v8980 = vpop.xlane.xlu0 %8979
      %8981 = vadd.xlane.f32.xlu0 %v8953
      %v8982 = vpop.xlane.xlu0 %8981
      %8983 = vadd.xlane.f32.xlu0 %v8954
      %v8984 = vpop.xlane.xlu0 %8983
      %8985 = vadd.xlane.f32.xlu0 %v8955
      %v8986 = vpop.xlane.xlu0 %8985
      %8987 = vadd.xlane.f32.xlu0 %v8956
      %v8988 = vpop.xlane.xlu0 %8987
      %8989 = vadd.xlane.f32.xlu0 %v8957
      %v8990 = vpop.xlane.xlu0 %8989
      %8991 = vadd.xlane.f32.xlu0 %v8958
      %v8992 = vpop.xlane.xlu0 %8991
      %8993 = vadd.xlane.f32.xlu0 %v8959
      %v8994 = vpop.xlane.xlu0 %8993
      %8995 = vadd.xlane.f32.xlu0 %v8960
      %v8996 = vpop.xlane.xlu0 %8995
      %v8997 = vmul.f32 %v8966, %v587
      %v8998 = vmul.f32 %v8968, %v587
      %v8999 = vmul.f32 %v8970, %v587
      %v9000 = vmul.f32 %v8972, %v587
      %v9001 = vmul.f32 %v8974, %v587
      %v9002 = vmul.f32 %v8976, %v587
      %v9003 = vmul.f32 %v8978, %v587
      %v9004 = vmul.f32 %v8980, %v587
      %v9005 = vmul.f32 %v8982, %v587
      %v9006 = vmul.f32 %v8984, %v587
      %v9007 = vmul.f32 %v8986, %v587
      %v9008 = vmul.f32 %v8988, %v587
      %v9009 = vmul.f32 %v8990, %v587
      %v9010 = vmul.f32 %v8992, %v587
      %v9011 = vmul.f32 %v8994, %v587
      %v9012 = vmul.f32 %v8996, %v587
      %v9013 = vsub.f32 %v8945, %v8997
      %v9014 = vsub.f32 %v8946, %v8998
      %v9015 = vsub.f32 %v8947, %v8999
      %v9016 = vsub.f32 %v8948, %v9000
      %v9017 = vsub.f32 %v8949, %v9001
      %v9018 = vsub.f32 %v8950, %v9002
      %v9019 = vsub.f32 %v8951, %v9003
      %v9020 = vsub.f32 %v8952, %v9004
      %v9021 = vsub.f32 %v8953, %v9005
      %v9022 = vsub.f32 %v8954, %v9006
      %v9023 = vsub.f32 %v8955, %v9007
      %v9024 = vsub.f32 %v8956, %v9008
      %v9025 = vsub.f32 %v8957, %v9009
      %v9026 = vsub.f32 %v8958, %v9010
      %v9027 = vsub.f32 %v8959, %v9011
      %v9028 = vsub.f32 %v8960, %v9012
      %v9029 = vmul.f32 %v9013, %v9013
      %v9030 = vmul.f32 %v9014, %v9014
      %v9031 = vmul.f32 %v9015, %v9015
      %v9032 = vmul.f32 %v9016, %v9016
      %v9033 = vmul.f32 %v9017, %v9017
      %v9034 = vmul.f32 %v9018, %v9018
      %v9035 = vmul.f32 %v9019, %v9019
      %v9036 = vmul.f32 %v9020, %v9020
      %v9037 = vmul.f32 %v9021, %v9021
      %v9038 = vmul.f32 %v9022, %v9022
      %v9039 = vmul.f32 %v9023, %v9023
      %v9040 = vmul.f32 %v9024, %v9024
      %v9041 = vmul.f32 %v9025, %v9025
      %v9042 = vmul.f32 %v9026, %v9026
      %v9043 = vmul.f32 %v9027, %v9027
      %v9044 = vmul.f32 %v9028, %v9028
      %9045 = vadd.xlane.f32.xlu0 %v9029
      %v9046 = vpop.xlane.xlu0 %9045
      %9047 = vadd.xlane.f32.xlu0 %v9030
      %v9048 = vpop.xlane.xlu0 %9047
      %9049 = vadd.xlane.f32.xlu0 %v9031
      %v9050 = vpop.xlane.xlu0 %9049
      %9051 = vadd.xlane.f32.xlu0 %v9032
      %v9052 = vpop.xlane.xlu0 %9051
      %9053 = vadd.xlane.f32.xlu0 %v9033
      %v9054 = vpop.xlane.xlu0 %9053
      %9055 = vadd.xlane.f32.xlu0 %v9034
      %v9056 = vpop.xlane.xlu0 %9055
      %9057 = vadd.xlane.f32.xlu0 %v9035
      %v9058 = vpop.xlane.xlu0 %9057
      %9059 = vadd.xlane.f32.xlu0 %v9036
      %v9060 = vpop.xlane.xlu0 %9059
      %9061 = vadd.xlane.f32.xlu0 %v9037
      %v9062 = vpop.xlane.xlu0 %9061
      %9063 = vadd.xlane.f32.xlu0 %v9038
      %v9064 = vpop.xlane.xlu0 %9063
      %9065 = vadd.xlane.f32.xlu0 %v9039
      %v9066 = vpop.xlane.xlu0 %9065
      %9067 = vadd.xlane.f32.xlu0 %v9040
      %v9068 = vpop.xlane.xlu0 %9067
      %9069 = vadd.xlane.f32.xlu0 %v9041
      %v9070 = vpop.xlane.xlu0 %9069
      %9071 = vadd.xlane.f32.xlu0 %v9042
      %v9072 = vpop.xlane.xlu0 %9071
      %9073 = vadd.xlane.f32.xlu0 %v9043
      %v9074 = vpop.xlane.xlu0 %9073
      %9075 = vadd.xlane.f32.xlu0 %v9044
      %v9076 = vpop.xlane.xlu0 %9075
      %v9077 = vmul.f32 %v9046, %v587
      %v9078 = vmul.f32 %v9048, %v587
      %v9079 = vmul.f32 %v9050, %v587
      %v9080 = vmul.f32 %v9052, %v587
      %v9081 = vmul.f32 %v9054, %v587
      %v9082 = vmul.f32 %v9056, %v587
      %v9083 = vmul.f32 %v9058, %v587
      %v9084 = vmul.f32 %v9060, %v587
      %v9085 = vmul.f32 %v9062, %v587
      %v9086 = vmul.f32 %v9064, %v587
      %v9087 = vmul.f32 %v9066, %v587
      %v9088 = vmul.f32 %v9068, %v587
      %v9089 = vmul.f32 %v9070, %v587
      %v9090 = vmul.f32 %v9072, %v587
      %v9091 = vmul.f32 %v9074, %v587
      %v9092 = vmul.f32 %v9076, %v587
      %v9093 = vadd.f32 %v9077, 1e-12
      %v9094 = vadd.f32 %v9078, 1e-12
      %v9095 = vadd.f32 %v9079, 1e-12
      %v9096 = vadd.f32 %v9080, 1e-12
      %v9097 = vadd.f32 %v9081, 1e-12
      %v9098 = vadd.f32 %v9082, 1e-12
      %v9099 = vadd.f32 %v9083, 1e-12
      %v9100 = vadd.f32 %v9084, 1e-12
      %v9101 = vadd.f32 %v9085, 1e-12
      %v9102 = vadd.f32 %v9086, 1e-12
      %v9103 = vadd.f32 %v9087, 1e-12
      %v9104 = vadd.f32 %v9088, 1e-12
      %v9105 = vadd.f32 %v9089, 1e-12
      %v9106 = vadd.f32 %v9090, 1e-12
      %v9107 = vadd.f32 %v9091, 1e-12
      %v9108 = vadd.f32 %v9092, 1e-12
      %v9109 = vrsqrt.pop %v9093
      %v9110 = vrsqrt.pop %v9094
      %v9111 = vrsqrt.pop %v9095
      %v9112 = vrsqrt.pop %v9096
      %v9113 = vrsqrt.pop %v9097
      %v9114 = vrsqrt.pop %v9098
      %v9115 = vrsqrt.pop %v9099
      %v9116 = vrsqrt.pop %v9100
      %v9117 = vrsqrt.pop %v9101
      %v9118 = vrsqrt.pop %v9102
      %v9119 = vrsqrt.pop %v9103
      %v9120 = vrsqrt.pop %v9104
      %v9121 = vrsqrt.pop %v9105
      %v9122 = vrsqrt.pop %v9106
      %v9123 = vrsqrt.pop %v9107
      %v9124 = vrsqrt.pop %v9108
      %v9125 = vmul.f32 %v9013, %v9109
      %v9126 = vmul.f32 %v9014, %v9110
      %v9127 = vmul.f32 %v9015, %v9111
      %v9128 = vmul.f32 %v9016, %v9112
      %v9129 = vmul.f32 %v9017, %v9113
      %v9130 = vmul.f32 %v9018, %v9114
      %v9131 = vmul.f32 %v9019, %v9115
      %v9132 = vmul.f32 %v9020, %v9116
      %v9133 = vmul.f32 %v9021, %v9117
      %v9134 = vmul.f32 %v9022, %v9118
      %v9135 = vmul.f32 %v9023, %v9119
      %v9136 = vmul.f32 %v9024, %v9120
      %v9137 = vmul.f32 %v9025, %v9121
      %v9138 = vmul.f32 %v9026, %v9122
      %v9139 = vmul.f32 %v9027, %v9123
      %v9140 = vmul.f32 %v9028, %v9124
      %v9142 = vlaneseq
      %v9143 = vshrl.u32 %v9142, 7
      %v9144 = vsub.s32 0, %v9143
      %v9145 = vrot.slane %v8962, %v9144
      %v9147 = vmul.f32 %v9125, %v9145
      %v9148 = vmul.f32 %v9126, %v9145
      %v9149 = vmul.f32 %v9127, %v9145
      %v9150 = vmul.f32 %v9128, %v9145
      %v9151 = vmul.f32 %v9129, %v9145
      %v9152 = vmul.f32 %v9130, %v9145
      %v9153 = vmul.f32 %v9131, %v9145
      %v9154 = vmul.f32 %v9132, %v9145
      %v9155 = vmul.f32 %v9133, %v9145
      %v9156 = vmul.f32 %v9134, %v9145
      %v9157 = vmul.f32 %v9135, %v9145
      %v9158 = vmul.f32 %v9136, %v9145
      %v9159 = vmul.f32 %v9137, %v9145
      %v9160 = vmul.f32 %v9138, %v9145
      %v9161 = vmul.f32 %v9139, %v9145
      %v9162 = vmul.f32 %v9140, %v9145
      %v9164 = vlaneseq
      %v9165 = vshrl.u32 %v9164, 7
      %v9166 = vsub.s32 0, %v9165
      %v9167 = vrot.slane %v8964, %v9166
      %v9169 = vadd.f32 %v9147, %v9167
      %v9170 = vadd.f32 %v9148, %v9167
      %v9171 = vadd.f32 %v9149, %v9167
      %v9172 = vadd.f32 %v9150, %v9167
      %v9173 = vadd.f32 %v9151, %v9167
      %v9174 = vadd.f32 %v9152, %v9167
      %v9175 = vadd.f32 %v9153, %v9167
      %v9176 = vadd.f32 %v9154, %v9167
      %v9177 = vadd.f32 %v9155, %v9167
      %v9178 = vadd.f32 %v9156, %v9167
      %v9179 = vadd.f32 %v9157, %v9167
      %v9180 = vadd.f32 %v9158, %v9167
      %v9181 = vadd.f32 %v9159, %v9167
      %v9182 = vadd.f32 %v9160, %v9167
      %v9183 = vadd.f32 %v9161, %v9167
      %v9184 = vadd.f32 %v9162, %v9167
      %v9185 = vpack.c.bf16 %v9170, %v9169
      %v9186 = vpack.c.bf16 %v9172, %v9171
      %v9187 = vpack.c.bf16 %v9174, %v9173
      %v9188 = vpack.c.bf16 %v9176, %v9175
      %v9189 = vpack.c.bf16 %v9178, %v9177
      %v9190 = vpack.c.bf16 %v9180, %v9179
      %v9191 = vpack.c.bf16 %v9182, %v9181
      %v9192 = vpack.c.bf16 %v9184, %v9183
      %s9193 = scalar_lea.vmem %s10, 256
      %v9194 = vld [vmem:[%s9193] sm:$0xff]
      %v9195 = vld [vmem:[%s9193 + $0x8] sm:$0xff]
      %v9196 = vld [vmem:[%s9193 + $0x10] sm:$0xff]
      %v9197 = vld [vmem:[%s9193 + $0x18] sm:$0xff]
      %v9198 = vld [vmem:[%s9193 + $0x20] sm:$0xff]
      %v9199 = vld [vmem:[%s9193 + $0x28] sm:$0xff]
      %v9200 = vld [vmem:[%s9193 + $0x30] sm:$0xff]
      %v9201 = vld [vmem:[%s9193 + $0x38] sm:$0xff]
      %v9202 = vld [vmem:[%s9193 + $0x40] sm:$0xff]
      %v9203 = vld [vmem:[%s9193 + $0x48] sm:$0xff]
      %v9204 = vld [vmem:[%s9193 + $0x50] sm:$0xff]
      %v9205 = vld [vmem:[%s9193 + $0x58] sm:$0xff]
      %v9206 = vld [vmem:[%s9193 + $0x60] sm:$0xff]
      %v9207 = vld [vmem:[%s9193 + $0x68] sm:$0xff]
      %v9208 = vld [vmem:[%s9193 + $0x70] sm:$0xff]
      %v9209 = vld [vmem:[%s9193 + $0x78] sm:$0xff]
      %v9210 = vld [vmem:[%s9193 + $0x80] sm:$0xff]
      %v9211 = vld [vmem:[%s9193 + $0x88] sm:$0xff]
      %v9212 = vld [vmem:[%s9193 + $0x90] sm:$0xff]
      %v9213 = vld [vmem:[%s9193 + $0x98] sm:$0xff]
      %v9214 = vld [vmem:[%s9193 + $0xa0] sm:$0xff]
      %v9215 = vld [vmem:[%s9193 + $0xa8] sm:$0xff]
      %v9216 = vld [vmem:[%s9193 + $0xb0] sm:$0xff]
      %v9217 = vld [vmem:[%s9193 + $0xb8] sm:$0xff]
      %v9218 = vld [vmem:[%s9193 + $0xc0] sm:$0xff]
      %v9219 = vld [vmem:[%s9193 + $0xc8] sm:$0xff]
      %v9220 = vld [vmem:[%s9193 + $0xd0] sm:$0xff]
      %v9221 = vld [vmem:[%s9193 + $0xd8] sm:$0xff]
      %v9222 = vld [vmem:[%s9193 + $0xe0] sm:$0xff]
      %v9223 = vld [vmem:[%s9193 + $0xe8] sm:$0xff]
      %v9224 = vld [vmem:[%s9193 + $0xf0] sm:$0xff]
      %v9225 = vld [vmem:[%s9193 + $0xf8] sm:$0xff]
      %s9226 = scalar_lea.vmem %s11, 4
      %v9227 = vld [vmem:[%s9226] sm:$0xf]
      %v9229 = vlaneseq
      %v9230 = vshrl.u32 %v9229, 7
      %v9231 = vsub.s32 0, %v9230
      %v9232 = vrot.slane %v9227, %v9231
      %v9233 = vlaneseq
      %v9234 = vshrl.u32 %v9233, 7
      %v9235 = vsub.s32 1, %v9234
      %v9236 = vrot.slane %v9227, %v9235
      %v9237 = vlaneseq
      %v9238 = vshrl.u32 %v9237, 7
      %v9239 = vsub.s32 2, %v9238
      %v9240 = vrot.slane %v9227, %v9239
      %v9241 = vlaneseq
      %v9242 = vshrl.u32 %v9241, 7
      %v9243 = vsub.s32 3, %v9242
      %v9244 = vrot.slane %v9227, %v9243
      %v9281 = vunpack.c.l.b16 %v9194
      %v9282 = vunpack.c.h.b16 %v9194
      %v9283 = vunpack.c.l.b16 %v9195
      %v9284 = vunpack.c.h.b16 %v9195
      %v9285 = vunpack.c.l.b16 %v9196
      %v9286 = vunpack.c.h.b16 %v9196
      %v9287 = vunpack.c.l.b16 %v9197
      %v9288 = vunpack.c.h.b16 %v9197
      %v9289 = vunpack.c.l.b16 %v9198
      %v9290 = vunpack.c.h.b16 %v9198
      %v9291 = vunpack.c.l.b16 %v9199
      %v9292 = vunpack.c.h.b16 %v9199
      %v9293 = vunpack.c.l.b16 %v9200
      %v9294 = vunpack.c.h.b16 %v9200
      %v9295 = vunpack.c.l.b16 %v9201
      %v9296 = vunpack.c.h.b16 %v9201
      %v9297 = vunpack.c.l.b16 %v9202
      %v9298 = vunpack.c.h.b16 %v9202
      %v9299 = vunpack.c.l.b16 %v9203
      %v9300 = vunpack.c.h.b16 %v9203
      %v9301 = vunpack.c.l.b16 %v9204
      %v9302 = vunpack.c.h.b16 %v9204
      %v9303 = vunpack.c.l.b16 %v9205
      %v9304 = vunpack.c.h.b16 %v9205
      %v9305 = vunpack.c.l.b16 %v9206
      %v9306 = vunpack.c.h.b16 %v9206
      %v9307 = vunpack.c.l.b16 %v9207
      %v9308 = vunpack.c.h.b16 %v9207
      %v9309 = vunpack.c.l.b16 %v9208
      %v9310 = vunpack.c.h.b16 %v9208
      %v9311 = vunpack.c.l.b16 %v9209
      %v9312 = vunpack.c.h.b16 %v9209
      %v9313 = vunpack.c.l.b16 %v9210
      %v9314 = vunpack.c.h.b16 %v9210
      %v9315 = vunpack.c.l.b16 %v9211
      %v9316 = vunpack.c.h.b16 %v9211
      %v9317 = vunpack.c.l.b16 %v9212
      %v9318 = vunpack.c.h.b16 %v9212
      %v9319 = vunpack.c.l.b16 %v9213
      %v9320 = vunpack.c.h.b16 %v9213
      %v9321 = vunpack.c.l.b16 %v9214
      %v9322 = vunpack.c.h.b16 %v9214
      %v9323 = vunpack.c.l.b16 %v9215
      %v9324 = vunpack.c.h.b16 %v9215
      %v9325 = vunpack.c.l.b16 %v9216
      %v9326 = vunpack.c.h.b16 %v9216
      %v9327 = vunpack.c.l.b16 %v9217
      %v9328 = vunpack.c.h.b16 %v9217
      %v9329 = vunpack.c.l.b16 %v9218
      %v9330 = vunpack.c.h.b16 %v9218
      %v9331 = vunpack.c.l.b16 %v9219
      %v9332 = vunpack.c.h.b16 %v9219
      %v9333 = vunpack.c.l.b16 %v9220
      %v9334 = vunpack.c.h.b16 %v9220
      %v9335 = vunpack.c.l.b16 %v9221
      %v9336 = vunpack.c.h.b16 %v9221
      %v9337 = vunpack.c.l.b16 %v9222
      %v9338 = vunpack.c.h.b16 %v9222
      %v9339 = vunpack.c.l.b16 %v9223
      %v9340 = vunpack.c.h.b16 %v9223
      %v9341 = vunpack.c.l.b16 %v9224
      %v9342 = vunpack.c.h.b16 %v9224
      %v9343 = vunpack.c.l.b16 %v9225
      %v9344 = vunpack.c.h.b16 %v9225
      %v9345 = vpack.c.b16 %v9285, %v9281
      %v9346 = vpack.c.b16 %v9286, %v9282
      %v9347 = vpack.c.b16 %v9287, %v9283
      %v9348 = vpack.c.b16 %v9288, %v9284
      %v9349 = vpack.c.b16 %v9293, %v9289
      %v9350 = vpack.c.b16 %v9294, %v9290
      %v9351 = vpack.c.b16 %v9295, %v9291
      %v9352 = vpack.c.b16 %v9296, %v9292
      %v9353 = vpack.c.b16 %v9301, %v9297
      %v9354 = vpack.c.b16 %v9302, %v9298
      %v9355 = vpack.c.b16 %v9303, %v9299
      %v9356 = vpack.c.b16 %v9304, %v9300
      %v9357 = vpack.c.b16 %v9309, %v9305
      %v9358 = vpack.c.b16 %v9310, %v9306
      %v9359 = vpack.c.b16 %v9311, %v9307
      %v9360 = vpack.c.b16 %v9312, %v9308
      %v9361 = vpack.c.b16 %v9317, %v9313
      %v9362 = vpack.c.b16 %v9318, %v9314
      %v9363 = vpack.c.b16 %v9319, %v9315
      %v9364 = vpack.c.b16 %v9320, %v9316
      %v9365 = vpack.c.b16 %v9325, %v9321
      %v9366 = vpack.c.b16 %v9326, %v9322
      %v9367 = vpack.c.b16 %v9327, %v9323
      %v9368 = vpack.c.b16 %v9328, %v9324
      %v9369 = vpack.c.b16 %v9333, %v9329
      %v9370 = vpack.c.b16 %v9334, %v9330
      %v9371 = vpack.c.b16 %v9335, %v9331
      %v9372 = vpack.c.b16 %v9336, %v9332
      %v9373 = vpack.c.b16 %v9341, %v9337
      %v9374 = vpack.c.b16 %v9342, %v9338
      %v9375 = vpack.c.b16 %v9343, %v9339
      %v9376 = vpack.c.b16 %v9344, %v9340
      %9409 = vmatprep.subr.bf16.mxu0 %v9374
      %9410 = vmatpush1.bf16.msra.mxu0 %v9373
      %9411 = vmatprep.subr.bf16.mxu0 %v9370
      %9412 = vmatpush1.bf16.msra.mxu0 %v9369
      %9413 = vmatprep.subr.bf16.mxu0 %v9366
      %9414 = vmatpush1.bf16.msra.mxu0 %v9365
      %9415 = vmatprep.subr.bf16.mxu0 %v9362
      %9416 = vmatpush1.bf16.msra.mxu0 %v9361
      %9417 = vmatprep.subr.bf16.mxu0 %v9358
      %9418 = vmatpush1.bf16.msra.mxu0 %v9357
      %9419 = vmatprep.subr.bf16.mxu0 %v9354
      %9420 = vmatpush1.bf16.msra.mxu0 %v9353
      %9421 = vmatprep.subr.bf16.mxu0 %v9350
      %9422 = vmatpush1.bf16.msra.mxu0 %v9349
      %9423 = vmatprep.subr.bf16.mxu0 %v9346
      %9424 = vmatpush1.bf16.msra.mxu0 %v9345
      %9425 = vmatprep.subr.bf16.mxu0 0
      %9426 = vmatpush2.bf16.msra.mxu0 0
      %9427 = vmatprep.subr.bf16.mxu0 0
      %9428 = vmatpush2.bf16.msra.mxu0 0
      %9429 = vmatprep.subr.bf16.mxu0 0
      %9430 = vmatpush2.bf16.msra.mxu0 0
      %9431 = vmatprep.subr.bf16.mxu0 0
      %9432 = vmatpush2.bf16.msra.mxu0 0
      %9433 = vmatprep.subr.bf16.mxu0 0
      %9434 = vmatpush2.bf16.msra.mxu0 0
      %9435 = vmatprep.subr.bf16.mxu0 0
      %9436 = vmatpush2.bf16.msra.mxu0 0
      %9437 = vmatprep.subr.bf16.mxu0 0
      %9438 = vmatpush2.bf16.msra.mxu0 0
      %9439 = vmatprep.subr.bf16.mxu0 0
      %9440 = vmatpush2.bf16.msra.mxu0 0
      %9441 = vmatprep.mubr.bf16.mxu0 0
      %9442 = vmatmul.mubr.bf16.gmra.mxu0 %v9185
      %v9443 = vpop.f32.mrf.mxu0
      %v9444 = vadd.f32 %v9232, %v9443
      %v9445 = vpop.f32.mrf.mxu0
      %v9446 = vadd.f32 %v9236, %v9445
      %v9447 = vpop.f32.mrf.mxu0
      %v9448 = vadd.f32 %v9232, %v9447
      %v9449 = vpop.f32.mrf.mxu0
      %v9450 = vadd.f32 %v9236, %v9449
      %9451 = vmatprep.mubr.bf16.mxu0 0
      %9452 = vmatmul.mubr.bf16.gmra.mxu0 %v9186
      %v9453 = vpop.f32.mrf.mxu0
      %v9454 = vadd.f32 %v9232, %v9453
      %v9455 = vpop.f32.mrf.mxu0
      %v9456 = vadd.f32 %v9236, %v9455
      %v9457 = vpop.f32.mrf.mxu0
      %v9458 = vadd.f32 %v9232, %v9457
      %v9459 = vpop.f32.mrf.mxu0
      %v9460 = vadd.f32 %v9236, %v9459
      %9461 = vmatprep.mubr.bf16.mxu0 0
      %9462 = vmatmul.mubr.bf16.gmra.mxu0 %v9187
      %v9463 = vpop.f32.mrf.mxu0
      %v9464 = vadd.f32 %v9232, %v9463
      %v9465 = vpop.f32.mrf.mxu0
      %v9466 = vadd.f32 %v9236, %v9465
      %v9467 = vpop.f32.mrf.mxu0
      %v9468 = vadd.f32 %v9232, %v9467
      %v9469 = vpop.f32.mrf.mxu0
      %v9470 = vadd.f32 %v9236, %v9469
      %9471 = vmatprep.mubr.bf16.mxu0 0
      %9472 = vmatmul.mubr.bf16.gmra.mxu0 %v9188
      %v9473 = vpop.f32.mrf.mxu0
      %v9474 = vadd.f32 %v9232, %v9473
      %v9475 = vpop.f32.mrf.mxu0
      %v9476 = vadd.f32 %v9236, %v9475
      %v9477 = vpop.f32.mrf.mxu0
      %v9478 = vadd.f32 %v9232, %v9477
      %v9479 = vpop.f32.mrf.mxu0
      %v9480 = vadd.f32 %v9236, %v9479
      %9481 = vmatprep.mubr.bf16.mxu0 0
      %9482 = vmatmul.mubr.bf16.gmra.mxu0 %v9189
      %v9483 = vpop.f32.mrf.mxu0
      %v9484 = vadd.f32 %v9232, %v9483
      %v9485 = vpop.f32.mrf.mxu0
      %v9486 = vadd.f32 %v9236, %v9485
      %v9487 = vpop.f32.mrf.mxu0
      %v9488 = vadd.f32 %v9232, %v9487
      %v9489 = vpop.f32.mrf.mxu0
      %v9490 = vadd.f32 %v9236, %v9489
      %9491 = vmatprep.mubr.bf16.mxu0 0
      %9492 = vmatmul.mubr.bf16.gmra.mxu0 %v9190
      %v9493 = vpop.f32.mrf.mxu0
      %v9494 = vadd.f32 %v9232, %v9493
      %v9495 = vpop.f32.mrf.mxu0
      %v9496 = vadd.f32 %v9236, %v9495
      %v9497 = vpop.f32.mrf.mxu0
      %v9498 = vadd.f32 %v9232, %v9497
      %v9499 = vpop.f32.mrf.mxu0
      %v9500 = vadd.f32 %v9236, %v9499
      %9501 = vmatprep.mubr.bf16.mxu0 0
      %9502 = vmatmul.mubr.bf16.gmra.mxu0 %v9191
      %v9503 = vpop.f32.mrf.mxu0
      %v9504 = vadd.f32 %v9232, %v9503
      %v9505 = vpop.f32.mrf.mxu0
      %v9506 = vadd.f32 %v9236, %v9505
      %v9507 = vpop.f32.mrf.mxu0
      %v9508 = vadd.f32 %v9232, %v9507
      %v9509 = vpop.f32.mrf.mxu0
      %v9510 = vadd.f32 %v9236, %v9509
      %9511 = vmatprep.mubr.bf16.mxu0 0
      %9512 = vmatmul.mubr.bf16.gmra.mxu0 %v9192
      %v9513 = vpop.f32.mrf.mxu0
      %v9514 = vadd.f32 %v9232, %v9513
      %v9515 = vpop.f32.mrf.mxu0
      %v9516 = vadd.f32 %v9236, %v9515
      %v9517 = vpop.f32.mrf.mxu0
      %v9518 = vadd.f32 %v9232, %v9517
      %v9519 = vpop.f32.mrf.mxu0
      %v9520 = vadd.f32 %v9236, %v9519
      %9521 = vdwg.mxu0
      %9522 = vmatprep.subr.bf16.mxu0 %v9376
      %9523 = vmatpush1.bf16.msra.mxu0 %v9375
      %9524 = vmatprep.subr.bf16.mxu0 %v9372
      %9525 = vmatpush1.bf16.msra.mxu0 %v9371
      %9526 = vmatprep.subr.bf16.mxu0 %v9368
      %9527 = vmatpush1.bf16.msra.mxu0 %v9367
      %9528 = vmatprep.subr.bf16.mxu0 %v9364
      %9529 = vmatpush1.bf16.msra.mxu0 %v9363
      %9530 = vmatprep.subr.bf16.mxu0 %v9360
      %9531 = vmatpush1.bf16.msra.mxu0 %v9359
      %9532 = vmatprep.subr.bf16.mxu0 %v9356
      %9533 = vmatpush1.bf16.msra.mxu0 %v9355
      %9534 = vmatprep.subr.bf16.mxu0 %v9352
      %9535 = vmatpush1.bf16.msra.mxu0 %v9351
      %9536 = vmatprep.subr.bf16.mxu0 %v9348
      %9537 = vmatpush1.bf16.msra.mxu0 %v9347
      %9538 = vmatprep.subr.bf16.mxu0 0
      %9539 = vmatpush2.bf16.msra.mxu0 0
      %9540 = vmatprep.subr.bf16.mxu0 0
      %9541 = vmatpush2.bf16.msra.mxu0 0
      %9542 = vmatprep.subr.bf16.mxu0 0
      %9543 = vmatpush2.bf16.msra.mxu0 0
      %9544 = vmatprep.subr.bf16.mxu0 0
      %9545 = vmatpush2.bf16.msra.mxu0 0
      %9546 = vmatprep.subr.bf16.mxu0 0
      %9547 = vmatpush2.bf16.msra.mxu0 0
      %9548 = vmatprep.subr.bf16.mxu0 0
      %9549 = vmatpush2.bf16.msra.mxu0 0
      %9550 = vmatprep.subr.bf16.mxu0 0
      %9551 = vmatpush2.bf16.msra.mxu0 0
      %9552 = vmatprep.subr.bf16.mxu0 0
      %9553 = vmatpush2.bf16.msra.mxu0 0
      %9554 = vmatprep.mubr.bf16.mxu0 0
      %9555 = vmatmul.mubr.bf16.gmra.mxu0 %v9185
      %v9556 = vpop.f32.mrf.mxu0
      %v9557 = vadd.f32 %v9240, %v9556
      %v9558 = vpop.f32.mrf.mxu0
      %v9559 = vadd.f32 %v9244, %v9558
      %v9560 = vpop.f32.mrf.mxu0
      %v9561 = vadd.f32 %v9240, %v9560
      %v9562 = vpop.f32.mrf.mxu0
      %v9563 = vadd.f32 %v9244, %v9562
      %9564 = vmatprep.mubr.bf16.mxu0 0
      %9565 = vmatmul.mubr.bf16.gmra.mxu0 %v9186
      %v9566 = vpop.f32.mrf.mxu0
      %v9567 = vadd.f32 %v9240, %v9566
      %v9568 = vpop.f32.mrf.mxu0
      %v9569 = vadd.f32 %v9244, %v9568
      %v9570 = vpop.f32.mrf.mxu0
      %v9571 = vadd.f32 %v9240, %v9570
      %v9572 = vpop.f32.mrf.mxu0
      %v9573 = vadd.f32 %v9244, %v9572
      %9574 = vmatprep.mubr.bf16.mxu0 0
      %9575 = vmatmul.mubr.bf16.gmra.mxu0 %v9187
      %v9576 = vpop.f32.mrf.mxu0
      %v9577 = vadd.f32 %v9240, %v9576
      %v9578 = vpop.f32.mrf.mxu0
      %v9579 = vadd.f32 %v9244, %v9578
      %v9580 = vpop.f32.mrf.mxu0
      %v9581 = vadd.f32 %v9240, %v9580
      %v9582 = vpop.f32.mrf.mxu0
      %v9583 = vadd.f32 %v9244, %v9582
      %9584 = vmatprep.mubr.bf16.mxu0 0
      %9585 = vmatmul.mubr.bf16.gmra.mxu0 %v9188
      %v9586 = vpop.f32.mrf.mxu0
      %v9587 = vadd.f32 %v9240, %v9586
      %v9588 = vpop.f32.mrf.mxu0
      %v9589 = vadd.f32 %v9244, %v9588
      %v9590 = vpop.f32.mrf.mxu0
      %v9591 = vadd.f32 %v9240, %v9590
      %v9592 = vpop.f32.mrf.mxu0
      %v9593 = vadd.f32 %v9244, %v9592
      %9594 = vmatprep.mubr.bf16.mxu0 0
      %9595 = vmatmul.mubr.bf16.gmra.mxu0 %v9189
      %v9596 = vpop.f32.mrf.mxu0
      %v9597 = vadd.f32 %v9240, %v9596
      %v9598 = vpop.f32.mrf.mxu0
      %v9599 = vadd.f32 %v9244, %v9598
      %v9600 = vpop.f32.mrf.mxu0
      %v9601 = vadd.f32 %v9240, %v9600
      %v9602 = vpop.f32.mrf.mxu0
      %v9603 = vadd.f32 %v9244, %v9602
      %9604 = vmatprep.mubr.bf16.mxu0 0
      %9605 = vmatmul.mubr.bf16.gmra.mxu0 %v9190
      %v9606 = vpop.f32.mrf.mxu0
      %v9607 = vadd.f32 %v9240, %v9606
      %v9608 = vpop.f32.mrf.mxu0
      %v9609 = vadd.f32 %v9244, %v9608
      %v9610 = vpop.f32.mrf.mxu0
      %v9611 = vadd.f32 %v9240, %v9610
      %v9612 = vpop.f32.mrf.mxu0
      %v9613 = vadd.f32 %v9244, %v9612
      %9614 = vmatprep.mubr.bf16.mxu0 0
      %9615 = vmatmul.mubr.bf16.gmra.mxu0 %v9191
      %v9616 = vpop.f32.mrf.mxu0
      %v9617 = vadd.f32 %v9240, %v9616
      %v9618 = vpop.f32.mrf.mxu0
      %v9619 = vadd.f32 %v9244, %v9618
      %v9620 = vpop.f32.mrf.mxu0
      %v9621 = vadd.f32 %v9240, %v9620
      %v9622 = vpop.f32.mrf.mxu0
      %v9623 = vadd.f32 %v9244, %v9622
      %9624 = vmatprep.mubr.bf16.mxu0 0
      %9625 = vmatmul.mubr.bf16.gmra.mxu0 %v9192
      %v9626 = vpop.f32.mrf.mxu0
      %v9627 = vadd.f32 %v9240, %v9626
      %v9628 = vpop.f32.mrf.mxu0
      %v9629 = vadd.f32 %v9244, %v9628
      %v9630 = vpop.f32.mrf.mxu0
      %v9631 = vadd.f32 %v9240, %v9630
      %v9632 = vpop.f32.mrf.mxu0
      %v9633 = vadd.f32 %v9244, %v9632
      %9634 = vdwg.mxu0
      %v9635 = vmul.f32 %v9444, %v9444
      %v9636 = vmul.f32 %v9446, %v9446
      %v9637 = vmul.f32 %v9557, %v9557
      %v9638 = vmul.f32 %v9559, %v9559
      %v9639 = vmul.f32 %v9448, %v9448
      %v9640 = vmul.f32 %v9450, %v9450
      %v9641 = vmul.f32 %v9561, %v9561
      %v9642 = vmul.f32 %v9563, %v9563
      %v9643 = vmul.f32 %v9454, %v9454
      %v9644 = vmul.f32 %v9456, %v9456
      %v9645 = vmul.f32 %v9567, %v9567
      %v9646 = vmul.f32 %v9569, %v9569
      %v9647 = vmul.f32 %v9458, %v9458
      %v9648 = vmul.f32 %v9460, %v9460
      %v9649 = vmul.f32 %v9571, %v9571
      %v9650 = vmul.f32 %v9573, %v9573
      %v9651 = vmul.f32 %v9464, %v9464
      %v9652 = vmul.f32 %v9466, %v9466
      %v9653 = vmul.f32 %v9577, %v9577
      %v9654 = vmul.f32 %v9579, %v9579
      %v9655 = vmul.f32 %v9468, %v9468
      %v9656 = vmul.f32 %v9470, %v9470
      %v9657 = vmul.f32 %v9581, %v9581
      %v9658 = vmul.f32 %v9583, %v9583
      %v9659 = vmul.f32 %v9474, %v9474
      %v9660 = vmul.f32 %v9476, %v9476
      %v9661 = vmul.f32 %v9587, %v9587
      %v9662 = vmul.f32 %v9589, %v9589
      %v9663 = vmul.f32 %v9478, %v9478
      %v9664 = vmul.f32 %v9480, %v9480
      %v9665 = vmul.f32 %v9591, %v9591
      %v9666 = vmul.f32 %v9593, %v9593
      %v9667 = vmul.f32 %v9484, %v9484
      %v9668 = vmul.f32 %v9486, %v9486
      %v9669 = vmul.f32 %v9597, %v9597
      %v9670 = vmul.f32 %v9599, %v9599
      %v9671 = vmul.f32 %v9488, %v9488
      %v9672 = vmul.f32 %v9490, %v9490
      %v9673 = vmul.f32 %v9601, %v9601
      %v9674 = vmul.f32 %v9603, %v9603
      %v9675 = vmul.f32 %v9494, %v9494
      %v9676 = vmul.f32 %v9496, %v9496
      %v9677 = vmul.f32 %v9607, %v9607
      %v9678 = vmul.f32 %v9609, %v9609
      %v9679 = vmul.f32 %v9498, %v9498
      %v9680 = vmul.f32 %v9500, %v9500
      %v9681 = vmul.f32 %v9611, %v9611
      %v9682 = vmul.f32 %v9613, %v9613
      %v9683 = vmul.f32 %v9504, %v9504
      %v9684 = vmul.f32 %v9506, %v9506
      %v9685 = vmul.f32 %v9617, %v9617
      %v9686 = vmul.f32 %v9619, %v9619
      %v9687 = vmul.f32 %v9508, %v9508
      %v9688 = vmul.f32 %v9510, %v9510
      %v9689 = vmul.f32 %v9621, %v9621
      %v9690 = vmul.f32 %v9623, %v9623
      %v9691 = vmul.f32 %v9514, %v9514
      %v9692 = vmul.f32 %v9516, %v9516
      %v9693 = vmul.f32 %v9627, %v9627
      %v9694 = vmul.f32 %v9629, %v9629
      %v9695 = vmul.f32 %v9518, %v9518
      %v9696 = vmul.f32 %v9520, %v9520
      %v9697 = vmul.f32 %v9631, %v9631
      %v9698 = vmul.f32 %v9633, %v9633
      %v9699 = vmul.f32 %v9444, %v9635
      %v9700 = vmul.f32 %v9446, %v9636
      %v9701 = vmul.f32 %v9557, %v9637
      %v9702 = vmul.f32 %v9559, %v9638
      %v9703 = vmul.f32 %v9448, %v9639
      %v9704 = vmul.f32 %v9450, %v9640
      %v9705 = vmul.f32 %v9561, %v9641
      %v9706 = vmul.f32 %v9563, %v9642
      %v9707 = vmul.f32 %v9454, %v9643
      %v9708 = vmul.f32 %v9456, %v9644
      %v9709 = vmul.f32 %v9567, %v9645
      %v9710 = vmul.f32 %v9569, %v9646
      %v9711 = vmul.f32 %v9458, %v9647
      %v9712 = vmul.f32 %v9460, %v9648
      %v9713 = vmul.f32 %v9571, %v9649
      %v9714 = vmul.f32 %v9573, %v9650
      %v9715 = vmul.f32 %v9464, %v9651
      %v9716 = vmul.f32 %v9466, %v9652
      %v9717 = vmul.f32 %v9577, %v9653
      %v9718 = vmul.f32 %v9579, %v9654
      %v9719 = vmul.f32 %v9468, %v9655
      %v9720 = vmul.f32 %v9470, %v9656
      %v9721 = vmul.f32 %v9581, %v9657
      %v9722 = vmul.f32 %v9583, %v9658
      %v9723 = vmul.f32 %v9474, %v9659
      %v9724 = vmul.f32 %v9476, %v9660
      %v9725 = vmul.f32 %v9587, %v9661
      %v9726 = vmul.f32 %v9589, %v9662
      %v9727 = vmul.f32 %v9478, %v9663
      %v9728 = vmul.f32 %v9480, %v9664
      %v9729 = vmul.f32 %v9591, %v9665
      %v9730 = vmul.f32 %v9593, %v9666
      %v9731 = vmul.f32 %v9484, %v9667
      %v9732 = vmul.f32 %v9486, %v9668
      %v9733 = vmul.f32 %v9597, %v9669
      %v9734 = vmul.f32 %v9599, %v9670
      %v9735 = vmul.f32 %v9488, %v9671
      %v9736 = vmul.f32 %v9490, %v9672
      %v9737 = vmul.f32 %v9601, %v9673
      %v9738 = vmul.f32 %v9603, %v9674
      %v9739 = vmul.f32 %v9494, %v9675
      %v9740 = vmul.f32 %v9496, %v9676
      %v9741 = vmul.f32 %v9607, %v9677
      %v9742 = vmul.f32 %v9609, %v9678
      %v9743 = vmul.f32 %v9498, %v9679
      %v9744 = vmul.f32 %v9500, %v9680
      %v9745 = vmul.f32 %v9611, %v9681
      %v9746 = vmul.f32 %v9613, %v9682
      %v9747 = vmul.f32 %v9504, %v9683
      %v9748 = vmul.f32 %v9506, %v9684
      %v9749 = vmul.f32 %v9617, %v9685
      %v9750 = vmul.f32 %v9619, %v9686
      %v9751 = vmul.f32 %v9508, %v9687
      %v9752 = vmul.f32 %v9510, %v9688
      %v9753 = vmul.f32 %v9621, %v9689
      %v9754 = vmul.f32 %v9623, %v9690
      %v9755 = vmul.f32 %v9514, %v9691
      %v9756 = vmul.f32 %v9516, %v9692
      %v9757 = vmul.f32 %v9627, %v9693
      %v9758 = vmul.f32 %v9629, %v9694
      %v9759 = vmul.f32 %v9518, %v9695
      %v9760 = vmul.f32 %v9520, %v9696
      %v9761 = vmul.f32 %v9631, %v9697
      %v9762 = vmul.f32 %v9633, %v9698
      %v9763 = vmul.f32 %v9699, 0.044715
      %v9764 = vmul.f32 %v9700, 0.044715
      %v9765 = vmul.f32 %v9701, 0.044715
      %v9766 = vmul.f32 %v9702, 0.044715
      %v9767 = vmul.f32 %v9703, 0.044715
      %v9768 = vmul.f32 %v9704, 0.044715
      %v9769 = vmul.f32 %v9705, 0.044715
      %v9770 = vmul.f32 %v9706, 0.044715
      %v9771 = vmul.f32 %v9707, 0.044715
      %v9772 = vmul.f32 %v9708, 0.044715
      %v9773 = vmul.f32 %v9709, 0.044715
      %v9774 = vmul.f32 %v9710, 0.044715
      %v9775 = vmul.f32 %v9711, 0.044715
      %v9776 = vmul.f32 %v9712, 0.044715
      %v9777 = vmul.f32 %v9713, 0.044715
      %v9778 = vmul.f32 %v9714, 0.044715
      %v9779 = vmul.f32 %v9715, 0.044715
      %v9780 = vmul.f32 %v9716, 0.044715
      %v9781 = vmul.f32 %v9717, 0.044715
      %v9782 = vmul.f32 %v9718, 0.044715
      %v9783 = vmul.f32 %v9719, 0.044715
      %v9784 = vmul.f32 %v9720, 0.044715
      %v9785 = vmul.f32 %v9721, 0.044715
      %v9786 = vmul.f32 %v9722, 0.044715
      %v9787 = vmul.f32 %v9723, 0.044715
      %v9788 = vmul.f32 %v9724, 0.044715
      %v9789 = vmul.f32 %v9725, 0.044715
      %v9790 = vmul.f32 %v9726, 0.044715
      %v9791 = vmul.f32 %v9727, 0.044715
      %v9792 = vmul.f32 %v9728, 0.044715
      %v9793 = vmul.f32 %v9729, 0.044715
      %v9794 = vmul.f32 %v9730, 0.044715
      %v9795 = vmul.f32 %v9731, 0.044715
      %v9796 = vmul.f32 %v9732, 0.044715
      %v9797 = vmul.f32 %v9733, 0.044715
      %v9798 = vmul.f32 %v9734, 0.044715
      %v9799 = vmul.f32 %v9735, 0.044715
      %v9800 = vmul.f32 %v9736, 0.044715
      %v9801 = vmul.f32 %v9737, 0.044715
      %v9802 = vmul.f32 %v9738, 0.044715
      %v9803 = vmul.f32 %v9739, 0.044715
      %v9804 = vmul.f32 %v9740, 0.044715
      %v9805 = vmul.f32 %v9741, 0.044715
      %v9806 = vmul.f32 %v9742, 0.044715
      %v9807 = vmul.f32 %v9743, 0.044715
      %v9808 = vmul.f32 %v9744, 0.044715
      %v9809 = vmul.f32 %v9745, 0.044715
      %v9810 = vmul.f32 %v9746, 0.044715
      %v9811 = vmul.f32 %v9747, 0.044715
      %v9812 = vmul.f32 %v9748, 0.044715
      %v9813 = vmul.f32 %v9749, 0.044715
      %v9814 = vmul.f32 %v9750, 0.044715
      %v9815 = vmul.f32 %v9751, 0.044715
      %v9816 = vmul.f32 %v9752, 0.044715
      %v9817 = vmul.f32 %v9753, 0.044715
      %v9818 = vmul.f32 %v9754, 0.044715
      %v9819 = vmul.f32 %v9755, 0.044715
      %v9820 = vmul.f32 %v9756, 0.044715
      %v9821 = vmul.f32 %v9757, 0.044715
      %v9822 = vmul.f32 %v9758, 0.044715
      %v9823 = vmul.f32 %v9759, 0.044715
      %v9824 = vmul.f32 %v9760, 0.044715
      %v9825 = vmul.f32 %v9761, 0.044715
      %v9826 = vmul.f32 %v9762, 0.044715
      %v9827 = vadd.f32 %v9444, %v9763
      %v9828 = vadd.f32 %v9446, %v9764
      %v9829 = vadd.f32 %v9557, %v9765
      %v9830 = vadd.f32 %v9559, %v9766
      %v9831 = vadd.f32 %v9448, %v9767
      %v9832 = vadd.f32 %v9450, %v9768
      %v9833 = vadd.f32 %v9561, %v9769
      %v9834 = vadd.f32 %v9563, %v9770
      %v9835 = vadd.f32 %v9454, %v9771
      %v9836 = vadd.f32 %v9456, %v9772
      %v9837 = vadd.f32 %v9567, %v9773
      %v9838 = vadd.f32 %v9569, %v9774
      %v9839 = vadd.f32 %v9458, %v9775
      %v9840 = vadd.f32 %v9460, %v9776
      %v9841 = vadd.f32 %v9571, %v9777
      %v9842 = vadd.f32 %v9573, %v9778
      %v9843 = vadd.f32 %v9464, %v9779
      %v9844 = vadd.f32 %v9466, %v9780
      %v9845 = vadd.f32 %v9577, %v9781
      %v9846 = vadd.f32 %v9579, %v9782
      %v9847 = vadd.f32 %v9468, %v9783
      %v9848 = vadd.f32 %v9470, %v9784
      %v9849 = vadd.f32 %v9581, %v9785
      %v9850 = vadd.f32 %v9583, %v9786
      %v9851 = vadd.f32 %v9474, %v9787
      %v9852 = vadd.f32 %v9476, %v9788
      %v9853 = vadd.f32 %v9587, %v9789
      %v9854 = vadd.f32 %v9589, %v9790
      %v9855 = vadd.f32 %v9478, %v9791
      %v9856 = vadd.f32 %v9480, %v9792
      %v9857 = vadd.f32 %v9591, %v9793
      %v9858 = vadd.f32 %v9593, %v9794
      %v9859 = vadd.f32 %v9484, %v9795
      %v9860 = vadd.f32 %v9486, %v9796
      %v9861 = vadd.f32 %v9597, %v9797
      %v9862 = vadd.f32 %v9599, %v9798
      %v9863 = vadd.f32 %v9488, %v9799
      %v9864 = vadd.f32 %v9490, %v9800
      %v9865 = vadd.f32 %v9601, %v9801
      %v9866 = vadd.f32 %v9603, %v9802
      %v9867 = vadd.f32 %v9494, %v9803
      %v9868 = vadd.f32 %v9496, %v9804
      %v9869 = vadd.f32 %v9607, %v9805
      %v9870 = vadd.f32 %v9609, %v9806
      %v9871 = vadd.f32 %v9498, %v9807
      %v9872 = vadd.f32 %v9500, %v9808
      %v9873 = vadd.f32 %v9611, %v9809
      %v9874 = vadd.f32 %v9613, %v9810
      %v9875 = vadd.f32 %v9504, %v9811
      %v9876 = vadd.f32 %v9506, %v9812
      %v9877 = vadd.f32 %v9617, %v9813
      %v9878 = vadd.f32 %v9619, %v9814
      %v9879 = vadd.f32 %v9508, %v9815
      %v9880 = vadd.f32 %v9510, %v9816
      %v9881 = vadd.f32 %v9621, %v9817
      %v9882 = vadd.f32 %v9623, %v9818
      %v9883 = vadd.f32 %v9514, %v9819
      %v9884 = vadd.f32 %v9516, %v9820
      %v9885 = vadd.f32 %v9627, %v9821
      %v9886 = vadd.f32 %v9629, %v9822
      %v9887 = vadd.f32 %v9518, %v9823
      %v9888 = vadd.f32 %v9520, %v9824
      %v9889 = vadd.f32 %v9631, %v9825
      %v9890 = vadd.f32 %v9633, %v9826
      %v9891 = vmul.f32 %v9827, 0.7978846
      %v9892 = vmul.f32 %v9828, 0.7978846
      %v9893 = vmul.f32 %v9829, 0.7978846
      %v9894 = vmul.f32 %v9830, 0.7978846
      %v9895 = vmul.f32 %v9831, 0.7978846
      %v9896 = vmul.f32 %v9832, 0.7978846
      %v9897 = vmul.f32 %v9833, 0.7978846
      %v9898 = vmul.f32 %v9834, 0.7978846
      %v9899 = vmul.f32 %v9835, 0.7978846
      %v9900 = vmul.f32 %v9836, 0.7978846
      %v9901 = vmul.f32 %v9837, 0.7978846
      %v9902 = vmul.f32 %v9838, 0.7978846
      %v9903 = vmul.f32 %v9839, 0.7978846
      %v9904 = vmul.f32 %v9840, 0.7978846
      %v9905 = vmul.f32 %v9841, 0.7978846
      %v9906 = vmul.f32 %v9842, 0.7978846
      %v9907 = vmul.f32 %v9843, 0.7978846
      %v9908 = vmul.f32 %v9844, 0.7978846
      %v9909 = vmul.f32 %v9845, 0.7978846
      %v9910 = vmul.f32 %v9846, 0.7978846
      %v9911 = vmul.f32 %v9847, 0.7978846
      %v9912 = vmul.f32 %v9848, 0.7978846
      %v9913 = vmul.f32 %v9849, 0.7978846
      %v9914 = vmul.f32 %v9850, 0.7978846
      %v9915 = vmul.f32 %v9851, 0.7978846
      %v9916 = vmul.f32 %v9852, 0.7978846
      %v9917 = vmul.f32 %v9853, 0.7978846
      %v9918 = vmul.f32 %v9854, 0.7978846
      %v9919 = vmul.f32 %v9855, 0.7978846
      %v9920 = vmul.f32 %v9856, 0.7978846
      %v9921 = vmul.f32 %v9857, 0.7978846
      %v9922 = vmul.f32 %v9858, 0.7978846
      %v9923 = vmul.f32 %v9859, 0.7978846
      %v9924 = vmul.f32 %v9860, 0.7978846
      %v9925 = vmul.f32 %v9861, 0.7978846
      %v9926 = vmul.f32 %v9862, 0.7978846
      %v9927 = vmul.f32 %v9863, 0.7978846
      %v9928 = vmul.f32 %v9864, 0.7978846
      %v9929 = vmul.f32 %v9865, 0.7978846
      %v9930 = vmul.f32 %v9866, 0.7978846
      %v9931 = vmul.f32 %v9867, 0.7978846
      %v9932 = vmul.f32 %v9868, 0.7978846
      %v9933 = vmul.f32 %v9869, 0.7978846
      %v9934 = vmul.f32 %v9870, 0.7978846
      %v9935 = vmul.f32 %v9871, 0.7978846
      %v9936 = vmul.f32 %v9872, 0.7978846
      %v9937 = vmul.f32 %v9873, 0.7978846
      %v9938 = vmul.f32 %v9874, 0.7978846
      %v9939 = vmul.f32 %v9875, 0.7978846
      %v9940 = vmul.f32 %v9876, 0.7978846
      %v9941 = vmul.f32 %v9877, 0.7978846
      %v9942 = vmul.f32 %v9878, 0.7978846
      %v9943 = vmul.f32 %v9879, 0.7978846
      %v9944 = vmul.f32 %v9880, 0.7978846
      %v9945 = vmul.f32 %v9881, 0.7978846
      %v9946 = vmul.f32 %v9882, 0.7978846
      %v9947 = vmul.f32 %v9883, 0.7978846
      %v9948 = vmul.f32 %v9884, 0.7978846
      %v9949 = vmul.f32 %v9885, 0.7978846
      %v9950 = vmul.f32 %v9886, 0.7978846
      %v9951 = vmul.f32 %v9887, 0.7978846
      %v9952 = vmul.f32 %v9888, 0.7978846
      %v9953 = vmul.f32 %v9889, 0.7978846
      %v9954 = vmul.f32 %v9890, 0.7978846
      %v9955 = vtanh.pop %v9891
      %v9956 = vtanh.pop %v9892
      %v9957 = vtanh.pop %v9893
      %v9958 = vtanh.pop %v9894
      %v9959 = vtanh.pop %v9895
      %v9960 = vtanh.pop %v9896
      %v9961 = vtanh.pop %v9897
      %v9962 = vtanh.pop %v9898
      %v9963 = vtanh.pop %v9899
      %v9964 = vtanh.pop %v9900
      %v9965 = vtanh.pop %v9901
      %v9966 = vtanh.pop %v9902
      %v9967 = vtanh.pop %v9903
      %v9968 = vtanh.pop %v9904
      %v9969 = vtanh.pop %v9905
      %v9970 = vtanh.pop %v9906
      %v9971 = vtanh.pop %v9907
      %v9972 = vtanh.pop %v9908
      %v9973 = vtanh.pop %v9909
      %v9974 = vtanh.pop %v9910
      %v9975 = vtanh.pop %v9911
      %v9976 = vtanh.pop %v9912
      %v9977 = vtanh.pop %v9913
      %v9978 = vtanh.pop %v9914
      %v9979 = vtanh.pop %v9915
      %v9980 = vtanh.pop %v9916
      %v9981 = vtanh.pop %v9917
      %v9982 = vtanh.pop %v9918
      %v9983 = vtanh.pop %v9919
      %v9984 = vtanh.pop %v9920
      %v9985 = vtanh.pop %v9921
      %v9986 = vtanh.pop %v9922
      %v9987 = vtanh.pop %v9923
      %v9988 = vtanh.pop %v9924
      %v9989 = vtanh.pop %v9925
      %v9990 = vtanh.pop %v9926
      %v9991 = vtanh.pop %v9927
      %v9992 = vtanh.pop %v9928
      %v9993 = vtanh.pop %v9929
      %v9994 = vtanh.pop %v9930
      %v9995 = vtanh.pop %v9931
      %v9996 = vtanh.pop %v9932
      %v9997 = vtanh.pop %v9933
      %v9998 = vtanh.pop %v9934
      %v9999 = vtanh.pop %v9935
      %v10000 = vtanh.pop %v9936
      %v10001 = vtanh.pop %v9937
      %v10002 = vtanh.pop %v9938
      %v10003 = vtanh.pop %v9939
      %v10004 = vtanh.pop %v9940
      %v10005 = vtanh.pop %v9941
      %v10006 = vtanh.pop %v9942
      %v10007 = vtanh.pop %v9943
      %v10008 = vtanh.pop %v9944
      %v10009 = vtanh.pop %v9945
      %v10010 = vtanh.pop %v9946
      %v10011 = vtanh.pop %v9947
      %v10012 = vtanh.pop %v9948
      %v10013 = vtanh.pop %v9949
      %v10014 = vtanh.pop %v9950
      %v10015 = vtanh.pop %v9951
      %v10016 = vtanh.pop %v9952
      %v10017 = vtanh.pop %v9953
      %v10018 = vtanh.pop %v9954
      %v10019 = vadd.f32 %v9955, 1.0
      %v10020 = vadd.f32 %v9956, 1.0
      %v10021 = vadd.f32 %v9957, 1.0
      %v10022 = vadd.f32 %v9958, 1.0
      %v10023 = vadd.f32 %v9959, 1.0
      %v10024 = vadd.f32 %v9960, 1.0
      %v10025 = vadd.f32 %v9961, 1.0
      %v10026 = vadd.f32 %v9962, 1.0
      %v10027 = vadd.f32 %v9963, 1.0
      %v10028 = vadd.f32 %v9964, 1.0
      %v10029 = vadd.f32 %v9965, 1.0
      %v10030 = vadd.f32 %v9966, 1.0
      %v10031 = vadd.f32 %v9967, 1.0
      %v10032 = vadd.f32 %v9968, 1.0
      %v10033 = vadd.f32 %v9969, 1.0
      %v10034 = vadd.f32 %v9970, 1.0
      %v10035 = vadd.f32 %v9971, 1.0
      %v10036 = vadd.f32 %v9972, 1.0
      %v10037 = vadd.f32 %v9973, 1.0
      %v10038 = vadd.f32 %v9974, 1.0
      %v10039 = vadd.f32 %v9975, 1.0
      %v10040 = vadd.f32 %v9976, 1.0
      %v10041 = vadd.f32 %v9977, 1.0
      %v10042 = vadd.f32 %v9978, 1.0
      %v10043 = vadd.f32 %v9979, 1.0
      %v10044 = vadd.f32 %v9980, 1.0
      %v10045 = vadd.f32 %v9981, 1.0
      %v10046 = vadd.f32 %v9982, 1.0
      %v10047 = vadd.f32 %v9983, 1.0
      %v10048 = vadd.f32 %v9984, 1.0
      %v10049 = vadd.f32 %v9985, 1.0
      %v10050 = vadd.f32 %v9986, 1.0
      %v10051 = vadd.f32 %v9987, 1.0
      %v10052 = vadd.f32 %v9988, 1.0
      %v10053 = vadd.f32 %v9989, 1.0
      %v10054 = vadd.f32 %v9990, 1.0
      %v10055 = vadd.f32 %v9991, 1.0
      %v10056 = vadd.f32 %v9992, 1.0
      %v10057 = vadd.f32 %v9993, 1.0
      %v10058 = vadd.f32 %v9994, 1.0
      %v10059 = vadd.f32 %v9995, 1.0
      %v10060 = vadd.f32 %v9996, 1.0
      %v10061 = vadd.f32 %v9997, 1.0
      %v10062 = vadd.f32 %v9998, 1.0
      %v10063 = vadd.f32 %v9999, 1.0
      %v10064 = vadd.f32 %v10000, 1.0
      %v10065 = vadd.f32 %v10001, 1.0
      %v10066 = vadd.f32 %v10002, 1.0
      %v10067 = vadd.f32 %v10003, 1.0
      %v10068 = vadd.f32 %v10004, 1.0
      %v10069 = vadd.f32 %v10005, 1.0
      %v10070 = vadd.f32 %v10006, 1.0
      %v10071 = vadd.f32 %v10007, 1.0
      %v10072 = vadd.f32 %v10008, 1.0
      %v10073 = vadd.f32 %v10009, 1.0
      %v10074 = vadd.f32 %v10010, 1.0
      %v10075 = vadd.f32 %v10011, 1.0
      %v10076 = vadd.f32 %v10012, 1.0
      %v10077 = vadd.f32 %v10013, 1.0
      %v10078 = vadd.f32 %v10014, 1.0
      %v10079 = vadd.f32 %v10015, 1.0
      %v10080 = vadd.f32 %v10016, 1.0
      %v10081 = vadd.f32 %v10017, 1.0
      %v10082 = vadd.f32 %v10018, 1.0
      %v10083 = vmul.f32 %v10019, 0.5
      %v10084 = vmul.f32 %v10020, 0.5
      %v10085 = vmul.f32 %v10021, 0.5
      %v10086 = vmul.f32 %v10022, 0.5
      %v10087 = vmul.f32 %v10023, 0.5
      %v10088 = vmul.f32 %v10024, 0.5
      %v10089 = vmul.f32 %v10025, 0.5
      %v10090 = vmul.f32 %v10026, 0.5
      %v10091 = vmul.f32 %v10027, 0.5
      %v10092 = vmul.f32 %v10028, 0.5
      %v10093 = vmul.f32 %v10029, 0.5
      %v10094 = vmul.f32 %v10030, 0.5
      %v10095 = vmul.f32 %v10031, 0.5
      %v10096 = vmul.f32 %v10032, 0.5
      %v10097 = vmul.f32 %v10033, 0.5
      %v10098 = vmul.f32 %v10034, 0.5
      %v10099 = vmul.f32 %v10035, 0.5
      %v10100 = vmul.f32 %v10036, 0.5
      %v10101 = vmul.f32 %v10037, 0.5
      %v10102 = vmul.f32 %v10038, 0.5
      %v10103 = vmul.f32 %v10039, 0.5
      %v10104 = vmul.f32 %v10040, 0.5
      %v10105 = vmul.f32 %v10041, 0.5
      %v10106 = vmul.f32 %v10042, 0.5
      %v10107 = vmul.f32 %v10043, 0.5
      %v10108 = vmul.f32 %v10044, 0.5
      %v10109 = vmul.f32 %v10045, 0.5
      %v10110 = vmul.f32 %v10046, 0.5
      %v10111 = vmul.f32 %v10047, 0.5
      %v10112 = vmul.f32 %v10048, 0.5
      %v10113 = vmul.f32 %v10049, 0.5
      %v10114 = vmul.f32 %v10050, 0.5
      %v10115 = vmul.f32 %v10051, 0.5
      %v10116 = vmul.f32 %v10052, 0.5
      %v10117 = vmul.f32 %v10053, 0.5
      %v10118 = vmul.f32 %v10054, 0.5
      %v10119 = vmul.f32 %v10055, 0.5
      %v10120 = vmul.f32 %v10056, 0.5
      %v10121 = vmul.f32 %v10057, 0.5
      %v10122 = vmul.f32 %v10058, 0.5
      %v10123 = vmul.f32 %v10059, 0.5
      %v10124 = vmul.f32 %v10060, 0.5
      %v10125 = vmul.f32 %v10061, 0.5
      %v10126 = vmul.f32 %v10062, 0.5
      %v10127 = vmul.f32 %v10063, 0.5
      %v10128 = vmul.f32 %v10064, 0.5
      %v10129 = vmul.f32 %v10065, 0.5
      %v10130 = vmul.f32 %v10066, 0.5
      %v10131 = vmul.f32 %v10067, 0.5
      %v10132 = vmul.f32 %v10068, 0.5
      %v10133 = vmul.f32 %v10069, 0.5
      %v10134 = vmul.f32 %v10070, 0.5
      %v10135 = vmul.f32 %v10071, 0.5
      %v10136 = vmul.f32 %v10072, 0.5
      %v10137 = vmul.f32 %v10073, 0.5
      %v10138 = vmul.f32 %v10074, 0.5
      %v10139 = vmul.f32 %v10075, 0.5
      %v10140 = vmul.f32 %v10076, 0.5
      %v10141 = vmul.f32 %v10077, 0.5
      %v10142 = vmul.f32 %v10078, 0.5
      %v10143 = vmul.f32 %v10079, 0.5
      %v10144 = vmul.f32 %v10080, 0.5
      %v10145 = vmul.f32 %v10081, 0.5
      %v10146 = vmul.f32 %v10082, 0.5
      %v10147 = vmul.f32 %v9444, %v10083
      %v10148 = vmul.f32 %v9446, %v10084
      %v10149 = vmul.f32 %v9557, %v10085
      %v10150 = vmul.f32 %v9559, %v10086
      %v10151 = vmul.f32 %v9448, %v10087
      %v10152 = vmul.f32 %v9450, %v10088
      %v10153 = vmul.f32 %v9561, %v10089
      %v10154 = vmul.f32 %v9563, %v10090
      %v10155 = vmul.f32 %v9454, %v10091
      %v10156 = vmul.f32 %v9456, %v10092
      %v10157 = vmul.f32 %v9567, %v10093
      %v10158 = vmul.f32 %v9569, %v10094
      %v10159 = vmul.f32 %v9458, %v10095
      %v10160 = vmul.f32 %v9460, %v10096
      %v10161 = vmul.f32 %v9571, %v10097
      %v10162 = vmul.f32 %v9573, %v10098
      %v10163 = vmul.f32 %v9464, %v10099
      %v10164 = vmul.f32 %v9466, %v10100
      %v10165 = vmul.f32 %v9577, %v10101
      %v10166 = vmul.f32 %v9579, %v10102
      %v10167 = vmul.f32 %v9468, %v10103
      %v10168 = vmul.f32 %v9470, %v10104
      %v10169 = vmul.f32 %v9581, %v10105
      %v10170 = vmul.f32 %v9583, %v10106
      %v10171 = vmul.f32 %v9474, %v10107
      %v10172 = vmul.f32 %v9476, %v10108
      %v10173 = vmul.f32 %v9587, %v10109
      %v10174 = vmul.f32 %v9589, %v10110
      %v10175 = vmul.f32 %v9478, %v10111
      %v10176 = vmul.f32 %v9480, %v10112
      %v10177 = vmul.f32 %v9591, %v10113
      %v10178 = vmul.f32 %v9593, %v10114
      %v10179 = vmul.f32 %v9484, %v10115
      %v10180 = vmul.f32 %v9486, %v10116
      %v10181 = vmul.f32 %v9597, %v10117
      %v10182 = vmul.f32 %v9599, %v10118
      %v10183 = vmul.f32 %v9488, %v10119
      %v10184 = vmul.f32 %v9490, %v10120
      %v10185 = vmul.f32 %v9601, %v10121
      %v10186 = vmul.f32 %v9603, %v10122
      %v10187 = vmul.f32 %v9494, %v10123
      %v10188 = vmul.f32 %v9496, %v10124
      %v10189 = vmul.f32 %v9607, %v10125
      %v10190 = vmul.f32 %v9609, %v10126
      %v10191 = vmul.f32 %v9498, %v10127
      %v10192 = vmul.f32 %v9500, %v10128
      %v10193 = vmul.f32 %v9611, %v10129
      %v10194 = vmul.f32 %v9613, %v10130
      %v10195 = vmul.f32 %v9504, %v10131
      %v10196 = vmul.f32 %v9506, %v10132
      %v10197 = vmul.f32 %v9617, %v10133
      %v10198 = vmul.f32 %v9619, %v10134
      %v10199 = vmul.f32 %v9508, %v10135
      %v10200 = vmul.f32 %v9510, %v10136
      %v10201 = vmul.f32 %v9621, %v10137
      %v10202 = vmul.f32 %v9623, %v10138
      %v10203 = vmul.f32 %v9514, %v10139
      %v10204 = vmul.f32 %v9516, %v10140
      %v10205 = vmul.f32 %v9627, %v10141
      %v10206 = vmul.f32 %v9629, %v10142
      %v10207 = vmul.f32 %v9518, %v10143
      %v10208 = vmul.f32 %v9520, %v10144
      %v10209 = vmul.f32 %v9631, %v10145
      %v10210 = vmul.f32 %v9633, %v10146
      %v10211 = vpack.c.bf16 %v10151, %v10147
      %v10212 = vpack.c.bf16 %v10152, %v10148
      %v10213 = vpack.c.bf16 %v10153, %v10149
      %v10214 = vpack.c.bf16 %v10154, %v10150
      %v10215 = vpack.c.bf16 %v10159, %v10155
      %v10216 = vpack.c.bf16 %v10160, %v10156
      %v10217 = vpack.c.bf16 %v10161, %v10157
      %v10218 = vpack.c.bf16 %v10162, %v10158
      %v10219 = vpack.c.bf16 %v10167, %v10163
      %v10220 = vpack.c.bf16 %v10168, %v10164
      %v10221 = vpack.c.bf16 %v10169, %v10165
      %v10222 = vpack.c.bf16 %v10170, %v10166
      %v10223 = vpack.c.bf16 %v10175, %v10171
      %v10224 = vpack.c.bf16 %v10176, %v10172
      %v10225 = vpack.c.bf16 %v10177, %v10173
      %v10226 = vpack.c.bf16 %v10178, %v10174
      %v10227 = vpack.c.bf16 %v10183, %v10179
      %v10228 = vpack.c.bf16 %v10184, %v10180
      %v10229 = vpack.c.bf16 %v10185, %v10181
      %v10230 = vpack.c.bf16 %v10186, %v10182
      %v10231 = vpack.c.bf16 %v10191, %v10187
      %v10232 = vpack.c.bf16 %v10192, %v10188
      %v10233 = vpack.c.bf16 %v10193, %v10189
      %v10234 = vpack.c.bf16 %v10194, %v10190
      %v10235 = vpack.c.bf16 %v10199, %v10195
      %v10236 = vpack.c.bf16 %v10200, %v10196
      %v10237 = vpack.c.bf16 %v10201, %v10197
      %v10238 = vpack.c.bf16 %v10202, %v10198
      %v10239 = vpack.c.bf16 %v10207, %v10203
      %v10240 = vpack.c.bf16 %v10208, %v10204
      %v10241 = vpack.c.bf16 %v10209, %v10205
      %v10242 = vpack.c.bf16 %v10210, %v10206
      %s10243 = scalar_lea.vmem %s12, 256
      %v10244 = vld [vmem:[%s10243] sm:$0xf]
      %v10245 = vld [vmem:[%s10243 + $0x4] sm:$0xf]
      %v10246 = vld [vmem:[%s10243 + $0x8] sm:$0xf]
      %v10247 = vld [vmem:[%s10243 + $0xc] sm:$0xf]
      %v10248 = vld [vmem:[%s10243 + $0x10] sm:$0xf]
      %v10249 = vld [vmem:[%s10243 + $0x14] sm:$0xf]
      %v10250 = vld [vmem:[%s10243 + $0x18] sm:$0xf]
      %v10251 = vld [vmem:[%s10243 + $0x1c] sm:$0xf]
      %v10252 = vld [vmem:[%s10243 + $0x20] sm:$0xf]
      %v10253 = vld [vmem:[%s10243 + $0x24] sm:$0xf]
      %v10254 = vld [vmem:[%s10243 + $0x28] sm:$0xf]
      %v10255 = vld [vmem:[%s10243 + $0x2c] sm:$0xf]
      %v10256 = vld [vmem:[%s10243 + $0x30] sm:$0xf]
      %v10257 = vld [vmem:[%s10243 + $0x34] sm:$0xf]
      %v10258 = vld [vmem:[%s10243 + $0x38] sm:$0xf]
      %v10259 = vld [vmem:[%s10243 + $0x3c] sm:$0xf]
      %v10260 = vld [vmem:[%s10243 + $0x40] sm:$0xf]
      %v10261 = vld [vmem:[%s10243 + $0x44] sm:$0xf]
      %v10262 = vld [vmem:[%s10243 + $0x48] sm:$0xf]
      %v10263 = vld [vmem:[%s10243 + $0x4c] sm:$0xf]
      %v10264 = vld [vmem:[%s10243 + $0x50] sm:$0xf]
      %v10265 = vld [vmem:[%s10243 + $0x54] sm:$0xf]
      %v10266 = vld [vmem:[%s10243 + $0x58] sm:$0xf]
      %v10267 = vld [vmem:[%s10243 + $0x5c] sm:$0xf]
      %v10268 = vld [vmem:[%s10243 + $0x60] sm:$0xf]
      %v10269 = vld [vmem:[%s10243 + $0x64] sm:$0xf]
      %v10270 = vld [vmem:[%s10243 + $0x68] sm:$0xf]
      %v10271 = vld [vmem:[%s10243 + $0x6c] sm:$0xf]
      %v10272 = vld [vmem:[%s10243 + $0x70] sm:$0xf]
      %v10273 = vld [vmem:[%s10243 + $0x74] sm:$0xf]
      %v10274 = vld [vmem:[%s10243 + $0x78] sm:$0xf]
      %v10275 = vld [vmem:[%s10243 + $0x7c] sm:$0xf]
      %v10276 = vld [vmem:[%s10243 + $0x80] sm:$0xf]
      %v10277 = vld [vmem:[%s10243 + $0x84] sm:$0xf]
      %v10278 = vld [vmem:[%s10243 + $0x88] sm:$0xf]
      %v10279 = vld [vmem:[%s10243 + $0x8c] sm:$0xf]
      %v10280 = vld [vmem:[%s10243 + $0x90] sm:$0xf]
      %v10281 = vld [vmem:[%s10243 + $0x94] sm:$0xf]
      %v10282 = vld [vmem:[%s10243 + $0x98] sm:$0xf]
      %v10283 = vld [vmem:[%s10243 + $0x9c] sm:$0xf]
      %v10284 = vld [vmem:[%s10243 + $0xa0] sm:$0xf]
      %v10285 = vld [vmem:[%s10243 + $0xa4] sm:$0xf]
      %v10286 = vld [vmem:[%s10243 + $0xa8] sm:$0xf]
      %v10287 = vld [vmem:[%s10243 + $0xac] sm:$0xf]
      %v10288 = vld [vmem:[%s10243 + $0xb0] sm:$0xf]
      %v10289 = vld [vmem:[%s10243 + $0xb4] sm:$0xf]
      %v10290 = vld [vmem:[%s10243 + $0xb8] sm:$0xf]
      %v10291 = vld [vmem:[%s10243 + $0xbc] sm:$0xf]
      %v10292 = vld [vmem:[%s10243 + $0xc0] sm:$0xf]
      %v10293 = vld [vmem:[%s10243 + $0xc4] sm:$0xf]
      %v10294 = vld [vmem:[%s10243 + $0xc8] sm:$0xf]
      %v10295 = vld [vmem:[%s10243 + $0xcc] sm:$0xf]
      %v10296 = vld [vmem:[%s10243 + $0xd0] sm:$0xf]
      %v10297 = vld [vmem:[%s10243 + $0xd4] sm:$0xf]
      %v10298 = vld [vmem:[%s10243 + $0xd8] sm:$0xf]
      %v10299 = vld [vmem:[%s10243 + $0xdc] sm:$0xf]
      %v10300 = vld [vmem:[%s10243 + $0xe0] sm:$0xf]
      %v10301 = vld [vmem:[%s10243 + $0xe4] sm:$0xf]
      %v10302 = vld [vmem:[%s10243 + $0xe8] sm:$0xf]
      %v10303 = vld [vmem:[%s10243 + $0xec] sm:$0xf]
      %v10304 = vld [vmem:[%s10243 + $0xf0] sm:$0xf]
      %v10305 = vld [vmem:[%s10243 + $0xf4] sm:$0xf]
      %v10306 = vld [vmem:[%s10243 + $0xf8] sm:$0xf]
      %v10307 = vld [vmem:[%s10243 + $0xfc] sm:$0xf]
      %s10308 = scalar_lea.vmem %s13, 1
      %v10309 = vld [vmem:[%s10308] sm:$0x1]
      %v10311 = vlaneseq
      %v10312 = vshrl.u32 %v10311, 7
      %v10313 = vsub.s32 0, %v10312
      %v10314 = vrot.slane %v10309, %v10313
      %v10380 = vunpack.c.l.b16 %v10244
      %v10381 = vunpack.c.l.b16 %v10245
      %v10382 = vunpack.c.l.b16 %v10246
      %v10383 = vunpack.c.l.b16 %v10247
      %v10384 = vunpack.c.l.b16 %v10248
      %v10385 = vunpack.c.l.b16 %v10249
      %v10386 = vunpack.c.l.b16 %v10250
      %v10387 = vunpack.c.l.b16 %v10251
      %v10388 = vunpack.c.l.b16 %v10252
      %v10389 = vunpack.c.l.b16 %v10253
      %v10390 = vunpack.c.l.b16 %v10254
      %v10391 = vunpack.c.l.b16 %v10255
      %v10392 = vunpack.c.l.b16 %v10256
      %v10393 = vunpack.c.l.b16 %v10257
      %v10394 = vunpack.c.l.b16 %v10258
      %v10395 = vunpack.c.l.b16 %v10259
      %v10396 = vunpack.c.l.b16 %v10260
      %v10397 = vunpack.c.l.b16 %v10261
      %v10398 = vunpack.c.l.b16 %v10262
      %v10399 = vunpack.c.l.b16 %v10263
      %v10400 = vunpack.c.l.b16 %v10264
      %v10401 = vunpack.c.l.b16 %v10265
      %v10402 = vunpack.c.l.b16 %v10266
      %v10403 = vunpack.c.l.b16 %v10267
      %v10404 = vunpack.c.l.b16 %v10268
      %v10405 = vunpack.c.l.b16 %v10269
      %v10406 = vunpack.c.l.b16 %v10270
      %v10407 = vunpack.c.l.b16 %v10271
      %v10408 = vunpack.c.l.b16 %v10272
      %v10409 = vunpack.c.l.b16 %v10273
      %v10410 = vunpack.c.l.b16 %v10274
      %v10411 = vunpack.c.l.b16 %v10275
      %v10412 = vunpack.c.l.b16 %v10276
      %v10413 = vunpack.c.l.b16 %v10277
      %v10414 = vunpack.c.l.b16 %v10278
      %v10415 = vunpack.c.l.b16 %v10279
      %v10416 = vunpack.c.l.b16 %v10280
      %v10417 = vunpack.c.l.b16 %v10281
      %v10418 = vunpack.c.l.b16 %v10282
      %v10419 = vunpack.c.l.b16 %v10283
      %v10420 = vunpack.c.l.b16 %v10284
      %v10421 = vunpack.c.l.b16 %v10285
      %v10422 = vunpack.c.l.b16 %v10286
      %v10423 = vunpack.c.l.b16 %v10287
      %v10424 = vunpack.c.l.b16 %v10288
      %v10425 = vunpack.c.l.b16 %v10289
      %v10426 = vunpack.c.l.b16 %v10290
      %v10427 = vunpack.c.l.b16 %v10291
      %v10428 = vunpack.c.l.b16 %v10292
      %v10429 = vunpack.c.l.b16 %v10293
      %v10430 = vunpack.c.l.b16 %v10294
      %v10431 = vunpack.c.l.b16 %v10295
      %v10432 = vunpack.c.l.b16 %v10296
      %v10433 = vunpack.c.l.b16 %v10297
      %v10434 = vunpack.c.l.b16 %v10298
      %v10435 = vunpack.c.l.b16 %v10299
      %v10436 = vunpack.c.l.b16 %v10300
      %v10437 = vunpack.c.l.b16 %v10301
      %v10438 = vunpack.c.l.b16 %v10302
      %v10439 = vunpack.c.l.b16 %v10303
      %v10440 = vunpack.c.l.b16 %v10304
      %v10441 = vunpack.c.l.b16 %v10305
      %v10442 = vunpack.c.l.b16 %v10306
      %v10443 = vunpack.c.l.b16 %v10307
      %v10444 = vpack.c.b16 %v10381, %v10380
      %v10445 = vpack.c.b16 %v10383, %v10382
      %v10446 = vpack.c.b16 %v10385, %v10384
      %v10447 = vpack.c.b16 %v10387, %v10386
      %v10448 = vpack.c.b16 %v10389, %v10388
      %v10449 = vpack.c.b16 %v10391, %v10390
      %v10450 = vpack.c.b16 %v10393, %v10392
      %v10451 = vpack.c.b16 %v10395, %v10394
      %v10452 = vpack.c.b16 %v10397, %v10396
      %v10453 = vpack.c.b16 %v10399, %v10398
      %v10454 = vpack.c.b16 %v10401, %v10400
      %v10455 = vpack.c.b16 %v10403, %v10402
      %v10456 = vpack.c.b16 %v10405, %v10404
      %v10457 = vpack.c.b16 %v10407, %v10406
      %v10458 = vpack.c.b16 %v10409, %v10408
      %v10459 = vpack.c.b16 %v10411, %v10410
      %v10460 = vpack.c.b16 %v10413, %v10412
      %v10461 = vpack.c.b16 %v10415, %v10414
      %v10462 = vpack.c.b16 %v10417, %v10416
      %v10463 = vpack.c.b16 %v10419, %v10418
      %v10464 = vpack.c.b16 %v10421, %v10420
      %v10465 = vpack.c.b16 %v10423, %v10422
      %v10466 = vpack.c.b16 %v10425, %v10424
      %v10467 = vpack.c.b16 %v10427, %v10426
      %v10468 = vpack.c.b16 %v10429, %v10428
      %v10469 = vpack.c.b16 %v10431, %v10430
      %v10470 = vpack.c.b16 %v10433, %v10432
      %v10471 = vpack.c.b16 %v10435, %v10434
      %v10472 = vpack.c.b16 %v10437, %v10436
      %v10473 = vpack.c.b16 %v10439, %v10438
      %v10474 = vpack.c.b16 %v10441, %v10440
      %v10475 = vpack.c.b16 %v10443, %v10442
      %10508 = vmatprep.subr.bf16.mxu0 0
      %10509 = vmatpush1.bf16.msra.mxu0 %v10451
      %10510 = vmatprep.subr.bf16.mxu0 0
      %10511 = vmatpush1.bf16.msra.mxu0 %v10450
      %10512 = vmatprep.subr.bf16.mxu0 0
      %10513 = vmatpush1.bf16.msra.mxu0 %v10449
      %10514 = vmatprep.subr.bf16.mxu0 0
      %10515 = vmatpush1.bf16.msra.mxu0 %v10448
      %10516 = vmatprep.subr.bf16.mxu0 0
      %10517 = vmatpush1.bf16.msra.mxu0 %v10447
      %10518 = vmatprep.subr.bf16.mxu0 0
      %10519 = vmatpush1.bf16.msra.mxu0 %v10446
      %10520 = vmatprep.subr.bf16.mxu0 0
      %10521 = vmatpush1.bf16.msra.mxu0 %v10445
      %10522 = vmatprep.subr.bf16.mxu0 0
      %10523 = vmatpush1.bf16.msra.mxu0 %v10444
      %10524 = vmatprep.subr.bf16.mxu0 0
      %10525 = vmatpush2.bf16.msra.mxu0 %v10459
      %10526 = vmatprep.subr.bf16.mxu0 0
      %10527 = vmatpush2.bf16.msra.mxu0 %v10458
      %10528 = vmatprep.subr.bf16.mxu0 0
      %10529 = vmatpush2.bf16.msra.mxu0 %v10457
      %10530 = vmatprep.subr.bf16.mxu0 0
      %10531 = vmatpush2.bf16.msra.mxu0 %v10456
      %10532 = vmatprep.subr.bf16.mxu0 0
      %10533 = vmatpush2.bf16.msra.mxu0 %v10455
      %10534 = vmatprep.subr.bf16.mxu0 0
      %10535 = vmatpush2.bf16.msra.mxu0 %v10454
      %10536 = vmatprep.subr.bf16.mxu0 0
      %10537 = vmatpush2.bf16.msra.mxu0 %v10453
      %10538 = vmatprep.subr.bf16.mxu0 0
      %10539 = vmatpush2.bf16.msra.mxu0 %v10452
      %10540 = vmatprep.mubr.bf16.mxu0 %v10212
      %10541 = vmatmul.mubr.bf16.gmra.mxu0 %v10211
      %v10542 = vpop.f32.mrf.mxu0
      %v10543 = vadd.f32 %v10314, %v10542
      %v10544 = vpop.f32.mrf.mxu0
      %v10545 = vpop.f32.mrf.mxu0
      %v10546 = vadd.f32 %v10314, %v10545
      %v10547 = vpop.f32.mrf.mxu0
      %10548 = vmatprep.mubr.bf16.mxu0 %v10216
      %10549 = vmatmul.mubr.bf16.gmra.mxu0 %v10215
      %v10550 = vpop.f32.mrf.mxu0
      %v10551 = vadd.f32 %v10314, %v10550
      %v10552 = vpop.f32.mrf.mxu0
      %v10553 = vpop.f32.mrf.mxu0
      %v10554 = vadd.f32 %v10314, %v10553
      %v10555 = vpop.f32.mrf.mxu0
      %10556 = vmatprep.mubr.bf16.mxu0 %v10220
      %10557 = vmatmul.mubr.bf16.gmra.mxu0 %v10219
      %v10558 = vpop.f32.mrf.mxu0
      %v10559 = vadd.f32 %v10314, %v10558
      %v10560 = vpop.f32.mrf.mxu0
      %v10561 = vpop.f32.mrf.mxu0
      %v10562 = vadd.f32 %v10314, %v10561
      %v10563 = vpop.f32.mrf.mxu0
      %10564 = vmatprep.mubr.bf16.mxu0 %v10224
      %10565 = vmatmul.mubr.bf16.gmra.mxu0 %v10223
      %v10566 = vpop.f32.mrf.mxu0
      %v10567 = vadd.f32 %v10314, %v10566
      %v10568 = vpop.f32.mrf.mxu0
      %v10569 = vpop.f32.mrf.mxu0
      %v10570 = vadd.f32 %v10314, %v10569
      %v10571 = vpop.f32.mrf.mxu0
      %10572 = vmatprep.mubr.bf16.mxu0 %v10228
      %10573 = vmatmul.mubr.bf16.gmra.mxu0 %v10227
      %v10574 = vpop.f32.mrf.mxu0
      %v10575 = vadd.f32 %v10314, %v10574
      %v10576 = vpop.f32.mrf.mxu0
      %v10577 = vpop.f32.mrf.mxu0
      %v10578 = vadd.f32 %v10314, %v10577
      %v10579 = vpop.f32.mrf.mxu0
      %10580 = vmatprep.mubr.bf16.mxu0 %v10232
      %10581 = vmatmul.mubr.bf16.gmra.mxu0 %v10231
      %v10582 = vpop.f32.mrf.mxu0
      %v10583 = vadd.f32 %v10314, %v10582
      %v10584 = vpop.f32.mrf.mxu0
      %v10585 = vpop.f32.mrf.mxu0
      %v10586 = vadd.f32 %v10314, %v10585
      %v10587 = vpop.f32.mrf.mxu0
      %10588 = vmatprep.mubr.bf16.mxu0 %v10236
      %10589 = vmatmul.mubr.bf16.gmra.mxu0 %v10235
      %v10590 = vpop.f32.mrf.mxu0
      %v10591 = vadd.f32 %v10314, %v10590
      %v10592 = vpop.f32.mrf.mxu0
      %v10593 = vpop.f32.mrf.mxu0
      %v10594 = vadd.f32 %v10314, %v10593
      %v10595 = vpop.f32.mrf.mxu0
      %10596 = vmatprep.mubr.bf16.mxu0 %v10240
      %10597 = vmatmul.mubr.bf16.gmra.mxu0 %v10239
      %v10598 = vpop.f32.mrf.mxu0
      %v10599 = vadd.f32 %v10314, %v10598
      %v10600 = vpop.f32.mrf.mxu0
      %v10601 = vpop.f32.mrf.mxu0
      %v10602 = vadd.f32 %v10314, %v10601
      %v10603 = vpop.f32.mrf.mxu0
      %10604 = vdwg.mxu0
      %10605 = vmatprep.subr.bf16.mxu0 0
      %10606 = vmatpush1.bf16.msra.mxu0 %v10467
      %10607 = vmatprep.subr.bf16.mxu0 0
      %10608 = vmatpush1.bf16.msra.mxu0 %v10466
      %10609 = vmatprep.subr.bf16.mxu0 0
      %10610 = vmatpush1.bf16.msra.mxu0 %v10465
      %10611 = vmatprep.subr.bf16.mxu0 0
      %10612 = vmatpush1.bf16.msra.mxu0 %v10464
      %10613 = vmatprep.subr.bf16.mxu0 0
      %10614 = vmatpush1.bf16.msra.mxu0 %v10463
      %10615 = vmatprep.subr.bf16.mxu0 0
      %10616 = vmatpush1.bf16.msra.mxu0 %v10462
      %10617 = vmatprep.subr.bf16.mxu0 0
      %10618 = vmatpush1.bf16.msra.mxu0 %v10461
      %10619 = vmatprep.subr.bf16.mxu0 0
      %10620 = vmatpush1.bf16.msra.mxu0 %v10460
      %10621 = vmatprep.subr.bf16.mxu0 0
      %10622 = vmatpush2.bf16.msra.mxu0 %v10475
      %10623 = vmatprep.subr.bf16.mxu0 0
      %10624 = vmatpush2.bf16.msra.mxu0 %v10474
      %10625 = vmatprep.subr.bf16.mxu0 0
      %10626 = vmatpush2.bf16.msra.mxu0 %v10473
      %10627 = vmatprep.subr.bf16.mxu0 0
      %10628 = vmatpush2.bf16.msra.mxu0 %v10472
      %10629 = vmatprep.subr.bf16.mxu0 0
      %10630 = vmatpush2.bf16.msra.mxu0 %v10471
      %10631 = vmatprep.subr.bf16.mxu0 0
      %10632 = vmatpush2.bf16.msra.mxu0 %v10470
      %10633 = vmatprep.subr.bf16.mxu0 0
      %10634 = vmatpush2.bf16.msra.mxu0 %v10469
      %10635 = vmatprep.subr.bf16.mxu0 0
      %10636 = vmatpush2.bf16.msra.mxu0 %v10468
      %10637 = vmatprep.mubr.bf16.mxu0 %v10214
      %10638 = vmatmul.mubr.bf16.gmra.mxu0 %v10213
      %v10639 = vpop.f32.mrf.mxu0
      %v10640 = vadd.f32 %v10543, %v10639
      %v10641 = vpop.f32.mrf.mxu0
      %v10642 = vpop.f32.mrf.mxu0
      %v10643 = vadd.f32 %v10546, %v10642
      %v10644 = vpop.f32.mrf.mxu0
      %10645 = vmatprep.mubr.bf16.mxu0 %v10218
      %10646 = vmatmul.mubr.bf16.gmra.mxu0 %v10217
      %v10647 = vpop.f32.mrf.mxu0
      %v10648 = vadd.f32 %v10551, %v10647
      %v10649 = vpop.f32.mrf.mxu0
      %v10650 = vpop.f32.mrf.mxu0
      %v10651 = vadd.f32 %v10554, %v10650
      %v10652 = vpop.f32.mrf.mxu0
      %10653 = vmatprep.mubr.bf16.mxu0 %v10222
      %10654 = vmatmul.mubr.bf16.gmra.mxu0 %v10221
      %v10655 = vpop.f32.mrf.mxu0
      %v10656 = vadd.f32 %v10559, %v10655
      %v10657 = vpop.f32.mrf.mxu0
      %v10658 = vpop.f32.mrf.mxu0
      %v10659 = vadd.f32 %v10562, %v10658
      %v10660 = vpop.f32.mrf.mxu0
      %10661 = vmatprep.mubr.bf16.mxu0 %v10226
      %10662 = vmatmul.mubr.bf16.gmra.mxu0 %v10225
      %v10663 = vpop.f32.mrf.mxu0
      %v10664 = vadd.f32 %v10567, %v10663
      %v10665 = vpop.f32.mrf.mxu0
      %v10666 = vpop.f32.mrf.mxu0
      %v10667 = vadd.f32 %v10570, %v10666
      %v10668 = vpop.f32.mrf.mxu0
      %10669 = vmatprep.mubr.bf16.mxu0 %v10230
      %10670 = vmatmul.mubr.bf16.gmra.mxu0 %v10229
      %v10671 = vpop.f32.mrf.mxu0
      %v10672 = vadd.f32 %v10575, %v10671
      %v10673 = vpop.f32.mrf.mxu0
      %v10674 = vpop.f32.mrf.mxu0
      %v10675 = vadd.f32 %v10578, %v10674
      %v10676 = vpop.f32.mrf.mxu0
      %10677 = vmatprep.mubr.bf16.mxu0 %v10234
      %10678 = vmatmul.mubr.bf16.gmra.mxu0 %v10233
      %v10679 = vpop.f32.mrf.mxu0
      %v10680 = vadd.f32 %v10583, %v10679
      %v10681 = vpop.f32.mrf.mxu0
      %v10682 = vpop.f32.mrf.mxu0
      %v10683 = vadd.f32 %v10586, %v10682
      %v10684 = vpop.f32.mrf.mxu0
      %10685 = vmatprep.mubr.bf16.mxu0 %v10238
      %10686 = vmatmul.mubr.bf16.gmra.mxu0 %v10237
      %v10687 = vpop.f32.mrf.mxu0
      %v10688 = vadd.f32 %v10591, %v10687
      %v10689 = vpop.f32.mrf.mxu0
      %v10690 = vpop.f32.mrf.mxu0
      %v10691 = vadd.f32 %v10594, %v10690
      %v10692 = vpop.f32.mrf.mxu0
      %10693 = vmatprep.mubr.bf16.mxu0 %v10242
      %10694 = vmatmul.mubr.bf16.gmra.mxu0 %v10241
      %v10695 = vpop.f32.mrf.mxu0
      %v10696 = vadd.f32 %v10599, %v10695
      %v10697 = vpop.f32.mrf.mxu0
      %v10698 = vpop.f32.mrf.mxu0
      %v10699 = vadd.f32 %v10602, %v10698
      %v10700 = vpop.f32.mrf.mxu0
      %10701 = vdwg.mxu0
      %v10702 = vadd.f32 %v9169, %v10640
      %v10703 = vadd.f32 %v9170, %v10643
      %v10704 = vadd.f32 %v9171, %v10648
      %v10705 = vadd.f32 %v9172, %v10651
      %v10706 = vadd.f32 %v9173, %v10656
      %v10707 = vadd.f32 %v9174, %v10659
      %v10708 = vadd.f32 %v9175, %v10664
      %v10709 = vadd.f32 %v9176, %v10667
      %v10710 = vadd.f32 %v9177, %v10672
      %v10711 = vadd.f32 %v9178, %v10675
      %v10712 = vadd.f32 %v9179, %v10680
      %v10713 = vadd.f32 %v9180, %v10683
      %v10714 = vadd.f32 %v9181, %v10688
      %v10715 = vadd.f32 %v9182, %v10691
      %v10716 = vadd.f32 %v9183, %v10696
      %v10717 = vadd.f32 %v9184, %v10699
      %s10718 = scalar_lea.vmem %s14, 1
      %v10719 = vld [vmem:[%s10718] sm:$0x1]
      %s10720 = scalar_lea.vmem %s15, 1
      %v10721 = vld [vmem:[%s10720] sm:$0x1]
      %10722 = vadd.xlane.f32.xlu0 %v10702
      %v10723 = vpop.xlane.xlu0 %10722
      %10724 = vadd.xlane.f32.xlu0 %v10703
      %v10725 = vpop.xlane.xlu0 %10724
      %10726 = vadd.xlane.f32.xlu0 %v10704
      %v10727 = vpop.xlane.xlu0 %10726
      %10728 = vadd.xlane.f32.xlu0 %v10705
      %v10729 = vpop.xlane.xlu0 %10728
      %10730 = vadd.xlane.f32.xlu0 %v10706
      %v10731 = vpop.xlane.xlu0 %10730
      %10732 = vadd.xlane.f32.xlu0 %v10707
      %v10733 = vpop.xlane.xlu0 %10732
      %10734 = vadd.xlane.f32.xlu0 %v10708
      %v10735 = vpop.xlane.xlu0 %10734
      %10736 = vadd.xlane.f32.xlu0 %v10709
      %v10737 = vpop.xlane.xlu0 %10736
      %10738 = vadd.xlane.f32.xlu0 %v10710
      %v10739 = vpop.xlane.xlu0 %10738
      %10740 = vadd.xlane.f32.xlu0 %v10711
      %v10741 = vpop.xlane.xlu0 %10740
      %10742 = vadd.xlane.f32.xlu0 %v10712
      %v10743 = vpop.xlane.xlu0 %10742
      %10744 = vadd.xlane.f32.xlu0 %v10713
      %v10745 = vpop.xlane.xlu0 %10744
      %10746 = vadd.xlane.f32.xlu0 %v10714
      %v10747 = vpop.xlane.xlu0 %10746
      %10748 = vadd.xlane.f32.xlu0 %v10715
      %v10749 = vpop.xlane.xlu0 %10748
      %10750 = vadd.xlane.f32.xlu0 %v10716
      %v10751 = vpop.xlane.xlu0 %10750
      %10752 = vadd.xlane.f32.xlu0 %v10717
      %v10753 = vpop.xlane.xlu0 %10752
      %v10754 = vmul.f32 %v10723, %v587
      %v10755 = vmul.f32 %v10725, %v587
      %v10756 = vmul.f32 %v10727, %v587
      %v10757 = vmul.f32 %v10729, %v587
      %v10758 = vmul.f32 %v10731, %v587
      %v10759 = vmul.f32 %v10733, %v587
      %v10760 = vmul.f32 %v10735, %v587
      %v10761 = vmul.f32 %v10737, %v587
      %v10762 = vmul.f32 %v10739, %v587
      %v10763 = vmul.f32 %v10741, %v587
      %v10764 = vmul.f32 %v10743, %v587
      %v10765 = vmul.f32 %v10745, %v587
      %v10766 = vmul.f32 %v10747, %v587
      %v10767 = vmul.f32 %v10749, %v587
      %v10768 = vmul.f32 %v10751, %v587
      %v10769 = vmul.f32 %v10753, %v587
      %v10770 = vsub.f32 %v10702, %v10754
      %v10771 = vsub.f32 %v10703, %v10755
      %v10772 = vsub.f32 %v10704, %v10756
      %v10773 = vsub.f32 %v10705, %v10757
      %v10774 = vsub.f32 %v10706, %v10758
      %v10775 = vsub.f32 %v10707, %v10759
      %v10776 = vsub.f32 %v10708, %v10760
      %v10777 = vsub.f32 %v10709, %v10761
      %v10778 = vsub.f32 %v10710, %v10762
      %v10779 = vsub.f32 %v10711, %v10763
      %v10780 = vsub.f32 %v10712, %v10764
      %v10781 = vsub.f32 %v10713, %v10765
      %v10782 = vsub.f32 %v10714, %v10766
      %v10783 = vsub.f32 %v10715, %v10767
      %v10784 = vsub.f32 %v10716, %v10768
      %v10785 = vsub.f32 %v10717, %v10769
      %v10786 = vmul.f32 %v10770, %v10770
      %v10787 = vmul.f32 %v10771, %v10771
      %v10788 = vmul.f32 %v10772, %v10772
      %v10789 = vmul.f32 %v10773, %v10773
      %v10790 = vmul.f32 %v10774, %v10774
      %v10791 = vmul.f32 %v10775, %v10775
      %v10792 = vmul.f32 %v10776, %v10776
      %v10793 = vmul.f32 %v10777, %v10777
      %v10794 = vmul.f32 %v10778, %v10778
      %v10795 = vmul.f32 %v10779, %v10779
      %v10796 = vmul.f32 %v10780, %v10780
      %v10797 = vmul.f32 %v10781, %v10781
      %v10798 = vmul.f32 %v10782, %v10782
      %v10799 = vmul.f32 %v10783, %v10783
      %v10800 = vmul.f32 %v10784, %v10784
      %v10801 = vmul.f32 %v10785, %v10785
      %10802 = vadd.xlane.f32.xlu0 %v10786
      %v10803 = vpop.xlane.xlu0 %10802
      %10804 = vadd.xlane.f32.xlu0 %v10787
      %v10805 = vpop.xlane.xlu0 %10804
      %10806 = vadd.xlane.f32.xlu0 %v10788
      %v10807 = vpop.xlane.xlu0 %10806
      %10808 = vadd.xlane.f32.xlu0 %v10789
      %v10809 = vpop.xlane.xlu0 %10808
      %10810 = vadd.xlane.f32.xlu0 %v10790
      %v10811 = vpop.xlane.xlu0 %10810
      %10812 = vadd.xlane.f32.xlu0 %v10791
      %v10813 = vpop.xlane.xlu0 %10812
      %10814 = vadd.xlane.f32.xlu0 %v10792
      %v10815 = vpop.xlane.xlu0 %10814
      %10816 = vadd.xlane.f32.xlu0 %v10793
      %v10817 = vpop.xlane.xlu0 %10816
      %10818 = vadd.xlane.f32.xlu0 %v10794
      %v10819 = vpop.xlane.xlu0 %10818
      %10820 = vadd.xlane.f32.xlu0 %v10795
      %v10821 = vpop.xlane.xlu0 %10820
      %10822 = vadd.xlane.f32.xlu0 %v10796
      %v10823 = vpop.xlane.xlu0 %10822
      %10824 = vadd.xlane.f32.xlu0 %v10797
      %v10825 = vpop.xlane.xlu0 %10824
      %10826 = vadd.xlane.f32.xlu0 %v10798
      %v10827 = vpop.xlane.xlu0 %10826
      %10828 = vadd.xlane.f32.xlu0 %v10799
      %v10829 = vpop.xlane.xlu0 %10828
      %10830 = vadd.xlane.f32.xlu0 %v10800
      %v10831 = vpop.xlane.xlu0 %10830
      %10832 = vadd.xlane.f32.xlu0 %v10801
      %v10833 = vpop.xlane.xlu0 %10832
      %v10834 = vmul.f32 %v10803, %v587
      %v10835 = vmul.f32 %v10805, %v587
      %v10836 = vmul.f32 %v10807, %v587
      %v10837 = vmul.f32 %v10809, %v587
      %v10838 = vmul.f32 %v10811, %v587
      %v10839 = vmul.f32 %v10813, %v587
      %v10840 = vmul.f32 %v10815, %v587
      %v10841 = vmul.f32 %v10817, %v587
      %v10842 = vmul.f32 %v10819, %v587
      %v10843 = vmul.f32 %v10821, %v587
      %v10844 = vmul.f32 %v10823, %v587
      %v10845 = vmul.f32 %v10825, %v587
      %v10846 = vmul.f32 %v10827, %v587
      %v10847 = vmul.f32 %v10829, %v587
      %v10848 = vmul.f32 %v10831, %v587
      %v10849 = vmul.f32 %v10833, %v587
      %v10850 = vadd.f32 %v10834, 1e-12
      %v10851 = vadd.f32 %v10835, 1e-12
      %v10852 = vadd.f32 %v10836, 1e-12
      %v10853 = vadd.f32 %v10837, 1e-12
      %v10854 = vadd.f32 %v10838, 1e-12
      %v10855 = vadd.f32 %v10839, 1e-12
      %v10856 = vadd.f32 %v10840, 1e-12
      %v10857 = vadd.f32 %v10841, 1e-12
      %v10858 = vadd.f32 %v10842, 1e-12
      %v10859 = vadd.f32 %v10843, 1e-12
      %v10860 = vadd.f32 %v10844, 1e-12
      %v10861 = vadd.f32 %v10845, 1e-12
      %v10862 = vadd.f32 %v10846, 1e-12
      %v10863 = vadd.f32 %v10847, 1e-12
      %v10864 = vadd.f32 %v10848, 1e-12
      %v10865 = vadd.f32 %v10849, 1e-12
      %v10866 = vrsqrt.pop %v10850
      %v10867 = vrsqrt.pop %v10851
      %v10868 = vrsqrt.pop %v10852
      %v10869 = vrsqrt.pop %v10853
      %v10870 = vrsqrt.pop %v10854
      %v10871 = vrsqrt.pop %v10855
      %v10872 = vrsqrt.pop %v10856
      %v10873 = vrsqrt.pop %v10857
      %v10874 = vrsqrt.pop %v10858
      %v10875 = vrsqrt.pop %v10859
      %v10876 = vrsqrt.pop %v10860
      %v10877 = vrsqrt.pop %v10861
      %v10878 = vrsqrt.pop %v10862
      %v10879 = vrsqrt.pop %v10863
      %v10880 = vrsqrt.pop %v10864
      %v10881 = vrsqrt.pop %v10865
      %v10882 = vmul.f32 %v10770, %v10866
      %v10883 = vmul.f32 %v10771, %v10867
      %v10884 = vmul.f32 %v10772, %v10868
      %v10885 = vmul.f32 %v10773, %v10869
      %v10886 = vmul.f32 %v10774, %v10870
      %v10887 = vmul.f32 %v10775, %v10871
      %v10888 = vmul.f32 %v10776, %v10872
      %v10889 = vmul.f32 %v10777, %v10873
      %v10890 = vmul.f32 %v10778, %v10874
      %v10891 = vmul.f32 %v10779, %v10875
      %v10892 = vmul.f32 %v10780, %v10876
      %v10893 = vmul.f32 %v10781, %v10877
      %v10894 = vmul.f32 %v10782, %v10878
      %v10895 = vmul.f32 %v10783, %v10879
      %v10896 = vmul.f32 %v10784, %v10880
      %v10897 = vmul.f32 %v10785, %v10881
      %v10899 = vlaneseq
      %v10900 = vshrl.u32 %v10899, 7
      %v10901 = vsub.s32 0, %v10900
      %v10902 = vrot.slane %v10719, %v10901
      %v10904 = vmul.f32 %v10882, %v10902
      %v10905 = vmul.f32 %v10883, %v10902
      %v10906 = vmul.f32 %v10884, %v10902
      %v10907 = vmul.f32 %v10885, %v10902
      %v10908 = vmul.f32 %v10886, %v10902
      %v10909 = vmul.f32 %v10887, %v10902
      %v10910 = vmul.f32 %v10888, %v10902
      %v10911 = vmul.f32 %v10889, %v10902
      %v10912 = vmul.f32 %v10890, %v10902
      %v10913 = vmul.f32 %v10891, %v10902
      %v10914 = vmul.f32 %v10892, %v10902
      %v10915 = vmul.f32 %v10893, %v10902
      %v10916 = vmul.f32 %v10894, %v10902
      %v10917 = vmul.f32 %v10895, %v10902
      %v10918 = vmul.f32 %v10896, %v10902
      %v10919 = vmul.f32 %v10897, %v10902
      %v10921 = vlaneseq
      %v10922 = vshrl.u32 %v10921, 7
      %v10923 = vsub.s32 0, %v10922
      %v10924 = vrot.slane %v10721, %v10923
      %v10926 = vadd.f32 %v10904, %v10924
      %v10927 = vadd.f32 %v10905, %v10924
      %v10928 = vadd.f32 %v10906, %v10924
      %v10929 = vadd.f32 %v10907, %v10924
      %v10930 = vadd.f32 %v10908, %v10924
      %v10931 = vadd.f32 %v10909, %v10924
      %v10932 = vadd.f32 %v10910, %v10924
      %v10933 = vadd.f32 %v10911, %v10924
      %v10934 = vadd.f32 %v10912, %v10924
      %v10935 = vadd.f32 %v10913, %v10924
      %v10936 = vadd.f32 %v10914, %v10924
      %v10937 = vadd.f32 %v10915, %v10924
      %v10938 = vadd.f32 %v10916, %v10924
      %v10939 = vadd.f32 %v10917, %v10924
      %v10940 = vadd.f32 %v10918, %v10924
      %v10941 = vadd.f32 %v10919, %v10924
      %10942 = vst [vmem:[%s535] sm:$0xff] %v10926
      %10943 = vst [vmem:[%s535 + $0x8] sm:$0xff] %v10927
      %10944 = vst [vmem:[%s535 + $0x10] sm:$0xff] %v10928
      %10945 = vst [vmem:[%s535 + $0x18] sm:$0xff] %v10929
      %10946 = vst [vmem:[%s535 + $0x20] sm:$0xff] %v10930
      %10947 = vst [vmem:[%s535 + $0x28] sm:$0xff] %v10931
      %10948 = vst [vmem:[%s535 + $0x30] sm:$0xff] %v10932
      %10949 = vst [vmem:[%s535 + $0x38] sm:$0xff] %v10933
      %10950 = vst [vmem:[%s535 + $0x40] sm:$0xff] %v10934
      %10951 = vst [vmem:[%s535 + $0x48] sm:$0xff] %v10935
      %10952 = vst [vmem:[%s535 + $0x50] sm:$0xff] %v10936
      %10953 = vst [vmem:[%s535 + $0x58] sm:$0xff] %v10937
      %10954 = vst [vmem:[%s535 + $0x60] sm:$0xff] %v10938
      %10955 = vst [vmem:[%s535 + $0x68] sm:$0xff] %v10939
      %10956 = vst [vmem:[%s535 + $0x70] sm:$0xff] %v10940
      %10957 = vst [vmem:[%s535 + $0x78] sm:$0xff] %v10941
      %p10958 = scmp.lt.s32.totalorder %s27, 1
      %s10959 = scalar_select %p10958, %s27, 1
      %s10960 = smul.addr %s10959, 16
      %s10961 = smul.addr %s10960, 8
      %s10962 = scalar_lea.vmem %s16, %s10961
      // Predicated region
      $region85: #{forward.1} parent=83 // pred_check
        %p10963 = pneg %p391
      $region86: #{forward.1} parent=83 // pred_check_branch
        %10965 = sbr.rel (%p10963) target = $region88
      $region87: #{forward.1} parent=83 // pred_region
        _
      $region88: #{forward.1} parent=83 // pred_fallthru
        _
    $region84: #{forward.1} parent=5 // pred_fallthru
      _
    %p10966 = scmp.le.s32.totalorder 2, %s22
    // Predicated region
    $region89: #{forward.1} parent=5 // pred_check
      %p10967 = pneg %p10966
    $region90: #{forward.1} parent=5 // pred_check_branch
      %10969 = sbr.rel (%p10967) target = $region92
    $region91: #{forward.1} parent=5 // pred_region
      %s10970 = ssub.s32 %s22, 2
      // Predicated region
      $region93: #{forward.1} parent=91 // pred_check
        %p10971 = pneg %p397
      $region94: #{forward.1} parent=91 // pred_check_branch
        %10973 = sbr.rel (%p10971) target = $region96
      $region95: #{forward.1} parent=91 // pred_region
        %p10974 = scmp.lt.s32.totalorder %s28, 1
        %s10975 = scalar_select %p10974, %s28, 1
        %s10976 = smul.addr %s10975, 16
        %s10977 = smul.addr %s10976, 8
        %s10978 = scalar_lea.vmem %s16, %s10977
      $region96: #{forward.1} parent=91 // pred_fallthru
        _
    $region92: #{forward.1} parent=5 // pred_fallthru
      _
  $region6: #{forward.1} parent=0 // loop_footer
    %s26 = sadd.s32 1, %s22
  $region7: #{forward.1} parent=0 // loop_footer_branch
    %21 = sbr.rel target = $region3
  $region8: #{forward.1} parent=0 // loop_exit
    _

</llo_original>
